<compile_context>
chip_gen: v6e
topology: v6e:2x2x1
jax: 0.10.0
libtpu: 0.0.40
codegen_flags: <defaults>
</compile_context>

<pallas_src>
import functools

import jax
import jax.numpy as jnp
from jax.experimental import pallas as pl
from jax.experimental.pallas import tpu as pltpu

BN_EPS = 1e-5
LANE = 128


def _round_up(x, m):
    return (x + m - 1) // m * m


def _pick_tile(m, cap):
    """Largest multiple-of-8 divisor of m that is <= cap (None if there is none)."""
    best = None
    for t in range(8, min(cap, m) + 1, 8):
        if m % t == 0:
            best = t
    return best


# ----------------------------------------------------------------------------- kernels
def _conv1x1_stats_kernel(x_ref, w_ref, y_ref, s_ref, ss_ref):
    """1x1 conv (matmul) over an M tile; bf16 activations + per-tile BN partials."""
    acc = jnp.dot(x_ref[...], w_ref[...], preferred_element_type=jnp.float32)
    y_ref[...] = acc.astype(y_ref.dtype)
    s_ref[...] = jnp.sum(acc, axis=0, keepdims=True).reshape(1, 1, -1)
    ss_ref[...] = jnp.sum(acc * acc, axis=0, keepdims=True).reshape(1, 1, -1)


def _bnrelu_conv1x1_stats_kernel(y_ref, scale_ref, shift_ref, w_ref,
                                 o_ref, s_ref, ss_ref, *, needs_mask, tm, m_true):
    """Fused previous-layer BN affine + ReLU + 1x1 conv + per-tile BN partials."""
    act = jnp.maximum(
        y_ref[...].astype(jnp.float32) * scale_ref[...] + shift_ref[...], 0.0)
    if needs_mask:  # only when the tile does not divide M and rows were padded
        row = pl.program_id(0) * tm + jax.lax.broadcasted_iota(jnp.int32, act.shape, 0)
        act = jnp.where(row < m_true, act, 0.0)
    acc = jnp.dot(act.astype(w_ref.dtype), w_ref[...],
                  preferred_element_type=jnp.float32)
    o_ref[...] = acc.astype(o_ref.dtype)
    s_ref[...] = jnp.sum(acc, axis=0, keepdims=True).reshape(1, 1, -1)
    ss_ref[...] = jnp.sum(acc * acc, axis=0, keepdims=True).reshape(1, 1, -1)


def _bnrelu_conv3x3_stats_kernel(y_ref, scale_ref, shift_ref, w_ref,
                                 o_ref, s_ref, ss_ref, pad_ref, *, h, w, c):
    """Fused BN1 affine + ReLU + 3x3 conv (pad=1, stride=1) + per-image BN partials.

    The spatial halo is built in a VMEM scratch (no HBM jnp.pad round trip).
    The interior is written at column offset 2 so the store stays aligned with
    the packed bf16 sublanes; tap (di, dj) then reads [di:di+h, dj+1:dj+1+w].
    """
    act = jnp.maximum(
        y_ref[0].astype(jnp.float32) * scale_ref[...] + shift_ref[...], 0.0)
    pad_ref[...] = jnp.zeros_like(pad_ref)
    pad_ref[1:h + 1, 2:w + 2, :] = act.astype(pad_ref.dtype).reshape(h, w, c)
    # TODO(synk): restructure the 9 taps around pltpu.roll so the dj shift stays
    #             sublane-aligned instead of materializing shifted VMEM patches.
    acc = jnp.zeros((h * w, c), jnp.float32)
    for di in range(3):
        for dj in range(3):
            patch = pad_ref[di:di + h, dj + 1:dj + 1 + w, :].reshape(h * w, c)
            acc += jnp.dot(patch, w_ref[di, dj], preferred_element_type=jnp.float32)
    o_ref[0] = acc.astype(o_ref.dtype)
    s_ref[...] = jnp.sum(acc, axis=0, keepdims=True).reshape(1, 1, -1)
    ss_ref[...] = jnp.sum(acc * acc, axis=0, keepdims=True).reshape(1, 1, -1)


def _bn_res_relu_kernel(y_ref, scale_ref, shift_ref, res_ref, o_ref):
    """BN3 affine + identity residual + ReLU (pure elementwise, f32 math)."""
    val = (y_ref[...].astype(jnp.float32) * scale_ref[...] + shift_ref[...]
           + res_ref[...].astype(jnp.float32))
    o_ref[...] = jnp.maximum(val, 0.0).astype(o_ref.dtype)


# ----------------------------------------------------------------------------- helpers
def _bn_scale_shift(s_part, ss_part, m_true, gamma, beta, cp):
    """Fold train-mode BN (batch mean, biased var) into per-channel scale/shift.

    TODO(synk): E[x^2]-E[x]^2 in f32 can cancel for very large M with large means;
                switch to a shifted / Welford-style accumulation if that matters.
    """
    total = jnp.sum(s_part, axis=(0, 1))
    total_sq = jnp.sum(ss_part, axis=(0, 1))
    mean = total / m_true
    var = jnp.maximum(total_sq / m_true - mean * mean, 0.0)
    gp = jnp.pad(gamma.astype(jnp.float32), (0, cp - gamma.shape[0]))
    bp = jnp.pad(beta.astype(jnp.float32), (0, cp - beta.shape[0]))
    scale = gp * jax.lax.rsqrt(var + BN_EPS)
    shift = bp - mean * scale
    return scale.reshape(1, cp), shift.reshape(1, cp)


# ----------------------------------------------------------------------------- wrapper
def bottleneck_forward(x, w1, w2, w3,
                       gamma1, beta1, gamma2, beta2, gamma3, beta3):
    """Bottleneck forward (stride=1, dilation=1, downsample=None). NCHW in / NCHW out."""
    n, c1, h, w = x.shape
    c2 = w1.shape[0]
    c3 = w3.shape[0]
    assert w1.shape == (c2, c1, 1, 1) and w2.shape == (c2, c2, 3, 3)
    assert w3.shape == (c3, c2, 1, 1)
    assert c3 == c1, "identity residual requires in_ch == 4 * out_ch"

    c1p, c2p, c3p = (_round_up(c, LANE) for c in (c1, c2, c3))
    m = n * h * w
    f32, bf16 = jnp.float32, jnp.bfloat16

    # M tiling: prefer a tile that divides M exactly (no padded rows, no masks).
    tm = _pick_tile(m, 512)            # matmul stages: keep VMEM modest (v7x/v5e)
    if tm is None:
        tm = min(512, _round_up(m, 8))
        mp = _round_up(m, tm)
        needs_mask = True
    else:
        mp = m
        needs_mask = False
    gm = mp // tm
    tm_ew = _pick_tile(mp, 1024)       # final elementwise pass: larger tiles
    gm_ew = mp // tm_ew

    # Single bf16 copy of the input: stage-1 matmul operand AND residual operand.
    x_flat = jnp.transpose(x, (0, 2, 3, 1)).reshape(m, c1).astype(bf16)
    x_flat = jnp.pad(x_flat, ((0, mp - m), (0, c1p - c1)))

    w1_mat = jnp.pad(w1[:, :, 0, 0].T, ((0, c1p - c1), (0, c2p - c2))).astype(bf16)
    w2_mat = jnp.pad(jnp.transpose(w2, (2, 3, 1, 0)),
                     ((0, 0), (0, 0), (0, c2p - c2), (0, c2p - c2))).astype(bf16)
    w3_mat = jnp.pad(w3[:, :, 0, 0].T, ((0, c2p - c2), (0, c3p - c3))).astype(bf16)

    par = pltpu.CompilerParams(dimension_semantics=("parallel",))
    row_spec = lambda t, c: pl.BlockSpec((t, c), lambda i: (i, 0))
    bcast_spec = lambda c: pl.BlockSpec((1, c), lambda i: (0, 0))
    stat_spec = lambda c: pl.BlockSpec((1, 1, c), lambda i: (i, 0, 0))
    stat_shape = lambda g, c: jax.ShapeDtypeStruct((g, 1, c), f32)

    # ---- stage 1: 1x1 conv; bf16 activations + per-tile BN1 partial stats ----
    y1_pre, s1, ss1 = pl.pallas_call(
        _conv1x1_stats_kernel,
        grid=(gm,),
        in_specs=[row_spec(tm, c1p), pl.BlockSpec((c1p, c2p), lambda i: (0, 0))],
        out_specs=[row_spec(tm, c2p), stat_spec(c2p), stat_spec(c2p)],
        out_shape=[jax.ShapeDtypeStruct((mp, c2p), bf16),
                   stat_shape(gm, c2p), stat_shape(gm, c2p)],
        compiler_params=par,
    )(x_flat, w1_mat)
    scale1, shift1 = _bn_scale_shift(s1, ss1, m, gamma1, beta1, c2p)

    # ---- stage 2: fused BN1 affine + ReLU + 3x3 conv (pad=1), per image ----
    # TODO(synk): tile the spatial axis (grid=(n, H//th)) for large feature maps so
    #             the per-step VMEM block stays bounded and pipelining improves.
    y1_img = (y1_pre if mp == m else y1_pre[:m]).reshape(n, h * w, c2p)
    y2_pre, s2, ss2 = pl.pallas_call(
        functools.partial(_bnrelu_conv3x3_stats_kernel, h=h, w=w, c=c2p),
        grid=(n,),
        in_specs=[pl.BlockSpec((1, h * w, c2p), lambda b: (b, 0, 0)),
                  bcast_spec(c2p), bcast_spec(c2p),
                  pl.BlockSpec((3, 3, c2p, c2p), lambda b: (0, 0, 0, 0))],
        out_specs=[pl.BlockSpec((1, h * w, c2p), lambda b: (b, 0, 0)),
                   stat_spec(c2p), stat_spec(c2p)],
        out_shape=[jax.ShapeDtypeStruct((n, h * w, c2p), bf16),
                   stat_shape(n, c2p), stat_shape(n, c2p)],
        scratch_shapes=[pltpu.VMEM((h + 2, w + 4, c2p), bf16)],
        compiler_params=par,
    )(y1_img, scale1, shift1, w2_mat)
    scale2, shift2 = _bn_scale_shift(s2, ss2, m, gamma2, beta2, c2p)

    # ---- stage 3: fused BN2 affine + ReLU + 1x1 conv; per-tile BN3 partials ----
    y2_flat = y2_pre.reshape(m, c2p)
    if mp != m:
        y2_flat = jnp.pad(y2_flat, ((0, mp - m), (0, 0)))
    y3_pre, s3, ss3 = pl.pallas_call(
        functools.partial(_bnrelu_conv1x1_stats_kernel,
                          needs_mask=needs_mask, tm=tm, m_true=m),
        grid=(gm,),
        in_specs=[row_spec(tm, c2p), bcast_spec(c2p), bcast_spec(c2p),
                  pl.BlockSpec((c2p, c3p), lambda i: (0, 0))],
        out_specs=[row_spec(tm, c3p), stat_spec(c3p), stat_spec(c3p)],
        out_shape=[jax.ShapeDtypeStruct((mp, c3p), bf16),
                   stat_shape(gm, c3p), stat_shape(gm, c3p)],
        compiler_params=par,
    )(y2_flat, scale2, shift2, w3_mat)
    scale3, shift3 = _bn_scale_shift(s3, ss3, m, gamma3, beta3, c3p)

    # ---- final: BN3 affine + identity residual + ReLU ----
    out_flat = pl.pallas_call(
        _bn_res_relu_kernel,
        grid=(gm_ew,),
        in_specs=[row_spec(tm_ew, c3p), bcast_spec(c3p), bcast_spec(c3p),
                  row_spec(tm_ew, c3p)],
        out_specs=row_spec(tm_ew, c3p),
        out_shape=jax.ShapeDtypeStruct((mp, c3p), f32),
        compiler_params=par,
    )(y3_pre, scale3, shift3, x_flat)

    out = out_flat[:m, :c3].reshape(n, h, w, c3)
    return jnp.transpose(out, (0, 3, 1, 2))


# ----------------------------------------------------------------------------- reference
def _reference(x, w1, w2, w3, g1, b1, g2, b2, g3, b3):
    def conv(v, w, pad):
        return jax.lax.conv_general_dilated(
            v, w, window_strides=(1, 1), padding=pad,
            dimension_numbers=("NCHW", "OIHW", "NCHW"))

    def bn(v, g, b):
        mean = jnp.mean(v, axis=(0, 2, 3), keepdims=True)
        var = jnp.mean((v - mean) ** 2, axis=(0, 2, 3), keepdims=True)
        vh = (v - mean) * jax.lax.rsqrt(var + BN_EPS)
        return vh * g.reshape(1, -1, 1, 1) + b.reshape(1, -1, 1, 1)

    y = jax.nn.relu(bn(conv(x, w1, "VALID"), g1, b1))
    y = jax.nn.relu(bn(conv(y, w2, [(1, 1), (1, 1)]), g2, b2))
    y = bn(conv(y, w3, "VALID"), g3, b3)
    return jax.nn.relu(y + x)


if __name__ == "__main__":
    # Bottleneck(in_ch=16, out_ch=4): identity residual needs in_ch == 4*out_ch.
    N, IN_CH, OUT_CH, H, W = 2, 16, 4, 16, 16

    key = jax.random.PRNGKey(0)
    kx, k1, k2, k3 = jax.random.split(key, 4)
    x = jax.random.normal(kx, (N, IN_CH, H, W), dtype=jnp.float32)
    w1 = jax.random.normal(k1, (OUT_CH, IN_CH, 1, 1), jnp.float32) / jnp.sqrt(IN_CH)
    w2 = jax.random.normal(k2, (OUT_CH, OUT_CH, 3, 3), jnp.float32) / jnp.sqrt(9.0 * OUT_CH)
    w3 = jax.random.normal(k3, (4 * OUT_CH, OUT_CH, 1, 1), jnp.float32) / jnp.sqrt(OUT_CH)

    ones = lambda c: jnp.ones((c,), jnp.float32)    # BatchNorm2d default weight
    zeros = lambda c: jnp.zeros((c,), jnp.float32)  # BatchNorm2d default bias
    params = (w1, w2, w3,
              ones(OUT_CH), zeros(OUT_CH),
              ones(OUT_CH), zeros(OUT_CH),
              ones(4 * OUT_CH), zeros(4 * OUT_CH))

    out = jax.jit(bottleneck_forward)(x, *params)
    out = jax.block_until_ready(out)

    ref = jax.block_until_ready(_reference(x, *params))
    assert out.shape == (N, 4 * OUT_CH, H, W), out.shape

    # End-to-end bf16 (MXU operands + stored intermediates + residual) vs. a pure
    # f32 reference through three BN-normalized stages: allow ~4% of the output
    # dynamic range (structural errors would be orders of magnitude larger).
    max_err = float(jnp.max(jnp.abs(out - ref)))
    ref_range = float(jnp.max(jnp.abs(ref)))
    assert max_err <= 0.04 * max(ref_range, 1.0), (max_err, ref_range)

    print("KERNEL_OK")
</pallas_src>

<mosaic_0001>
module attributes {stable_mosaic.version = 11 : i64} {
  func.func @_conv1x1_stats_kernel(%arg0: i32, %arg1: memref<512x128xbf16, #tpu.memory_space<vmem>>, %arg2: memref<128x128xbf16, #tpu.memory_space<vmem>>, %arg3: memref<512x128xbf16, #tpu.memory_space<vmem>>, %arg4: memref<1x1x128xf32, #tpu.memory_space<vmem>>, %arg5: memref<1x1x128xf32, #tpu.memory_space<vmem>>) attributes {dimension_semantics = [#tpu.dimension_semantics<parallel>], iteration_bounds = array<i64: 1>, scalar_prefetch = 0 : i64, scratch_operands = 0 : i64, tpu.core_type = #tpu.core_type<tc>, window_params = [{transform_indices = @transform_0, window_bounds = array<i64: 512, 128>}, {pipeline_mode = #tpu.pipeline_mode<synchronous>, transform_indices = @transform_1, window_bounds = array<i64: 128, 128>}, {transform_indices = @transform_2, window_bounds = array<i64: 512, 128>}, {transform_indices = @transform_3, window_bounds = array<i64: 1, 1, 128>}, {transform_indices = @transform_4, window_bounds = array<i64: 1, 1, 128>}]} {
    %c0 = arith.constant 0 : index
    %c0_0 = arith.constant 0 : index
    %0 = vector.load %arg1[%c0, %c0_0] : memref<512x128xbf16, #tpu.memory_space<vmem>>, vector<512x128xbf16>
    %c0_1 = arith.constant 0 : index
    %c0_2 = arith.constant 0 : index
    %1 = vector.load %arg2[%c0_1, %c0_2] : memref<128x128xbf16, #tpu.memory_space<vmem>>, vector<128x128xbf16>
    %cst = arith.constant dense<0.000000e+00> : vector<512x128xf32>
    %2 = tpu.matmul %0, %1, %cst {dimension_numbers = #tpu.dot_dimension_numbers<[1], [0], [0], [1], [0, 0, 1, 1], [], []>} : vector<512x128xbf16>, vector<128x128xbf16>, vector<512x128xf32> -> vector<512x128xf32>
    %3 = arith.truncf %2 : vector<512x128xf32> to vector<512x128xbf16>
    %c0_3 = arith.constant 0 : index
    %c0_4 = arith.constant 0 : index
    %4 = vector.load %arg3[%c0_3, %c0_4] : memref<512x128xbf16, #tpu.memory_space<vmem>>, vector<512x128xbf16>
    tpu.vector_store %arg3[%c0_3, %c0_4], %3 {strides = array<i32>} : memref<512x128xbf16, #tpu.memory_space<vmem>>, vector<512x128xbf16>,
    %cst_5 = arith.constant dense<0.000000e+00> : vector<128xf32>
    %5 = vector.multi_reduction <add>, %2, %cst_5 [0] : vector<512x128xf32> to vector<128xf32>
    %6 = vector.shape_cast %5 : vector<128xf32> to vector<1x128xf32>
    %7 = vector.shape_cast %6 : vector<1x128xf32> to vector<1x1x128xf32>
    %c0_6 = arith.constant 0 : index
    %c0_7 = arith.constant 0 : index
    %c0_8 = arith.constant 0 : index
    %8 = vector.load %arg4[%c0_6, %c0_7, %c0_8] : memref<1x1x128xf32, #tpu.memory_space<vmem>>, vector<1x1x128xf32>
    tpu.vector_store %arg4[%c0_6, %c0_7, %c0_8], %7 {strides = array<i32>} : memref<1x1x128xf32, #tpu.memory_space<vmem>>, vector<1x1x128xf32>,
    %9 = arith.mulf %2, %2 : vector<512x128xf32>
    %cst_9 = arith.constant dense<0.000000e+00> : vector<128xf32>
    %10 = vector.multi_reduction <add>, %9, %cst_9 [0] : vector<512x128xf32> to vector<128xf32>
    %11 = vector.shape_cast %10 : vector<128xf32> to vector<1x128xf32>
    %12 = vector.shape_cast %11 : vector<1x128xf32> to vector<1x1x128xf32>
    %c0_10 = arith.constant 0 : index
    %c0_11 = arith.constant 0 : index
    %c0_12 = arith.constant 0 : index
    %13 = vector.load %arg5[%c0_10, %c0_11, %c0_12] : memref<1x1x128xf32, #tpu.memory_space<vmem>>, vector<1x1x128xf32>
    tpu.vector_store %arg5[%c0_10, %c0_11, %c0_12], %12 {strides = array<i32>} : memref<1x1x128xf32, #tpu.memory_space<vmem>>, vector<1x1x128xf32>,
    return
  }
  func.func @transform_0(%arg0: i32) -> (i32, i32) {
    %c0_i32 = arith.constant 0 : i32
    %c0_i32_0 = arith.constant 0 : i32
    return %arg0, %c0_i32 : i32, i32
  }
  func.func @transform_1(%arg0: i32) -> (i32, i32) {
    %c0_i32 = arith.constant 0 : i32
    %c0_i32_0 = arith.constant 0 : i32
    %c0_i32_1 = arith.constant 0 : i32
    return %c0_i32, %c0_i32_0 : i32, i32
  }
  func.func @transform_2(%arg0: i32) -> (i32, i32) {
    %c0_i32 = arith.constant 0 : i32
    %c0_i32_0 = arith.constant 0 : i32
    return %arg0, %c0_i32 : i32, i32
  }
  func.func @transform_3(%arg0: i32) -> (i32, i32, i32) {
    %c0_i32 = arith.constant 0 : i32
    %c0_i32_0 = arith.constant 0 : i32
    %c0_i32_1 = arith.constant 0 : i32
    return %arg0, %c0_i32, %c0_i32_0 : i32, i32, i32
  }
  func.func @transform_4(%arg0: i32) -> (i32, i32, i32) {
    %c0_i32 = arith.constant 0 : i32
    %c0_i32_0 = arith.constant 0 : i32
    %c0_i32_1 = arith.constant 0 : i32
    return %arg0, %c0_i32, %c0_i32_0 : i32, i32, i32
  }
}

module attributes {stable_mosaic.version = 11 : i64} {
  func.func @_bnrelu_conv3x3_stats_kernel(%arg0: i32, %arg1: memref<1x256x128xbf16, #tpu.memory_space<vmem>>, %arg2: memref<1x128xf32, #tpu.memory_space<vmem>>, %arg3: memref<1x128xf32, #tpu.memory_space<vmem>>, %arg4: memref<3x3x128x128xbf16, #tpu.memory_space<vmem>>, %arg5: memref<1x256x128xbf16, #tpu.memory_space<vmem>>, %arg6: memref<1x1x128xf32, #tpu.memory_space<vmem>>, %arg7: memref<1x1x128xf32, #tpu.memory_space<vmem>>, %arg8: memref<18x20x128xbf16, #tpu.memory_space<vmem>>) attributes {dimension_semantics = [#tpu.dimension_semantics<parallel>], iteration_bounds = array<i64: 2>, scalar_prefetch = 0 : i64, scratch_operands = 1 : i64, tpu.core_type = #tpu.core_type<tc>, window_params = [{transform_indices = @transform_0, window_bounds = array<i64: 1, 256, 128>}, {pipeline_mode = #tpu.pipeline_mode<synchronous>, transform_indices = @transform_1, window_bounds = array<i64: 1, 128>}, {pipeline_mode = #tpu.pipeline_mode<synchronous>, transform_indices = @transform_2, window_bounds = array<i64: 1, 128>}, {pipeline_mode = #tpu.pipeline_mode<synchronous>, transform_indices = @transform_3, window_bounds = array<i64: 3, 3, 128, 128>}, {transform_indices = @transform_4, window_bounds = array<i64: 1, 256, 128>}, {transform_indices = @transform_5, window_bounds = array<i64: 1, 1, 128>}, {transform_indices = @transform_6, window_bounds = array<i64: 1, 1, 128>}]} {
    %c0 = arith.constant 0 : index
    %c0_0 = arith.constant 0 : index
    %c0_1 = arith.constant 0 : index
    %0 = vector.load %arg1[%c0, %c0_0, %c0_1] : memref<1x256x128xbf16, #tpu.memory_space<vmem>>, vector<1x256x128xbf16>
    %1 = vector.shape_cast %0 : vector<1x256x128xbf16> to vector<256x128xbf16>
    %2 = arith.extf %1 : vector<256x128xbf16> to vector<256x128xf32>
    %c0_2 = arith.constant 0 : index
    %c0_3 = arith.constant 0 : index
    %3 = vector.load %arg2[%c0_2, %c0_3] : memref<1x128xf32, #tpu.memory_space<vmem>>, vector<1x128xf32>
    %4 = vector.broadcast %3 : vector<1x128xf32> to vector<256x128xf32>
    %5 = arith.mulf %2, %4 : vector<256x128xf32>
    %c0_4 = arith.constant 0 : index
    %c0_5 = arith.constant 0 : index
    %6 = vector.load %arg3[%c0_4, %c0_5] : memref<1x128xf32, #tpu.memory_space<vmem>>, vector<1x128xf32>
    %7 = vector.broadcast %6 : vector<1x128xf32> to vector<256x128xf32>
    %8 = arith.addf %5, %7 : vector<256x128xf32>
    %cst = arith.constant 0.000000e+00 : f32
    %9 = vector.broadcast %cst : f32 to vector<256x128xf32>
    %10 = arith.maximumf %8, %9 : vector<256x128xf32>
    %cst_6 = arith.constant 0.000000e+00 : bf16
    %11 = vector.broadcast %cst_6 : bf16 to vector<18x20x128xbf16>
    %c0_7 = arith.constant 0 : index
    %c0_8 = arith.constant 0 : index
    %c0_9 = arith.constant 0 : index
    %12 = vector.load %arg8[%c0_7, %c0_8, %c0_9] : memref<18x20x128xbf16, #tpu.memory_space<vmem>>, vector<18x20x128xbf16>
    tpu.vector_store %arg8[%c0_7, %c0_8, %c0_9], %11 {strides = array<i32>} : memref<18x20x128xbf16, #tpu.memory_space<vmem>>, vector<18x20x128xbf16>,
    %13 = arith.truncf %10 : vector<256x128xf32> to vector<256x128xbf16>
    %14 = vector.shape_cast %13 : vector<256x128xbf16> to vector<16x16x128xbf16>
    %c1 = arith.constant 1 : index
    %c2 = arith.constant 2 : index
    %c0_10 = arith.constant 0 : index
    %15 = vector.load %arg8[%c1, %c2, %c0_10] : memref<18x20x128xbf16, #tpu.memory_space<vmem>>, vector<16x16x128xbf16>
    tpu.vector_store %arg8[%c1, %c2, %c0_10], %14 {strides = array<i32>} : memref<18x20x128xbf16, #tpu.memory_space<vmem>>, vector<16x16x128xbf16>,
    %cst_11 = arith.constant 0.000000e+00 : f32
    %16 = vector.broadcast %cst_11 : f32 to vector<256x128xf32>
    %c0_12 = arith.constant 0 : index
    %c1_13 = arith.constant 1 : index
    %c0_14 = arith.constant 0 : index
    %17 = vector.load %arg8[%c0_12, %c1_13, %c0_14] : memref<18x20x128xbf16, #tpu.memory_space<vmem>>, vector<16x16x128xbf16>
    %18 = vector.shape_cast %17 : vector<16x16x128xbf16> to vector<256x128xbf16>
    %c0_15 = arith.constant 0 : index
    %c0_16 = arith.constant 0 : index
    %c0_17 = arith.constant 0 : index
    %c0_18 = arith.constant 0 : index
    %19 = vector.load %arg4[%c0_15, %c0_16, %c0_17, %c0_18] : memref<3x3x128x128xbf16, #tpu.memory_space<vmem>>, vector<1x1x128x128xbf16>
    %20 = vector.shape_cast %19 : vector<1x1x128x128xbf16> to vector<128x128xbf16>
    %cst_19 = arith.constant dense<0.000000e+00> : vector<256x128xf32>
    %21 = tpu.matmul %18, %20, %cst_19 {dimension_numbers = #tpu.dot_dimension_numbers<[1], [0], [0], [1], [0, 0, 1, 1], [], []>} : vector<256x128xbf16>, vector<128x128xbf16>, vector<256x128xf32> -> vector<256x128xf32>
    %22 = arith.addf %16, %21 : vector<256x128xf32>
    %c0_20 = arith.constant 0 : index
    %c2_21 = arith.constant 2 : index
    %c0_22 = arith.constant 0 : index
    %23 = vector.load %arg8[%c0_20, %c2_21, %c0_22] : memref<18x20x128xbf16, #tpu.memory_space<vmem>>, vector<16x16x128xbf16>
    %24 = vector.shape_cast %23 : vector<16x16x128xbf16> to vector<256x128xbf16>
    %c0_23 = arith.constant 0 : index
    %c1_24 = arith.constant 1 : index
    %c0_25 = arith.constant 0 : index
    %c0_26 = arith.constant 0 : index
    %25 = vector.load %arg4[%c0_23, %c1_24, %c0_25, %c0_26] : memref<3x3x128x128xbf16, #tpu.memory_space<vmem>>, vector<1x1x128x128xbf16>
    %26 = vector.shape_cast %25 : vector<1x1x128x128xbf16> to vector<128x128xbf16>
    %cst_27 = arith.constant dense<0.000000e+00> : vector<256x128xf32>
    %27 = tpu.matmul %24, %26, %cst_27 {dimension_numbers = #tpu.dot_dimension_numbers<[1], [0], [0], [1], [0, 0, 1, 1], [], []>} : vector<256x128xbf16>, vector<128x128xbf16>, vector<256x128xf32> -> vector<256x128xf32>
    %28 = arith.addf %22, %27 : vector<256x128xf32>
    %c0_28 = arith.constant 0 : index
    %c3 = arith.constant 3 : index
    %c0_29 = arith.constant 0 : index
    %29 = vector.load %arg8[%c0_28, %c3, %c0_29] : memref<18x20x128xbf16, #tpu.memory_space<vmem>>, vector<16x16x128xbf16>
    %30 = vector.shape_cast %29 : vector<16x16x128xbf16> to vector<256x128xbf16>
    %c0_30 = arith.constant 0 : index
    %c2_31 = arith.constant 2 : index
    %c0_32 = arith.constant 0 : index
    %c0_33 = arith.constant 0 : index
    %31 = vector.load %arg4[%c0_30, %c2_31, %c0_32, %c0_33] : memref<3x3x128x128xbf16, #tpu.memory_space<vmem>>, vector<1x1x128x128xbf16>
    %32 = vector.shape_cast %31 : vector<1x1x128x128xbf16> to vector<128x128xbf16>
    %cst_34 = arith.constant dense<0.000000e+00> : vector<256x128xf32>
    %33 = tpu.matmul %30, %32, %cst_34 {dimension_numbers = #tpu.dot_dimension_numbers<[1], [0], [0], [1], [0, 0, 1, 1], [], []>} : vector<256x128xbf16>, vector<128x128xbf16>, vector<256x128xf32> -> vector<256x128xf32>
    %34 = arith.addf %28, %33 : vector<256x128xf32>
    %c1_35 = arith.constant 1 : index
    %c1_36 = arith.constant 1 : index
    %c0_37 = arith.constant 0 : index
    %35 = vector.load %arg8[%c1_35, %c1_36, %c0_37] : memref<18x20x128xbf16, #tpu.memory_space<vmem>>, vector<16x16x128xbf16>
    %36 = vector.shape_cast %35 : vector<16x16x128xbf16> to vector<256x128xbf16>
    %c1_38 = arith.constant 1 : index
    %c0_39 = arith.constant 0 : index
    %c0_40 = arith.constant 0 : index
    %c0_41 = arith.constant 0 : index
    %37 = vector.load %arg4[%c1_38, %c0_39, %c0_40, %c0_41] : memref<3x3x128x128xbf16, #tpu.memory_space<vmem>>, vector<1x1x128x128xbf16>
    %38 = vector.shape_cast %37 : vector<1x1x128x128xbf16> to vector<128x128xbf16>
    %cst_42 = arith.constant dense<0.000000e+00> : vector<256x128xf32>
    %39 = tpu.matmul %36, %38, %cst_42 {dimension_numbers = #tpu.dot_dimension_numbers<[1], [0], [0], [1], [0, 0, 1, 1], [], []>} : vector<256x128xbf16>, vector<128x128xbf16>, vector<256x128xf32> -> vector<256x128xf32>
    %40 = arith.addf %34, %39 : vector<256x128xf32>
    %c1_43 = arith.constant 1 : index
    %c2_44 = arith.constant 2 : index
    %c0_45 = arith.constant 0 : index
    %41 = vector.load %arg8[%c1_43, %c2_44, %c0_45] : memref<18x20x128xbf16, #tpu.memory_space<vmem>>, vector<16x16x128xbf16>
    %42 = vector.shape_cast %41 : vector<16x16x128xbf16> to vector<256x128xbf16>
    %c1_46 = arith.constant 1 : index
    %c1_47 = arith.constant 1 : index
    %c0_48 = arith.constant 0 : index
    %c0_49 = arith.constant 0 : index
    %43 = vector.load %arg4[%c1_46, %c1_47, %c0_48, %c0_49] : memref<3x3x128x128xbf16, #tpu.memory_space<vmem>>, vector<1x1x128x128xbf16>
    %44 = vector.shape_cast %43 : vector<1x1x128x128xbf16> to vector<128x128xbf16>
    %cst_50 = arith.constant dense<0.000000e+00> : vector<256x128xf32>
    %45 = tpu.matmul %42, %44, %cst_50 {dimension_numbers = #tpu.dot_dimension_numbers<[1], [0], [0], [1], [0, 0, 1, 1], [], []>} : vector<256x128xbf16>, vector<128x128xbf16>, vector<256x128xf32> -> vector<256x128xf32>
    %46 = arith.addf %40, %45 : vector<256x128xf32>
    %c1_51 = arith.constant 1 : index
    %c3_52 = arith.constant 3 : index
    %c0_53 = arith.constant 0 : index
    %47 = vector.load %arg8[%c1_51, %c3_52, %c0_53] : memref<18x20x128xbf16, #tpu.memory_space<vmem>>, vector<16x16x128xbf16>
    %48 = vector.shape_cast %47 : vector<16x16x128xbf16> to vector<256x128xbf16>
    %c1_54 = arith.constant 1 : index
    %c2_55 = arith.constant 2 : index
    %c0_56 = arith.constant 0 : index
    %c0_57 = arith.constant 0 : index
    %49 = vector.load %arg4[%c1_54, %c2_55, %c0_56, %c0_57] : memref<3x3x128x128xbf16, #tpu.memory_space<vmem>>, vector<1x1x128x128xbf16>
    %50 = vector.shape_cast %49 : vector<1x1x128x128xbf16> to vector<128x128xbf16>
    %cst_58 = arith.constant dense<0.000000e+00> : vector<256x128xf32>
    %51 = tpu.matmul %48, %50, %cst_58 {dimension_numbers = #tpu.dot_dimension_numbers<[1], [0], [0], [1], [0, 0, 1, 1], [], []>} : vector<256x128xbf16>, vector<128x128xbf16>, vector<256x128xf32> -> vector<256x128xf32>
    %52 = arith.addf %46, %51 : vector<256x128xf32>
    %c2_59 = arith.constant 2 : index
    %c1_60 = arith.constant 1 : index
    %c0_61 = arith.constant 0 : index
    %53 = vector.load %arg8[%c2_59, %c1_60, %c0_61] : memref<18x20x128xbf16, #tpu.memory_space<vmem>>, vector<16x16x128xbf16>
    %54 = vector.shape_cast %53 : vector<16x16x128xbf16> to vector<256x128xbf16>
    %c2_62 = arith.constant 2 : index
    %c0_63 = arith.constant 0 : index
    %c0_64 = arith.constant 0 : index
    %c0_65 = arith.constant 0 : index
    %55 = vector.load %arg4[%c2_62, %c0_63, %c0_64, %c0_65] : memref<3x3x128x128xbf16, #tpu.memory_space<vmem>>, vector<1x1x128x128xbf16>
    %56 = vector.shape_cast %55 : vector<1x1x128x128xbf16> to vector<128x128xbf16>
    %cst_66 = arith.constant dense<0.000000e+00> : vector<256x128xf32>
    %57 = tpu.matmul %54, %56, %cst_66 {dimension_numbers = #tpu.dot_dimension_numbers<[1], [0], [0], [1], [0, 0, 1, 1], [], []>} : vector<256x128xbf16>, vector<128x128xbf16>, vector<256x128xf32> -> vector<256x128xf32>
    %58 = arith.addf %52, %57 : vector<256x128xf32>
    %c2_67 = arith.constant 2 : index
    %c2_68 = arith.constant 2 : index
    %c0_69 = arith.constant 0 : index
    %59 = vector.load %arg8[%c2_67, %c2_68, %c0_69] : memref<18x20x128xbf16, #tpu.memory_space<vmem>>, vector<16x16x128xbf16>
    %60 = vector.shape_cast %59 : vector<16x16x128xbf16> to vector<256x128xbf16>
    %c2_70 = arith.constant 2 : index
    %c1_71 = arith.constant 1 : index
    %c0_72 = arith.constant 0 : index
    %c0_73 = arith.constant 0 : index
    %61 = vector.load %arg4[%c2_70, %c1_71, %c0_72, %c0_73] : memref<3x3x128x128xbf16, #tpu.memory_space<vmem>>, vector<1x1x128x128xbf16>
    %62 = vector.shape_cast %61 : vector<1x1x128x128xbf16> to vector<128x128xbf16>
    %cst_74 = arith.constant dense<0.000000e+00> : vector<256x128xf32>
    %63 = tpu.matmul %60, %62, %cst_74 {dimension_numbers = #tpu.dot_dimension_numbers<[1], [0], [0], [1], [0, 0, 1, 1], [], []>} : vector<256x128xbf16>, vector<128x128xbf16>, vector<256x128xf32> -> vector<256x128xf32>
    %64 = arith.addf %58, %63 : vector<256x128xf32>
    %c2_75 = arith.constant 2 : index
    %c3_76 = arith.constant 3 : index
    %c0_77 = arith.constant 0 : index
    %65 = vector.load %arg8[%c2_75, %c3_76, %c0_77] : memref<18x20x128xbf16, #tpu.memory_space<vmem>>, vector<16x16x128xbf16>
    %66 = vector.shape_cast %65 : vector<16x16x128xbf16> to vector<256x128xbf16>
    %c2_78 = arith.constant 2 : index
    %c2_79 = arith.constant 2 : index
    %c0_80 = arith.constant 0 : index
    %c0_81 = arith.constant 0 : index
    %67 = vector.load %arg4[%c2_78, %c2_79, %c0_80, %c0_81] : memref<3x3x128x128xbf16, #tpu.memory_space<vmem>>, vector<1x1x128x128xbf16>
    %68 = vector.shape_cast %67 : vector<1x1x128x128xbf16> to vector<128x128xbf16>
    %cst_82 = arith.constant dense<0.000000e+00> : vector<256x128xf32>
    %69 = tpu.matmul %66, %68, %cst_82 {dimension_numbers = #tpu.dot_dimension_numbers<[1], [0], [0], [1], [0, 0, 1, 1], [], []>} : vector<256x128xbf16>, vector<128x128xbf16>, vector<256x128xf32> -> vector<256x128xf32>
    %70 = arith.addf %64, %69 : vector<256x128xf32>
    %71 = arith.truncf %70 : vector<256x128xf32> to vector<256x128xbf16>
    %c0_83 = arith.constant 0 : index
    %c0_84 = arith.constant 0 : index
    %c0_85 = arith.constant 0 : index
    %72 = vector.load %arg5[%c0_83, %c0_84, %c0_85] : memref<1x256x128xbf16, #tpu.memory_space<vmem>>, vector<1x256x128xbf16>
    %73 = vector.shape_cast %72 : vector<1x256x128xbf16> to vector<256x128xbf16>
    %74 = vector.shape_cast %71 : vector<256x128xbf16> to vector<1x256x128xbf16>
    tpu.vector_store %arg5[%c0_83, %c0_84, %c0_85], %74 {strides = array<i32>} : memref<1x256x128xbf16, #tpu.memory_space<vmem>>, vector<1x256x128xbf16>,
    %cst_86 = arith.constant dense<0.000000e+00> : vector<128xf32>
    %75 = vector.multi_reduction <add>, %70, %cst_86 [0] : vector<256x128xf32> to vector<128xf32>
    %76 = vector.shape_cast %75 : vector<128xf32> to vector<1x128xf32>
    %77 = vector.shape_cast %76 : vector<1x128xf32> to vector<1x1x128xf32>
    %c0_87 = arith.constant 0 : index
    %c0_88 = arith.constant 0 : index
    %c0_89 = arith.constant 0 : index
    %78 = vector.load %arg6[%c0_87, %c0_88, %c0_89] : memref<1x1x128xf32, #tpu.memory_space<vmem>>, vector<1x1x128xf32>
    tpu.vector_store %arg6[%c0_87, %c0_88, %c0_89], %77 {strides = array<i32>} : memref<1x1x128xf32, #tpu.memory_space<vmem>>, vector<1x1x128xf32>,
    %79 = arith.mulf %70, %70 : vector<256x128xf32>
    %cst_90 = arith.constant dense<0.000000e+00> : vector<128xf32>
    %80 = vector.multi_reduction <add>, %79, %cst_90 [0] : vector<256x128xf32> to vector<128xf32>
    %81 = vector.shape_cast %80 : vector<128xf32> to vector<1x128xf32>
    %82 = vector.shape_cast %81 : vector<1x128xf32> to vector<1x1x128xf32>
    %c0_91 = arith.constant 0 : index
    %c0_92 = arith.constant 0 : index
    %c0_93 = arith.constant 0 : index
    %83 = vector.load %arg7[%c0_91, %c0_92, %c0_93] : memref<1x1x128xf32, #tpu.memory_space<vmem>>, vector<1x1x128xf32>
    tpu.vector_store %arg7[%c0_91, %c0_92, %c0_93], %82 {strides = array<i32>} : memref<1x1x128xf32, #tpu.memory_space<vmem>>, vector<1x1x128xf32>,
    return
  }
  func.func @transform_0(%arg0: i32) -> (i32, i32, i32) {
    %c0_i32 = arith.constant 0 : i32
    %c0_i32_0 = arith.constant 0 : i32
    %c0_i32_1 = arith.constant 0 : i32
    return %arg0, %c0_i32, %c0_i32_0 : i32, i32, i32
  }
  func.func @transform_1(%arg0: i32) -> (i32, i32) {
    %c0_i32 = arith.constant 0 : i32
    %c0_i32_0 = arith.constant 0 : i32
    %c0_i32_1 = arith.constant 0 : i32
    return %c0_i32, %c0_i32_0 : i32, i32
  }
  func.func @transform_2(%arg0: i32) -> (i32, i32) {
    %c0_i32 = arith.constant 0 : i32
    %c0_i32_0 = arith.constant 0 : i32
    %c0_i32_1 = arith.constant 0 : i32
    return %c0_i32, %c0_i32_0 : i32, i32
  }
  func.func @transform_3(%arg0: i32) -> (i32, i32, i32, i32) {
    %c0_i32 = arith.constant 0 : i32
    %c0_i32_0 = arith.constant 0 : i32
    %c0_i32_1 = arith.constant 0 : i32
    %c0_i32_2 = arith.constant 0 : i32
    %c0_i32_3 = arith.constant 0 : i32
    return %c0_i32, %c0_i32_0, %c0_i32_1, %c0_i32_2 : i32, i32, i32, i32
  }
  func.func @transform_4(%arg0: i32) -> (i32, i32, i32) {
    %c0_i32 = arith.constant 0 : i32
    %c0_i32_0 = arith.constant 0 : i32
    %c0_i32_1 = arith.constant 0 : i32
    return %arg0, %c0_i32, %c0_i32_0 : i32, i32, i32
  }
  func.func @transform_5(%arg0: i32) -> (i32, i32, i32) {
    %c0_i32 = arith.constant 0 : i32
    %c0_i32_0 = arith.constant 0 : i32
    %c0_i32_1 = arith.constant 0 : i32
    return %arg0, %c0_i32, %c0_i32_0 : i32, i32, i32
  }
  func.func @transform_6(%arg0: i32) -> (i32, i32, i32) {
    %c0_i32 = arith.constant 0 : i32
    %c0_i32_0 = arith.constant 0 : i32
    %c0_i32_1 = arith.constant 0 : i32
    return %arg0, %c0_i32, %c0_i32_0 : i32, i32, i32
  }
}

module attributes {stable_mosaic.version = 11 : i64} {
  func.func @_bn_res_relu_kernel(%arg0: i32, %arg1: memref<512x128xbf16, #tpu.memory_space<vmem>>, %arg2: memref<1x128xf32, #tpu.memory_space<vmem>>, %arg3: memref<1x128xf32, #tpu.memory_space<vmem>>, %arg4: memref<512x128xbf16, #tpu.memory_space<vmem>>, %arg5: memref<512x128xf32, #tpu.memory_space<vmem>>) attributes {dimension_semantics = [#tpu.dimension_semantics<parallel>], iteration_bounds = array<i64: 1>, scalar_prefetch = 0 : i64, scratch_operands = 0 : i64, tpu.core_type = #tpu.core_type<tc>, window_params = [{transform_indices = @transform_0, window_bounds = array<i64: 512, 128>}, {pipeline_mode = #tpu.pipeline_mode<synchronous>, transform_indices = @transform_1, window_bounds = array<i64: 1, 128>}, {pipeline_mode = #tpu.pipeline_mode<synchronous>, transform_indices = @transform_2, window_bounds = array<i64: 1, 128>}, {transform_indices = @transform_3, window_bounds = array<i64: 512, 128>}, {transform_indices = @transform_4, window_bounds = array<i64: 512, 128>}]} {
    %c0 = arith.constant 0 : index
    %c0_0 = arith.constant 0 : index
    %0 = vector.load %arg1[%c0, %c0_0] : memref<512x128xbf16, #tpu.memory_space<vmem>>, vector<512x128xbf16>
    %1 = arith.extf %0 : vector<512x128xbf16> to vector<512x128xf32>
    %c0_1 = arith.constant 0 : index
    %c0_2 = arith.constant 0 : index
    %2 = vector.load %arg2[%c0_1, %c0_2] : memref<1x128xf32, #tpu.memory_space<vmem>>, vector<1x128xf32>
    %3 = vector.broadcast %2 : vector<1x128xf32> to vector<512x128xf32>
    %4 = arith.mulf %1, %3 : vector<512x128xf32>
    %c0_3 = arith.constant 0 : index
    %c0_4 = arith.constant 0 : index
    %5 = vector.load %arg3[%c0_3, %c0_4] : memref<1x128xf32, #tpu.memory_space<vmem>>, vector<1x128xf32>
    %6 = vector.broadcast %5 : vector<1x128xf32> to vector<512x128xf32>
    %7 = arith.addf %4, %6 : vector<512x128xf32>
    %c0_5 = arith.constant 0 : index
    %c0_6 = arith.constant 0 : index
    %8 = vector.load %arg4[%c0_5, %c0_6] : memref<512x128xbf16, #tpu.memory_space<vmem>>, vector<512x128xbf16>
    %9 = arith.extf %8 : vector<512x128xbf16> to vector<512x128xf32>
    %10 = arith.addf %7, %9 : vector<512x128xf32>
    %cst = arith.constant 0.000000e+00 : f32
    %11 = vector.broadcast %cst : f32 to vector<512x128xf32>
    %12 = arith.maximumf %10, %11 : vector<512x128xf32>
    %c0_7 = arith.constant 0 : index
    %c0_8 = arith.constant 0 : index
    %13 = vector.load %arg5[%c0_7, %c0_8] : memref<512x128xf32, #tpu.memory_space<vmem>>, vector<512x128xf32>
    tpu.vector_store %arg5[%c0_7, %c0_8], %12 {strides = array<i32>} : memref<512x128xf32, #tpu.memory_space<vmem>>, vector<512x128xf32>,
    return
  }
  func.func @transform_0(%arg0: i32) -> (i32, i32) {
    %c0_i32 = arith.constant 0 : i32
    %c0_i32_0 = arith.constant 0 : i32
    return %arg0, %c0_i32 : i32, i32
  }
  func.func @transform_1(%arg0: i32) -> (i32, i32) {
    %c0_i32 = arith.constant 0 : i32
    %c0_i32_0 = arith.constant 0 : i32
    %c0_i32_1 = arith.constant 0 : i32
    return %c0_i32, %c0_i32_0 : i32, i32
  }
  func.func @transform_2(%arg0: i32) -> (i32, i32) {
    %c0_i32 = arith.constant 0 : i32
    %c0_i32_0 = arith.constant 0 : i32
    %c0_i32_1 = arith.constant 0 : i32
    return %c0_i32, %c0_i32_0 : i32, i32
  }
  func.func @transform_3(%arg0: i32) -> (i32, i32) {
    %c0_i32 = arith.constant 0 : i32
    %c0_i32_0 = arith.constant 0 : i32
    return %arg0, %c0_i32 : i32, i32
  }
  func.func @transform_4(%arg0: i32) -> (i32, i32) {
    %c0_i32 = arith.constant 0 : i32
    %c0_i32_0 = arith.constant 0 : i32
    return %arg0, %c0_i32 : i32, i32
  }
}

module attributes {stable_mosaic.version = 11 : i64} {
  func.func @_bnrelu_conv1x1_stats_kernel(%arg0: i32, %arg1: memref<512x128xbf16, #tpu.memory_space<vmem>>, %arg2: memref<1x128xf32, #tpu.memory_space<vmem>>, %arg3: memref<1x128xf32, #tpu.memory_space<vmem>>, %arg4: memref<128x128xbf16, #tpu.memory_space<vmem>>, %arg5: memref<512x128xbf16, #tpu.memory_space<vmem>>, %arg6: memref<1x1x128xf32, #tpu.memory_space<vmem>>, %arg7: memref<1x1x128xf32, #tpu.memory_space<vmem>>) attributes {dimension_semantics = [#tpu.dimension_semantics<parallel>], iteration_bounds = array<i64: 1>, scalar_prefetch = 0 : i64, scratch_operands = 0 : i64, tpu.core_type = #tpu.core_type<tc>, window_params = [{transform_indices = @transform_0, window_bounds = array<i64: 512, 128>}, {pipeline_mode = #tpu.pipeline_mode<synchronous>, transform_indices = @transform_1, window_bounds = array<i64: 1, 128>}, {pipeline_mode = #tpu.pipeline_mode<synchronous>, transform_indices = @transform_2, window_bounds = array<i64: 1, 128>}, {pipeline_mode = #tpu.pipeline_mode<synchronous>, transform_indices = @transform_3, window_bounds = array<i64: 128, 128>}, {transform_indices = @transform_4, window_bounds = array<i64: 512, 128>}, {transform_indices = @transform_5, window_bounds = array<i64: 1, 1, 128>}, {transform_indices = @transform_6, window_bounds = array<i64: 1, 1, 128>}]} {
    %c0 = arith.constant 0 : index
    %c0_0 = arith.constant 0 : index
    %0 = vector.load %arg1[%c0, %c0_0] : memref<512x128xbf16, #tpu.memory_space<vmem>>, vector<512x128xbf16>
    %1 = arith.extf %0 : vector<512x128xbf16> to vector<512x128xf32>
    %c0_1 = arith.constant 0 : index
    %c0_2 = arith.constant 0 : index
    %2 = vector.load %arg2[%c0_1, %c0_2] : memref<1x128xf32, #tpu.memory_space<vmem>>, vector<1x128xf32>
    %3 = vector.broadcast %2 : vector<1x128xf32> to vector<512x128xf32>
    %4 = arith.mulf %1, %3 : vector<512x128xf32>
    %c0_3 = arith.constant 0 : index
    %c0_4 = arith.constant 0 : index
    %5 = vector.load %arg3[%c0_3, %c0_4] : memref<1x128xf32, #tpu.memory_space<vmem>>, vector<1x128xf32>
    %6 = vector.broadcast %5 : vector<1x128xf32> to vector<512x128xf32>
    %7 = arith.addf %4, %6 : vector<512x128xf32>
    %cst = arith.constant 0.000000e+00 : f32
    %8 = vector.broadcast %cst : f32 to vector<512x128xf32>
    %9 = arith.maximumf %7, %8 : vector<512x128xf32>
    %10 = arith.truncf %9 : vector<512x128xf32> to vector<512x128xbf16>
    %c0_5 = arith.constant 0 : index
    %c0_6 = arith.constant 0 : index
    %11 = vector.load %arg4[%c0_5, %c0_6] : memref<128x128xbf16, #tpu.memory_space<vmem>>, vector<128x128xbf16>
    %cst_7 = arith.constant dense<0.000000e+00> : vector<512x128xf32>
    %12 = tpu.matmul %10, %11, %cst_7 {dimension_numbers = #tpu.dot_dimension_numbers<[1], [0], [0], [1], [0, 0, 1, 1], [], []>} : vector<512x128xbf16>, vector<128x128xbf16>, vector<512x128xf32> -> vector<512x128xf32>
    %13 = arith.truncf %12 : vector<512x128xf32> to vector<512x128xbf16>
    %c0_8 = arith.constant 0 : index
    %c0_9 = arith.constant 0 : index
    %14 = vector.load %arg5[%c0_8, %c0_9] : memref<512x128xbf16, #tpu.memory_space<vmem>>, vector<512x128xbf16>
    tpu.vector_store %arg5[%c0_8, %c0_9], %13 {strides = array<i32>} : memref<512x128xbf16, #tpu.memory_space<vmem>>, vector<512x128xbf16>,
    %cst_10 = arith.constant dense<0.000000e+00> : vector<128xf32>
    %15 = vector.multi_reduction <add>, %12, %cst_10 [0] : vector<512x128xf32> to vector<128xf32>
    %16 = vector.shape_cast %15 : vector<128xf32> to vector<1x128xf32>
    %17 = vector.shape_cast %16 : vector<1x128xf32> to vector<1x1x128xf32>
    %c0_11 = arith.constant 0 : index
    %c0_12 = arith.constant 0 : index
    %c0_13 = arith.constant 0 : index
    %18 = vector.load %arg6[%c0_11, %c0_12, %c0_13] : memref<1x1x128xf32, #tpu.memory_space<vmem>>, vector<1x1x128xf32>
    tpu.vector_store %arg6[%c0_11, %c0_12, %c0_13], %17 {strides = array<i32>} : memref<1x1x128xf32, #tpu.memory_space<vmem>>, vector<1x1x128xf32>,
    %19 = arith.mulf %12, %12 : vector<512x128xf32>
    %cst_14 = arith.constant dense<0.000000e+00> : vector<128xf32>
    %20 = vector.multi_reduction <add>, %19, %cst_14 [0] : vector<512x128xf32> to vector<128xf32>
    %21 = vector.shape_cast %20 : vector<128xf32> to vector<1x128xf32>
    %22 = vector.shape_cast %21 : vector<1x128xf32> to vector<1x1x128xf32>
    %c0_15 = arith.constant 0 : index
    %c0_16 = arith.constant 0 : index
    %c0_17 = arith.constant 0 : index
    %23 = vector.load %arg7[%c0_15, %c0_16, %c0_17] : memref<1x1x128xf32, #tpu.memory_space<vmem>>, vector<1x1x128xf32>
    tpu.vector_store %arg7[%c0_15, %c0_16, %c0_17], %22 {strides = array<i32>} : memref<1x1x128xf32, #tpu.memory_space<vmem>>, vector<1x1x128xf32>,
    return
  }
  func.func @transform_0(%arg0: i32) -> (i32, i32) {
    %c0_i32 = arith.constant 0 : i32
    %c0_i32_0 = arith.constant 0 : i32
    return %arg0, %c0_i32 : i32, i32
  }
  func.func @transform_1(%arg0: i32) -> (i32, i32) {
    %c0_i32 = arith.constant 0 : i32
    %c0_i32_0 = arith.constant 0 : i32
    %c0_i32_1 = arith.constant 0 : i32
    return %c0_i32, %c0_i32_0 : i32, i32
  }
  func.func @transform_2(%arg0: i32) -> (i32, i32) {
    %c0_i32 = arith.constant 0 : i32
    %c0_i32_0 = arith.constant 0 : i32
    %c0_i32_1 = arith.constant 0 : i32
    return %c0_i32, %c0_i32_0 : i32, i32
  }
  func.func @transform_3(%arg0: i32) -> (i32, i32) {
    %c0_i32 = arith.constant 0 : i32
    %c0_i32_0 = arith.constant 0 : i32
    %c0_i32_1 = arith.constant 0 : i32
    return %c0_i32, %c0_i32_0 : i32, i32
  }
  func.func @transform_4(%arg0: i32) -> (i32, i32) {
    %c0_i32 = arith.constant 0 : i32
    %c0_i32_0 = arith.constant 0 : i32
    return %arg0, %c0_i32 : i32, i32
  }
  func.func @transform_5(%arg0: i32) -> (i32, i32, i32) {
    %c0_i32 = arith.constant 0 : i32
    %c0_i32_0 = arith.constant 0 : i32
    %c0_i32_1 = arith.constant 0 : i32
    return %arg0, %c0_i32, %c0_i32_0 : i32, i32, i32
  }
  func.func @transform_6(%arg0: i32) -> (i32, i32, i32) {
    %c0_i32 = arith.constant 0 : i32
    %c0_i32_0 = arith.constant 0 : i32
    %c0_i32_1 = arith.constant 0 : i32
    return %arg0, %c0_i32, %c0_i32_0 : i32, i32, i32
  }
}

</mosaic_0001>

<llo_original>
// kernel: bottleneck_forward.7
$region0: #{bottleneck_forward.7}
  #allocation0 [shape = 'u32[]', space=smem, size = 0x4, offset = 0x4, fixed_abs, tag = 'smem constant byte address 0x4 - core index']
  #allocation1 [shape = 'u32[144,128]{1,0:T(1,128)}', space=vmem, size = 0x12000, scoped, tag = 'internal scratch']
  %s0 = inlined_call_operand.vmem [shape: bf16[512,128], index: 0, kind: input, shape index: {}]
  %s1 = inlined_call_operand.vmem [shape: f32[1,128], index: 1, kind: input, shape index: {}]
  %s2 = inlined_call_operand.vmem [shape: f32[1,128], index: 2, kind: input, shape index: {}]
  %s3 = inlined_call_operand.vmem [shape: bf16[512,128], index: 3, kind: input, shape index: {}]
  %s4 = inlined_call_operand.vmem [shape: f32[512,128], index: 4, kind: output, shape index: {}]
  %s5 = sld [smem:[#allocation0]]
  $region26: #{bottleneck_forward.7} parent=0
    _
  %s7 = ssub.s32 1, %s5
  %s8 = scalar_select 0, %s7, %s5
  // Predicated region
  $region2: #{bottleneck_forward.7} parent=0 // pred_check
    _
  $region3: #{bottleneck_forward.7} parent=0 // pred_check_branch
    %10 = sbr.rel (0) target = $region5
  $region4: #{bottleneck_forward.7} parent=0 // pred_region
    _
  $region5: #{bottleneck_forward.7} parent=0 // pred_fallthru
    _
  // Predicated region
  $region6: #{bottleneck_forward.7} parent=0 // pred_check
    _
  $region7: #{bottleneck_forward.7} parent=0 // pred_check_branch
    %12 = sbr.rel (0) target = $region9
  $region8: #{bottleneck_forward.7} parent=0 // pred_region
    _
  $region9: #{bottleneck_forward.7} parent=0 // pred_fallthru
    _
  // Predicated region
  $region10: #{bottleneck_forward.7} parent=0 // pred_check
    _
  $region11: #{bottleneck_forward.7} parent=0 // pred_check_branch
    %14 = sbr.rel (0) target = $region13
  $region12: #{bottleneck_forward.7} parent=0 // pred_region
    _
  $region13: #{bottleneck_forward.7} parent=0 // pred_fallthru
    _
  // Predicated region
  $region14: #{bottleneck_forward.7} parent=0 // pred_check
    _
  $region15: #{bottleneck_forward.7} parent=0 // pred_check_branch
    %16 = sbr.rel (0) target = $region17
  $region16: #{bottleneck_forward.7} parent=0 // pred_region
    _
  $region17: #{bottleneck_forward.7} parent=0 // pred_fallthru
    _
  %v17 = vld [vmem:[%s0] sm:$0xf]
  %v18 = vld [vmem:[%s0 + $0x4] sm:$0xf]
  %v19 = vld [vmem:[%s0 + $0x8] sm:$0xf]
  %v20 = vld [vmem:[%s0 + $0xc] sm:$0xf]
  %v21 = vld [vmem:[%s0 + $0x10] sm:$0xf]
  %v22 = vld [vmem:[%s0 + $0x14] sm:$0xf]
  %v23 = vld [vmem:[%s0 + $0x18] sm:$0xf]
  %v24 = vld [vmem:[%s0 + $0x1c] sm:$0xf]
  %v25 = vld [vmem:[%s0 + $0x20] sm:$0xf]
  %v26 = vld [vmem:[%s0 + $0x24] sm:$0xf]
  %v27 = vld [vmem:[%s0 + $0x28] sm:$0xf]
  %v28 = vld [vmem:[%s0 + $0x2c] sm:$0xf]
  %v29 = vld [vmem:[%s0 + $0x30] sm:$0xf]
  %v30 = vld [vmem:[%s0 + $0x34] sm:$0xf]
  %v31 = vld [vmem:[%s0 + $0x38] sm:$0xf]
  %v32 = vld [vmem:[%s0 + $0x3c] sm:$0xf]
  %v33 = vld [vmem:[%s0 + $0x40] sm:$0xf]
  %v34 = vld [vmem:[%s0 + $0x44] sm:$0xf]
  %v35 = vld [vmem:[%s0 + $0x48] sm:$0xf]
  %v36 = vld [vmem:[%s0 + $0x4c] sm:$0xf]
  %v37 = vld [vmem:[%s0 + $0x50] sm:$0xf]
  %v38 = vld [vmem:[%s0 + $0x54] sm:$0xf]
  %v39 = vld [vmem:[%s0 + $0x58] sm:$0xf]
  %v40 = vld [vmem:[%s0 + $0x5c] sm:$0xf]
  %v41 = vld [vmem:[%s0 + $0x60] sm:$0xf]
  %v42 = vld [vmem:[%s0 + $0x64] sm:$0xf]
  %v43 = vld [vmem:[%s0 + $0x68] sm:$0xf]
  %v44 = vld [vmem:[%s0 + $0x6c] sm:$0xf]
  %v45 = vld [vmem:[%s0 + $0x70] sm:$0xf]
  %v46 = vld [vmem:[%s0 + $0x74] sm:$0xf]
  %v47 = vld [vmem:[%s0 + $0x78] sm:$0xf]
  %v48 = vld [vmem:[%s0 + $0x7c] sm:$0xf]
  %v49 = vld [vmem:[%s0 + $0x80] sm:$0xf]
  %v50 = vld [vmem:[%s0 + $0x84] sm:$0xf]
  %v51 = vld [vmem:[%s0 + $0x88] sm:$0xf]
  %v52 = vld [vmem:[%s0 + $0x8c] sm:$0xf]
  %v53 = vld [vmem:[%s0 + $0x90] sm:$0xf]
  %v54 = vld [vmem:[%s0 + $0x94] sm:$0xf]
  %v55 = vld [vmem:[%s0 + $0x98] sm:$0xf]
  %v56 = vld [vmem:[%s0 + $0x9c] sm:$0xf]
  %v57 = vld [vmem:[%s0 + $0xa0] sm:$0xf]
  %v58 = vld [vmem:[%s0 + $0xa4] sm:$0xf]
  %v59 = vld [vmem:[%s0 + $0xa8] sm:$0xf]
  %v60 = vld [vmem:[%s0 + $0xac] sm:$0xf]
  %v61 = vld [vmem:[%s0 + $0xb0] sm:$0xf]
  %v62 = vld [vmem:[%s0 + $0xb4] sm:$0xf]
  %v63 = vld [vmem:[%s0 + $0xb8] sm:$0xf]
  %v64 = vld [vmem:[%s0 + $0xbc] sm:$0xf]
  %v65 = vld [vmem:[%s0 + $0xc0] sm:$0xf]
  %v66 = vld [vmem:[%s0 + $0xc4] sm:$0xf]
  %v67 = vld [vmem:[%s0 + $0xc8] sm:$0xf]
  %v68 = vld [vmem:[%s0 + $0xcc] sm:$0xf]
  %v69 = vld [vmem:[%s0 + $0xd0] sm:$0xf]
  %v70 = vld [vmem:[%s0 + $0xd4] sm:$0xf]
  %v71 = vld [vmem:[%s0 + $0xd8] sm:$0xf]
  %v72 = vld [vmem:[%s0 + $0xdc] sm:$0xf]
  %v73 = vld [vmem:[%s0 + $0xe0] sm:$0xf]
  %v74 = vld [vmem:[%s0 + $0xe4] sm:$0xf]
  %v75 = vld [vmem:[%s0 + $0xe8] sm:$0xf]
  %v76 = vld [vmem:[%s0 + $0xec] sm:$0xf]
  %v77 = vld [vmem:[%s0 + $0xf0] sm:$0xf]
  %v78 = vld [vmem:[%s0 + $0xf4] sm:$0xf]
  %v79 = vld [vmem:[%s0 + $0xf8] sm:$0xf]
  %v80 = vld [vmem:[%s0 + $0xfc] sm:$0xf]
  %v81 = vunpack.c.l.bf16 %v17
  %v82 = vunpack.c.l.bf16 %v18
  %v83 = vunpack.c.l.bf16 %v19
  %v84 = vunpack.c.l.bf16 %v20
  %v85 = vunpack.c.l.bf16 %v21
  %v86 = vunpack.c.l.bf16 %v22
  %v87 = vunpack.c.l.bf16 %v23
  %v88 = vunpack.c.l.bf16 %v24
  %v89 = vunpack.c.l.bf16 %v25
  %v90 = vunpack.c.l.bf16 %v26
  %v91 = vunpack.c.l.bf16 %v27
  %v92 = vunpack.c.l.bf16 %v28
  %v93 = vunpack.c.l.bf16 %v29
  %v94 = vunpack.c.l.bf16 %v30
  %v95 = vunpack.c.l.bf16 %v31
  %v96 = vunpack.c.l.bf16 %v32
  %v97 = vunpack.c.l.bf16 %v33
  %v98 = vunpack.c.l.bf16 %v34
  %v99 = vunpack.c.l.bf16 %v35
  %v100 = vunpack.c.l.bf16 %v36
  %v101 = vunpack.c.l.bf16 %v37
  %v102 = vunpack.c.l.bf16 %v38
  %v103 = vunpack.c.l.bf16 %v39
  %v104 = vunpack.c.l.bf16 %v40
  %v105 = vunpack.c.l.bf16 %v41
  %v106 = vunpack.c.l.bf16 %v42
  %v107 = vunpack.c.l.bf16 %v43
  %v108 = vunpack.c.l.bf16 %v44
  %v109 = vunpack.c.l.bf16 %v45
  %v110 = vunpack.c.l.bf16 %v46
  %v111 = vunpack.c.l.bf16 %v47
  %v112 = vunpack.c.l.bf16 %v48
  %v113 = vunpack.c.l.bf16 %v49
  %v114 = vunpack.c.l.bf16 %v50
  %v115 = vunpack.c.l.bf16 %v51
  %v116 = vunpack.c.l.bf16 %v52
  %v117 = vunpack.c.l.bf16 %v53
  %v118 = vunpack.c.l.bf16 %v54
  %v119 = vunpack.c.l.bf16 %v55
  %v120 = vunpack.c.l.bf16 %v56
  %v121 = vunpack.c.l.bf16 %v57
  %v122 = vunpack.c.l.bf16 %v58
  %v123 = vunpack.c.l.bf16 %v59
  %v124 = vunpack.c.l.bf16 %v60
  %v125 = vunpack.c.l.bf16 %v61
  %v126 = vunpack.c.l.bf16 %v62
  %v127 = vunpack.c.l.bf16 %v63
  %v128 = vunpack.c.l.bf16 %v64
  %v129 = vunpack.c.l.bf16 %v65
  %v130 = vunpack.c.l.bf16 %v66
  %v131 = vunpack.c.l.bf16 %v67
  %v132 = vunpack.c.l.bf16 %v68
  %v133 = vunpack.c.l.bf16 %v69
  %v134 = vunpack.c.l.bf16 %v70
  %v135 = vunpack.c.l.bf16 %v71
  %v136 = vunpack.c.l.bf16 %v72
  %v137 = vunpack.c.l.bf16 %v73
  %v138 = vunpack.c.l.bf16 %v74
  %v139 = vunpack.c.l.bf16 %v75
  %v140 = vunpack.c.l.bf16 %v76
  %v141 = vunpack.c.l.bf16 %v77
  %v142 = vunpack.c.l.bf16 %v78
  %v143 = vunpack.c.l.bf16 %v79
  %v144 = vunpack.c.l.bf16 %v80
  %v145 = vld [vmem:[%s1] sm:$0x1]
  %v147 = vlaneseq
  %v148 = vshrl.u32 %v147, 7
  %v149 = vsub.s32 0, %v148
  %v150 = vrot.slane %v145, %v149
  %v152 = vmul.f32 %v81, %v150
  %v153 = vmul.f32 %v82, %v150
  %v154 = vmul.f32 %v83, %v150
  %v155 = vmul.f32 %v84, %v150
  %v156 = vmul.f32 %v85, %v150
  %v157 = vmul.f32 %v86, %v150
  %v158 = vmul.f32 %v87, %v150
  %v159 = vmul.f32 %v88, %v150
  %v160 = vmul.f32 %v89, %v150
  %v161 = vmul.f32 %v90, %v150
  %v162 = vmul.f32 %v91, %v150
  %v163 = vmul.f32 %v92, %v150
  %v164 = vmul.f32 %v93, %v150
  %v165 = vmul.f32 %v94, %v150
  %v166 = vmul.f32 %v95, %v150
  %v167 = vmul.f32 %v96, %v150
  %v168 = vmul.f32 %v97, %v150
  %v169 = vmul.f32 %v98, %v150
  %v170 = vmul.f32 %v99, %v150
  %v171 = vmul.f32 %v100, %v150
  %v172 = vmul.f32 %v101, %v150
  %v173 = vmul.f32 %v102, %v150
  %v174 = vmul.f32 %v103, %v150
  %v175 = vmul.f32 %v104, %v150
  %v176 = vmul.f32 %v105, %v150
  %v177 = vmul.f32 %v106, %v150
  %v178 = vmul.f32 %v107, %v150
  %v179 = vmul.f32 %v108, %v150
  %v180 = vmul.f32 %v109, %v150
  %v181 = vmul.f32 %v110, %v150
  %v182 = vmul.f32 %v111, %v150
  %v183 = vmul.f32 %v112, %v150
  %v184 = vmul.f32 %v113, %v150
  %v185 = vmul.f32 %v114, %v150
  %v186 = vmul.f32 %v115, %v150
  %v187 = vmul.f32 %v116, %v150
  %v188 = vmul.f32 %v117, %v150
  %v189 = vmul.f32 %v118, %v150
  %v190 = vmul.f32 %v119, %v150
  %v191 = vmul.f32 %v120, %v150
  %v192 = vmul.f32 %v121, %v150
  %v193 = vmul.f32 %v122, %v150
  %v194 = vmul.f32 %v123, %v150
  %v195 = vmul.f32 %v124, %v150
  %v196 = vmul.f32 %v125, %v150
  %v197 = vmul.f32 %v126, %v150
  %v198 = vmul.f32 %v127, %v150
  %v199 = vmul.f32 %v128, %v150
  %v200 = vmul.f32 %v129, %v150
  %v201 = vmul.f32 %v130, %v150
  %v202 = vmul.f32 %v131, %v150
  %v203 = vmul.f32 %v132, %v150
  %v204 = vmul.f32 %v133, %v150
  %v205 = vmul.f32 %v134, %v150
  %v206 = vmul.f32 %v135, %v150
  %v207 = vmul.f32 %v136, %v150
  %v208 = vmul.f32 %v137, %v150
  %v209 = vmul.f32 %v138, %v150
  %v210 = vmul.f32 %v139, %v150
  %v211 = vmul.f32 %v140, %v150
  %v212 = vmul.f32 %v141, %v150
  %v213 = vmul.f32 %v142, %v150
  %v214 = vmul.f32 %v143, %v150
  %v215 = vmul.f32 %v144, %v150
  %v216 = vld [vmem:[%s2] sm:$0x1]
  %v218 = vlaneseq
  %v219 = vshrl.u32 %v218, 7
  %v220 = vsub.s32 0, %v219
  %v221 = vrot.slane %v216, %v220
  %v223 = vadd.f32 %v152, %v221
  %v224 = vadd.f32 %v153, %v221
  %v225 = vadd.f32 %v154, %v221
  %v226 = vadd.f32 %v155, %v221
  %v227 = vadd.f32 %v156, %v221
  %v228 = vadd.f32 %v157, %v221
  %v229 = vadd.f32 %v158, %v221
  %v230 = vadd.f32 %v159, %v221
  %v231 = vadd.f32 %v160, %v221
  %v232 = vadd.f32 %v161, %v221
  %v233 = vadd.f32 %v162, %v221
  %v234 = vadd.f32 %v163, %v221
  %v235 = vadd.f32 %v164, %v221
  %v236 = vadd.f32 %v165, %v221
  %v237 = vadd.f32 %v166, %v221
  %v238 = vadd.f32 %v167, %v221
  %v239 = vadd.f32 %v168, %v221
  %v240 = vadd.f32 %v169, %v221
  %v241 = vadd.f32 %v170, %v221
  %v242 = vadd.f32 %v171, %v221
  %v243 = vadd.f32 %v172, %v221
  %v244 = vadd.f32 %v173, %v221
  %v245 = vadd.f32 %v174, %v221
  %v246 = vadd.f32 %v175, %v221
  %v247 = vadd.f32 %v176, %v221
  %v248 = vadd.f32 %v177, %v221
  %v249 = vadd.f32 %v178, %v221
  %v250 = vadd.f32 %v179, %v221
  %v251 = vadd.f32 %v180, %v221
  %v252 = vadd.f32 %v181, %v221
  %v253 = vadd.f32 %v182, %v221
  %v254 = vadd.f32 %v183, %v221
  %v255 = vadd.f32 %v184, %v221
  %v256 = vadd.f32 %v185, %v221
  %v257 = vadd.f32 %v186, %v221
  %v258 = vadd.f32 %v187, %v221
  %v259 = vadd.f32 %v188, %v221
  %v260 = vadd.f32 %v189, %v221
  %v261 = vadd.f32 %v190, %v221
  %v262 = vadd.f32 %v191, %v221
  %v263 = vadd.f32 %v192, %v221
  %v264 = vadd.f32 %v193, %v221
  %v265 = vadd.f32 %v194, %v221
  %v266 = vadd.f32 %v195, %v221
  %v267 = vadd.f32 %v196, %v221
  %v268 = vadd.f32 %v197, %v221
  %v269 = vadd.f32 %v198, %v221
  %v270 = vadd.f32 %v199, %v221
  %v271 = vadd.f32 %v200, %v221
  %v272 = vadd.f32 %v201, %v221
  %v273 = vadd.f32 %v202, %v221
  %v274 = vadd.f32 %v203, %v221
  %v275 = vadd.f32 %v204, %v221
  %v276 = vadd.f32 %v205, %v221
  %v277 = vadd.f32 %v206, %v221
  %v278 = vadd.f32 %v207, %v221
  %v279 = vadd.f32 %v208, %v221
  %v280 = vadd.f32 %v209, %v221
  %v281 = vadd.f32 %v210, %v221
  %v282 = vadd.f32 %v211, %v221
  %v283 = vadd.f32 %v212, %v221
  %v284 = vadd.f32 %v213, %v221
  %v285 = vadd.f32 %v214, %v221
  %v286 = vadd.f32 %v215, %v221
  %v287 = vld [vmem:[%s3] sm:$0xf]
  %v288 = vld [vmem:[%s3 + $0x4] sm:$0xf]
  %v289 = vld [vmem:[%s3 + $0x8] sm:$0xf]
  %v290 = vld [vmem:[%s3 + $0xc] sm:$0xf]
  %v291 = vld [vmem:[%s3 + $0x10] sm:$0xf]
  %v292 = vld [vmem:[%s3 + $0x14] sm:$0xf]
  %v293 = vld [vmem:[%s3 + $0x18] sm:$0xf]
  %v294 = vld [vmem:[%s3 + $0x1c] sm:$0xf]
  %v295 = vld [vmem:[%s3 + $0x20] sm:$0xf]
  %v296 = vld [vmem:[%s3 + $0x24] sm:$0xf]
  %v297 = vld [vmem:[%s3 + $0x28] sm:$0xf]
  %v298 = vld [vmem:[%s3 + $0x2c] sm:$0xf]
  %v299 = vld [vmem:[%s3 + $0x30] sm:$0xf]
  %v300 = vld [vmem:[%s3 + $0x34] sm:$0xf]
  %v301 = vld [vmem:[%s3 + $0x38] sm:$0xf]
  %v302 = vld [vmem:[%s3 + $0x3c] sm:$0xf]
  %v303 = vld [vmem:[%s3 + $0x40] sm:$0xf]
  %v304 = vld [vmem:[%s3 + $0x44] sm:$0xf]
  %v305 = vld [vmem:[%s3 + $0x48] sm:$0xf]
  %v306 = vld [vmem:[%s3 + $0x4c] sm:$0xf]
  %v307 = vld [vmem:[%s3 + $0x50] sm:$0xf]
  %v308 = vld [vmem:[%s3 + $0x54] sm:$0xf]
  %v309 = vld [vmem:[%s3 + $0x58] sm:$0xf]
  %v310 = vld [vmem:[%s3 + $0x5c] sm:$0xf]
  %v311 = vld [vmem:[%s3 + $0x60] sm:$0xf]
  %v312 = vld [vmem:[%s3 + $0x64] sm:$0xf]
  %v313 = vld [vmem:[%s3 + $0x68] sm:$0xf]
  %v314 = vld [vmem:[%s3 + $0x6c] sm:$0xf]
  %v315 = vld [vmem:[%s3 + $0x70] sm:$0xf]
  %v316 = vld [vmem:[%s3 + $0x74] sm:$0xf]
  %v317 = vld [vmem:[%s3 + $0x78] sm:$0xf]
  %v318 = vld [vmem:[%s3 + $0x7c] sm:$0xf]
  %v319 = vld [vmem:[%s3 + $0x80] sm:$0xf]
  %v320 = vld [vmem:[%s3 + $0x84] sm:$0xf]
  %v321 = vld [vmem:[%s3 + $0x88] sm:$0xf]
  %v322 = vld [vmem:[%s3 + $0x8c] sm:$0xf]
  %v323 = vld [vmem:[%s3 + $0x90] sm:$0xf]
  %v324 = vld [vmem:[%s3 + $0x94] sm:$0xf]
  %v325 = vld [vmem:[%s3 + $0x98] sm:$0xf]
  %v326 = vld [vmem:[%s3 + $0x9c] sm:$0xf]
  %v327 = vld [vmem:[%s3 + $0xa0] sm:$0xf]
  %v328 = vld [vmem:[%s3 + $0xa4] sm:$0xf]
  %v329 = vld [vmem:[%s3 + $0xa8] sm:$0xf]
  %v330 = vld [vmem:[%s3 + $0xac] sm:$0xf]
  %v331 = vld [vmem:[%s3 + $0xb0] sm:$0xf]
  %v332 = vld [vmem:[%s3 + $0xb4] sm:$0xf]
  %v333 = vld [vmem:[%s3 + $0xb8] sm:$0xf]
  %v334 = vld [vmem:[%s3 + $0xbc] sm:$0xf]
  %v335 = vld [vmem:[%s3 + $0xc0] sm:$0xf]
  %v336 = vld [vmem:[%s3 + $0xc4] sm:$0xf]
  %v337 = vld [vmem:[%s3 + $0xc8] sm:$0xf]
  %v338 = vld [vmem:[%s3 + $0xcc] sm:$0xf]
  %v339 = vld [vmem:[%s3 + $0xd0] sm:$0xf]
  %v340 = vld [vmem:[%s3 + $0xd4] sm:$0xf]
  %v341 = vld [vmem:[%s3 + $0xd8] sm:$0xf]
  %v342 = vld [vmem:[%s3 + $0xdc] sm:$0xf]
  %v343 = vld [vmem:[%s3 + $0xe0] sm:$0xf]
  %v344 = vld [vmem:[%s3 + $0xe4] sm:$0xf]
  %v345 = vld [vmem:[%s3 + $0xe8] sm:$0xf]
  %v346 = vld [vmem:[%s3 + $0xec] sm:$0xf]
  %v347 = vld [vmem:[%s3 + $0xf0] sm:$0xf]
  %v348 = vld [vmem:[%s3 + $0xf4] sm:$0xf]
  %v349 = vld [vmem:[%s3 + $0xf8] sm:$0xf]
  %v350 = vld [vmem:[%s3 + $0xfc] sm:$0xf]
  %v351 = vunpack.c.l.bf16 %v287
  %v352 = vunpack.c.l.bf16 %v288
  %v353 = vunpack.c.l.bf16 %v289
  %v354 = vunpack.c.l.bf16 %v290
  %v355 = vunpack.c.l.bf16 %v291
  %v356 = vunpack.c.l.bf16 %v292
  %v357 = vunpack.c.l.bf16 %v293
  %v358 = vunpack.c.l.bf16 %v294
  %v359 = vunpack.c.l.bf16 %v295
  %v360 = vunpack.c.l.bf16 %v296
  %v361 = vunpack.c.l.bf16 %v297
  %v362 = vunpack.c.l.bf16 %v298
  %v363 = vunpack.c.l.bf16 %v299
  %v364 = vunpack.c.l.bf16 %v300
  %v365 = vunpack.c.l.bf16 %v301
  %v366 = vunpack.c.l.bf16 %v302
  %v367 = vunpack.c.l.bf16 %v303
  %v368 = vunpack.c.l.bf16 %v304
  %v369 = vunpack.c.l.bf16 %v305
  %v370 = vunpack.c.l.bf16 %v306
  %v371 = vunpack.c.l.bf16 %v307
  %v372 = vunpack.c.l.bf16 %v308
  %v373 = vunpack.c.l.bf16 %v309
  %v374 = vunpack.c.l.bf16 %v310
  %v375 = vunpack.c.l.bf16 %v311
  %v376 = vunpack.c.l.bf16 %v312
  %v377 = vunpack.c.l.bf16 %v313
  %v378 = vunpack.c.l.bf16 %v314
  %v379 = vunpack.c.l.bf16 %v315
  %v380 = vunpack.c.l.bf16 %v316
  %v381 = vunpack.c.l.bf16 %v317
  %v382 = vunpack.c.l.bf16 %v318
  %v383 = vunpack.c.l.bf16 %v319
  %v384 = vunpack.c.l.bf16 %v320
  %v385 = vunpack.c.l.bf16 %v321
  %v386 = vunpack.c.l.bf16 %v322
  %v387 = vunpack.c.l.bf16 %v323
  %v388 = vunpack.c.l.bf16 %v324
  %v389 = vunpack.c.l.bf16 %v325
  %v390 = vunpack.c.l.bf16 %v326
  %v391 = vunpack.c.l.bf16 %v327
  %v392 = vunpack.c.l.bf16 %v328
  %v393 = vunpack.c.l.bf16 %v329
  %v394 = vunpack.c.l.bf16 %v330
  %v395 = vunpack.c.l.bf16 %v331
  %v396 = vunpack.c.l.bf16 %v332
  %v397 = vunpack.c.l.bf16 %v333
  %v398 = vunpack.c.l.bf16 %v334
  %v399 = vunpack.c.l.bf16 %v335
  %v400 = vunpack.c.l.bf16 %v336
  %v401 = vunpack.c.l.bf16 %v337
  %v402 = vunpack.c.l.bf16 %v338
  %v403 = vunpack.c.l.bf16 %v339
  %v404 = vunpack.c.l.bf16 %v340
  %v405 = vunpack.c.l.bf16 %v341
  %v406 = vunpack.c.l.bf16 %v342
  %v407 = vunpack.c.l.bf16 %v343
  %v408 = vunpack.c.l.bf16 %v344
  %v409 = vunpack.c.l.bf16 %v345
  %v410 = vunpack.c.l.bf16 %v346
  %v411 = vunpack.c.l.bf16 %v347
  %v412 = vunpack.c.l.bf16 %v348
  %v413 = vunpack.c.l.bf16 %v349
  %v414 = vunpack.c.l.bf16 %v350
  %v415 = vadd.f32 %v223, %v351
  %v416 = vadd.f32 %v224, %v352
  %v417 = vadd.f32 %v225, %v353
  %v418 = vadd.f32 %v226, %v354
  %v419 = vadd.f32 %v227, %v355
  %v420 = vadd.f32 %v228, %v356
  %v421 = vadd.f32 %v229, %v357
  %v422 = vadd.f32 %v230, %v358
  %v423 = vadd.f32 %v231, %v359
  %v424 = vadd.f32 %v232, %v360
  %v425 = vadd.f32 %v233, %v361
  %v426 = vadd.f32 %v234, %v362
  %v427 = vadd.f32 %v235, %v363
  %v428 = vadd.f32 %v236, %v364
  %v429 = vadd.f32 %v237, %v365
  %v430 = vadd.f32 %v238, %v366
  %v431 = vadd.f32 %v239, %v367
  %v432 = vadd.f32 %v240, %v368
  %v433 = vadd.f32 %v241, %v369
  %v434 = vadd.f32 %v242, %v370
  %v435 = vadd.f32 %v243, %v371
  %v436 = vadd.f32 %v244, %v372
  %v437 = vadd.f32 %v245, %v373
  %v438 = vadd.f32 %v246, %v374
  %v439 = vadd.f32 %v247, %v375
  %v440 = vadd.f32 %v248, %v376
  %v441 = vadd.f32 %v249, %v377
  %v442 = vadd.f32 %v250, %v378
  %v443 = vadd.f32 %v251, %v379
  %v444 = vadd.f32 %v252, %v380
  %v445 = vadd.f32 %v253, %v381
  %v446 = vadd.f32 %v254, %v382
  %v447 = vadd.f32 %v255, %v383
  %v448 = vadd.f32 %v256, %v384
  %v449 = vadd.f32 %v257, %v385
  %v450 = vadd.f32 %v258, %v386
  %v451 = vadd.f32 %v259, %v387
  %v452 = vadd.f32 %v260, %v388
  %v453 = vadd.f32 %v261, %v389
  %v454 = vadd.f32 %v262, %v390
  %v455 = vadd.f32 %v263, %v391
  %v456 = vadd.f32 %v264, %v392
  %v457 = vadd.f32 %v265, %v393
  %v458 = vadd.f32 %v266, %v394
  %v459 = vadd.f32 %v267, %v395
  %v460 = vadd.f32 %v268, %v396
  %v461 = vadd.f32 %v269, %v397
  %v462 = vadd.f32 %v270, %v398
  %v463 = vadd.f32 %v271, %v399
  %v464 = vadd.f32 %v272, %v400
  %v465 = vadd.f32 %v273, %v401
  %v466 = vadd.f32 %v274, %v402
  %v467 = vadd.f32 %v275, %v403
  %v468 = vadd.f32 %v276, %v404
  %v469 = vadd.f32 %v277, %v405
  %v470 = vadd.f32 %v278, %v406
  %v471 = vadd.f32 %v279, %v407
  %v472 = vadd.f32 %v280, %v408
  %v473 = vadd.f32 %v281, %v409
  %v474 = vadd.f32 %v282, %v410
  %v475 = vadd.f32 %v283, %v411
  %v476 = vadd.f32 %v284, %v412
  %v477 = vadd.f32 %v285, %v413
  %v478 = vadd.f32 %v286, %v414
  %v479 = vmax.f32 %v415, 0.0
  %v480 = vmax.f32 %v416, 0.0
  %v481 = vmax.f32 %v417, 0.0
  %v482 = vmax.f32 %v418, 0.0
  %v483 = vmax.f32 %v419, 0.0
  %v484 = vmax.f32 %v420, 0.0
  %v485 = vmax.f32 %v421, 0.0
  %v486 = vmax.f32 %v422, 0.0
  %v487 = vmax.f32 %v423, 0.0
  %v488 = vmax.f32 %v424, 0.0
  %v489 = vmax.f32 %v425, 0.0
  %v490 = vmax.f32 %v426, 0.0
  %v491 = vmax.f32 %v427, 0.0
  %v492 = vmax.f32 %v428, 0.0
  %v493 = vmax.f32 %v429, 0.0
  %v494 = vmax.f32 %v430, 0.0
  %v495 = vmax.f32 %v431, 0.0
  %v496 = vmax.f32 %v432, 0.0
  %v497 = vmax.f32 %v433, 0.0
  %v498 = vmax.f32 %v434, 0.0
  %v499 = vmax.f32 %v435, 0.0
  %v500 = vmax.f32 %v436, 0.0
  %v501 = vmax.f32 %v437, 0.0
  %v502 = vmax.f32 %v438, 0.0
  %v503 = vmax.f32 %v439, 0.0
  %v504 = vmax.f32 %v440, 0.0
  %v505 = vmax.f32 %v441, 0.0
  %v506 = vmax.f32 %v442, 0.0
  %v507 = vmax.f32 %v443, 0.0
  %v508 = vmax.f32 %v444, 0.0
  %v509 = vmax.f32 %v445, 0.0
  %v510 = vmax.f32 %v446, 0.0
  %v511 = vmax.f32 %v447, 0.0
  %v512 = vmax.f32 %v448, 0.0
  %v513 = vmax.f32 %v449, 0.0
  %v514 = vmax.f32 %v450, 0.0
  %v515 = vmax.f32 %v451, 0.0
  %v516 = vmax.f32 %v452, 0.0
  %v517 = vmax.f32 %v453, 0.0
  %v518 = vmax.f32 %v454, 0.0
  %v519 = vmax.f32 %v455, 0.0
  %v520 = vmax.f32 %v456, 0.0
  %v521 = vmax.f32 %v457, 0.0
  %v522 = vmax.f32 %v458, 0.0
  %v523 = vmax.f32 %v459, 0.0
  %v524 = vmax.f32 %v460, 0.0
  %v525 = vmax.f32 %v461, 0.0
  %v526 = vmax.f32 %v462, 0.0
  %v527 = vmax.f32 %v463, 0.0
  %v528 = vmax.f32 %v464, 0.0
  %v529 = vmax.f32 %v465, 0.0
  %v530 = vmax.f32 %v466, 0.0
  %v531 = vmax.f32 %v467, 0.0
  %v532 = vmax.f32 %v468, 0.0
  %v533 = vmax.f32 %v469, 0.0
  %v534 = vmax.f32 %v470, 0.0
  %v535 = vmax.f32 %v471, 0.0
  %v536 = vmax.f32 %v472, 0.0
  %v537 = vmax.f32 %v473, 0.0
  %v538 = vmax.f32 %v474, 0.0
  %v539 = vmax.f32 %v475, 0.0
  %v540 = vmax.f32 %v476, 0.0
  %v541 = vmax.f32 %v477, 0.0
  %v542 = vmax.f32 %v478, 0.0
  %543 = vst [vmem:[%s4] sm:$0xff] %v479
  %544 = vst [vmem:[%s4 + $0x8] sm:$0xff] %v480
  %545 = vst [vmem:[%s4 + $0x10] sm:$0xff] %v481
  %546 = vst [vmem:[%s4 + $0x18] sm:$0xff] %v482
  %547 = vst [vmem:[%s4 + $0x20] sm:$0xff] %v483
  %548 = vst [vmem:[%s4 + $0x28] sm:$0xff] %v484
  %549 = vst [vmem:[%s4 + $0x30] sm:$0xff] %v485
  %550 = vst [vmem:[%s4 + $0x38] sm:$0xff] %v486
  %551 = vst [vmem:[%s4 + $0x40] sm:$0xff] %v487
  %552 = vst [vmem:[%s4 + $0x48] sm:$0xff] %v488
  %553 = vst [vmem:[%s4 + $0x50] sm:$0xff] %v489
  %554 = vst [vmem:[%s4 + $0x58] sm:$0xff] %v490
  %555 = vst [vmem:[%s4 + $0x60] sm:$0xff] %v491
  %556 = vst [vmem:[%s4 + $0x68] sm:$0xff] %v492
  %557 = vst [vmem:[%s4 + $0x70] sm:$0xff] %v493
  %558 = vst [vmem:[%s4 + $0x78] sm:$0xff] %v494
  %559 = vst [vmem:[%s4 + $0x80] sm:$0xff] %v495
  %560 = vst [vmem:[%s4 + $0x88] sm:$0xff] %v496
  %561 = vst [vmem:[%s4 + $0x90] sm:$0xff] %v497
  %562 = vst [vmem:[%s4 + $0x98] sm:$0xff] %v498
  %563 = vst [vmem:[%s4 + $0xa0] sm:$0xff] %v499
  %564 = vst [vmem:[%s4 + $0xa8] sm:$0xff] %v500
  %565 = vst [vmem:[%s4 + $0xb0] sm:$0xff] %v501
  %566 = vst [vmem:[%s4 + $0xb8] sm:$0xff] %v502
  %567 = vst [vmem:[%s4 + $0xc0] sm:$0xff] %v503
  %568 = vst [vmem:[%s4 + $0xc8] sm:$0xff] %v504
  %569 = vst [vmem:[%s4 + $0xd0] sm:$0xff] %v505
  %570 = vst [vmem:[%s4 + $0xd8] sm:$0xff] %v506
  %571 = vst [vmem:[%s4 + $0xe0] sm:$0xff] %v507
  %572 = vst [vmem:[%s4 + $0xe8] sm:$0xff] %v508
  %573 = vst [vmem:[%s4 + $0xf0] sm:$0xff] %v509
  %574 = vst [vmem:[%s4 + $0xf8] sm:$0xff] %v510
  %575 = vst [vmem:[%s4 + $0x100] sm:$0xff] %v511
  %576 = vst [vmem:[%s4 + $0x108] sm:$0xff] %v512
  %577 = vst [vmem:[%s4 + $0x110] sm:$0xff] %v513
  %578 = vst [vmem:[%s4 + $0x118] sm:$0xff] %v514
  %579 = vst [vmem:[%s4 + $0x120] sm:$0xff] %v515
  %580 = vst [vmem:[%s4 + $0x128] sm:$0xff] %v516
  %581 = vst [vmem:[%s4 + $0x130] sm:$0xff] %v517
  %582 = vst [vmem:[%s4 + $0x138] sm:$0xff] %v518
  %583 = vst [vmem:[%s4 + $0x140] sm:$0xff] %v519
  %584 = vst [vmem:[%s4 + $0x148] sm:$0xff] %v520
  %585 = vst [vmem:[%s4 + $0x150] sm:$0xff] %v521
  %586 = vst [vmem:[%s4 + $0x158] sm:$0xff] %v522
  %587 = vst [vmem:[%s4 + $0x160] sm:$0xff] %v523
  %588 = vst [vmem:[%s4 + $0x168] sm:$0xff] %v524
  %589 = vst [vmem:[%s4 + $0x170] sm:$0xff] %v525
  %590 = vst [vmem:[%s4 + $0x178] sm:$0xff] %v526
  %591 = vst [vmem:[%s4 + $0x180] sm:$0xff] %v527
  %592 = vst [vmem:[%s4 + $0x188] sm:$0xff] %v528
  %593 = vst [vmem:[%s4 + $0x190] sm:$0xff] %v529
  %594 = vst [vmem:[%s4 + $0x198] sm:$0xff] %v530
  %595 = vst [vmem:[%s4 + $0x1a0] sm:$0xff] %v531
  %596 = vst [vmem:[%s4 + $0x1a8] sm:$0xff] %v532
  %597 = vst [vmem:[%s4 + $0x1b0] sm:$0xff] %v533
  %598 = vst [vmem:[%s4 + $0x1b8] sm:$0xff] %v534
  %599 = vst [vmem:[%s4 + $0x1c0] sm:$0xff] %v535
  %600 = vst [vmem:[%s4 + $0x1c8] sm:$0xff] %v536
  %601 = vst [vmem:[%s4 + $0x1d0] sm:$0xff] %v537
  %602 = vst [vmem:[%s4 + $0x1d8] sm:$0xff] %v538
  %603 = vst [vmem:[%s4 + $0x1e0] sm:$0xff] %v539
  %604 = vst [vmem:[%s4 + $0x1e8] sm:$0xff] %v540
  %605 = vst [vmem:[%s4 + $0x1f0] sm:$0xff] %v541
  %606 = vst [vmem:[%s4 + $0x1f8] sm:$0xff] %v542
  // Predicated region
  $region18: #{bottleneck_forward.7} parent=0 // pred_check
    _
  $region19: #{bottleneck_forward.7} parent=0 // pred_check_branch
    %608 = sbr.rel (0) target = $region21
  $region20: #{bottleneck_forward.7} parent=0 // pred_region
    _
  $region21: #{bottleneck_forward.7} parent=0 // pred_fallthru
    _
  // Predicated region
  $region22: #{bottleneck_forward.7} parent=0 // pred_check
    _
  $region23: #{bottleneck_forward.7} parent=0 // pred_check_branch
    %610 = sbr.rel (0) target = $region25
  $region24: #{bottleneck_forward.7} parent=0 // pred_region
    _
  $region25: #{bottleneck_forward.7} parent=0 // pred_fallthru
    _

// kernel: bottleneck_forward.4
$region0: #{bottleneck_forward.4}
  #allocation0 [shape = 'u32[]', space=smem, size = 0x4, offset = 0x4, fixed_abs, tag = 'smem constant byte address 0x4 - core index']
  #allocation1 [shape = 'u32[144,128]{1,0:T(1,128)}', space=vmem, size = 0x12000, scoped, tag = 'internal scratch']
  %s0 = inlined_call_operand.vmem [shape: bf16[512,128], index: 0, kind: input, shape index: {}]
  %s1 = inlined_call_operand.vmem [shape: bf16[128,128], index: 1, kind: input, shape index: {}]
  %s2 = inlined_call_operand.vmem [shape: bf16[512,128], index: 2, kind: output, shape index: {0}]
  %s3 = inlined_call_operand.vmem [shape: f32[1,1,128], index: 3, kind: output, shape index: {1}]
  %s4 = inlined_call_operand.vmem [shape: f32[1,1,128], index: 4, kind: output, shape index: {2}]
  %5 = xla_tuple %s2, %s3, %s4
  %s6 = sld [smem:[#allocation0]]
  $region34: #{bottleneck_forward.4} parent=0
    _
  %s8 = ssub.s32 1, %s6
  %s9 = scalar_select 0, %s8, %s6
  // Predicated region
  $region2: #{bottleneck_forward.4} parent=0 // pred_check
    _
  $region3: #{bottleneck_forward.4} parent=0 // pred_check_branch
    %11 = sbr.rel (0) target = $region5
  $region4: #{bottleneck_forward.4} parent=0 // pred_region
    _
  $region5: #{bottleneck_forward.4} parent=0 // pred_fallthru
    _
  // Predicated region
  $region6: #{bottleneck_forward.4} parent=0 // pred_check
    _
  $region7: #{bottleneck_forward.4} parent=0 // pred_check_branch
    %13 = sbr.rel (0) target = $region9
  $region8: #{bottleneck_forward.4} parent=0 // pred_region
    _
  $region9: #{bottleneck_forward.4} parent=0 // pred_fallthru
    _
  %v15 = vld [vmem:[%s0] sm:$0xf]
  %v16 = vld [vmem:[%s0 + $0x4] sm:$0xf]
  %v17 = vld [vmem:[%s0 + $0x8] sm:$0xf]
  %v18 = vld [vmem:[%s0 + $0xc] sm:$0xf]
  %v19 = vld [vmem:[%s0 + $0x10] sm:$0xf]
  %v20 = vld [vmem:[%s0 + $0x14] sm:$0xf]
  %v21 = vld [vmem:[%s0 + $0x18] sm:$0xf]
  %v22 = vld [vmem:[%s0 + $0x1c] sm:$0xf]
  %v23 = vld [vmem:[%s0 + $0x20] sm:$0xf]
  %v24 = vld [vmem:[%s0 + $0x24] sm:$0xf]
  %v25 = vld [vmem:[%s0 + $0x28] sm:$0xf]
  %v26 = vld [vmem:[%s0 + $0x2c] sm:$0xf]
  %v27 = vld [vmem:[%s0 + $0x30] sm:$0xf]
  %v28 = vld [vmem:[%s0 + $0x34] sm:$0xf]
  %v29 = vld [vmem:[%s0 + $0x38] sm:$0xf]
  %v30 = vld [vmem:[%s0 + $0x3c] sm:$0xf]
  %v31 = vld [vmem:[%s0 + $0x40] sm:$0xf]
  %v32 = vld [vmem:[%s0 + $0x44] sm:$0xf]
  %v33 = vld [vmem:[%s0 + $0x48] sm:$0xf]
  %v34 = vld [vmem:[%s0 + $0x4c] sm:$0xf]
  %v35 = vld [vmem:[%s0 + $0x50] sm:$0xf]
  %v36 = vld [vmem:[%s0 + $0x54] sm:$0xf]
  %v37 = vld [vmem:[%s0 + $0x58] sm:$0xf]
  %v38 = vld [vmem:[%s0 + $0x5c] sm:$0xf]
  %v39 = vld [vmem:[%s0 + $0x60] sm:$0xf]
  %v40 = vld [vmem:[%s0 + $0x64] sm:$0xf]
  %v41 = vld [vmem:[%s0 + $0x68] sm:$0xf]
  %v42 = vld [vmem:[%s0 + $0x6c] sm:$0xf]
  %v43 = vld [vmem:[%s0 + $0x70] sm:$0xf]
  %v44 = vld [vmem:[%s0 + $0x74] sm:$0xf]
  %v45 = vld [vmem:[%s0 + $0x78] sm:$0xf]
  %v46 = vld [vmem:[%s0 + $0x7c] sm:$0xf]
  %v47 = vld [vmem:[%s0 + $0x80] sm:$0xf]
  %v48 = vld [vmem:[%s0 + $0x84] sm:$0xf]
  %v49 = vld [vmem:[%s0 + $0x88] sm:$0xf]
  %v50 = vld [vmem:[%s0 + $0x8c] sm:$0xf]
  %v51 = vld [vmem:[%s0 + $0x90] sm:$0xf]
  %v52 = vld [vmem:[%s0 + $0x94] sm:$0xf]
  %v53 = vld [vmem:[%s0 + $0x98] sm:$0xf]
  %v54 = vld [vmem:[%s0 + $0x9c] sm:$0xf]
  %v55 = vld [vmem:[%s0 + $0xa0] sm:$0xf]
  %v56 = vld [vmem:[%s0 + $0xa4] sm:$0xf]
  %v57 = vld [vmem:[%s0 + $0xa8] sm:$0xf]
  %v58 = vld [vmem:[%s0 + $0xac] sm:$0xf]
  %v59 = vld [vmem:[%s0 + $0xb0] sm:$0xf]
  %v60 = vld [vmem:[%s0 + $0xb4] sm:$0xf]
  %v61 = vld [vmem:[%s0 + $0xb8] sm:$0xf]
  %v62 = vld [vmem:[%s0 + $0xbc] sm:$0xf]
  %v63 = vld [vmem:[%s0 + $0xc0] sm:$0xf]
  %v64 = vld [vmem:[%s0 + $0xc4] sm:$0xf]
  %v65 = vld [vmem:[%s0 + $0xc8] sm:$0xf]
  %v66 = vld [vmem:[%s0 + $0xcc] sm:$0xf]
  %v67 = vld [vmem:[%s0 + $0xd0] sm:$0xf]
  %v68 = vld [vmem:[%s0 + $0xd4] sm:$0xf]
  %v69 = vld [vmem:[%s0 + $0xd8] sm:$0xf]
  %v70 = vld [vmem:[%s0 + $0xdc] sm:$0xf]
  %v71 = vld [vmem:[%s0 + $0xe0] sm:$0xf]
  %v72 = vld [vmem:[%s0 + $0xe4] sm:$0xf]
  %v73 = vld [vmem:[%s0 + $0xe8] sm:$0xf]
  %v74 = vld [vmem:[%s0 + $0xec] sm:$0xf]
  %v75 = vld [vmem:[%s0 + $0xf0] sm:$0xf]
  %v76 = vld [vmem:[%s0 + $0xf4] sm:$0xf]
  %v77 = vld [vmem:[%s0 + $0xf8] sm:$0xf]
  %v78 = vld [vmem:[%s0 + $0xfc] sm:$0xf]
  %v79 = vld [vmem:[%s1] sm:$0xf]
  %v80 = vld [vmem:[%s1 + $0x4] sm:$0xf]
  %v81 = vld [vmem:[%s1 + $0x8] sm:$0xf]
  %v82 = vld [vmem:[%s1 + $0xc] sm:$0xf]
  %v83 = vld [vmem:[%s1 + $0x10] sm:$0xf]
  %v84 = vld [vmem:[%s1 + $0x14] sm:$0xf]
  %v85 = vld [vmem:[%s1 + $0x18] sm:$0xf]
  %v86 = vld [vmem:[%s1 + $0x1c] sm:$0xf]
  %v87 = vld [vmem:[%s1 + $0x20] sm:$0xf]
  %v88 = vld [vmem:[%s1 + $0x24] sm:$0xf]
  %v89 = vld [vmem:[%s1 + $0x28] sm:$0xf]
  %v90 = vld [vmem:[%s1 + $0x2c] sm:$0xf]
  %v91 = vld [vmem:[%s1 + $0x30] sm:$0xf]
  %v92 = vld [vmem:[%s1 + $0x34] sm:$0xf]
  %v93 = vld [vmem:[%s1 + $0x38] sm:$0xf]
  %v94 = vld [vmem:[%s1 + $0x3c] sm:$0xf]
  %v159 = vunpack.c.l.b16 %v15
  %v160 = vunpack.c.l.b16 %v16
  %v161 = vunpack.c.l.b16 %v17
  %v162 = vunpack.c.l.b16 %v18
  %v163 = vunpack.c.l.b16 %v19
  %v164 = vunpack.c.l.b16 %v20
  %v165 = vunpack.c.l.b16 %v21
  %v166 = vunpack.c.l.b16 %v22
  %v167 = vunpack.c.l.b16 %v23
  %v168 = vunpack.c.l.b16 %v24
  %v169 = vunpack.c.l.b16 %v25
  %v170 = vunpack.c.l.b16 %v26
  %v171 = vunpack.c.l.b16 %v27
  %v172 = vunpack.c.l.b16 %v28
  %v173 = vunpack.c.l.b16 %v29
  %v174 = vunpack.c.l.b16 %v30
  %v175 = vunpack.c.l.b16 %v31
  %v176 = vunpack.c.l.b16 %v32
  %v177 = vunpack.c.l.b16 %v33
  %v178 = vunpack.c.l.b16 %v34
  %v179 = vunpack.c.l.b16 %v35
  %v180 = vunpack.c.l.b16 %v36
  %v181 = vunpack.c.l.b16 %v37
  %v182 = vunpack.c.l.b16 %v38
  %v183 = vunpack.c.l.b16 %v39
  %v184 = vunpack.c.l.b16 %v40
  %v185 = vunpack.c.l.b16 %v41
  %v186 = vunpack.c.l.b16 %v42
  %v187 = vunpack.c.l.b16 %v43
  %v188 = vunpack.c.l.b16 %v44
  %v189 = vunpack.c.l.b16 %v45
  %v190 = vunpack.c.l.b16 %v46
  %v191 = vunpack.c.l.b16 %v47
  %v192 = vunpack.c.l.b16 %v48
  %v193 = vunpack.c.l.b16 %v49
  %v194 = vunpack.c.l.b16 %v50
  %v195 = vunpack.c.l.b16 %v51
  %v196 = vunpack.c.l.b16 %v52
  %v197 = vunpack.c.l.b16 %v53
  %v198 = vunpack.c.l.b16 %v54
  %v199 = vunpack.c.l.b16 %v55
  %v200 = vunpack.c.l.b16 %v56
  %v201 = vunpack.c.l.b16 %v57
  %v202 = vunpack.c.l.b16 %v58
  %v203 = vunpack.c.l.b16 %v59
  %v204 = vunpack.c.l.b16 %v60
  %v205 = vunpack.c.l.b16 %v61
  %v206 = vunpack.c.l.b16 %v62
  %v207 = vunpack.c.l.b16 %v63
  %v208 = vunpack.c.l.b16 %v64
  %v209 = vunpack.c.l.b16 %v65
  %v210 = vunpack.c.l.b16 %v66
  %v211 = vunpack.c.l.b16 %v67
  %v212 = vunpack.c.l.b16 %v68
  %v213 = vunpack.c.l.b16 %v69
  %v214 = vunpack.c.l.b16 %v70
  %v215 = vunpack.c.l.b16 %v71
  %v216 = vunpack.c.l.b16 %v72
  %v217 = vunpack.c.l.b16 %v73
  %v218 = vunpack.c.l.b16 %v74
  %v219 = vunpack.c.l.b16 %v75
  %v220 = vunpack.c.l.b16 %v76
  %v221 = vunpack.c.l.b16 %v77
  %v222 = vunpack.c.l.b16 %v78
  %v223 = vpack.c.b16 %v160, %v159
  %v224 = vpack.c.b16 %v162, %v161
  %v225 = vpack.c.b16 %v164, %v163
  %v226 = vpack.c.b16 %v166, %v165
  %v227 = vpack.c.b16 %v168, %v167
  %v228 = vpack.c.b16 %v170, %v169
  %v229 = vpack.c.b16 %v172, %v171
  %v230 = vpack.c.b16 %v174, %v173
  %v231 = vpack.c.b16 %v176, %v175
  %v232 = vpack.c.b16 %v178, %v177
  %v233 = vpack.c.b16 %v180, %v179
  %v234 = vpack.c.b16 %v182, %v181
  %v235 = vpack.c.b16 %v184, %v183
  %v236 = vpack.c.b16 %v186, %v185
  %v237 = vpack.c.b16 %v188, %v187
  %v238 = vpack.c.b16 %v190, %v189
  %v239 = vpack.c.b16 %v192, %v191
  %v240 = vpack.c.b16 %v194, %v193
  %v241 = vpack.c.b16 %v196, %v195
  %v242 = vpack.c.b16 %v198, %v197
  %v243 = vpack.c.b16 %v200, %v199
  %v244 = vpack.c.b16 %v202, %v201
  %v245 = vpack.c.b16 %v204, %v203
  %v246 = vpack.c.b16 %v206, %v205
  %v247 = vpack.c.b16 %v208, %v207
  %v248 = vpack.c.b16 %v210, %v209
  %v249 = vpack.c.b16 %v212, %v211
  %v250 = vpack.c.b16 %v214, %v213
  %v251 = vpack.c.b16 %v216, %v215
  %v252 = vpack.c.b16 %v218, %v217
  %v253 = vpack.c.b16 %v220, %v219
  %v254 = vpack.c.b16 %v222, %v221
  %v303 = vunpack.c.l.b16 %v79
  %v304 = vunpack.c.l.b16 %v80
  %v305 = vunpack.c.l.b16 %v81
  %v306 = vunpack.c.l.b16 %v82
  %v307 = vunpack.c.l.b16 %v83
  %v308 = vunpack.c.l.b16 %v84
  %v309 = vunpack.c.l.b16 %v85
  %v310 = vunpack.c.l.b16 %v86
  %v311 = vunpack.c.l.b16 %v87
  %v312 = vunpack.c.l.b16 %v88
  %v313 = vunpack.c.l.b16 %v89
  %v314 = vunpack.c.l.b16 %v90
  %v315 = vunpack.c.l.b16 %v91
  %v316 = vunpack.c.l.b16 %v92
  %v317 = vunpack.c.l.b16 %v93
  %v318 = vunpack.c.l.b16 %v94
  %v319 = vpack.c.b16 %v304, %v303
  %v320 = vpack.c.b16 %v306, %v305
  %v321 = vpack.c.b16 %v308, %v307
  %v322 = vpack.c.b16 %v310, %v309
  %v323 = vpack.c.b16 %v312, %v311
  %v324 = vpack.c.b16 %v314, %v313
  %v325 = vpack.c.b16 %v316, %v315
  %v326 = vpack.c.b16 %v318, %v317
  %335 = vmatprep.subr.bf16.mxu0 0
  %336 = vmatpush1.bf16.msra.mxu0 %v326
  %337 = vmatprep.subr.bf16.mxu0 0
  %338 = vmatpush1.bf16.msra.mxu0 %v325
  %339 = vmatprep.subr.bf16.mxu0 0
  %340 = vmatpush1.bf16.msra.mxu0 %v324
  %341 = vmatprep.subr.bf16.mxu0 0
  %342 = vmatpush1.bf16.msra.mxu0 %v323
  %343 = vmatprep.subr.bf16.mxu0 0
  %344 = vmatpush1.bf16.msra.mxu0 %v322
  %345 = vmatprep.subr.bf16.mxu0 0
  %346 = vmatpush1.bf16.msra.mxu0 %v321
  %347 = vmatprep.subr.bf16.mxu0 0
  %348 = vmatpush1.bf16.msra.mxu0 %v320
  %349 = vmatprep.subr.bf16.mxu0 0
  %350 = vmatpush1.bf16.msra.mxu0 %v319
  %351 = vmatprep.subr.bf16.mxu0 0
  %352 = vmatpush2.bf16.msra.mxu0 0
  %353 = vmatprep.subr.bf16.mxu0 0
  %354 = vmatpush2.bf16.msra.mxu0 0
  %355 = vmatprep.subr.bf16.mxu0 0
  %356 = vmatpush2.bf16.msra.mxu0 0
  %357 = vmatprep.subr.bf16.mxu0 0
  %358 = vmatpush2.bf16.msra.mxu0 0
  %359 = vmatprep.subr.bf16.mxu0 0
  %360 = vmatpush2.bf16.msra.mxu0 0
  %361 = vmatprep.subr.bf16.mxu0 0
  %362 = vmatpush2.bf16.msra.mxu0 0
  %363 = vmatprep.subr.bf16.mxu0 0
  %364 = vmatpush2.bf16.msra.mxu0 0
  %365 = vmatprep.subr.bf16.mxu0 0
  %366 = vmatpush2.bf16.msra.mxu0 0
  %367 = vmatprep.mubr.bf16.mxu0 0
  %368 = vmatmul.mubr.bf16.gmra.mxu0 %v223
  %v369 = vpop.f32.mrf.mxu0
  %v370 = vadd.f32 0.0, %v369
  %v371 = vpop.f32.mrf.mxu0
  %v372 = vpop.f32.mrf.mxu0
  %v373 = vadd.f32 0.0, %v372
  %v374 = vpop.f32.mrf.mxu0
  %375 = vmatprep.mubr.bf16.mxu0 0
  %376 = vmatmul.mubr.bf16.gmra.mxu0 %v224
  %v377 = vpop.f32.mrf.mxu0
  %v378 = vadd.f32 0.0, %v377
  %v379 = vpop.f32.mrf.mxu0
  %v380 = vpop.f32.mrf.mxu0
  %v381 = vadd.f32 0.0, %v380
  %v382 = vpop.f32.mrf.mxu0
  %383 = vmatprep.mubr.bf16.mxu0 0
  %384 = vmatmul.mubr.bf16.gmra.mxu0 %v225
  %v385 = vpop.f32.mrf.mxu0
  %v386 = vadd.f32 0.0, %v385
  %v387 = vpop.f32.mrf.mxu0
  %v388 = vpop.f32.mrf.mxu0
  %v389 = vadd.f32 0.0, %v388
  %v390 = vpop.f32.mrf.mxu0
  %391 = vmatprep.mubr.bf16.mxu0 0
  %392 = vmatmul.mubr.bf16.gmra.mxu0 %v226
  %v393 = vpop.f32.mrf.mxu0
  %v394 = vadd.f32 0.0, %v393
  %v395 = vpop.f32.mrf.mxu0
  %v396 = vpop.f32.mrf.mxu0
  %v397 = vadd.f32 0.0, %v396
  %v398 = vpop.f32.mrf.mxu0
  %399 = vmatprep.mubr.bf16.mxu0 0
  %400 = vmatmul.mubr.bf16.gmra.mxu0 %v227
  %v401 = vpop.f32.mrf.mxu0
  %v402 = vadd.f32 0.0, %v401
  %v403 = vpop.f32.mrf.mxu0
  %v404 = vpop.f32.mrf.mxu0
  %v405 = vadd.f32 0.0, %v404
  %v406 = vpop.f32.mrf.mxu0
  %407 = vmatprep.mubr.bf16.mxu0 0
  %408 = vmatmul.mubr.bf16.gmra.mxu0 %v228
  %v409 = vpop.f32.mrf.mxu0
  %v410 = vadd.f32 0.0, %v409
  %v411 = vpop.f32.mrf.mxu0
  %v412 = vpop.f32.mrf.mxu0
  %v413 = vadd.f32 0.0, %v412
  %v414 = vpop.f32.mrf.mxu0
  %415 = vmatprep.mubr.bf16.mxu0 0
  %416 = vmatmul.mubr.bf16.gmra.mxu0 %v229
  %v417 = vpop.f32.mrf.mxu0
  %v418 = vadd.f32 0.0, %v417
  %v419 = vpop.f32.mrf.mxu0
  %v420 = vpop.f32.mrf.mxu0
  %v421 = vadd.f32 0.0, %v420
  %v422 = vpop.f32.mrf.mxu0
  %423 = vmatprep.mubr.bf16.mxu0 0
  %424 = vmatmul.mubr.bf16.gmra.mxu0 %v230
  %v425 = vpop.f32.mrf.mxu0
  %v426 = vadd.f32 0.0, %v425
  %v427 = vpop.f32.mrf.mxu0
  %v428 = vpop.f32.mrf.mxu0
  %v429 = vadd.f32 0.0, %v428
  %v430 = vpop.f32.mrf.mxu0
  %431 = vmatprep.mubr.bf16.mxu0 0
  %432 = vmatmul.mubr.bf16.gmra.mxu0 %v231
  %v433 = vpop.f32.mrf.mxu0
  %v434 = vadd.f32 0.0, %v433
  %v435 = vpop.f32.mrf.mxu0
  %v436 = vpop.f32.mrf.mxu0
  %v437 = vadd.f32 0.0, %v436
  %v438 = vpop.f32.mrf.mxu0
  %439 = vmatprep.mubr.bf16.mxu0 0
  %440 = vmatmul.mubr.bf16.gmra.mxu0 %v232
  %v441 = vpop.f32.mrf.mxu0
  %v442 = vadd.f32 0.0, %v441
  %v443 = vpop.f32.mrf.mxu0
  %v444 = vpop.f32.mrf.mxu0
  %v445 = vadd.f32 0.0, %v444
  %v446 = vpop.f32.mrf.mxu0
  %447 = vmatprep.mubr.bf16.mxu0 0
  %448 = vmatmul.mubr.bf16.gmra.mxu0 %v233
  %v449 = vpop.f32.mrf.mxu0
  %v450 = vadd.f32 0.0, %v449
  %v451 = vpop.f32.mrf.mxu0
  %v452 = vpop.f32.mrf.mxu0
  %v453 = vadd.f32 0.0, %v452
  %v454 = vpop.f32.mrf.mxu0
  %455 = vmatprep.mubr.bf16.mxu0 0
  %456 = vmatmul.mubr.bf16.gmra.mxu0 %v234
  %v457 = vpop.f32.mrf.mxu0
  %v458 = vadd.f32 0.0, %v457
  %v459 = vpop.f32.mrf.mxu0
  %v460 = vpop.f32.mrf.mxu0
  %v461 = vadd.f32 0.0, %v460
  %v462 = vpop.f32.mrf.mxu0
  %463 = vmatprep.mubr.bf16.mxu0 0
  %464 = vmatmul.mubr.bf16.gmra.mxu0 %v235
  %v465 = vpop.f32.mrf.mxu0
  %v466 = vadd.f32 0.0, %v465
  %v467 = vpop.f32.mrf.mxu0
  %v468 = vpop.f32.mrf.mxu0
  %v469 = vadd.f32 0.0, %v468
  %v470 = vpop.f32.mrf.mxu0
  %471 = vmatprep.mubr.bf16.mxu0 0
  %472 = vmatmul.mubr.bf16.gmra.mxu0 %v236
  %v473 = vpop.f32.mrf.mxu0
  %v474 = vadd.f32 0.0, %v473
  %v475 = vpop.f32.mrf.mxu0
  %v476 = vpop.f32.mrf.mxu0
  %v477 = vadd.f32 0.0, %v476
  %v478 = vpop.f32.mrf.mxu0
  %479 = vmatprep.mubr.bf16.mxu0 0
  %480 = vmatmul.mubr.bf16.gmra.mxu0 %v237
  %v481 = vpop.f32.mrf.mxu0
  %v482 = vadd.f32 0.0, %v481
  %v483 = vpop.f32.mrf.mxu0
  %v484 = vpop.f32.mrf.mxu0
  %v485 = vadd.f32 0.0, %v484
  %v486 = vpop.f32.mrf.mxu0
  %487 = vmatprep.mubr.bf16.mxu0 0
  %488 = vmatmul.mubr.bf16.gmra.mxu0 %v238
  %v489 = vpop.f32.mrf.mxu0
  %v490 = vadd.f32 0.0, %v489
  %v491 = vpop.f32.mrf.mxu0
  %v492 = vpop.f32.mrf.mxu0
  %v493 = vadd.f32 0.0, %v492
  %v494 = vpop.f32.mrf.mxu0
  %495 = vmatprep.mubr.bf16.mxu0 0
  %496 = vmatmul.mubr.bf16.gmra.mxu0 %v239
  %v497 = vpop.f32.mrf.mxu0
  %v498 = vadd.f32 0.0, %v497
  %v499 = vpop.f32.mrf.mxu0
  %v500 = vpop.f32.mrf.mxu0
  %v501 = vadd.f32 0.0, %v500
  %v502 = vpop.f32.mrf.mxu0
  %503 = vmatprep.mubr.bf16.mxu0 0
  %504 = vmatmul.mubr.bf16.gmra.mxu0 %v240
  %v505 = vpop.f32.mrf.mxu0
  %v506 = vadd.f32 0.0, %v505
  %v507 = vpop.f32.mrf.mxu0
  %v508 = vpop.f32.mrf.mxu0
  %v509 = vadd.f32 0.0, %v508
  %v510 = vpop.f32.mrf.mxu0
  %511 = vmatprep.mubr.bf16.mxu0 0
  %512 = vmatmul.mubr.bf16.gmra.mxu0 %v241
  %v513 = vpop.f32.mrf.mxu0
  %v514 = vadd.f32 0.0, %v513
  %v515 = vpop.f32.mrf.mxu0
  %v516 = vpop.f32.mrf.mxu0
  %v517 = vadd.f32 0.0, %v516
  %v518 = vpop.f32.mrf.mxu0
  %519 = vmatprep.mubr.bf16.mxu0 0
  %520 = vmatmul.mubr.bf16.gmra.mxu0 %v242
  %v521 = vpop.f32.mrf.mxu0
  %v522 = vadd.f32 0.0, %v521
  %v523 = vpop.f32.mrf.mxu0
  %v524 = vpop.f32.mrf.mxu0
  %v525 = vadd.f32 0.0, %v524
  %v526 = vpop.f32.mrf.mxu0
  %527 = vmatprep.mubr.bf16.mxu0 0
  %528 = vmatmul.mubr.bf16.gmra.mxu0 %v243
  %v529 = vpop.f32.mrf.mxu0
  %v530 = vadd.f32 0.0, %v529
  %v531 = vpop.f32.mrf.mxu0
  %v532 = vpop.f32.mrf.mxu0
  %v533 = vadd.f32 0.0, %v532
  %v534 = vpop.f32.mrf.mxu0
  %535 = vmatprep.mubr.bf16.mxu0 0
  %536 = vmatmul.mubr.bf16.gmra.mxu0 %v244
  %v537 = vpop.f32.mrf.mxu0
  %v538 = vadd.f32 0.0, %v537
  %v539 = vpop.f32.mrf.mxu0
  %v540 = vpop.f32.mrf.mxu0
  %v541 = vadd.f32 0.0, %v540
  %v542 = vpop.f32.mrf.mxu0
  %543 = vmatprep.mubr.bf16.mxu0 0
  %544 = vmatmul.mubr.bf16.gmra.mxu0 %v245
  %v545 = vpop.f32.mrf.mxu0
  %v546 = vadd.f32 0.0, %v545
  %v547 = vpop.f32.mrf.mxu0
  %v548 = vpop.f32.mrf.mxu0
  %v549 = vadd.f32 0.0, %v548
  %v550 = vpop.f32.mrf.mxu0
  %551 = vmatprep.mubr.bf16.mxu0 0
  %552 = vmatmul.mubr.bf16.gmra.mxu0 %v246
  %v553 = vpop.f32.mrf.mxu0
  %v554 = vadd.f32 0.0, %v553
  %v555 = vpop.f32.mrf.mxu0
  %v556 = vpop.f32.mrf.mxu0
  %v557 = vadd.f32 0.0, %v556
  %v558 = vpop.f32.mrf.mxu0
  %559 = vmatprep.mubr.bf16.mxu0 0
  %560 = vmatmul.mubr.bf16.gmra.mxu0 %v247
  %v561 = vpop.f32.mrf.mxu0
  %v562 = vadd.f32 0.0, %v561
  %v563 = vpop.f32.mrf.mxu0
  %v564 = vpop.f32.mrf.mxu0
  %v565 = vadd.f32 0.0, %v564
  %v566 = vpop.f32.mrf.mxu0
  %567 = vmatprep.mubr.bf16.mxu0 0
  %568 = vmatmul.mubr.bf16.gmra.mxu0 %v248
  %v569 = vpop.f32.mrf.mxu0
  %v570 = vadd.f32 0.0, %v569
  %v571 = vpop.f32.mrf.mxu0
  %v572 = vpop.f32.mrf.mxu0
  %v573 = vadd.f32 0.0, %v572
  %v574 = vpop.f32.mrf.mxu0
  %575 = vmatprep.mubr.bf16.mxu0 0
  %576 = vmatmul.mubr.bf16.gmra.mxu0 %v249
  %v577 = vpop.f32.mrf.mxu0
  %v578 = vadd.f32 0.0, %v577
  %v579 = vpop.f32.mrf.mxu0
  %v580 = vpop.f32.mrf.mxu0
  %v581 = vadd.f32 0.0, %v580
  %v582 = vpop.f32.mrf.mxu0
  %583 = vmatprep.mubr.bf16.mxu0 0
  %584 = vmatmul.mubr.bf16.gmra.mxu0 %v250
  %v585 = vpop.f32.mrf.mxu0
  %v586 = vadd.f32 0.0, %v585
  %v587 = vpop.f32.mrf.mxu0
  %v588 = vpop.f32.mrf.mxu0
  %v589 = vadd.f32 0.0, %v588
  %v590 = vpop.f32.mrf.mxu0
  %591 = vmatprep.mubr.bf16.mxu0 0
  %592 = vmatmul.mubr.bf16.gmra.mxu0 %v251
  %v593 = vpop.f32.mrf.mxu0
  %v594 = vadd.f32 0.0, %v593
  %v595 = vpop.f32.mrf.mxu0
  %v596 = vpop.f32.mrf.mxu0
  %v597 = vadd.f32 0.0, %v596
  %v598 = vpop.f32.mrf.mxu0
  %599 = vmatprep.mubr.bf16.mxu0 0
  %600 = vmatmul.mubr.bf16.gmra.mxu0 %v252
  %v601 = vpop.f32.mrf.mxu0
  %v602 = vadd.f32 0.0, %v601
  %v603 = vpop.f32.mrf.mxu0
  %v604 = vpop.f32.mrf.mxu0
  %v605 = vadd.f32 0.0, %v604
  %v606 = vpop.f32.mrf.mxu0
  %607 = vmatprep.mubr.bf16.mxu0 0
  %608 = vmatmul.mubr.bf16.gmra.mxu0 %v253
  %v609 = vpop.f32.mrf.mxu0
  %v610 = vadd.f32 0.0, %v609
  %v611 = vpop.f32.mrf.mxu0
  %v612 = vpop.f32.mrf.mxu0
  %v613 = vadd.f32 0.0, %v612
  %v614 = vpop.f32.mrf.mxu0
  %615 = vmatprep.mubr.bf16.mxu0 0
  %616 = vmatmul.mubr.bf16.gmra.mxu0 %v254
  %v617 = vpop.f32.mrf.mxu0
  %v618 = vadd.f32 0.0, %v617
  %v619 = vpop.f32.mrf.mxu0
  %v620 = vpop.f32.mrf.mxu0
  %v621 = vadd.f32 0.0, %v620
  %v622 = vpop.f32.mrf.mxu0
  %623 = vdwg.mxu0
  %v624 = vpack.c.bf16 %v373, %v370
  %v625 = vpack.c.bf16 %v381, %v378
  %v626 = vpack.c.bf16 %v389, %v386
  %v627 = vpack.c.bf16 %v397, %v394
  %v628 = vpack.c.bf16 %v405, %v402
  %v629 = vpack.c.bf16 %v413, %v410
  %v630 = vpack.c.bf16 %v421, %v418
  %v631 = vpack.c.bf16 %v429, %v426
  %v632 = vpack.c.bf16 %v437, %v434
  %v633 = vpack.c.bf16 %v445, %v442
  %v634 = vpack.c.bf16 %v453, %v450
  %v635 = vpack.c.bf16 %v461, %v458
  %v636 = vpack.c.bf16 %v469, %v466
  %v637 = vpack.c.bf16 %v477, %v474
  %v638 = vpack.c.bf16 %v485, %v482
  %v639 = vpack.c.bf16 %v493, %v490
  %v640 = vpack.c.bf16 %v501, %v498
  %v641 = vpack.c.bf16 %v509, %v506
  %v642 = vpack.c.bf16 %v517, %v514
  %v643 = vpack.c.bf16 %v525, %v522
  %v644 = vpack.c.bf16 %v533, %v530
  %v645 = vpack.c.bf16 %v541, %v538
  %v646 = vpack.c.bf16 %v549, %v546
  %v647 = vpack.c.bf16 %v557, %v554
  %v648 = vpack.c.bf16 %v565, %v562
  %v649 = vpack.c.bf16 %v573, %v570
  %v650 = vpack.c.bf16 %v581, %v578
  %v651 = vpack.c.bf16 %v589, %v586
  %v652 = vpack.c.bf16 %v597, %v594
  %v653 = vpack.c.bf16 %v605, %v602
  %v654 = vpack.c.bf16 %v613, %v610
  %v655 = vpack.c.bf16 %v621, %v618
  %v688 = vunpack.c.l.b16 %v624
  %v689 = vunpack.c.h.b16 %v624
  %v690 = vunpack.c.l.b16 %v625
  %v691 = vunpack.c.h.b16 %v625
  %v692 = vunpack.c.l.b16 %v626
  %v693 = vunpack.c.h.b16 %v626
  %v694 = vunpack.c.l.b16 %v627
  %v695 = vunpack.c.h.b16 %v627
  %v696 = vunpack.c.l.b16 %v628
  %v697 = vunpack.c.h.b16 %v628
  %v698 = vunpack.c.l.b16 %v629
  %v699 = vunpack.c.h.b16 %v629
  %v700 = vunpack.c.l.b16 %v630
  %v701 = vunpack.c.h.b16 %v630
  %v702 = vunpack.c.l.b16 %v631
  %v703 = vunpack.c.h.b16 %v631
  %v704 = vunpack.c.l.b16 %v632
  %v705 = vunpack.c.h.b16 %v632
  %v706 = vunpack.c.l.b16 %v633
  %v707 = vunpack.c.h.b16 %v633
  %v708 = vunpack.c.l.b16 %v634
  %v709 = vunpack.c.h.b16 %v634
  %v710 = vunpack.c.l.b16 %v635
  %v711 = vunpack.c.h.b16 %v635
  %v712 = vunpack.c.l.b16 %v636
  %v713 = vunpack.c.h.b16 %v636
  %v714 = vunpack.c.l.b16 %v637
  %v715 = vunpack.c.h.b16 %v637
  %v716 = vunpack.c.l.b16 %v638
  %v717 = vunpack.c.h.b16 %v638
  %v718 = vunpack.c.l.b16 %v639
  %v719 = vunpack.c.h.b16 %v639
  %v720 = vunpack.c.l.b16 %v640
  %v721 = vunpack.c.h.b16 %v640
  %v722 = vunpack.c.l.b16 %v641
  %v723 = vunpack.c.h.b16 %v641
  %v724 = vunpack.c.l.b16 %v642
  %v725 = vunpack.c.h.b16 %v642
  %v726 = vunpack.c.l.b16 %v643
  %v727 = vunpack.c.h.b16 %v643
  %v728 = vunpack.c.l.b16 %v644
  %v729 = vunpack.c.h.b16 %v644
  %v730 = vunpack.c.l.b16 %v645
  %v731 = vunpack.c.h.b16 %v645
  %v732 = vunpack.c.l.b16 %v646
  %v733 = vunpack.c.h.b16 %v646
  %v734 = vunpack.c.l.b16 %v647
  %v735 = vunpack.c.h.b16 %v647
  %v736 = vunpack.c.l.b16 %v648
  %v737 = vunpack.c.h.b16 %v648
  %v738 = vunpack.c.l.b16 %v649
  %v739 = vunpack.c.h.b16 %v649
  %v740 = vunpack.c.l.b16 %v650
  %v741 = vunpack.c.h.b16 %v650
  %v742 = vunpack.c.l.b16 %v651
  %v743 = vunpack.c.h.b16 %v651
  %v744 = vunpack.c.l.b16 %v652
  %v745 = vunpack.c.h.b16 %v652
  %v746 = vunpack.c.l.b16 %v653
  %v747 = vunpack.c.h.b16 %v653
  %v748 = vunpack.c.l.b16 %v654
  %v749 = vunpack.c.h.b16 %v654
  %v750 = vunpack.c.l.b16 %v655
  %v751 = vunpack.c.h.b16 %v655
  %v752 = vpack.c.b16 %v688, %v688
  %v753 = vpack.c.b16 %v689, %v689
  %v754 = vpack.c.b16 %v690, %v690
  %v755 = vpack.c.b16 %v691, %v691
  %v756 = vpack.c.b16 %v692, %v692
  %v757 = vpack.c.b16 %v693, %v693
  %v758 = vpack.c.b16 %v694, %v694
  %v759 = vpack.c.b16 %v695, %v695
  %v760 = vpack.c.b16 %v696, %v696
  %v761 = vpack.c.b16 %v697, %v697
  %v762 = vpack.c.b16 %v698, %v698
  %v763 = vpack.c.b16 %v699, %v699
  %v764 = vpack.c.b16 %v700, %v700
  %v765 = vpack.c.b16 %v701, %v701
  %v766 = vpack.c.b16 %v702, %v702
  %v767 = vpack.c.b16 %v703, %v703
  %v768 = vpack.c.b16 %v704, %v704
  %v769 = vpack.c.b16 %v705, %v705
  %v770 = vpack.c.b16 %v706, %v706
  %v771 = vpack.c.b16 %v707, %v707
  %v772 = vpack.c.b16 %v708, %v708
  %v773 = vpack.c.b16 %v709, %v709
  %v774 = vpack.c.b16 %v710, %v710
  %v775 = vpack.c.b16 %v711, %v711
  %v776 = vpack.c.b16 %v712, %v712
  %v777 = vpack.c.b16 %v713, %v713
  %v778 = vpack.c.b16 %v714, %v714
  %v779 = vpack.c.b16 %v715, %v715
  %v780 = vpack.c.b16 %v716, %v716
  %v781 = vpack.c.b16 %v717, %v717
  %v782 = vpack.c.b16 %v718, %v718
  %v783 = vpack.c.b16 %v719, %v719
  %v784 = vpack.c.b16 %v720, %v720
  %v785 = vpack.c.b16 %v721, %v721
  %v786 = vpack.c.b16 %v722, %v722
  %v787 = vpack.c.b16 %v723, %v723
  %v788 = vpack.c.b16 %v724, %v724
  %v789 = vpack.c.b16 %v725, %v725
  %v790 = vpack.c.b16 %v726, %v726
  %v791 = vpack.c.b16 %v727, %v727
  %v792 = vpack.c.b16 %v728, %v728
  %v793 = vpack.c.b16 %v729, %v729
  %v794 = vpack.c.b16 %v730, %v730
  %v795 = vpack.c.b16 %v731, %v731
  %v796 = vpack.c.b16 %v732, %v732
  %v797 = vpack.c.b16 %v733, %v733
  %v798 = vpack.c.b16 %v734, %v734
  %v799 = vpack.c.b16 %v735, %v735
  %v800 = vpack.c.b16 %v736, %v736
  %v801 = vpack.c.b16 %v737, %v737
  %v802 = vpack.c.b16 %v738, %v738
  %v803 = vpack.c.b16 %v739, %v739
  %v804 = vpack.c.b16 %v740, %v740
  %v805 = vpack.c.b16 %v741, %v741
  %v806 = vpack.c.b16 %v742, %v742
  %v807 = vpack.c.b16 %v743, %v743
  %v808 = vpack.c.b16 %v744, %v744
  %v809 = vpack.c.b16 %v745, %v745
  %v810 = vpack.c.b16 %v746, %v746
  %v811 = vpack.c.b16 %v747, %v747
  %v812 = vpack.c.b16 %v748, %v748
  %v813 = vpack.c.b16 %v749, %v749
  %v814 = vpack.c.b16 %v750, %v750
  %v815 = vpack.c.b16 %v751, %v751
  %880 = vst [vmem:[%s2] sm:$0xf] %v752
  %881 = vst [vmem:[%s2 + $0x4] sm:$0xf] %v753
  %882 = vst [vmem:[%s2 + $0x8] sm:$0xf] %v754
  %883 = vst [vmem:[%s2 + $0xc] sm:$0xf] %v755
  %884 = vst [vmem:[%s2 + $0x10] sm:$0xf] %v756
  %885 = vst [vmem:[%s2 + $0x14] sm:$0xf] %v757
  %886 = vst [vmem:[%s2 + $0x18] sm:$0xf] %v758
  %887 = vst [vmem:[%s2 + $0x1c] sm:$0xf] %v759
  %888 = vst [vmem:[%s2 + $0x20] sm:$0xf] %v760
  %889 = vst [vmem:[%s2 + $0x24] sm:$0xf] %v761
  %890 = vst [vmem:[%s2 + $0x28] sm:$0xf] %v762
  %891 = vst [vmem:[%s2 + $0x2c] sm:$0xf] %v763
  %892 = vst [vmem:[%s2 + $0x30] sm:$0xf] %v764
  %893 = vst [vmem:[%s2 + $0x34] sm:$0xf] %v765
  %894 = vst [vmem:[%s2 + $0x38] sm:$0xf] %v766
  %895 = vst [vmem:[%s2 + $0x3c] sm:$0xf] %v767
  %896 = vst [vmem:[%s2 + $0x40] sm:$0xf] %v768
  %897 = vst [vmem:[%s2 + $0x44] sm:$0xf] %v769
  %898 = vst [vmem:[%s2 + $0x48] sm:$0xf] %v770
  %899 = vst [vmem:[%s2 + $0x4c] sm:$0xf] %v771
  %900 = vst [vmem:[%s2 + $0x50] sm:$0xf] %v772
  %901 = vst [vmem:[%s2 + $0x54] sm:$0xf] %v773
  %902 = vst [vmem:[%s2 + $0x58] sm:$0xf] %v774
  %903 = vst [vmem:[%s2 + $0x5c] sm:$0xf] %v775
  %904 = vst [vmem:[%s2 + $0x60] sm:$0xf] %v776
  %905 = vst [vmem:[%s2 + $0x64] sm:$0xf] %v777
  %906 = vst [vmem:[%s2 + $0x68] sm:$0xf] %v778
  %907 = vst [vmem:[%s2 + $0x6c] sm:$0xf] %v779
  %908 = vst [vmem:[%s2 + $0x70] sm:$0xf] %v780
  %909 = vst [vmem:[%s2 + $0x74] sm:$0xf] %v781
  %910 = vst [vmem:[%s2 + $0x78] sm:$0xf] %v782
  %911 = vst [vmem:[%s2 + $0x7c] sm:$0xf] %v783
  %912 = vst [vmem:[%s2 + $0x80] sm:$0xf] %v784
  %913 = vst [vmem:[%s2 + $0x84] sm:$0xf] %v785
  %914 = vst [vmem:[%s2 + $0x88] sm:$0xf] %v786
  %915 = vst [vmem:[%s2 + $0x8c] sm:$0xf] %v787
  %916 = vst [vmem:[%s2 + $0x90] sm:$0xf] %v788
  %917 = vst [vmem:[%s2 + $0x94] sm:$0xf] %v789
  %918 = vst [vmem:[%s2 + $0x98] sm:$0xf] %v790
  %919 = vst [vmem:[%s2 + $0x9c] sm:$0xf] %v791
  %920 = vst [vmem:[%s2 + $0xa0] sm:$0xf] %v792
  %921 = vst [vmem:[%s2 + $0xa4] sm:$0xf] %v793
  %922 = vst [vmem:[%s2 + $0xa8] sm:$0xf] %v794
  %923 = vst [vmem:[%s2 + $0xac] sm:$0xf] %v795
  %924 = vst [vmem:[%s2 + $0xb0] sm:$0xf] %v796
  %925 = vst [vmem:[%s2 + $0xb4] sm:$0xf] %v797
  %926 = vst [vmem:[%s2 + $0xb8] sm:$0xf] %v798
  %927 = vst [vmem:[%s2 + $0xbc] sm:$0xf] %v799
  %928 = vst [vmem:[%s2 + $0xc0] sm:$0xf] %v800
  %929 = vst [vmem:[%s2 + $0xc4] sm:$0xf] %v801
  %930 = vst [vmem:[%s2 + $0xc8] sm:$0xf] %v802
  %931 = vst [vmem:[%s2 + $0xcc] sm:$0xf] %v803
  %932 = vst [vmem:[%s2 + $0xd0] sm:$0xf] %v804
  %933 = vst [vmem:[%s2 + $0xd4] sm:$0xf] %v805
  %934 = vst [vmem:[%s2 + $0xd8] sm:$0xf] %v806
  %935 = vst [vmem:[%s2 + $0xdc] sm:$0xf] %v807
  %936 = vst [vmem:[%s2 + $0xe0] sm:$0xf] %v808
  %937 = vst [vmem:[%s2 + $0xe4] sm:$0xf] %v809
  %938 = vst [vmem:[%s2 + $0xe8] sm:$0xf] %v810
  %939 = vst [vmem:[%s2 + $0xec] sm:$0xf] %v811
  %940 = vst [vmem:[%s2 + $0xf0] sm:$0xf] %v812
  %941 = vst [vmem:[%s2 + $0xf4] sm:$0xf] %v813
  %942 = vst [vmem:[%s2 + $0xf8] sm:$0xf] %v814
  %943 = vst [vmem:[%s2 + $0xfc] sm:$0xf] %v815
  %v944 = vadd.f32 %v370, %v373
  %v945 = vadd.f32 %v944, %v378
  %v946 = vadd.f32 %v945, %v381
  %v947 = vadd.f32 %v946, %v386
  %v948 = vadd.f32 %v947, %v389
  %v949 = vadd.f32 %v948, %v394
  %v950 = vadd.f32 %v949, %v397
  %v951 = vadd.f32 %v950, %v402
  %v952 = vadd.f32 %v951, %v405
  %v953 = vadd.f32 %v952, %v410
  %v954 = vadd.f32 %v953, %v413
  %v955 = vadd.f32 %v954, %v418
  %v956 = vadd.f32 %v955, %v421
  %v957 = vadd.f32 %v956, %v426
  %v958 = vadd.f32 %v957, %v429
  %v959 = vadd.f32 %v958, %v434
  %v960 = vadd.f32 %v959, %v437
  %v961 = vadd.f32 %v960, %v442
  %v962 = vadd.f32 %v961, %v445
  %v963 = vadd.f32 %v962, %v450
  %v964 = vadd.f32 %v963, %v453
  %v965 = vadd.f32 %v964, %v458
  %v966 = vadd.f32 %v965, %v461
  %v967 = vadd.f32 %v966, %v466
  %v968 = vadd.f32 %v967, %v469
  %v969 = vadd.f32 %v968, %v474
  %v970 = vadd.f32 %v969, %v477
  %v971 = vadd.f32 %v970, %v482
  %v972 = vadd.f32 %v971, %v485
  %v973 = vadd.f32 %v972, %v490
  %v974 = vadd.f32 %v973, %v493
  %v975 = vadd.f32 %v974, %v498
  %v976 = vadd.f32 %v975, %v501
  %v977 = vadd.f32 %v976, %v506
  %v978 = vadd.f32 %v977, %v509
  %v979 = vadd.f32 %v978, %v514
  %v980 = vadd.f32 %v979, %v517
  %v981 = vadd.f32 %v980, %v522
  %v982 = vadd.f32 %v981, %v525
  %v983 = vadd.f32 %v982, %v530
  %v984 = vadd.f32 %v983, %v533
  %v985 = vadd.f32 %v984, %v538
  %v986 = vadd.f32 %v985, %v541
  %v987 = vadd.f32 %v986, %v546
  %v988 = vadd.f32 %v987, %v549
  %v989 = vadd.f32 %v988, %v554
  %v990 = vadd.f32 %v989, %v557
  %v991 = vadd.f32 %v990, %v562
  %v992 = vadd.f32 %v991, %v565
  %v993 = vadd.f32 %v992, %v570
  %v994 = vadd.f32 %v993, %v573
  %v995 = vadd.f32 %v994, %v578
  %v996 = vadd.f32 %v995, %v581
  %v997 = vadd.f32 %v996, %v586
  %v998 = vadd.f32 %v997, %v589
  %v999 = vadd.f32 %v998, %v594
  %v1000 = vadd.f32 %v999, %v597
  %v1001 = vadd.f32 %v1000, %v602
  %v1002 = vadd.f32 %v1001, %v605
  %v1003 = vadd.f32 %v1002, %v610
  %v1004 = vadd.f32 %v1003, %v613
  %v1005 = vadd.f32 %v1004, %v618
  %v1006 = vadd.f32 %v1005, %v621
  %v1007 = vrot.slane %v1006, 4
  %v1008 = vadd.f32 %v1006, %v1007
  %v1009 = vrot.slane %v1008, 2
  %v1010 = vadd.f32 %v1008, %v1009
  %v1011 = vrot.slane %v1010, 1
  %v1012 = vadd.f32 %v1010, %v1011
  %1013 = vst [vmem:[%s3] sm:$0x1] %v1012
  %v1014 = vmul.f32 %v370, %v370
  %v1015 = vmul.f32 %v373, %v373
  %v1016 = vmul.f32 %v378, %v378
  %v1017 = vmul.f32 %v381, %v381
  %v1018 = vmul.f32 %v386, %v386
  %v1019 = vmul.f32 %v389, %v389
  %v1020 = vmul.f32 %v394, %v394
  %v1021 = vmul.f32 %v397, %v397
  %v1022 = vmul.f32 %v402, %v402
  %v1023 = vmul.f32 %v405, %v405
  %v1024 = vmul.f32 %v410, %v410
  %v1025 = vmul.f32 %v413, %v413
  %v1026 = vmul.f32 %v418, %v418
  %v1027 = vmul.f32 %v421, %v421
  %v1028 = vmul.f32 %v426, %v426
  %v1029 = vmul.f32 %v429, %v429
  %v1030 = vmul.f32 %v434, %v434
  %v1031 = vmul.f32 %v437, %v437
  %v1032 = vmul.f32 %v442, %v442
  %v1033 = vmul.f32 %v445, %v445
  %v1034 = vmul.f32 %v450, %v450
  %v1035 = vmul.f32 %v453, %v453
  %v1036 = vmul.f32 %v458, %v458
  %v1037 = vmul.f32 %v461, %v461
  %v1038 = vmul.f32 %v466, %v466
  %v1039 = vmul.f32 %v469, %v469
  %v1040 = vmul.f32 %v474, %v474
  %v1041 = vmul.f32 %v477, %v477
  %v1042 = vmul.f32 %v482, %v482
  %v1043 = vmul.f32 %v485, %v485
  %v1044 = vmul.f32 %v490, %v490
  %v1045 = vmul.f32 %v493, %v493
  %v1046 = vmul.f32 %v498, %v498
  %v1047 = vmul.f32 %v501, %v501
  %v1048 = vmul.f32 %v506, %v506
  %v1049 = vmul.f32 %v509, %v509
  %v1050 = vmul.f32 %v514, %v514
  %v1051 = vmul.f32 %v517, %v517
  %v1052 = vmul.f32 %v522, %v522
  %v1053 = vmul.f32 %v525, %v525
  %v1054 = vmul.f32 %v530, %v530
  %v1055 = vmul.f32 %v533, %v533
  %v1056 = vmul.f32 %v538, %v538
  %v1057 = vmul.f32 %v541, %v541
  %v1058 = vmul.f32 %v546, %v546
  %v1059 = vmul.f32 %v549, %v549
  %v1060 = vmul.f32 %v554, %v554
  %v1061 = vmul.f32 %v557, %v557
  %v1062 = vmul.f32 %v562, %v562
  %v1063 = vmul.f32 %v565, %v565
  %v1064 = vmul.f32 %v570, %v570
  %v1065 = vmul.f32 %v573, %v573
  %v1066 = vmul.f32 %v578, %v578
  %v1067 = vmul.f32 %v581, %v581
  %v1068 = vmul.f32 %v586, %v586
  %v1069 = vmul.f32 %v589, %v589
  %v1070 = vmul.f32 %v594, %v594
  %v1071 = vmul.f32 %v597, %v597
  %v1072 = vmul.f32 %v602, %v602
  %v1073 = vmul.f32 %v605, %v605
  %v1074 = vmul.f32 %v610, %v610
  %v1075 = vmul.f32 %v613, %v613
  %v1076 = vmul.f32 %v618, %v618
  %v1077 = vmul.f32 %v621, %v621
  %v1078 = vadd.f32 %v1014, %v1015
  %v1079 = vadd.f32 %v1078, %v1016
  %v1080 = vadd.f32 %v1079, %v1017
  %v1081 = vadd.f32 %v1080, %v1018
  %v1082 = vadd.f32 %v1081, %v1019
  %v1083 = vadd.f32 %v1082, %v1020
  %v1084 = vadd.f32 %v1083, %v1021
  %v1085 = vadd.f32 %v1084, %v1022
  %v1086 = vadd.f32 %v1085, %v1023
  %v1087 = vadd.f32 %v1086, %v1024
  %v1088 = vadd.f32 %v1087, %v1025
  %v1089 = vadd.f32 %v1088, %v1026
  %v1090 = vadd.f32 %v1089, %v1027
  %v1091 = vadd.f32 %v1090, %v1028
  %v1092 = vadd.f32 %v1091, %v1029
  %v1093 = vadd.f32 %v1092, %v1030
  %v1094 = vadd.f32 %v1093, %v1031
  %v1095 = vadd.f32 %v1094, %v1032
  %v1096 = vadd.f32 %v1095, %v1033
  %v1097 = vadd.f32 %v1096, %v1034
  %v1098 = vadd.f32 %v1097, %v1035
  %v1099 = vadd.f32 %v1098, %v1036
  %v1100 = vadd.f32 %v1099, %v1037
  %v1101 = vadd.f32 %v1100, %v1038
  %v1102 = vadd.f32 %v1101, %v1039
  %v1103 = vadd.f32 %v1102, %v1040
  %v1104 = vadd.f32 %v1103, %v1041
  %v1105 = vadd.f32 %v1104, %v1042
  %v1106 = vadd.f32 %v1105, %v1043
  %v1107 = vadd.f32 %v1106, %v1044
  %v1108 = vadd.f32 %v1107, %v1045
  %v1109 = vadd.f32 %v1108, %v1046
  %v1110 = vadd.f32 %v1109, %v1047
  %v1111 = vadd.f32 %v1110, %v1048
  %v1112 = vadd.f32 %v1111, %v1049
  %v1113 = vadd.f32 %v1112, %v1050
  %v1114 = vadd.f32 %v1113, %v1051
  %v1115 = vadd.f32 %v1114, %v1052
  %v1116 = vadd.f32 %v1115, %v1053
  %v1117 = vadd.f32 %v1116, %v1054
  %v1118 = vadd.f32 %v1117, %v1055
  %v1119 = vadd.f32 %v1118, %v1056
  %v1120 = vadd.f32 %v1119, %v1057
  %v1121 = vadd.f32 %v1120, %v1058
  %v1122 = vadd.f32 %v1121, %v1059
  %v1123 = vadd.f32 %v1122, %v1060
  %v1124 = vadd.f32 %v1123, %v1061
  %v1125 = vadd.f32 %v1124, %v1062
  %v1126 = vadd.f32 %v1125, %v1063
  %v1127 = vadd.f32 %v1126, %v1064
  %v1128 = vadd.f32 %v1127, %v1065
  %v1129 = vadd.f32 %v1128, %v1066
  %v1130 = vadd.f32 %v1129, %v1067
  %v1131 = vadd.f32 %v1130, %v1068
  %v1132 = vadd.f32 %v1131, %v1069
  %v1133 = vadd.f32 %v1132, %v1070
  %v1134 = vadd.f32 %v1133, %v1071
  %v1135 = vadd.f32 %v1134, %v1072
  %v1136 = vadd.f32 %v1135, %v1073
  %v1137 = vadd.f32 %v1136, %v1074
  %v1138 = vadd.f32 %v1137, %v1075
  %v1139 = vadd.f32 %v1138, %v1076
  %v1140 = vadd.f32 %v1139, %v1077
  %v1141 = vrot.slane %v1140, 4
  %v1142 = vadd.f32 %v1140, %v1141
  %v1143 = vrot.slane %v1142, 2
  %v1144 = vadd.f32 %v1142, %v1143
  %v1145 = vrot.slane %v1144, 1
  %v1146 = vadd.f32 %v1144, %v1145
  %1147 = vst [vmem:[%s4] sm:$0x1] %v1146
  // Predicated region
  $region10: #{bottleneck_forward.4} parent=0 // pred_check
    _
  $region11: #{bottleneck_forward.4} parent=0 // pred_check_branch
    %1149 = sbr.rel (0) target = $region13
  $region12: #{bottleneck_forward.4} parent=0 // pred_region
    _
  $region13: #{bottleneck_forward.4} parent=0 // pred_fallthru
    _
  // Predicated region
  $region14: #{bottleneck_forward.4} parent=0 // pred_check
    _
  $region15: #{bottleneck_forward.4} parent=0 // pred_check_branch
    %1151 = sbr.rel (0) target = $region17
  $region16: #{bottleneck_forward.4} parent=0 // pred_region
    _
  $region17: #{bottleneck_forward.4} parent=0 // pred_fallthru
    _
  // Predicated region
  $region18: #{bottleneck_forward.4} parent=0 // pred_check
    _
  $region19: #{bottleneck_forward.4} parent=0 // pred_check_branch
    %1153 = sbr.rel (0) target = $region21
  $region20: #{bottleneck_forward.4} parent=0 // pred_region
    _
  $region21: #{bottleneck_forward.4} parent=0 // pred_fallthru
    _
  // Predicated region
  $region22: #{bottleneck_forward.4} parent=0 // pred_check
    _
  $region23: #{bottleneck_forward.4} parent=0 // pred_check_branch
    %1155 = sbr.rel (0) target = $region25
  $region24: #{bottleneck_forward.4} parent=0 // pred_region
    _
  $region25: #{bottleneck_forward.4} parent=0 // pred_fallthru
    _
  // Predicated region
  $region26: #{bottleneck_forward.4} parent=0 // pred_check
    _
  $region27: #{bottleneck_forward.4} parent=0 // pred_check_branch
    %1157 = sbr.rel (0) target = $region29
  $region28: #{bottleneck_forward.4} parent=0 // pred_region
    _
  $region29: #{bottleneck_forward.4} parent=0 // pred_fallthru
    _
  // Predicated region
  $region30: #{bottleneck_forward.4} parent=0 // pred_check
    _
  $region31: #{bottleneck_forward.4} parent=0 // pred_check_branch
    %1159 = sbr.rel (0) target = $region33
  $region32: #{bottleneck_forward.4} parent=0 // pred_region
    _
  $region33: #{bottleneck_forward.4} parent=0 // pred_fallthru
    _

// kernel: bottleneck_forward.6
$region0: #{bottleneck_forward.6}
  #allocation0 [shape = 'u32[]', space=smem, size = 0x4, offset = 0x4, fixed_abs, tag = 'smem constant byte address 0x4 - core index']
  #allocation1 [shape = 'u32[144,128]{1,0:T(1,128)}', space=vmem, size = 0x12000, scoped, tag = 'internal scratch']
  %s0 = inlined_call_operand.vmem [shape: bf16[512,128], index: 0, kind: input, shape index: {}]
  %s1 = inlined_call_operand.vmem [shape: f32[1,128], index: 1, kind: input, shape index: {}]
  %s2 = inlined_call_operand.vmem [shape: f32[1,128], index: 2, kind: input, shape index: {}]
  %s3 = inlined_call_operand.vmem [shape: bf16[128,128], index: 3, kind: input, shape index: {}]
  %s4 = inlined_call_operand.vmem [shape: bf16[512,128], index: 4, kind: output, shape index: {0}]
  %s5 = inlined_call_operand.vmem [shape: f32[1,1,128], index: 5, kind: output, shape index: {1}]
  %s6 = inlined_call_operand.vmem [shape: f32[1,1,128], index: 6, kind: output, shape index: {2}]
  %7 = xla_tuple %s4, %s5, %s6
  %s8 = sld [smem:[#allocation0]]
  $region42: #{bottleneck_forward.6} parent=0
    _
  %s10 = ssub.s32 1, %s8
  %s11 = scalar_select 0, %s10, %s8
  // Predicated region
  $region2: #{bottleneck_forward.6} parent=0 // pred_check
    _
  $region3: #{bottleneck_forward.6} parent=0 // pred_check_branch
    %13 = sbr.rel (0) target = $region5
  $region4: #{bottleneck_forward.6} parent=0 // pred_region
    _
  $region5: #{bottleneck_forward.6} parent=0 // pred_fallthru
    _
  // Predicated region
  $region6: #{bottleneck_forward.6} parent=0 // pred_check
    _
  $region7: #{bottleneck_forward.6} parent=0 // pred_check_branch
    %15 = sbr.rel (0) target = $region9
  $region8: #{bottleneck_forward.6} parent=0 // pred_region
    _
  $region9: #{bottleneck_forward.6} parent=0 // pred_fallthru
    _
  // Predicated region
  $region10: #{bottleneck_forward.6} parent=0 // pred_check
    _
  $region11: #{bottleneck_forward.6} parent=0 // pred_check_branch
    %17 = sbr.rel (0) target = $region13
  $region12: #{bottleneck_forward.6} parent=0 // pred_region
    _
  $region13: #{bottleneck_forward.6} parent=0 // pred_fallthru
    _
  // Predicated region
  $region14: #{bottleneck_forward.6} parent=0 // pred_check
    _
  $region15: #{bottleneck_forward.6} parent=0 // pred_check_branch
    %19 = sbr.rel (0) target = $region17
  $region16: #{bottleneck_forward.6} parent=0 // pred_region
    _
  $region17: #{bottleneck_forward.6} parent=0 // pred_fallthru
    _
  %v21 = vld [vmem:[%s0] sm:$0xf]
  %v22 = vld [vmem:[%s0 + $0x4] sm:$0xf]
  %v23 = vld [vmem:[%s0 + $0x8] sm:$0xf]
  %v24 = vld [vmem:[%s0 + $0xc] sm:$0xf]
  %v25 = vld [vmem:[%s0 + $0x10] sm:$0xf]
  %v26 = vld [vmem:[%s0 + $0x14] sm:$0xf]
  %v27 = vld [vmem:[%s0 + $0x18] sm:$0xf]
  %v28 = vld [vmem:[%s0 + $0x1c] sm:$0xf]
  %v29 = vld [vmem:[%s0 + $0x20] sm:$0xf]
  %v30 = vld [vmem:[%s0 + $0x24] sm:$0xf]
  %v31 = vld [vmem:[%s0 + $0x28] sm:$0xf]
  %v32 = vld [vmem:[%s0 + $0x2c] sm:$0xf]
  %v33 = vld [vmem:[%s0 + $0x30] sm:$0xf]
  %v34 = vld [vmem:[%s0 + $0x34] sm:$0xf]
  %v35 = vld [vmem:[%s0 + $0x38] sm:$0xf]
  %v36 = vld [vmem:[%s0 + $0x3c] sm:$0xf]
  %v37 = vld [vmem:[%s0 + $0x40] sm:$0xf]
  %v38 = vld [vmem:[%s0 + $0x44] sm:$0xf]
  %v39 = vld [vmem:[%s0 + $0x48] sm:$0xf]
  %v40 = vld [vmem:[%s0 + $0x4c] sm:$0xf]
  %v41 = vld [vmem:[%s0 + $0x50] sm:$0xf]
  %v42 = vld [vmem:[%s0 + $0x54] sm:$0xf]
  %v43 = vld [vmem:[%s0 + $0x58] sm:$0xf]
  %v44 = vld [vmem:[%s0 + $0x5c] sm:$0xf]
  %v45 = vld [vmem:[%s0 + $0x60] sm:$0xf]
  %v46 = vld [vmem:[%s0 + $0x64] sm:$0xf]
  %v47 = vld [vmem:[%s0 + $0x68] sm:$0xf]
  %v48 = vld [vmem:[%s0 + $0x6c] sm:$0xf]
  %v49 = vld [vmem:[%s0 + $0x70] sm:$0xf]
  %v50 = vld [vmem:[%s0 + $0x74] sm:$0xf]
  %v51 = vld [vmem:[%s0 + $0x78] sm:$0xf]
  %v52 = vld [vmem:[%s0 + $0x7c] sm:$0xf]
  %v53 = vld [vmem:[%s0 + $0x80] sm:$0xf]
  %v54 = vld [vmem:[%s0 + $0x84] sm:$0xf]
  %v55 = vld [vmem:[%s0 + $0x88] sm:$0xf]
  %v56 = vld [vmem:[%s0 + $0x8c] sm:$0xf]
  %v57 = vld [vmem:[%s0 + $0x90] sm:$0xf]
  %v58 = vld [vmem:[%s0 + $0x94] sm:$0xf]
  %v59 = vld [vmem:[%s0 + $0x98] sm:$0xf]
  %v60 = vld [vmem:[%s0 + $0x9c] sm:$0xf]
  %v61 = vld [vmem:[%s0 + $0xa0] sm:$0xf]
  %v62 = vld [vmem:[%s0 + $0xa4] sm:$0xf]
  %v63 = vld [vmem:[%s0 + $0xa8] sm:$0xf]
  %v64 = vld [vmem:[%s0 + $0xac] sm:$0xf]
  %v65 = vld [vmem:[%s0 + $0xb0] sm:$0xf]
  %v66 = vld [vmem:[%s0 + $0xb4] sm:$0xf]
  %v67 = vld [vmem:[%s0 + $0xb8] sm:$0xf]
  %v68 = vld [vmem:[%s0 + $0xbc] sm:$0xf]
  %v69 = vld [vmem:[%s0 + $0xc0] sm:$0xf]
  %v70 = vld [vmem:[%s0 + $0xc4] sm:$0xf]
  %v71 = vld [vmem:[%s0 + $0xc8] sm:$0xf]
  %v72 = vld [vmem:[%s0 + $0xcc] sm:$0xf]
  %v73 = vld [vmem:[%s0 + $0xd0] sm:$0xf]
  %v74 = vld [vmem:[%s0 + $0xd4] sm:$0xf]
  %v75 = vld [vmem:[%s0 + $0xd8] sm:$0xf]
  %v76 = vld [vmem:[%s0 + $0xdc] sm:$0xf]
  %v77 = vld [vmem:[%s0 + $0xe0] sm:$0xf]
  %v78 = vld [vmem:[%s0 + $0xe4] sm:$0xf]
  %v79 = vld [vmem:[%s0 + $0xe8] sm:$0xf]
  %v80 = vld [vmem:[%s0 + $0xec] sm:$0xf]
  %v81 = vld [vmem:[%s0 + $0xf0] sm:$0xf]
  %v82 = vld [vmem:[%s0 + $0xf4] sm:$0xf]
  %v83 = vld [vmem:[%s0 + $0xf8] sm:$0xf]
  %v84 = vld [vmem:[%s0 + $0xfc] sm:$0xf]
  %v85 = vunpack.c.l.bf16 %v21
  %v86 = vunpack.c.l.bf16 %v22
  %v87 = vunpack.c.l.bf16 %v23
  %v88 = vunpack.c.l.bf16 %v24
  %v89 = vunpack.c.l.bf16 %v25
  %v90 = vunpack.c.l.bf16 %v26
  %v91 = vunpack.c.l.bf16 %v27
  %v92 = vunpack.c.l.bf16 %v28
  %v93 = vunpack.c.l.bf16 %v29
  %v94 = vunpack.c.l.bf16 %v30
  %v95 = vunpack.c.l.bf16 %v31
  %v96 = vunpack.c.l.bf16 %v32
  %v97 = vunpack.c.l.bf16 %v33
  %v98 = vunpack.c.l.bf16 %v34
  %v99 = vunpack.c.l.bf16 %v35
  %v100 = vunpack.c.l.bf16 %v36
  %v101 = vunpack.c.l.bf16 %v37
  %v102 = vunpack.c.l.bf16 %v38
  %v103 = vunpack.c.l.bf16 %v39
  %v104 = vunpack.c.l.bf16 %v40
  %v105 = vunpack.c.l.bf16 %v41
  %v106 = vunpack.c.l.bf16 %v42
  %v107 = vunpack.c.l.bf16 %v43
  %v108 = vunpack.c.l.bf16 %v44
  %v109 = vunpack.c.l.bf16 %v45
  %v110 = vunpack.c.l.bf16 %v46
  %v111 = vunpack.c.l.bf16 %v47
  %v112 = vunpack.c.l.bf16 %v48
  %v113 = vunpack.c.l.bf16 %v49
  %v114 = vunpack.c.l.bf16 %v50
  %v115 = vunpack.c.l.bf16 %v51
  %v116 = vunpack.c.l.bf16 %v52
  %v117 = vunpack.c.l.bf16 %v53
  %v118 = vunpack.c.l.bf16 %v54
  %v119 = vunpack.c.l.bf16 %v55
  %v120 = vunpack.c.l.bf16 %v56
  %v121 = vunpack.c.l.bf16 %v57
  %v122 = vunpack.c.l.bf16 %v58
  %v123 = vunpack.c.l.bf16 %v59
  %v124 = vunpack.c.l.bf16 %v60
  %v125 = vunpack.c.l.bf16 %v61
  %v126 = vunpack.c.l.bf16 %v62
  %v127 = vunpack.c.l.bf16 %v63
  %v128 = vunpack.c.l.bf16 %v64
  %v129 = vunpack.c.l.bf16 %v65
  %v130 = vunpack.c.l.bf16 %v66
  %v131 = vunpack.c.l.bf16 %v67
  %v132 = vunpack.c.l.bf16 %v68
  %v133 = vunpack.c.l.bf16 %v69
  %v134 = vunpack.c.l.bf16 %v70
  %v135 = vunpack.c.l.bf16 %v71
  %v136 = vunpack.c.l.bf16 %v72
  %v137 = vunpack.c.l.bf16 %v73
  %v138 = vunpack.c.l.bf16 %v74
  %v139 = vunpack.c.l.bf16 %v75
  %v140 = vunpack.c.l.bf16 %v76
  %v141 = vunpack.c.l.bf16 %v77
  %v142 = vunpack.c.l.bf16 %v78
  %v143 = vunpack.c.l.bf16 %v79
  %v144 = vunpack.c.l.bf16 %v80
  %v145 = vunpack.c.l.bf16 %v81
  %v146 = vunpack.c.l.bf16 %v82
  %v147 = vunpack.c.l.bf16 %v83
  %v148 = vunpack.c.l.bf16 %v84
  %v149 = vld [vmem:[%s1] sm:$0x1]
  %v151 = vlaneseq
  %v152 = vshrl.u32 %v151, 7
  %v153 = vsub.s32 0, %v152
  %v154 = vrot.slane %v149, %v153
  %v156 = vmul.f32 %v85, %v154
  %v157 = vmul.f32 %v86, %v154
  %v158 = vmul.f32 %v87, %v154
  %v159 = vmul.f32 %v88, %v154
  %v160 = vmul.f32 %v89, %v154
  %v161 = vmul.f32 %v90, %v154
  %v162 = vmul.f32 %v91, %v154
  %v163 = vmul.f32 %v92, %v154
  %v164 = vmul.f32 %v93, %v154
  %v165 = vmul.f32 %v94, %v154
  %v166 = vmul.f32 %v95, %v154
  %v167 = vmul.f32 %v96, %v154
  %v168 = vmul.f32 %v97, %v154
  %v169 = vmul.f32 %v98, %v154
  %v170 = vmul.f32 %v99, %v154
  %v171 = vmul.f32 %v100, %v154
  %v172 = vmul.f32 %v101, %v154
  %v173 = vmul.f32 %v102, %v154
  %v174 = vmul.f32 %v103, %v154
  %v175 = vmul.f32 %v104, %v154
  %v176 = vmul.f32 %v105, %v154
  %v177 = vmul.f32 %v106, %v154
  %v178 = vmul.f32 %v107, %v154
  %v179 = vmul.f32 %v108, %v154
  %v180 = vmul.f32 %v109, %v154
  %v181 = vmul.f32 %v110, %v154
  %v182 = vmul.f32 %v111, %v154
  %v183 = vmul.f32 %v112, %v154
  %v184 = vmul.f32 %v113, %v154
  %v185 = vmul.f32 %v114, %v154
  %v186 = vmul.f32 %v115, %v154
  %v187 = vmul.f32 %v116, %v154
  %v188 = vmul.f32 %v117, %v154
  %v189 = vmul.f32 %v118, %v154
  %v190 = vmul.f32 %v119, %v154
  %v191 = vmul.f32 %v120, %v154
  %v192 = vmul.f32 %v121, %v154
  %v193 = vmul.f32 %v122, %v154
  %v194 = vmul.f32 %v123, %v154
  %v195 = vmul.f32 %v124, %v154
  %v196 = vmul.f32 %v125, %v154
  %v197 = vmul.f32 %v126, %v154
  %v198 = vmul.f32 %v127, %v154
  %v199 = vmul.f32 %v128, %v154
  %v200 = vmul.f32 %v129, %v154
  %v201 = vmul.f32 %v130, %v154
  %v202 = vmul.f32 %v131, %v154
  %v203 = vmul.f32 %v132, %v154
  %v204 = vmul.f32 %v133, %v154
  %v205 = vmul.f32 %v134, %v154
  %v206 = vmul.f32 %v135, %v154
  %v207 = vmul.f32 %v136, %v154
  %v208 = vmul.f32 %v137, %v154
  %v209 = vmul.f32 %v138, %v154
  %v210 = vmul.f32 %v139, %v154
  %v211 = vmul.f32 %v140, %v154
  %v212 = vmul.f32 %v141, %v154
  %v213 = vmul.f32 %v142, %v154
  %v214 = vmul.f32 %v143, %v154
  %v215 = vmul.f32 %v144, %v154
  %v216 = vmul.f32 %v145, %v154
  %v217 = vmul.f32 %v146, %v154
  %v218 = vmul.f32 %v147, %v154
  %v219 = vmul.f32 %v148, %v154
  %v220 = vld [vmem:[%s2] sm:$0x1]
  %v222 = vlaneseq
  %v223 = vshrl.u32 %v222, 7
  %v224 = vsub.s32 0, %v223
  %v225 = vrot.slane %v220, %v224
  %v227 = vadd.f32 %v156, %v225
  %v228 = vadd.f32 %v157, %v225
  %v229 = vadd.f32 %v158, %v225
  %v230 = vadd.f32 %v159, %v225
  %v231 = vadd.f32 %v160, %v225
  %v232 = vadd.f32 %v161, %v225
  %v233 = vadd.f32 %v162, %v225
  %v234 = vadd.f32 %v163, %v225
  %v235 = vadd.f32 %v164, %v225
  %v236 = vadd.f32 %v165, %v225
  %v237 = vadd.f32 %v166, %v225
  %v238 = vadd.f32 %v167, %v225
  %v239 = vadd.f32 %v168, %v225
  %v240 = vadd.f32 %v169, %v225
  %v241 = vadd.f32 %v170, %v225
  %v242 = vadd.f32 %v171, %v225
  %v243 = vadd.f32 %v172, %v225
  %v244 = vadd.f32 %v173, %v225
  %v245 = vadd.f32 %v174, %v225
  %v246 = vadd.f32 %v175, %v225
  %v247 = vadd.f32 %v176, %v225
  %v248 = vadd.f32 %v177, %v225
  %v249 = vadd.f32 %v178, %v225
  %v250 = vadd.f32 %v179, %v225
  %v251 = vadd.f32 %v180, %v225
  %v252 = vadd.f32 %v181, %v225
  %v253 = vadd.f32 %v182, %v225
  %v254 = vadd.f32 %v183, %v225
  %v255 = vadd.f32 %v184, %v225
  %v256 = vadd.f32 %v185, %v225
  %v257 = vadd.f32 %v186, %v225
  %v258 = vadd.f32 %v187, %v225
  %v259 = vadd.f32 %v188, %v225
  %v260 = vadd.f32 %v189, %v225
  %v261 = vadd.f32 %v190, %v225
  %v262 = vadd.f32 %v191, %v225
  %v263 = vadd.f32 %v192, %v225
  %v264 = vadd.f32 %v193, %v225
  %v265 = vadd.f32 %v194, %v225
  %v266 = vadd.f32 %v195, %v225
  %v267 = vadd.f32 %v196, %v225
  %v268 = vadd.f32 %v197, %v225
  %v269 = vadd.f32 %v198, %v225
  %v270 = vadd.f32 %v199, %v225
  %v271 = vadd.f32 %v200, %v225
  %v272 = vadd.f32 %v201, %v225
  %v273 = vadd.f32 %v202, %v225
  %v274 = vadd.f32 %v203, %v225
  %v275 = vadd.f32 %v204, %v225
  %v276 = vadd.f32 %v205, %v225
  %v277 = vadd.f32 %v206, %v225
  %v278 = vadd.f32 %v207, %v225
  %v279 = vadd.f32 %v208, %v225
  %v280 = vadd.f32 %v209, %v225
  %v281 = vadd.f32 %v210, %v225
  %v282 = vadd.f32 %v211, %v225
  %v283 = vadd.f32 %v212, %v225
  %v284 = vadd.f32 %v213, %v225
  %v285 = vadd.f32 %v214, %v225
  %v286 = vadd.f32 %v215, %v225
  %v287 = vadd.f32 %v216, %v225
  %v288 = vadd.f32 %v217, %v225
  %v289 = vadd.f32 %v218, %v225
  %v290 = vadd.f32 %v219, %v225
  %v291 = vmax.f32 %v227, 0.0
  %v292 = vmax.f32 %v228, 0.0
  %v293 = vmax.f32 %v229, 0.0
  %v294 = vmax.f32 %v230, 0.0
  %v295 = vmax.f32 %v231, 0.0
  %v296 = vmax.f32 %v232, 0.0
  %v297 = vmax.f32 %v233, 0.0
  %v298 = vmax.f32 %v234, 0.0
  %v299 = vmax.f32 %v235, 0.0
  %v300 = vmax.f32 %v236, 0.0
  %v301 = vmax.f32 %v237, 0.0
  %v302 = vmax.f32 %v238, 0.0
  %v303 = vmax.f32 %v239, 0.0
  %v304 = vmax.f32 %v240, 0.0
  %v305 = vmax.f32 %v241, 0.0
  %v306 = vmax.f32 %v242, 0.0
  %v307 = vmax.f32 %v243, 0.0
  %v308 = vmax.f32 %v244, 0.0
  %v309 = vmax.f32 %v245, 0.0
  %v310 = vmax.f32 %v246, 0.0
  %v311 = vmax.f32 %v247, 0.0
  %v312 = vmax.f32 %v248, 0.0
  %v313 = vmax.f32 %v249, 0.0
  %v314 = vmax.f32 %v250, 0.0
  %v315 = vmax.f32 %v251, 0.0
  %v316 = vmax.f32 %v252, 0.0
  %v317 = vmax.f32 %v253, 0.0
  %v318 = vmax.f32 %v254, 0.0
  %v319 = vmax.f32 %v255, 0.0
  %v320 = vmax.f32 %v256, 0.0
  %v321 = vmax.f32 %v257, 0.0
  %v322 = vmax.f32 %v258, 0.0
  %v323 = vmax.f32 %v259, 0.0
  %v324 = vmax.f32 %v260, 0.0
  %v325 = vmax.f32 %v261, 0.0
  %v326 = vmax.f32 %v262, 0.0
  %v327 = vmax.f32 %v263, 0.0
  %v328 = vmax.f32 %v264, 0.0
  %v329 = vmax.f32 %v265, 0.0
  %v330 = vmax.f32 %v266, 0.0
  %v331 = vmax.f32 %v267, 0.0
  %v332 = vmax.f32 %v268, 0.0
  %v333 = vmax.f32 %v269, 0.0
  %v334 = vmax.f32 %v270, 0.0
  %v335 = vmax.f32 %v271, 0.0
  %v336 = vmax.f32 %v272, 0.0
  %v337 = vmax.f32 %v273, 0.0
  %v338 = vmax.f32 %v274, 0.0
  %v339 = vmax.f32 %v275, 0.0
  %v340 = vmax.f32 %v276, 0.0
  %v341 = vmax.f32 %v277, 0.0
  %v342 = vmax.f32 %v278, 0.0
  %v343 = vmax.f32 %v279, 0.0
  %v344 = vmax.f32 %v280, 0.0
  %v345 = vmax.f32 %v281, 0.0
  %v346 = vmax.f32 %v282, 0.0
  %v347 = vmax.f32 %v283, 0.0
  %v348 = vmax.f32 %v284, 0.0
  %v349 = vmax.f32 %v285, 0.0
  %v350 = vmax.f32 %v286, 0.0
  %v351 = vmax.f32 %v287, 0.0
  %v352 = vmax.f32 %v288, 0.0
  %v353 = vmax.f32 %v289, 0.0
  %v354 = vmax.f32 %v290, 0.0
  %v355 = vpack.c.bf16 %v292, %v291
  %v356 = vpack.c.bf16 %v294, %v293
  %v357 = vpack.c.bf16 %v296, %v295
  %v358 = vpack.c.bf16 %v298, %v297
  %v359 = vpack.c.bf16 %v300, %v299
  %v360 = vpack.c.bf16 %v302, %v301
  %v361 = vpack.c.bf16 %v304, %v303
  %v362 = vpack.c.bf16 %v306, %v305
  %v363 = vpack.c.bf16 %v308, %v307
  %v364 = vpack.c.bf16 %v310, %v309
  %v365 = vpack.c.bf16 %v312, %v311
  %v366 = vpack.c.bf16 %v314, %v313
  %v367 = vpack.c.bf16 %v316, %v315
  %v368 = vpack.c.bf16 %v318, %v317
  %v369 = vpack.c.bf16 %v320, %v319
  %v370 = vpack.c.bf16 %v322, %v321
  %v371 = vpack.c.bf16 %v324, %v323
  %v372 = vpack.c.bf16 %v326, %v325
  %v373 = vpack.c.bf16 %v328, %v327
  %v374 = vpack.c.bf16 %v330, %v329
  %v375 = vpack.c.bf16 %v332, %v331
  %v376 = vpack.c.bf16 %v334, %v333
  %v377 = vpack.c.bf16 %v336, %v335
  %v378 = vpack.c.bf16 %v338, %v337
  %v379 = vpack.c.bf16 %v340, %v339
  %v380 = vpack.c.bf16 %v342, %v341
  %v381 = vpack.c.bf16 %v344, %v343
  %v382 = vpack.c.bf16 %v346, %v345
  %v383 = vpack.c.bf16 %v348, %v347
  %v384 = vpack.c.bf16 %v350, %v349
  %v385 = vpack.c.bf16 %v352, %v351
  %v386 = vpack.c.bf16 %v354, %v353
  %v387 = vld [vmem:[%s3] sm:$0xf]
  %v388 = vld [vmem:[%s3 + $0x4] sm:$0xf]
  %v389 = vld [vmem:[%s3 + $0x8] sm:$0xf]
  %v390 = vld [vmem:[%s3 + $0xc] sm:$0xf]
  %v391 = vld [vmem:[%s3 + $0x10] sm:$0xf]
  %v392 = vld [vmem:[%s3 + $0x14] sm:$0xf]
  %v393 = vld [vmem:[%s3 + $0x18] sm:$0xf]
  %v394 = vld [vmem:[%s3 + $0x1c] sm:$0xf]
  %v395 = vld [vmem:[%s3 + $0x20] sm:$0xf]
  %v396 = vld [vmem:[%s3 + $0x24] sm:$0xf]
  %v397 = vld [vmem:[%s3 + $0x28] sm:$0xf]
  %v398 = vld [vmem:[%s3 + $0x2c] sm:$0xf]
  %v399 = vld [vmem:[%s3 + $0x30] sm:$0xf]
  %v400 = vld [vmem:[%s3 + $0x34] sm:$0xf]
  %v401 = vld [vmem:[%s3 + $0x38] sm:$0xf]
  %v402 = vld [vmem:[%s3 + $0x3c] sm:$0xf]
  %v419 = vunpack.c.l.b16 %v387
  %v420 = vunpack.c.l.b16 %v388
  %v421 = vunpack.c.l.b16 %v389
  %v422 = vunpack.c.l.b16 %v390
  %v423 = vunpack.c.l.b16 %v391
  %v424 = vunpack.c.l.b16 %v392
  %v425 = vunpack.c.l.b16 %v393
  %v426 = vunpack.c.l.b16 %v394
  %v427 = vunpack.c.l.b16 %v395
  %v428 = vunpack.c.l.b16 %v396
  %v429 = vunpack.c.l.b16 %v397
  %v430 = vunpack.c.l.b16 %v398
  %v431 = vunpack.c.l.b16 %v399
  %v432 = vunpack.c.l.b16 %v400
  %v433 = vunpack.c.l.b16 %v401
  %v434 = vunpack.c.l.b16 %v402
  %v435 = vpack.c.b16 %v420, %v419
  %v436 = vpack.c.b16 %v422, %v421
  %v437 = vpack.c.b16 %v424, %v423
  %v438 = vpack.c.b16 %v426, %v425
  %v439 = vpack.c.b16 %v428, %v427
  %v440 = vpack.c.b16 %v430, %v429
  %v441 = vpack.c.b16 %v432, %v431
  %v442 = vpack.c.b16 %v434, %v433
  %451 = vmatprep.subr.bf16.mxu0 0
  %452 = vmatpush1.bf16.msra.mxu0 %v442
  %453 = vmatprep.subr.bf16.mxu0 0
  %454 = vmatpush1.bf16.msra.mxu0 %v441
  %455 = vmatprep.subr.bf16.mxu0 0
  %456 = vmatpush1.bf16.msra.mxu0 %v440
  %457 = vmatprep.subr.bf16.mxu0 0
  %458 = vmatpush1.bf16.msra.mxu0 %v439
  %459 = vmatprep.subr.bf16.mxu0 0
  %460 = vmatpush1.bf16.msra.mxu0 %v438
  %461 = vmatprep.subr.bf16.mxu0 0
  %462 = vmatpush1.bf16.msra.mxu0 %v437
  %463 = vmatprep.subr.bf16.mxu0 0
  %464 = vmatpush1.bf16.msra.mxu0 %v436
  %465 = vmatprep.subr.bf16.mxu0 0
  %466 = vmatpush1.bf16.msra.mxu0 %v435
  %467 = vmatprep.subr.bf16.mxu0 0
  %468 = vmatpush2.bf16.msra.mxu0 0
  %469 = vmatprep.subr.bf16.mxu0 0
  %470 = vmatpush2.bf16.msra.mxu0 0
  %471 = vmatprep.subr.bf16.mxu0 0
  %472 = vmatpush2.bf16.msra.mxu0 0
  %473 = vmatprep.subr.bf16.mxu0 0
  %474 = vmatpush2.bf16.msra.mxu0 0
  %475 = vmatprep.subr.bf16.mxu0 0
  %476 = vmatpush2.bf16.msra.mxu0 0
  %477 = vmatprep.subr.bf16.mxu0 0
  %478 = vmatpush2.bf16.msra.mxu0 0
  %479 = vmatprep.subr.bf16.mxu0 0
  %480 = vmatpush2.bf16.msra.mxu0 0
  %481 = vmatprep.subr.bf16.mxu0 0
  %482 = vmatpush2.bf16.msra.mxu0 0
  %483 = vmatprep.mubr.bf16.mxu0 0
  %484 = vmatmul.mubr.bf16.gmra.mxu0 %v355
  %v485 = vpop.f32.mrf.mxu0
  %v486 = vadd.f32 0.0, %v485
  %v487 = vpop.f32.mrf.mxu0
  %v488 = vpop.f32.mrf.mxu0
  %v489 = vadd.f32 0.0, %v488
  %v490 = vpop.f32.mrf.mxu0
  %491 = vmatprep.mubr.bf16.mxu0 0
  %492 = vmatmul.mubr.bf16.gmra.mxu0 %v356
  %v493 = vpop.f32.mrf.mxu0
  %v494 = vadd.f32 0.0, %v493
  %v495 = vpop.f32.mrf.mxu0
  %v496 = vpop.f32.mrf.mxu0
  %v497 = vadd.f32 0.0, %v496
  %v498 = vpop.f32.mrf.mxu0
  %499 = vmatprep.mubr.bf16.mxu0 0
  %500 = vmatmul.mubr.bf16.gmra.mxu0 %v357
  %v501 = vpop.f32.mrf.mxu0
  %v502 = vadd.f32 0.0, %v501
  %v503 = vpop.f32.mrf.mxu0
  %v504 = vpop.f32.mrf.mxu0
  %v505 = vadd.f32 0.0, %v504
  %v506 = vpop.f32.mrf.mxu0
  %507 = vmatprep.mubr.bf16.mxu0 0
  %508 = vmatmul.mubr.bf16.gmra.mxu0 %v358
  %v509 = vpop.f32.mrf.mxu0
  %v510 = vadd.f32 0.0, %v509
  %v511 = vpop.f32.mrf.mxu0
  %v512 = vpop.f32.mrf.mxu0
  %v513 = vadd.f32 0.0, %v512
  %v514 = vpop.f32.mrf.mxu0
  %515 = vmatprep.mubr.bf16.mxu0 0
  %516 = vmatmul.mubr.bf16.gmra.mxu0 %v359
  %v517 = vpop.f32.mrf.mxu0
  %v518 = vadd.f32 0.0, %v517
  %v519 = vpop.f32.mrf.mxu0
  %v520 = vpop.f32.mrf.mxu0
  %v521 = vadd.f32 0.0, %v520
  %v522 = vpop.f32.mrf.mxu0
  %523 = vmatprep.mubr.bf16.mxu0 0
  %524 = vmatmul.mubr.bf16.gmra.mxu0 %v360
  %v525 = vpop.f32.mrf.mxu0
  %v526 = vadd.f32 0.0, %v525
  %v527 = vpop.f32.mrf.mxu0
  %v528 = vpop.f32.mrf.mxu0
  %v529 = vadd.f32 0.0, %v528
  %v530 = vpop.f32.mrf.mxu0
  %531 = vmatprep.mubr.bf16.mxu0 0
  %532 = vmatmul.mubr.bf16.gmra.mxu0 %v361
  %v533 = vpop.f32.mrf.mxu0
  %v534 = vadd.f32 0.0, %v533
  %v535 = vpop.f32.mrf.mxu0
  %v536 = vpop.f32.mrf.mxu0
  %v537 = vadd.f32 0.0, %v536
  %v538 = vpop.f32.mrf.mxu0
  %539 = vmatprep.mubr.bf16.mxu0 0
  %540 = vmatmul.mubr.bf16.gmra.mxu0 %v362
  %v541 = vpop.f32.mrf.mxu0
  %v542 = vadd.f32 0.0, %v541
  %v543 = vpop.f32.mrf.mxu0
  %v544 = vpop.f32.mrf.mxu0
  %v545 = vadd.f32 0.0, %v544
  %v546 = vpop.f32.mrf.mxu0
  %547 = vmatprep.mubr.bf16.mxu0 0
  %548 = vmatmul.mubr.bf16.gmra.mxu0 %v363
  %v549 = vpop.f32.mrf.mxu0
  %v550 = vadd.f32 0.0, %v549
  %v551 = vpop.f32.mrf.mxu0
  %v552 = vpop.f32.mrf.mxu0
  %v553 = vadd.f32 0.0, %v552
  %v554 = vpop.f32.mrf.mxu0
  %555 = vmatprep.mubr.bf16.mxu0 0
  %556 = vmatmul.mubr.bf16.gmra.mxu0 %v364
  %v557 = vpop.f32.mrf.mxu0
  %v558 = vadd.f32 0.0, %v557
  %v559 = vpop.f32.mrf.mxu0
  %v560 = vpop.f32.mrf.mxu0
  %v561 = vadd.f32 0.0, %v560
  %v562 = vpop.f32.mrf.mxu0
  %563 = vmatprep.mubr.bf16.mxu0 0
  %564 = vmatmul.mubr.bf16.gmra.mxu0 %v365
  %v565 = vpop.f32.mrf.mxu0
  %v566 = vadd.f32 0.0, %v565
  %v567 = vpop.f32.mrf.mxu0
  %v568 = vpop.f32.mrf.mxu0
  %v569 = vadd.f32 0.0, %v568
  %v570 = vpop.f32.mrf.mxu0
  %571 = vmatprep.mubr.bf16.mxu0 0
  %572 = vmatmul.mubr.bf16.gmra.mxu0 %v366
  %v573 = vpop.f32.mrf.mxu0
  %v574 = vadd.f32 0.0, %v573
  %v575 = vpop.f32.mrf.mxu0
  %v576 = vpop.f32.mrf.mxu0
  %v577 = vadd.f32 0.0, %v576
  %v578 = vpop.f32.mrf.mxu0
  %579 = vmatprep.mubr.bf16.mxu0 0
  %580 = vmatmul.mubr.bf16.gmra.mxu0 %v367
  %v581 = vpop.f32.mrf.mxu0
  %v582 = vadd.f32 0.0, %v581
  %v583 = vpop.f32.mrf.mxu0
  %v584 = vpop.f32.mrf.mxu0
  %v585 = vadd.f32 0.0, %v584
  %v586 = vpop.f32.mrf.mxu0
  %587 = vmatprep.mubr.bf16.mxu0 0
  %588 = vmatmul.mubr.bf16.gmra.mxu0 %v368
  %v589 = vpop.f32.mrf.mxu0
  %v590 = vadd.f32 0.0, %v589
  %v591 = vpop.f32.mrf.mxu0
  %v592 = vpop.f32.mrf.mxu0
  %v593 = vadd.f32 0.0, %v592
  %v594 = vpop.f32.mrf.mxu0
  %595 = vmatprep.mubr.bf16.mxu0 0
  %596 = vmatmul.mubr.bf16.gmra.mxu0 %v369
  %v597 = vpop.f32.mrf.mxu0
  %v598 = vadd.f32 0.0, %v597
  %v599 = vpop.f32.mrf.mxu0
  %v600 = vpop.f32.mrf.mxu0
  %v601 = vadd.f32 0.0, %v600
  %v602 = vpop.f32.mrf.mxu0
  %603 = vmatprep.mubr.bf16.mxu0 0
  %604 = vmatmul.mubr.bf16.gmra.mxu0 %v370
  %v605 = vpop.f32.mrf.mxu0
  %v606 = vadd.f32 0.0, %v605
  %v607 = vpop.f32.mrf.mxu0
  %v608 = vpop.f32.mrf.mxu0
  %v609 = vadd.f32 0.0, %v608
  %v610 = vpop.f32.mrf.mxu0
  %611 = vmatprep.mubr.bf16.mxu0 0
  %612 = vmatmul.mubr.bf16.gmra.mxu0 %v371
  %v613 = vpop.f32.mrf.mxu0
  %v614 = vadd.f32 0.0, %v613
  %v615 = vpop.f32.mrf.mxu0
  %v616 = vpop.f32.mrf.mxu0
  %v617 = vadd.f32 0.0, %v616
  %v618 = vpop.f32.mrf.mxu0
  %619 = vmatprep.mubr.bf16.mxu0 0
  %620 = vmatmul.mubr.bf16.gmra.mxu0 %v372
  %v621 = vpop.f32.mrf.mxu0
  %v622 = vadd.f32 0.0, %v621
  %v623 = vpop.f32.mrf.mxu0
  %v624 = vpop.f32.mrf.mxu0
  %v625 = vadd.f32 0.0, %v624
  %v626 = vpop.f32.mrf.mxu0
  %627 = vmatprep.mubr.bf16.mxu0 0
  %628 = vmatmul.mubr.bf16.gmra.mxu0 %v373
  %v629 = vpop.f32.mrf.mxu0
  %v630 = vadd.f32 0.0, %v629
  %v631 = vpop.f32.mrf.mxu0
  %v632 = vpop.f32.mrf.mxu0
  %v633 = vadd.f32 0.0, %v632
  %v634 = vpop.f32.mrf.mxu0
  %635 = vmatprep.mubr.bf16.mxu0 0
  %636 = vmatmul.mubr.bf16.gmra.mxu0 %v374
  %v637 = vpop.f32.mrf.mxu0
  %v638 = vadd.f32 0.0, %v637
  %v639 = vpop.f32.mrf.mxu0
  %v640 = vpop.f32.mrf.mxu0
  %v641 = vadd.f32 0.0, %v640
  %v642 = vpop.f32.mrf.mxu0
  %643 = vmatprep.mubr.bf16.mxu0 0
  %644 = vmatmul.mubr.bf16.gmra.mxu0 %v375
  %v645 = vpop.f32.mrf.mxu0
  %v646 = vadd.f32 0.0, %v645
  %v647 = vpop.f32.mrf.mxu0
  %v648 = vpop.f32.mrf.mxu0
  %v649 = vadd.f32 0.0, %v648
  %v650 = vpop.f32.mrf.mxu0
  %651 = vmatprep.mubr.bf16.mxu0 0
  %652 = vmatmul.mubr.bf16.gmra.mxu0 %v376
  %v653 = vpop.f32.mrf.mxu0
  %v654 = vadd.f32 0.0, %v653
  %v655 = vpop.f32.mrf.mxu0
  %v656 = vpop.f32.mrf.mxu0
  %v657 = vadd.f32 0.0, %v656
  %v658 = vpop.f32.mrf.mxu0
  %659 = vmatprep.mubr.bf16.mxu0 0
  %660 = vmatmul.mubr.bf16.gmra.mxu0 %v377
  %v661 = vpop.f32.mrf.mxu0
  %v662 = vadd.f32 0.0, %v661
  %v663 = vpop.f32.mrf.mxu0
  %v664 = vpop.f32.mrf.mxu0
  %v665 = vadd.f32 0.0, %v664
  %v666 = vpop.f32.mrf.mxu0
  %667 = vmatprep.mubr.bf16.mxu0 0
  %668 = vmatmul.mubr.bf16.gmra.mxu0 %v378
  %v669 = vpop.f32.mrf.mxu0
  %v670 = vadd.f32 0.0, %v669
  %v671 = vpop.f32.mrf.mxu0
  %v672 = vpop.f32.mrf.mxu0
  %v673 = vadd.f32 0.0, %v672
  %v674 = vpop.f32.mrf.mxu0
  %675 = vmatprep.mubr.bf16.mxu0 0
  %676 = vmatmul.mubr.bf16.gmra.mxu0 %v379
  %v677 = vpop.f32.mrf.mxu0
  %v678 = vadd.f32 0.0, %v677
  %v679 = vpop.f32.mrf.mxu0
  %v680 = vpop.f32.mrf.mxu0
  %v681 = vadd.f32 0.0, %v680
  %v682 = vpop.f32.mrf.mxu0
  %683 = vmatprep.mubr.bf16.mxu0 0
  %684 = vmatmul.mubr.bf16.gmra.mxu0 %v380
  %v685 = vpop.f32.mrf.mxu0
  %v686 = vadd.f32 0.0, %v685
  %v687 = vpop.f32.mrf.mxu0
  %v688 = vpop.f32.mrf.mxu0
  %v689 = vadd.f32 0.0, %v688
  %v690 = vpop.f32.mrf.mxu0
  %691 = vmatprep.mubr.bf16.mxu0 0
  %692 = vmatmul.mubr.bf16.gmra.mxu0 %v381
  %v693 = vpop.f32.mrf.mxu0
  %v694 = vadd.f32 0.0, %v693
  %v695 = vpop.f32.mrf.mxu0
  %v696 = vpop.f32.mrf.mxu0
  %v697 = vadd.f32 0.0, %v696
  %v698 = vpop.f32.mrf.mxu0
  %699 = vmatprep.mubr.bf16.mxu0 0
  %700 = vmatmul.mubr.bf16.gmra.mxu0 %v382
  %v701 = vpop.f32.mrf.mxu0
  %v702 = vadd.f32 0.0, %v701
  %v703 = vpop.f32.mrf.mxu0
  %v704 = vpop.f32.mrf.mxu0
  %v705 = vadd.f32 0.0, %v704
  %v706 = vpop.f32.mrf.mxu0
  %707 = vmatprep.mubr.bf16.mxu0 0
  %708 = vmatmul.mubr.bf16.gmra.mxu0 %v383
  %v709 = vpop.f32.mrf.mxu0
  %v710 = vadd.f32 0.0, %v709
  %v711 = vpop.f32.mrf.mxu0
  %v712 = vpop.f32.mrf.mxu0
  %v713 = vadd.f32 0.0, %v712
  %v714 = vpop.f32.mrf.mxu0
  %715 = vmatprep.mubr.bf16.mxu0 0
  %716 = vmatmul.mubr.bf16.gmra.mxu0 %v384
  %v717 = vpop.f32.mrf.mxu0
  %v718 = vadd.f32 0.0, %v717
  %v719 = vpop.f32.mrf.mxu0
  %v720 = vpop.f32.mrf.mxu0
  %v721 = vadd.f32 0.0, %v720
  %v722 = vpop.f32.mrf.mxu0
  %723 = vmatprep.mubr.bf16.mxu0 0
  %724 = vmatmul.mubr.bf16.gmra.mxu0 %v385
  %v725 = vpop.f32.mrf.mxu0
  %v726 = vadd.f32 0.0, %v725
  %v727 = vpop.f32.mrf.mxu0
  %v728 = vpop.f32.mrf.mxu0
  %v729 = vadd.f32 0.0, %v728
  %v730 = vpop.f32.mrf.mxu0
  %731 = vmatprep.mubr.bf16.mxu0 0
  %732 = vmatmul.mubr.bf16.gmra.mxu0 %v386
  %v733 = vpop.f32.mrf.mxu0
  %v734 = vadd.f32 0.0, %v733
  %v735 = vpop.f32.mrf.mxu0
  %v736 = vpop.f32.mrf.mxu0
  %v737 = vadd.f32 0.0, %v736
  %v738 = vpop.f32.mrf.mxu0
  %739 = vdwg.mxu0
  %v740 = vpack.c.bf16 %v489, %v486
  %v741 = vpack.c.bf16 %v497, %v494
  %v742 = vpack.c.bf16 %v505, %v502
  %v743 = vpack.c.bf16 %v513, %v510
  %v744 = vpack.c.bf16 %v521, %v518
  %v745 = vpack.c.bf16 %v529, %v526
  %v746 = vpack.c.bf16 %v537, %v534
  %v747 = vpack.c.bf16 %v545, %v542
  %v748 = vpack.c.bf16 %v553, %v550
  %v749 = vpack.c.bf16 %v561, %v558
  %v750 = vpack.c.bf16 %v569, %v566
  %v751 = vpack.c.bf16 %v577, %v574
  %v752 = vpack.c.bf16 %v585, %v582
  %v753 = vpack.c.bf16 %v593, %v590
  %v754 = vpack.c.bf16 %v601, %v598
  %v755 = vpack.c.bf16 %v609, %v606
  %v756 = vpack.c.bf16 %v617, %v614
  %v757 = vpack.c.bf16 %v625, %v622
  %v758 = vpack.c.bf16 %v633, %v630
  %v759 = vpack.c.bf16 %v641, %v638
  %v760 = vpack.c.bf16 %v649, %v646
  %v761 = vpack.c.bf16 %v657, %v654
  %v762 = vpack.c.bf16 %v665, %v662
  %v763 = vpack.c.bf16 %v673, %v670
  %v764 = vpack.c.bf16 %v681, %v678
  %v765 = vpack.c.bf16 %v689, %v686
  %v766 = vpack.c.bf16 %v697, %v694
  %v767 = vpack.c.bf16 %v705, %v702
  %v768 = vpack.c.bf16 %v713, %v710
  %v769 = vpack.c.bf16 %v721, %v718
  %v770 = vpack.c.bf16 %v729, %v726
  %v771 = vpack.c.bf16 %v737, %v734
  %v804 = vunpack.c.l.b16 %v740
  %v805 = vunpack.c.h.b16 %v740
  %v806 = vunpack.c.l.b16 %v741
  %v807 = vunpack.c.h.b16 %v741
  %v808 = vunpack.c.l.b16 %v742
  %v809 = vunpack.c.h.b16 %v742
  %v810 = vunpack.c.l.b16 %v743
  %v811 = vunpack.c.h.b16 %v743
  %v812 = vunpack.c.l.b16 %v744
  %v813 = vunpack.c.h.b16 %v744
  %v814 = vunpack.c.l.b16 %v745
  %v815 = vunpack.c.h.b16 %v745
  %v816 = vunpack.c.l.b16 %v746
  %v817 = vunpack.c.h.b16 %v746
  %v818 = vunpack.c.l.b16 %v747
  %v819 = vunpack.c.h.b16 %v747
  %v820 = vunpack.c.l.b16 %v748
  %v821 = vunpack.c.h.b16 %v748
  %v822 = vunpack.c.l.b16 %v749
  %v823 = vunpack.c.h.b16 %v749
  %v824 = vunpack.c.l.b16 %v750
  %v825 = vunpack.c.h.b16 %v750
  %v826 = vunpack.c.l.b16 %v751
  %v827 = vunpack.c.h.b16 %v751
  %v828 = vunpack.c.l.b16 %v752
  %v829 = vunpack.c.h.b16 %v752
  %v830 = vunpack.c.l.b16 %v753
  %v831 = vunpack.c.h.b16 %v753
  %v832 = vunpack.c.l.b16 %v754
  %v833 = vunpack.c.h.b16 %v754
  %v834 = vunpack.c.l.b16 %v755
  %v835 = vunpack.c.h.b16 %v755
  %v836 = vunpack.c.l.b16 %v756
  %v837 = vunpack.c.h.b16 %v756
  %v838 = vunpack.c.l.b16 %v757
  %v839 = vunpack.c.h.b16 %v757
  %v840 = vunpack.c.l.b16 %v758
  %v841 = vunpack.c.h.b16 %v758
  %v842 = vunpack.c.l.b16 %v759
  %v843 = vunpack.c.h.b16 %v759
  %v844 = vunpack.c.l.b16 %v760
  %v845 = vunpack.c.h.b16 %v760
  %v846 = vunpack.c.l.b16 %v761
  %v847 = vunpack.c.h.b16 %v761
  %v848 = vunpack.c.l.b16 %v762
  %v849 = vunpack.c.h.b16 %v762
  %v850 = vunpack.c.l.b16 %v763
  %v851 = vunpack.c.h.b16 %v763
  %v852 = vunpack.c.l.b16 %v764
  %v853 = vunpack.c.h.b16 %v764
  %v854 = vunpack.c.l.b16 %v765
  %v855 = vunpack.c.h.b16 %v765
  %v856 = vunpack.c.l.b16 %v766
  %v857 = vunpack.c.h.b16 %v766
  %v858 = vunpack.c.l.b16 %v767
  %v859 = vunpack.c.h.b16 %v767
  %v860 = vunpack.c.l.b16 %v768
  %v861 = vunpack.c.h.b16 %v768
  %v862 = vunpack.c.l.b16 %v769
  %v863 = vunpack.c.h.b16 %v769
  %v864 = vunpack.c.l.b16 %v770
  %v865 = vunpack.c.h.b16 %v770
  %v866 = vunpack.c.l.b16 %v771
  %v867 = vunpack.c.h.b16 %v771
  %v868 = vpack.c.b16 %v804, %v804
  %v869 = vpack.c.b16 %v805, %v805
  %v870 = vpack.c.b16 %v806, %v806
  %v871 = vpack.c.b16 %v807, %v807
  %v872 = vpack.c.b16 %v808, %v808
  %v873 = vpack.c.b16 %v809, %v809
  %v874 = vpack.c.b16 %v810, %v810
  %v875 = vpack.c.b16 %v811, %v811
  %v876 = vpack.c.b16 %v812, %v812
  %v877 = vpack.c.b16 %v813, %v813
  %v878 = vpack.c.b16 %v814, %v814
  %v879 = vpack.c.b16 %v815, %v815
  %v880 = vpack.c.b16 %v816, %v816
  %v881 = vpack.c.b16 %v817, %v817
  %v882 = vpack.c.b16 %v818, %v818
  %v883 = vpack.c.b16 %v819, %v819
  %v884 = vpack.c.b16 %v820, %v820
  %v885 = vpack.c.b16 %v821, %v821
  %v886 = vpack.c.b16 %v822, %v822
  %v887 = vpack.c.b16 %v823, %v823
  %v888 = vpack.c.b16 %v824, %v824
  %v889 = vpack.c.b16 %v825, %v825
  %v890 = vpack.c.b16 %v826, %v826
  %v891 = vpack.c.b16 %v827, %v827
  %v892 = vpack.c.b16 %v828, %v828
  %v893 = vpack.c.b16 %v829, %v829
  %v894 = vpack.c.b16 %v830, %v830
  %v895 = vpack.c.b16 %v831, %v831
  %v896 = vpack.c.b16 %v832, %v832
  %v897 = vpack.c.b16 %v833, %v833
  %v898 = vpack.c.b16 %v834, %v834
  %v899 = vpack.c.b16 %v835, %v835
  %v900 = vpack.c.b16 %v836, %v836
  %v901 = vpack.c.b16 %v837, %v837
  %v902 = vpack.c.b16 %v838, %v838
  %v903 = vpack.c.b16 %v839, %v839
  %v904 = vpack.c.b16 %v840, %v840
  %v905 = vpack.c.b16 %v841, %v841
  %v906 = vpack.c.b16 %v842, %v842
  %v907 = vpack.c.b16 %v843, %v843
  %v908 = vpack.c.b16 %v844, %v844
  %v909 = vpack.c.b16 %v845, %v845
  %v910 = vpack.c.b16 %v846, %v846
  %v911 = vpack.c.b16 %v847, %v847
  %v912 = vpack.c.b16 %v848, %v848
  %v913 = vpack.c.b16 %v849, %v849
  %v914 = vpack.c.b16 %v850, %v850
  %v915 = vpack.c.b16 %v851, %v851
  %v916 = vpack.c.b16 %v852, %v852
  %v917 = vpack.c.b16 %v853, %v853
  %v918 = vpack.c.b16 %v854, %v854
  %v919 = vpack.c.b16 %v855, %v855
  %v920 = vpack.c.b16 %v856, %v856
  %v921 = vpack.c.b16 %v857, %v857
  %v922 = vpack.c.b16 %v858, %v858
  %v923 = vpack.c.b16 %v859, %v859
  %v924 = vpack.c.b16 %v860, %v860
  %v925 = vpack.c.b16 %v861, %v861
  %v926 = vpack.c.b16 %v862, %v862
  %v927 = vpack.c.b16 %v863, %v863
  %v928 = vpack.c.b16 %v864, %v864
  %v929 = vpack.c.b16 %v865, %v865
  %v930 = vpack.c.b16 %v866, %v866
  %v931 = vpack.c.b16 %v867, %v867
  %996 = vst [vmem:[%s4] sm:$0xf] %v868
  %997 = vst [vmem:[%s4 + $0x4] sm:$0xf] %v869
  %998 = vst [vmem:[%s4 + $0x8] sm:$0xf] %v870
  %999 = vst [vmem:[%s4 + $0xc] sm:$0xf] %v871
  %1000 = vst [vmem:[%s4 + $0x10] sm:$0xf] %v872
  %1001 = vst [vmem:[%s4 + $0x14] sm:$0xf] %v873
  %1002 = vst [vmem:[%s4 + $0x18] sm:$0xf] %v874
  %1003 = vst [vmem:[%s4 + $0x1c] sm:$0xf] %v875
  %1004 = vst [vmem:[%s4 + $0x20] sm:$0xf] %v876
  %1005 = vst [vmem:[%s4 + $0x24] sm:$0xf] %v877
  %1006 = vst [vmem:[%s4 + $0x28] sm:$0xf] %v878
  %1007 = vst [vmem:[%s4 + $0x2c] sm:$0xf] %v879
  %1008 = vst [vmem:[%s4 + $0x30] sm:$0xf] %v880
  %1009 = vst [vmem:[%s4 + $0x34] sm:$0xf] %v881
  %1010 = vst [vmem:[%s4 + $0x38] sm:$0xf] %v882
  %1011 = vst [vmem:[%s4 + $0x3c] sm:$0xf] %v883
  %1012 = vst [vmem:[%s4 + $0x40] sm:$0xf] %v884
  %1013 = vst [vmem:[%s4 + $0x44] sm:$0xf] %v885
  %1014 = vst [vmem:[%s4 + $0x48] sm:$0xf] %v886
  %1015 = vst [vmem:[%s4 + $0x4c] sm:$0xf] %v887
  %1016 = vst [vmem:[%s4 + $0x50] sm:$0xf] %v888
  %1017 = vst [vmem:[%s4 + $0x54] sm:$0xf] %v889
  %1018 = vst [vmem:[%s4 + $0x58] sm:$0xf] %v890
  %1019 = vst [vmem:[%s4 + $0x5c] sm:$0xf] %v891
  %1020 = vst [vmem:[%s4 + $0x60] sm:$0xf] %v892
  %1021 = vst [vmem:[%s4 + $0x64] sm:$0xf] %v893
  %1022 = vst [vmem:[%s4 + $0x68] sm:$0xf] %v894
  %1023 = vst [vmem:[%s4 + $0x6c] sm:$0xf] %v895
  %1024 = vst [vmem:[%s4 + $0x70] sm:$0xf] %v896
  %1025 = vst [vmem:[%s4 + $0x74] sm:$0xf] %v897
  %1026 = vst [vmem:[%s4 + $0x78] sm:$0xf] %v898
  %1027 = vst [vmem:[%s4 + $0x7c] sm:$0xf] %v899
  %1028 = vst [vmem:[%s4 + $0x80] sm:$0xf] %v900
  %1029 = vst [vmem:[%s4 + $0x84] sm:$0xf] %v901
  %1030 = vst [vmem:[%s4 + $0x88] sm:$0xf] %v902
  %1031 = vst [vmem:[%s4 + $0x8c] sm:$0xf] %v903
  %1032 = vst [vmem:[%s4 + $0x90] sm:$0xf] %v904
  %1033 = vst [vmem:[%s4 + $0x94] sm:$0xf] %v905
  %1034 = vst [vmem:[%s4 + $0x98] sm:$0xf] %v906
  %1035 = vst [vmem:[%s4 + $0x9c] sm:$0xf] %v907
  %1036 = vst [vmem:[%s4 + $0xa0] sm:$0xf] %v908
  %1037 = vst [vmem:[%s4 + $0xa4] sm:$0xf] %v909
  %1038 = vst [vmem:[%s4 + $0xa8] sm:$0xf] %v910
  %1039 = vst [vmem:[%s4 + $0xac] sm:$0xf] %v911
  %1040 = vst [vmem:[%s4 + $0xb0] sm:$0xf] %v912
  %1041 = vst [vmem:[%s4 + $0xb4] sm:$0xf] %v913
  %1042 = vst [vmem:[%s4 + $0xb8] sm:$0xf] %v914
  %1043 = vst [vmem:[%s4 + $0xbc] sm:$0xf] %v915
  %1044 = vst [vmem:[%s4 + $0xc0] sm:$0xf] %v916
  %1045 = vst [vmem:[%s4 + $0xc4] sm:$0xf] %v917
  %1046 = vst [vmem:[%s4 + $0xc8] sm:$0xf] %v918
  %1047 = vst [vmem:[%s4 + $0xcc] sm:$0xf] %v919
  %1048 = vst [vmem:[%s4 + $0xd0] sm:$0xf] %v920
  %1049 = vst [vmem:[%s4 + $0xd4] sm:$0xf] %v921
  %1050 = vst [vmem:[%s4 + $0xd8] sm:$0xf] %v922
  %1051 = vst [vmem:[%s4 + $0xdc] sm:$0xf] %v923
  %1052 = vst [vmem:[%s4 + $0xe0] sm:$0xf] %v924
  %1053 = vst [vmem:[%s4 + $0xe4] sm:$0xf] %v925
  %1054 = vst [vmem:[%s4 + $0xe8] sm:$0xf] %v926
  %1055 = vst [vmem:[%s4 + $0xec] sm:$0xf] %v927
  %1056 = vst [vmem:[%s4 + $0xf0] sm:$0xf] %v928
  %1057 = vst [vmem:[%s4 + $0xf4] sm:$0xf] %v929
  %1058 = vst [vmem:[%s4 + $0xf8] sm:$0xf] %v930
  %1059 = vst [vmem:[%s4 + $0xfc] sm:$0xf] %v931
  %v1060 = vadd.f32 %v486, %v489
  %v1061 = vadd.f32 %v1060, %v494
  %v1062 = vadd.f32 %v1061, %v497
  %v1063 = vadd.f32 %v1062, %v502
  %v1064 = vadd.f32 %v1063, %v505
  %v1065 = vadd.f32 %v1064, %v510
  %v1066 = vadd.f32 %v1065, %v513
  %v1067 = vadd.f32 %v1066, %v518
  %v1068 = vadd.f32 %v1067, %v521
  %v1069 = vadd.f32 %v1068, %v526
  %v1070 = vadd.f32 %v1069, %v529
  %v1071 = vadd.f32 %v1070, %v534
  %v1072 = vadd.f32 %v1071, %v537
  %v1073 = vadd.f32 %v1072, %v542
  %v1074 = vadd.f32 %v1073, %v545
  %v1075 = vadd.f32 %v1074, %v550
  %v1076 = vadd.f32 %v1075, %v553
  %v1077 = vadd.f32 %v1076, %v558
  %v1078 = vadd.f32 %v1077, %v561
  %v1079 = vadd.f32 %v1078, %v566
  %v1080 = vadd.f32 %v1079, %v569
  %v1081 = vadd.f32 %v1080, %v574
  %v1082 = vadd.f32 %v1081, %v577
  %v1083 = vadd.f32 %v1082, %v582
  %v1084 = vadd.f32 %v1083, %v585
  %v1085 = vadd.f32 %v1084, %v590
  %v1086 = vadd.f32 %v1085, %v593
  %v1087 = vadd.f32 %v1086, %v598
  %v1088 = vadd.f32 %v1087, %v601
  %v1089 = vadd.f32 %v1088, %v606
  %v1090 = vadd.f32 %v1089, %v609
  %v1091 = vadd.f32 %v1090, %v614
  %v1092 = vadd.f32 %v1091, %v617
  %v1093 = vadd.f32 %v1092, %v622
  %v1094 = vadd.f32 %v1093, %v625
  %v1095 = vadd.f32 %v1094, %v630
  %v1096 = vadd.f32 %v1095, %v633
  %v1097 = vadd.f32 %v1096, %v638
  %v1098 = vadd.f32 %v1097, %v641
  %v1099 = vadd.f32 %v1098, %v646
  %v1100 = vadd.f32 %v1099, %v649
  %v1101 = vadd.f32 %v1100, %v654
  %v1102 = vadd.f32 %v1101, %v657
  %v1103 = vadd.f32 %v1102, %v662
  %v1104 = vadd.f32 %v1103, %v665
  %v1105 = vadd.f32 %v1104, %v670
  %v1106 = vadd.f32 %v1105, %v673
  %v1107 = vadd.f32 %v1106, %v678
  %v1108 = vadd.f32 %v1107, %v681
  %v1109 = vadd.f32 %v1108, %v686
  %v1110 = vadd.f32 %v1109, %v689
  %v1111 = vadd.f32 %v1110, %v694
  %v1112 = vadd.f32 %v1111, %v697
  %v1113 = vadd.f32 %v1112, %v702
  %v1114 = vadd.f32 %v1113, %v705
  %v1115 = vadd.f32 %v1114, %v710
  %v1116 = vadd.f32 %v1115, %v713
  %v1117 = vadd.f32 %v1116, %v718
  %v1118 = vadd.f32 %v1117, %v721
  %v1119 = vadd.f32 %v1118, %v726
  %v1120 = vadd.f32 %v1119, %v729
  %v1121 = vadd.f32 %v1120, %v734
  %v1122 = vadd.f32 %v1121, %v737
  %v1123 = vrot.slane %v1122, 4
  %v1124 = vadd.f32 %v1122, %v1123
  %v1125 = vrot.slane %v1124, 2
  %v1126 = vadd.f32 %v1124, %v1125
  %v1127 = vrot.slane %v1126, 1
  %v1128 = vadd.f32 %v1126, %v1127
  %1129 = vst [vmem:[%s5] sm:$0x1] %v1128
  %v1130 = vmul.f32 %v486, %v486
  %v1131 = vmul.f32 %v489, %v489
  %v1132 = vmul.f32 %v494, %v494
  %v1133 = vmul.f32 %v497, %v497
  %v1134 = vmul.f32 %v502, %v502
  %v1135 = vmul.f32 %v505, %v505
  %v1136 = vmul.f32 %v510, %v510
  %v1137 = vmul.f32 %v513, %v513
  %v1138 = vmul.f32 %v518, %v518
  %v1139 = vmul.f32 %v521, %v521
  %v1140 = vmul.f32 %v526, %v526
  %v1141 = vmul.f32 %v529, %v529
  %v1142 = vmul.f32 %v534, %v534
  %v1143 = vmul.f32 %v537, %v537
  %v1144 = vmul.f32 %v542, %v542
  %v1145 = vmul.f32 %v545, %v545
  %v1146 = vmul.f32 %v550, %v550
  %v1147 = vmul.f32 %v553, %v553
  %v1148 = vmul.f32 %v558, %v558
  %v1149 = vmul.f32 %v561, %v561
  %v1150 = vmul.f32 %v566, %v566
  %v1151 = vmul.f32 %v569, %v569
  %v1152 = vmul.f32 %v574, %v574
  %v1153 = vmul.f32 %v577, %v577
  %v1154 = vmul.f32 %v582, %v582
  %v1155 = vmul.f32 %v585, %v585
  %v1156 = vmul.f32 %v590, %v590
  %v1157 = vmul.f32 %v593, %v593
  %v1158 = vmul.f32 %v598, %v598
  %v1159 = vmul.f32 %v601, %v601
  %v1160 = vmul.f32 %v606, %v606
  %v1161 = vmul.f32 %v609, %v609
  %v1162 = vmul.f32 %v614, %v614
  %v1163 = vmul.f32 %v617, %v617
  %v1164 = vmul.f32 %v622, %v622
  %v1165 = vmul.f32 %v625, %v625
  %v1166 = vmul.f32 %v630, %v630
  %v1167 = vmul.f32 %v633, %v633
  %v1168 = vmul.f32 %v638, %v638
  %v1169 = vmul.f32 %v641, %v641
  %v1170 = vmul.f32 %v646, %v646
  %v1171 = vmul.f32 %v649, %v649
  %v1172 = vmul.f32 %v654, %v654
  %v1173 = vmul.f32 %v657, %v657
  %v1174 = vmul.f32 %v662, %v662
  %v1175 = vmul.f32 %v665, %v665
  %v1176 = vmul.f32 %v670, %v670
  %v1177 = vmul.f32 %v673, %v673
  %v1178 = vmul.f32 %v678, %v678
  %v1179 = vmul.f32 %v681, %v681
  %v1180 = vmul.f32 %v686, %v686
  %v1181 = vmul.f32 %v689, %v689
  %v1182 = vmul.f32 %v694, %v694
  %v1183 = vmul.f32 %v697, %v697
  %v1184 = vmul.f32 %v702, %v702
  %v1185 = vmul.f32 %v705, %v705
  %v1186 = vmul.f32 %v710, %v710
  %v1187 = vmul.f32 %v713, %v713
  %v1188 = vmul.f32 %v718, %v718
  %v1189 = vmul.f32 %v721, %v721
  %v1190 = vmul.f32 %v726, %v726
  %v1191 = vmul.f32 %v729, %v729
  %v1192 = vmul.f32 %v734, %v734
  %v1193 = vmul.f32 %v737, %v737
  %v1194 = vadd.f32 %v1130, %v1131
  %v1195 = vadd.f32 %v1194, %v1132
  %v1196 = vadd.f32 %v1195, %v1133
  %v1197 = vadd.f32 %v1196, %v1134
  %v1198 = vadd.f32 %v1197, %v1135
  %v1199 = vadd.f32 %v1198, %v1136
  %v1200 = vadd.f32 %v1199, %v1137
  %v1201 = vadd.f32 %v1200, %v1138
  %v1202 = vadd.f32 %v1201, %v1139
  %v1203 = vadd.f32 %v1202, %v1140
  %v1204 = vadd.f32 %v1203, %v1141
  %v1205 = vadd.f32 %v1204, %v1142
  %v1206 = vadd.f32 %v1205, %v1143
  %v1207 = vadd.f32 %v1206, %v1144
  %v1208 = vadd.f32 %v1207, %v1145
  %v1209 = vadd.f32 %v1208, %v1146
  %v1210 = vadd.f32 %v1209, %v1147
  %v1211 = vadd.f32 %v1210, %v1148
  %v1212 = vadd.f32 %v1211, %v1149
  %v1213 = vadd.f32 %v1212, %v1150
  %v1214 = vadd.f32 %v1213, %v1151
  %v1215 = vadd.f32 %v1214, %v1152
  %v1216 = vadd.f32 %v1215, %v1153
  %v1217 = vadd.f32 %v1216, %v1154
  %v1218 = vadd.f32 %v1217, %v1155
  %v1219 = vadd.f32 %v1218, %v1156
  %v1220 = vadd.f32 %v1219, %v1157
  %v1221 = vadd.f32 %v1220, %v1158
  %v1222 = vadd.f32 %v1221, %v1159
  %v1223 = vadd.f32 %v1222, %v1160
  %v1224 = vadd.f32 %v1223, %v1161
  %v1225 = vadd.f32 %v1224, %v1162
  %v1226 = vadd.f32 %v1225, %v1163
  %v1227 = vadd.f32 %v1226, %v1164
  %v1228 = vadd.f32 %v1227, %v1165
  %v1229 = vadd.f32 %v1228, %v1166
  %v1230 = vadd.f32 %v1229, %v1167
  %v1231 = vadd.f32 %v1230, %v1168
  %v1232 = vadd.f32 %v1231, %v1169
  %v1233 = vadd.f32 %v1232, %v1170
  %v1234 = vadd.f32 %v1233, %v1171
  %v1235 = vadd.f32 %v1234, %v1172
  %v1236 = vadd.f32 %v1235, %v1173
  %v1237 = vadd.f32 %v1236, %v1174
  %v1238 = vadd.f32 %v1237, %v1175
  %v1239 = vadd.f32 %v1238, %v1176
  %v1240 = vadd.f32 %v1239, %v1177
  %v1241 = vadd.f32 %v1240, %v1178
  %v1242 = vadd.f32 %v1241, %v1179
  %v1243 = vadd.f32 %v1242, %v1180
  %v1244 = vadd.f32 %v1243, %v1181
  %v1245 = vadd.f32 %v1244, %v1182
  %v1246 = vadd.f32 %v1245, %v1183
  %v1247 = vadd.f32 %v1246, %v1184
  %v1248 = vadd.f32 %v1247, %v1185
  %v1249 = vadd.f32 %v1248, %v1186
  %v1250 = vadd.f32 %v1249, %v1187
  %v1251 = vadd.f32 %v1250, %v1188
  %v1252 = vadd.f32 %v1251, %v1189
  %v1253 = vadd.f32 %v1252, %v1190
  %v1254 = vadd.f32 %v1253, %v1191
  %v1255 = vadd.f32 %v1254, %v1192
  %v1256 = vadd.f32 %v1255, %v1193
  %v1257 = vrot.slane %v1256, 4
  %v1258 = vadd.f32 %v1256, %v1257
  %v1259 = vrot.slane %v1258, 2
  %v1260 = vadd.f32 %v1258, %v1259
  %v1261 = vrot.slane %v1260, 1
  %v1262 = vadd.f32 %v1260, %v1261
  %1263 = vst [vmem:[%s6] sm:$0x1] %v1262
  // Predicated region
  $region18: #{bottleneck_forward.6} parent=0 // pred_check
    _
  $region19: #{bottleneck_forward.6} parent=0 // pred_check_branch
    %1265 = sbr.rel (0) target = $region21
  $region20: #{bottleneck_forward.6} parent=0 // pred_region
    _
  $region21: #{bottleneck_forward.6} parent=0 // pred_fallthru
    _
  // Predicated region
  $region22: #{bottleneck_forward.6} parent=0 // pred_check
    _
  $region23: #{bottleneck_forward.6} parent=0 // pred_check_branch
    %1267 = sbr.rel (0) target = $region25
  $region24: #{bottleneck_forward.6} parent=0 // pred_region
    _
  $region25: #{bottleneck_forward.6} parent=0 // pred_fallthru
    _
  // Predicated region
  $region26: #{bottleneck_forward.6} parent=0 // pred_check
    _
  $region27: #{bottleneck_forward.6} parent=0 // pred_check_branch
    %1269 = sbr.rel (0) target = $region29
  $region28: #{bottleneck_forward.6} parent=0 // pred_region
    _
  $region29: #{bottleneck_forward.6} parent=0 // pred_fallthru
    _
  // Predicated region
  $region30: #{bottleneck_forward.6} parent=0 // pred_check
    _
  $region31: #{bottleneck_forward.6} parent=0 // pred_check_branch
    %1271 = sbr.rel (0) target = $region33
  $region32: #{bottleneck_forward.6} parent=0 // pred_region
    _
  $region33: #{bottleneck_forward.6} parent=0 // pred_fallthru
    _
  // Predicated region
  $region34: #{bottleneck_forward.6} parent=0 // pred_check
    _
  $region35: #{bottleneck_forward.6} parent=0 // pred_check_branch
    %1273 = sbr.rel (0) target = $region37
  $region36: #{bottleneck_forward.6} parent=0 // pred_region
    _
  $region37: #{bottleneck_forward.6} parent=0 // pred_fallthru
    _
  // Predicated region
  $region38: #{bottleneck_forward.6} parent=0 // pred_check
    _
  $region39: #{bottleneck_forward.6} parent=0 // pred_check_branch
    %1275 = sbr.rel (0) target = $region41
  $region40: #{bottleneck_forward.6} parent=0 // pred_region
    _
  $region41: #{bottleneck_forward.6} parent=0 // pred_fallthru
    _

// kernel: bottleneck_forward.5
$region0: #{bottleneck_forward.5}
  #allocation0 [shape = 'u32[]', space=smem, size = 0x4, offset = 0x4, fixed_abs, tag = 'smem constant byte address 0x4 - core index']
  #allocation1 [shape = 'u32[144,128]{1,0:T(1,128)}', space=vmem, size = 0x12000, scoped, tag = 'internal scratch']
  #allocation2 [shape = 'bf16[18,20,128]{2,1,0:T(8,128)(2,1)}', space=vmem, size = 0x1b000, scoped, tag = 'scratch operand']
  %s0 = inlined_call_operand.vmem [shape: bf16[2,256,128], index: 0, kind: input, shape index: {}]
  %s1 = inlined_call_operand.vmem [shape: f32[1,128], index: 1, kind: input, shape index: {}]
  %s2 = inlined_call_operand.vmem [shape: f32[1,128], index: 2, kind: input, shape index: {}]
  %s3 = inlined_call_operand.vmem [shape: bf16[3,3,128,128], index: 3, kind: input, shape index: {}]
  %s4 = inlined_call_operand.vmem [shape: bf16[2,256,128], index: 4, kind: output, shape index: {0}]
  %s5 = inlined_call_operand.vmem [shape: f32[2,1,128], index: 5, kind: output, shape index: {1}]
  %s6 = inlined_call_operand.vmem [shape: f32[2,1,128], index: 6, kind: output, shape index: {2}]
  %7 = xla_tuple %s4, %s5, %s6
  %s8 = sld [smem:[#allocation0]]
  $region65: #{bottleneck_forward.5} parent=0
    _
  %s10 = ssub.s32 1, %s8
  %s11 = scalar_select 0, %s10, %s8
  loop: start=0, step=1, limit=4
  $region2: #{bottleneck_forward.5} parent=0 // loop_pre_header
    _
  $region3: #{bottleneck_forward.5} parent=0 // loop_header
    %s13 = sphi 0, %s17
    %p14 = scmp.ge.s32.totalorder %s13, 4
    %s23 = sphi 0, %s25
    %s26 = sphi 0, %s23
    %s27 = sphi 0, %s26
    %s43 = sphi 0, %s27
    %s47 = sphi 0, %s47
    %s49 = sphi 0, %s47
    %s50 = sphi 0, %s49
    %s64 = sphi 0, %s50
    %s68 = sphi 0, %s68
    %s70 = sphi 0, %s68
    %s71 = sphi 0, %s70
    %s85 = sphi 0, %s71
    %s89 = sphi 0, %s89
    %s91 = sphi 0, %s89
    %s92 = sphi 0, %s91
    %s106 = sphi 0, %s92
    %s112 = sphi 0, %s114
    %s115 = sphi 0, %s112
    %s116 = sphi 0, %s115
    %s132 = sphi 0, %s116
    %s138 = sphi 0, %s140
    %s141 = sphi 0, %s138
    %s142 = sphi 0, %s141
    %s158 = sphi 0, %s142
    %s164 = sphi 0, %s166
    %s167 = sphi 0, %s164
    %s168 = sphi 0, %s167
    %s184 = sphi 0, %s168
  $region4: #{bottleneck_forward.5} parent=0 // loop_header_branch
    %16 = sbr.rel (%p14) target = $region8
  $region5: #{bottleneck_forward.5} parent=0 // loop_body
    %s18 = ssub.s32 %s13, 1
    %s19 = ssub.s32 %s13, 2
    %s20 = sadd.s32 %s13, 1
    %s21 = ssub.s32 %s13, %s20
    %p22 = scmp.eq.s32.totalorder %s21, 0
    %s24 = sadd.s32 %s23, 1
    %s25 = scalar_select %p22, %s23, %s24
    %p28 = pneg %p22
    %p29 = scmp.eq.s32.totalorder %s13, 1
    %p30 = por %p28, %p29
    %p31 = scmp.ne.s32.totalorder %s23, %s26
    %p32 = scmp.eq.s32.totalorder %s13, 0
    %p33 = por %p31, %p32
    %p34 = scmp.ne.s32.totalorder %s23, %s26
    %p35 = scmp.eq.s32.totalorder %s18, 1
    %p36 = por %p34, %p35
    %p37 = scmp.ne.s32.totalorder %s26, %s27
    %p38 = scmp.eq.s32.totalorder %s18, 0
    %p39 = por %p37, %p38
    %p40 = scmp.ne.s32.totalorder %s26, %s27
    %p41 = scmp.eq.s32.totalorder %s19, 1
    %p42 = por %p40, %p41
    %p44 = scmp.ne.s32.totalorder %s27, %s43
    %p45 = scmp.eq.s32.totalorder %s19, 0
    %p46 = por %p44, %p45
    %s48 = sadd.s32 %s47, 1
    %p51 = scmp.eq.s32.totalorder %s13, 1
    %p52 = scmp.ne.s32.totalorder %s47, %s49
    %p53 = scmp.eq.s32.totalorder %s13, 0
    %p54 = por %p52, %p53
    %p55 = scmp.ne.s32.totalorder %s47, %s49
    %p56 = scmp.eq.s32.totalorder %s18, 1
    %p57 = por %p55, %p56
    %p58 = scmp.ne.s32.totalorder %s49, %s50
    %p59 = scmp.eq.s32.totalorder %s18, 0
    %p60 = por %p58, %p59
    %p61 = scmp.ne.s32.totalorder %s49, %s50
    %p62 = scmp.eq.s32.totalorder %s19, 1
    %p63 = por %p61, %p62
    %p65 = scmp.ne.s32.totalorder %s50, %s64
    %p66 = scmp.eq.s32.totalorder %s19, 0
    %p67 = por %p65, %p66
    %s69 = sadd.s32 %s68, 1
    %p72 = scmp.eq.s32.totalorder %s13, 1
    %p73 = scmp.ne.s32.totalorder %s68, %s70
    %p74 = scmp.eq.s32.totalorder %s13, 0
    %p75 = por %p73, %p74
    %p76 = scmp.ne.s32.totalorder %s68, %s70
    %p77 = scmp.eq.s32.totalorder %s18, 1
    %p78 = por %p76, %p77
    %p79 = scmp.ne.s32.totalorder %s70, %s71
    %p80 = scmp.eq.s32.totalorder %s18, 0
    %p81 = por %p79, %p80
    %p82 = scmp.ne.s32.totalorder %s70, %s71
    %p83 = scmp.eq.s32.totalorder %s19, 1
    %p84 = por %p82, %p83
    %p86 = scmp.ne.s32.totalorder %s71, %s85
    %p87 = scmp.eq.s32.totalorder %s19, 0
    %p88 = por %p86, %p87
    %s90 = sadd.s32 %s89, 1
    %p93 = scmp.eq.s32.totalorder %s13, 1
    %p94 = scmp.ne.s32.totalorder %s89, %s91
    %p95 = scmp.eq.s32.totalorder %s13, 0
    %p96 = por %p94, %p95
    %p97 = scmp.ne.s32.totalorder %s89, %s91
    %p98 = scmp.eq.s32.totalorder %s18, 1
    %p99 = por %p97, %p98
    %p100 = scmp.ne.s32.totalorder %s91, %s92
    %p101 = scmp.eq.s32.totalorder %s18, 0
    %p102 = por %p100, %p101
    %p103 = scmp.ne.s32.totalorder %s91, %s92
    %p104 = scmp.eq.s32.totalorder %s19, 1
    %p105 = por %p103, %p104
    %p107 = scmp.ne.s32.totalorder %s92, %s106
    %p108 = scmp.eq.s32.totalorder %s19, 0
    %p109 = por %p107, %p108
    %s110 = ssub.s32 %s13, %s20
    %p111 = scmp.eq.s32.totalorder %s110, 0
    %s113 = sadd.s32 %s112, 1
    %s114 = scalar_select %p111, %s112, %s113
    %p117 = pneg %p111
    %p118 = scmp.eq.s32.totalorder %s13, 1
    %p119 = por %p117, %p118
    %p120 = scmp.ne.s32.totalorder %s112, %s115
    %p121 = scmp.eq.s32.totalorder %s13, 0
    %p122 = por %p120, %p121
    %p123 = scmp.ne.s32.totalorder %s112, %s115
    %p124 = scmp.eq.s32.totalorder %s18, 1
    %p125 = por %p123, %p124
    %p126 = scmp.ne.s32.totalorder %s115, %s116
    %p127 = scmp.eq.s32.totalorder %s18, 0
    %p128 = por %p126, %p127
    %p129 = scmp.ne.s32.totalorder %s115, %s116
    %p130 = scmp.eq.s32.totalorder %s19, 1
    %p131 = por %p129, %p130
    %p133 = scmp.ne.s32.totalorder %s116, %s132
    %p134 = scmp.eq.s32.totalorder %s19, 0
    %p135 = por %p133, %p134
    %s136 = ssub.s32 %s13, %s20
    %p137 = scmp.eq.s32.totalorder %s136, 0
    %s139 = sadd.s32 %s138, 1
    %s140 = scalar_select %p137, %s138, %s139
    %p143 = pneg %p137
    %p144 = scmp.eq.s32.totalorder %s13, 1
    %p145 = por %p143, %p144
    %p146 = scmp.ne.s32.totalorder %s138, %s141
    %p147 = scmp.eq.s32.totalorder %s13, 0
    %p148 = por %p146, %p147
    %p149 = scmp.ne.s32.totalorder %s138, %s141
    %p150 = scmp.eq.s32.totalorder %s18, 1
    %p151 = por %p149, %p150
    %p152 = scmp.ne.s32.totalorder %s141, %s142
    %p153 = scmp.eq.s32.totalorder %s18, 0
    %p154 = por %p152, %p153
    %p155 = scmp.ne.s32.totalorder %s141, %s142
    %p156 = scmp.eq.s32.totalorder %s19, 1
    %p157 = por %p155, %p156
    %p159 = scmp.ne.s32.totalorder %s142, %s158
    %p160 = scmp.eq.s32.totalorder %s19, 0
    %p161 = por %p159, %p160
    %s162 = ssub.s32 %s13, %s20
    %p163 = scmp.eq.s32.totalorder %s162, 0
    %s165 = sadd.s32 %s164, 1
    %s166 = scalar_select %p163, %s164, %s165
    %p169 = pneg %p163
    %p170 = scmp.eq.s32.totalorder %s13, 1
    %p171 = por %p169, %p170
    %p172 = scmp.ne.s32.totalorder %s164, %s167
    %p173 = scmp.eq.s32.totalorder %s13, 0
    %p174 = por %p172, %p173
    %p175 = scmp.ne.s32.totalorder %s164, %s167
    %p176 = scmp.eq.s32.totalorder %s18, 1
    %p177 = por %p175, %p176
    %p178 = scmp.ne.s32.totalorder %s167, %s168
    %p179 = scmp.eq.s32.totalorder %s18, 0
    %p180 = por %p178, %p179
    %p181 = scmp.ne.s32.totalorder %s167, %s168
    %p182 = scmp.eq.s32.totalorder %s19, 1
    %p183 = por %p181, %p182
    %p185 = scmp.ne.s32.totalorder %s168, %s184
    %p186 = scmp.eq.s32.totalorder %s19, 0
    %p187 = por %p185, %p186
    %p188 = scmp.le.s32.totalorder 1, %s13
    %p189 = scmp.lt.s32.totalorder %s13, 3
    %p190 = pnand %p188, %p189
    %p191 = pneg %p190
    // Predicated region
    $region9: #{bottleneck_forward.5} parent=5 // pred_check
      _
    $region10: #{bottleneck_forward.5} parent=5 // pred_check_branch
      %193 = sbr.rel (%p190) target = $region12
    $region11: #{bottleneck_forward.5} parent=5 // pred_region
      %s194 = ssub.s32 %s13, 1
      // Predicated region
      $region13: #{bottleneck_forward.5} parent=11 // pred_check
        %p195 = pneg %p60
      $region14: #{bottleneck_forward.5} parent=11 // pred_check_branch
        %197 = sbr.rel (%p195) target = $region16
      $region15: #{bottleneck_forward.5} parent=11 // pred_region
        _
      $region16: #{bottleneck_forward.5} parent=11 // pred_fallthru
        _
      // Predicated region
      $region17: #{bottleneck_forward.5} parent=11 // pred_check
        %p198 = pneg %p81
      $region18: #{bottleneck_forward.5} parent=11 // pred_check_branch
        %200 = sbr.rel (%p198) target = $region20
      $region19: #{bottleneck_forward.5} parent=11 // pred_region
        _
      $region20: #{bottleneck_forward.5} parent=11 // pred_fallthru
        _
      // Predicated region
      $region21: #{bottleneck_forward.5} parent=11 // pred_check
        %p201 = pneg %p102
      $region22: #{bottleneck_forward.5} parent=11 // pred_check_branch
        %203 = sbr.rel (%p201) target = $region24
      $region23: #{bottleneck_forward.5} parent=11 // pred_region
        _
      $region24: #{bottleneck_forward.5} parent=11 // pred_fallthru
        _
    $region12: #{bottleneck_forward.5} parent=5 // pred_fallthru
      _
    %p204 = scmp.lt.s32.totalorder %s13, 2
    // Predicated region
    $region25: #{bottleneck_forward.5} parent=5 // pred_check
      %p205 = pneg %p204
    $region26: #{bottleneck_forward.5} parent=5 // pred_check_branch
      %207 = sbr.rel (%p205) target = $region28
    $region27: #{bottleneck_forward.5} parent=5 // pred_region
      // Predicated region
      $region29: #{bottleneck_forward.5} parent=27 // pred_check
        %p208 = pneg %p33
      $region30: #{bottleneck_forward.5} parent=27 // pred_check_branch
        %210 = sbr.rel (%p208) target = $region32
      $region31: #{bottleneck_forward.5} parent=27 // pred_region
        %p211 = scmp.lt.s32.totalorder %s13, 1
        %s212 = scalar_select %p211, %s13, 1
        %s213 = smul.addr %s212, 32
        %s214 = smul.addr %s213, 4
        %s215 = scalar_lea.vmem %s0, %s214
      $region32: #{bottleneck_forward.5} parent=27 // pred_fallthru
        _
    $region28: #{bottleneck_forward.5} parent=5 // pred_fallthru
      _
    %p216 = scmp.le.s32.totalorder 1, %s13
    %p217 = scmp.lt.s32.totalorder %s13, 3
    %p218 = pnand %p216, %p217
    %p219 = pneg %p218
    // Predicated region
    $region33: #{bottleneck_forward.5} parent=5 // pred_check
      _
    $region34: #{bottleneck_forward.5} parent=5 // pred_check_branch
      %221 = sbr.rel (%p218) target = $region36
    $region35: #{bottleneck_forward.5} parent=5 // pred_region
      %s222 = ssub.s32 %s13, 1
      %p223 = scmp.lt.s32.totalorder %s18, 1
      %s224 = scalar_select %p223, %s18, 1
      %s225 = smul.addr %s224, 32
      %s226 = smul.addr %s225, 4
      %s227 = scalar_lea.vmem %s0, %s226
      %p228 = pneg %p39
      %p229 = pneg %p36
      %p230 = pneg %p60
      %p231 = pneg %p57
      %p232 = pneg %p81
      %p233 = pneg %p78
      %p234 = pneg %p102
      %p235 = pneg %p99
      %p236 = pneg %p128
      %p237 = pneg %p125
      %p238 = scmp.lt.s32.totalorder %s18, 1
      %s239 = scalar_select %p238, %s18, 1
      %s240 = smul.addr %s239, 32
      %s241 = smul.addr %s240, 4
      %s242 = scalar_lea.vmem %s4, %s241
      %p243 = pneg %p154
      %p244 = pneg %p151
      %p245 = scmp.lt.s32.totalorder %s18, 1
      %s246 = scalar_select %p245, %s18, 1
      %s247 = scalar_lea.vmem %s5, %s246
      %p248 = pneg %p180
      %p249 = pneg %p177
      %p250 = scmp.lt.s32.totalorder %s18, 1
      %s251 = scalar_select %p250, %s18, 1
      %s252 = scalar_lea.vmem %s6, %s251
      %p253 = scmp.lt.s32.totalorder %s18, 1
      %s254 = scalar_select %p253, %s18, 1
      %s255 = smul.addr %s254, 32
      %s256 = smul.addr %s255, 4
      %s257 = scalar_lea.vmem %s0, %s256
      %p258 = scmp.lt.s32.totalorder %s18, 1
      %s259 = scalar_select %p258, %s18, 1
      %s260 = smul.addr %s259, 32
      %s261 = smul.addr %s260, 4
      %s262 = scalar_lea.vmem %s4, %s261
      %p263 = scmp.lt.s32.totalorder %s18, 1
      %s264 = scalar_select %p263, %s18, 1
      %s265 = scalar_lea.vmem %s5, %s264
      %p266 = scmp.lt.s32.totalorder %s18, 1
      %s267 = scalar_select %p266, %s18, 1
      %s268 = scalar_lea.vmem %s6, %s267
      %v270 = vld [vmem:[%s257] sm:$0xf]
      %v271 = vld [vmem:[%s257 + $0x4] sm:$0xf]
      %v272 = vld [vmem:[%s257 + $0x8] sm:$0xf]
      %v273 = vld [vmem:[%s257 + $0xc] sm:$0xf]
      %v274 = vld [vmem:[%s257 + $0x10] sm:$0xf]
      %v275 = vld [vmem:[%s257 + $0x14] sm:$0xf]
      %v276 = vld [vmem:[%s257 + $0x18] sm:$0xf]
      %v277 = vld [vmem:[%s257 + $0x1c] sm:$0xf]
      %v278 = vld [vmem:[%s257 + $0x20] sm:$0xf]
      %v279 = vld [vmem:[%s257 + $0x24] sm:$0xf]
      %v280 = vld [vmem:[%s257 + $0x28] sm:$0xf]
      %v281 = vld [vmem:[%s257 + $0x2c] sm:$0xf]
      %v282 = vld [vmem:[%s257 + $0x30] sm:$0xf]
      %v283 = vld [vmem:[%s257 + $0x34] sm:$0xf]
      %v284 = vld [vmem:[%s257 + $0x38] sm:$0xf]
      %v285 = vld [vmem:[%s257 + $0x3c] sm:$0xf]
      %v286 = vld [vmem:[%s257 + $0x40] sm:$0xf]
      %v287 = vld [vmem:[%s257 + $0x44] sm:$0xf]
      %v288 = vld [vmem:[%s257 + $0x48] sm:$0xf]
      %v289 = vld [vmem:[%s257 + $0x4c] sm:$0xf]
      %v290 = vld [vmem:[%s257 + $0x50] sm:$0xf]
      %v291 = vld [vmem:[%s257 + $0x54] sm:$0xf]
      %v292 = vld [vmem:[%s257 + $0x58] sm:$0xf]
      %v293 = vld [vmem:[%s257 + $0x5c] sm:$0xf]
      %v294 = vld [vmem:[%s257 + $0x60] sm:$0xf]
      %v295 = vld [vmem:[%s257 + $0x64] sm:$0xf]
      %v296 = vld [vmem:[%s257 + $0x68] sm:$0xf]
      %v297 = vld [vmem:[%s257 + $0x6c] sm:$0xf]
      %v298 = vld [vmem:[%s257 + $0x70] sm:$0xf]
      %v299 = vld [vmem:[%s257 + $0x74] sm:$0xf]
      %v300 = vld [vmem:[%s257 + $0x78] sm:$0xf]
      %v301 = vld [vmem:[%s257 + $0x7c] sm:$0xf]
      %v302 = vunpack.c.l.bf16 %v270
      %v303 = vunpack.c.l.bf16 %v271
      %v304 = vunpack.c.l.bf16 %v272
      %v305 = vunpack.c.l.bf16 %v273
      %v306 = vunpack.c.l.bf16 %v274
      %v307 = vunpack.c.l.bf16 %v275
      %v308 = vunpack.c.l.bf16 %v276
      %v309 = vunpack.c.l.bf16 %v277
      %v310 = vunpack.c.l.bf16 %v278
      %v311 = vunpack.c.l.bf16 %v279
      %v312 = vunpack.c.l.bf16 %v280
      %v313 = vunpack.c.l.bf16 %v281
      %v314 = vunpack.c.l.bf16 %v282
      %v315 = vunpack.c.l.bf16 %v283
      %v316 = vunpack.c.l.bf16 %v284
      %v317 = vunpack.c.l.bf16 %v285
      %v318 = vunpack.c.l.bf16 %v286
      %v319 = vunpack.c.l.bf16 %v287
      %v320 = vunpack.c.l.bf16 %v288
      %v321 = vunpack.c.l.bf16 %v289
      %v322 = vunpack.c.l.bf16 %v290
      %v323 = vunpack.c.l.bf16 %v291
      %v324 = vunpack.c.l.bf16 %v292
      %v325 = vunpack.c.l.bf16 %v293
      %v326 = vunpack.c.l.bf16 %v294
      %v327 = vunpack.c.l.bf16 %v295
      %v328 = vunpack.c.l.bf16 %v296
      %v329 = vunpack.c.l.bf16 %v297
      %v330 = vunpack.c.l.bf16 %v298
      %v331 = vunpack.c.l.bf16 %v299
      %v332 = vunpack.c.l.bf16 %v300
      %v333 = vunpack.c.l.bf16 %v301
      %v334 = vld [vmem:[%s1] sm:$0x1]
      %v336 = vlaneseq
      %v337 = vshrl.u32 %v336, 7
      %v338 = vsub.s32 0, %v337
      %v339 = vrot.slane %v334, %v338
      %v341 = vmul.f32 %v302, %v339
      %v342 = vmul.f32 %v303, %v339
      %v343 = vmul.f32 %v304, %v339
      %v344 = vmul.f32 %v305, %v339
      %v345 = vmul.f32 %v306, %v339
      %v346 = vmul.f32 %v307, %v339
      %v347 = vmul.f32 %v308, %v339
      %v348 = vmul.f32 %v309, %v339
      %v349 = vmul.f32 %v310, %v339
      %v350 = vmul.f32 %v311, %v339
      %v351 = vmul.f32 %v312, %v339
      %v352 = vmul.f32 %v313, %v339
      %v353 = vmul.f32 %v314, %v339
      %v354 = vmul.f32 %v315, %v339
      %v355 = vmul.f32 %v316, %v339
      %v356 = vmul.f32 %v317, %v339
      %v357 = vmul.f32 %v318, %v339
      %v358 = vmul.f32 %v319, %v339
      %v359 = vmul.f32 %v320, %v339
      %v360 = vmul.f32 %v321, %v339
      %v361 = vmul.f32 %v322, %v339
      %v362 = vmul.f32 %v323, %v339
      %v363 = vmul.f32 %v324, %v339
      %v364 = vmul.f32 %v325, %v339
      %v365 = vmul.f32 %v326, %v339
      %v366 = vmul.f32 %v327, %v339
      %v367 = vmul.f32 %v328, %v339
      %v368 = vmul.f32 %v329, %v339
      %v369 = vmul.f32 %v330, %v339
      %v370 = vmul.f32 %v331, %v339
      %v371 = vmul.f32 %v332, %v339
      %v372 = vmul.f32 %v333, %v339
      %v373 = vld [vmem:[%s2] sm:$0x1]
      %v375 = vlaneseq
      %v376 = vshrl.u32 %v375, 7
      %v377 = vsub.s32 0, %v376
      %v378 = vrot.slane %v373, %v377
      %v380 = vadd.f32 %v341, %v378
      %v381 = vadd.f32 %v342, %v378
      %v382 = vadd.f32 %v343, %v378
      %v383 = vadd.f32 %v344, %v378
      %v384 = vadd.f32 %v345, %v378
      %v385 = vadd.f32 %v346, %v378
      %v386 = vadd.f32 %v347, %v378
      %v387 = vadd.f32 %v348, %v378
      %v388 = vadd.f32 %v349, %v378
      %v389 = vadd.f32 %v350, %v378
      %v390 = vadd.f32 %v351, %v378
      %v391 = vadd.f32 %v352, %v378
      %v392 = vadd.f32 %v353, %v378
      %v393 = vadd.f32 %v354, %v378
      %v394 = vadd.f32 %v355, %v378
      %v395 = vadd.f32 %v356, %v378
      %v396 = vadd.f32 %v357, %v378
      %v397 = vadd.f32 %v358, %v378
      %v398 = vadd.f32 %v359, %v378
      %v399 = vadd.f32 %v360, %v378
      %v400 = vadd.f32 %v361, %v378
      %v401 = vadd.f32 %v362, %v378
      %v402 = vadd.f32 %v363, %v378
      %v403 = vadd.f32 %v364, %v378
      %v404 = vadd.f32 %v365, %v378
      %v405 = vadd.f32 %v366, %v378
      %v406 = vadd.f32 %v367, %v378
      %v407 = vadd.f32 %v368, %v378
      %v408 = vadd.f32 %v369, %v378
      %v409 = vadd.f32 %v370, %v378
      %v410 = vadd.f32 %v371, %v378
      %v411 = vadd.f32 %v372, %v378
      %v412 = vmax.f32 %v380, 0.0
      %v413 = vmax.f32 %v381, 0.0
      %v414 = vmax.f32 %v382, 0.0
      %v415 = vmax.f32 %v383, 0.0
      %v416 = vmax.f32 %v384, 0.0
      %v417 = vmax.f32 %v385, 0.0
      %v418 = vmax.f32 %v386, 0.0
      %v419 = vmax.f32 %v387, 0.0
      %v420 = vmax.f32 %v388, 0.0
      %v421 = vmax.f32 %v389, 0.0
      %v422 = vmax.f32 %v390, 0.0
      %v423 = vmax.f32 %v391, 0.0
      %v424 = vmax.f32 %v392, 0.0
      %v425 = vmax.f32 %v393, 0.0
      %v426 = vmax.f32 %v394, 0.0
      %v427 = vmax.f32 %v395, 0.0
      %v428 = vmax.f32 %v396, 0.0
      %v429 = vmax.f32 %v397, 0.0
      %v430 = vmax.f32 %v398, 0.0
      %v431 = vmax.f32 %v399, 0.0
      %v432 = vmax.f32 %v400, 0.0
      %v433 = vmax.f32 %v401, 0.0
      %v434 = vmax.f32 %v402, 0.0
      %v435 = vmax.f32 %v403, 0.0
      %v436 = vmax.f32 %v404, 0.0
      %v437 = vmax.f32 %v405, 0.0
      %v438 = vmax.f32 %v406, 0.0
      %v439 = vmax.f32 %v407, 0.0
      %v440 = vmax.f32 %v408, 0.0
      %v441 = vmax.f32 %v409, 0.0
      %v442 = vmax.f32 %v410, 0.0
      %v443 = vmax.f32 %v411, 0.0
      %444 = vst [vmem:[#allocation2] sm:$0xf] 0
      %445 = vst [vmem:[#allocation2 + $0x4] sm:$0xf] 0
      %446 = vst [vmem:[#allocation2 + $0x8] sm:$0x3] 0
      %447 = vst [vmem:[#allocation2 + $0xc] sm:$0xf] 0
      %448 = vst [vmem:[#allocation2 + $0x10] sm:$0xf] 0
      %449 = vst [vmem:[#allocation2 + $0x14] sm:$0x3] 0
      %450 = vst [vmem:[#allocation2 + $0x18] sm:$0xf] 0
      %451 = vst [vmem:[#allocation2 + $0x1c] sm:$0xf] 0
      %452 = vst [vmem:[#allocation2 + $0x20] sm:$0x3] 0
      %453 = vst [vmem:[#allocation2 + $0x24] sm:$0xf] 0
      %454 = vst [vmem:[#allocation2 + $0x28] sm:$0xf] 0
      %455 = vst [vmem:[#allocation2 + $0x2c] sm:$0x3] 0
      %456 = vst [vmem:[#allocation2 + $0x30] sm:$0xf] 0
      %457 = vst [vmem:[#allocation2 + $0x34] sm:$0xf] 0
      %458 = vst [vmem:[#allocation2 + $0x38] sm:$0x3] 0
      %459 = vst [vmem:[#allocation2 + $0x3c] sm:$0xf] 0
      %460 = vst [vmem:[#allocation2 + $0x40] sm:$0xf] 0
      %461 = vst [vmem:[#allocation2 + $0x44] sm:$0x3] 0
      %462 = vst [vmem:[#allocation2 + $0x48] sm:$0xf] 0
      %463 = vst [vmem:[#allocation2 + $0x4c] sm:$0xf] 0
      %464 = vst [vmem:[#allocation2 + $0x50] sm:$0x3] 0
      %465 = vst [vmem:[#allocation2 + $0x54] sm:$0xf] 0
      %466 = vst [vmem:[#allocation2 + $0x58] sm:$0xf] 0
      %467 = vst [vmem:[#allocation2 + $0x5c] sm:$0x3] 0
      %468 = vst [vmem:[#allocation2 + $0x60] sm:$0xf] 0
      %469 = vst [vmem:[#allocation2 + $0x64] sm:$0xf] 0
      %470 = vst [vmem:[#allocation2 + $0x68] sm:$0x3] 0
      %471 = vst [vmem:[#allocation2 + $0x6c] sm:$0xf] 0
      %472 = vst [vmem:[#allocation2 + $0x70] sm:$0xf] 0
      %473 = vst [vmem:[#allocation2 + $0x74] sm:$0x3] 0
      %474 = vst [vmem:[#allocation2 + $0x78] sm:$0xf] 0
      %475 = vst [vmem:[#allocation2 + $0x7c] sm:$0xf] 0
      %476 = vst [vmem:[#allocation2 + $0x80] sm:$0x3] 0
      %477 = vst [vmem:[#allocation2 + $0x84] sm:$0xf] 0
      %478 = vst [vmem:[#allocation2 + $0x88] sm:$0xf] 0
      %479 = vst [vmem:[#allocation2 + $0x8c] sm:$0x3] 0
      %480 = vst [vmem:[#allocation2 + $0x90] sm:$0xf] 0
      %481 = vst [vmem:[#allocation2 + $0x94] sm:$0xf] 0
      %482 = vst [vmem:[#allocation2 + $0x98] sm:$0x3] 0
      %483 = vst [vmem:[#allocation2 + $0x9c] sm:$0xf] 0
      %484 = vst [vmem:[#allocation2 + $0xa0] sm:$0xf] 0
      %485 = vst [vmem:[#allocation2 + $0xa4] sm:$0x3] 0
      %486 = vst [vmem:[#allocation2 + $0xa8] sm:$0xf] 0
      %487 = vst [vmem:[#allocation2 + $0xac] sm:$0xf] 0
      %488 = vst [vmem:[#allocation2 + $0xb0] sm:$0x3] 0
      %489 = vst [vmem:[#allocation2 + $0xb4] sm:$0xf] 0
      %490 = vst [vmem:[#allocation2 + $0xb8] sm:$0xf] 0
      %491 = vst [vmem:[#allocation2 + $0xbc] sm:$0x3] 0
      %492 = vst [vmem:[#allocation2 + $0xc0] sm:$0xf] 0
      %493 = vst [vmem:[#allocation2 + $0xc4] sm:$0xf] 0
      %494 = vst [vmem:[#allocation2 + $0xc8] sm:$0x3] 0
      %495 = vst [vmem:[#allocation2 + $0xcc] sm:$0xf] 0
      %496 = vst [vmem:[#allocation2 + $0xd0] sm:$0xf] 0
      %497 = vst [vmem:[#allocation2 + $0xd4] sm:$0x3] 0
      %v498 = vpack.c.bf16 %v413, %v412
      %v499 = vpack.c.bf16 %v415, %v414
      %v500 = vpack.c.bf16 %v417, %v416
      %v501 = vpack.c.bf16 %v419, %v418
      %v502 = vpack.c.bf16 %v421, %v420
      %v503 = vpack.c.bf16 %v423, %v422
      %v504 = vpack.c.bf16 %v425, %v424
      %v505 = vpack.c.bf16 %v427, %v426
      %v506 = vpack.c.bf16 %v429, %v428
      %v507 = vpack.c.bf16 %v431, %v430
      %v508 = vpack.c.bf16 %v433, %v432
      %v509 = vpack.c.bf16 %v435, %v434
      %v510 = vpack.c.bf16 %v437, %v436
      %v511 = vpack.c.bf16 %v439, %v438
      %v512 = vpack.c.bf16 %v441, %v440
      %v513 = vpack.c.bf16 %v443, %v442
      %v530 = vunpack.c.l.b16 %v498
      %v531 = vunpack.c.h.b16 %v498
      %v532 = vunpack.c.l.b16 %v499
      %v533 = vunpack.c.h.b16 %v499
      %v534 = vunpack.c.l.b16 %v500
      %v535 = vunpack.c.h.b16 %v500
      %v536 = vunpack.c.l.b16 %v501
      %v537 = vunpack.c.h.b16 %v501
      %v538 = vunpack.c.l.b16 %v502
      %v539 = vunpack.c.h.b16 %v502
      %v540 = vunpack.c.l.b16 %v503
      %v541 = vunpack.c.h.b16 %v503
      %v542 = vunpack.c.l.b16 %v504
      %v543 = vunpack.c.h.b16 %v504
      %v544 = vunpack.c.l.b16 %v505
      %v545 = vunpack.c.h.b16 %v505
      %v546 = vunpack.c.l.b16 %v506
      %v547 = vunpack.c.h.b16 %v506
      %v548 = vunpack.c.l.b16 %v507
      %v549 = vunpack.c.h.b16 %v507
      %v550 = vunpack.c.l.b16 %v508
      %v551 = vunpack.c.h.b16 %v508
      %v552 = vunpack.c.l.b16 %v509
      %v553 = vunpack.c.h.b16 %v509
      %v554 = vunpack.c.l.b16 %v510
      %v555 = vunpack.c.h.b16 %v510
      %v556 = vunpack.c.l.b16 %v511
      %v557 = vunpack.c.h.b16 %v511
      %v558 = vunpack.c.l.b16 %v512
      %v559 = vunpack.c.h.b16 %v512
      %v560 = vunpack.c.l.b16 %v513
      %v561 = vunpack.c.h.b16 %v513
      %v562 = vpack.c.b16 %v530, %v530
      %v563 = vpack.c.b16 %v531, %v531
      %v564 = vpack.c.b16 %v532, %v532
      %v565 = vpack.c.b16 %v533, %v533
      %v566 = vpack.c.b16 %v534, %v534
      %v567 = vpack.c.b16 %v535, %v535
      %v568 = vpack.c.b16 %v536, %v536
      %v569 = vpack.c.b16 %v537, %v537
      %v570 = vpack.c.b16 %v538, %v538
      %v571 = vpack.c.b16 %v539, %v539
      %v572 = vpack.c.b16 %v540, %v540
      %v573 = vpack.c.b16 %v541, %v541
      %v574 = vpack.c.b16 %v542, %v542
      %v575 = vpack.c.b16 %v543, %v543
      %v576 = vpack.c.b16 %v544, %v544
      %v577 = vpack.c.b16 %v545, %v545
      %v578 = vpack.c.b16 %v546, %v546
      %v579 = vpack.c.b16 %v547, %v547
      %v580 = vpack.c.b16 %v548, %v548
      %v581 = vpack.c.b16 %v549, %v549
      %v582 = vpack.c.b16 %v550, %v550
      %v583 = vpack.c.b16 %v551, %v551
      %v584 = vpack.c.b16 %v552, %v552
      %v585 = vpack.c.b16 %v553, %v553
      %v586 = vpack.c.b16 %v554, %v554
      %v587 = vpack.c.b16 %v555, %v555
      %v588 = vpack.c.b16 %v556, %v556
      %v589 = vpack.c.b16 %v557, %v557
      %v590 = vpack.c.b16 %v558, %v558
      %v591 = vpack.c.b16 %v559, %v559
      %v592 = vpack.c.b16 %v560, %v560
      %v593 = vpack.c.b16 %v561, %v561
      %vm594 = vcmask 1040384
      %vm595 = vcmask 1044484
      %vm596 = vmor %vm594, %vm595
      %v597 = vrot.slane %v562, 7
      %v598 = vrot.slane %v597, 4
      %v599 = vrot.slane %v563, 7
      %v600 = vsel %vm596, %v598, %v599
      %v601 = vrot.slane %v599, 4
      %v602 = vrot.slane %v564, 7
      %v603 = vrot.slane %v602, 4
      %v604 = vrot.slane %v565, 7
      %v605 = vsel %vm596, %v603, %v604
      %v606 = vrot.slane %v604, 4
      %v607 = vrot.slane %v566, 7
      %v608 = vrot.slane %v607, 4
      %v609 = vrot.slane %v567, 7
      %v610 = vsel %vm596, %v608, %v609
      %v611 = vrot.slane %v609, 4
      %v612 = vrot.slane %v568, 7
      %v613 = vrot.slane %v612, 4
      %v614 = vrot.slane %v569, 7
      %v615 = vsel %vm596, %v613, %v614
      %v616 = vrot.slane %v614, 4
      %v617 = vrot.slane %v570, 7
      %v618 = vrot.slane %v617, 4
      %v619 = vrot.slane %v571, 7
      %v620 = vsel %vm596, %v618, %v619
      %v621 = vrot.slane %v619, 4
      %v622 = vrot.slane %v572, 7
      %v623 = vrot.slane %v622, 4
      %v624 = vrot.slane %v573, 7
      %v625 = vsel %vm596, %v623, %v624
      %v626 = vrot.slane %v624, 4
      %v627 = vrot.slane %v574, 7
      %v628 = vrot.slane %v627, 4
      %v629 = vrot.slane %v575, 7
      %v630 = vsel %vm596, %v628, %v629
      %v631 = vrot.slane %v629, 4
      %v632 = vrot.slane %v576, 7
      %v633 = vrot.slane %v632, 4
      %v634 = vrot.slane %v577, 7
      %v635 = vsel %vm596, %v633, %v634
      %v636 = vrot.slane %v634, 4
      %v637 = vrot.slane %v578, 7
      %v638 = vrot.slane %v637, 4
      %v639 = vrot.slane %v579, 7
      %v640 = vsel %vm596, %v638, %v639
      %v641 = vrot.slane %v639, 4
      %v642 = vrot.slane %v580, 7
      %v643 = vrot.slane %v642, 4
      %v644 = vrot.slane %v581, 7
      %v645 = vsel %vm596, %v643, %v644
      %v646 = vrot.slane %v644, 4
      %v647 = vrot.slane %v582, 7
      %v648 = vrot.slane %v647, 4
      %v649 = vrot.slane %v583, 7
      %v650 = vsel %vm596, %v648, %v649
      %v651 = vrot.slane %v649, 4
      %v652 = vrot.slane %v584, 7
      %v653 = vrot.slane %v652, 4
      %v654 = vrot.slane %v585, 7
      %v655 = vsel %vm596, %v653, %v654
      %v656 = vrot.slane %v654, 4
      %v657 = vrot.slane %v586, 7
      %v658 = vrot.slane %v657, 4
      %v659 = vrot.slane %v587, 7
      %v660 = vsel %vm596, %v658, %v659
      %v661 = vrot.slane %v659, 4
      %v662 = vrot.slane %v588, 7
      %v663 = vrot.slane %v662, 4
      %v664 = vrot.slane %v589, 7
      %v665 = vsel %vm596, %v663, %v664
      %v666 = vrot.slane %v664, 4
      %v667 = vrot.slane %v590, 7
      %v668 = vrot.slane %v667, 4
      %v669 = vrot.slane %v591, 7
      %v670 = vsel %vm596, %v668, %v669
      %v671 = vrot.slane %v669, 4
      %v672 = vrot.slane %v592, 7
      %v673 = vrot.slane %v672, 4
      %v674 = vrot.slane %v593, 7
      %v675 = vsel %vm596, %v673, %v674
      %v676 = vrot.slane %v674, 4
      %s725 = scalar_lea.vmem [#allocation2], 12
      %726 = vst [vmem:[%s725] sm:$0xe] %v597
      %727 = vst [vmem:[%s725 + $0x4] sm:$0xf] %v600
      %728 = vst [vmem:[%s725 + $0x8] sm:$0x1] %v601
      %729 = vst [vmem:[%s725 + $0xc] sm:$0xe] %v602
      %730 = vst [vmem:[%s725 + $0x10] sm:$0xf] %v605
      %731 = vst [vmem:[%s725 + $0x14] sm:$0x1] %v606
      %732 = vst [vmem:[%s725 + $0x18] sm:$0xe] %v607
      %733 = vst [vmem:[%s725 + $0x1c] sm:$0xf] %v610
      %734 = vst [vmem:[%s725 + $0x20] sm:$0x1] %v611
      %735 = vst [vmem:[%s725 + $0x24] sm:$0xe] %v612
      %736 = vst [vmem:[%s725 + $0x28] sm:$0xf] %v615
      %737 = vst [vmem:[%s725 + $0x2c] sm:$0x1] %v616
      %738 = vst [vmem:[%s725 + $0x30] sm:$0xe] %v617
      %739 = vst [vmem:[%s725 + $0x34] sm:$0xf] %v620
      %740 = vst [vmem:[%s725 + $0x38] sm:$0x1] %v621
      %741 = vst [vmem:[%s725 + $0x3c] sm:$0xe] %v622
      %742 = vst [vmem:[%s725 + $0x40] sm:$0xf] %v625
      %743 = vst [vmem:[%s725 + $0x44] sm:$0x1] %v626
      %744 = vst [vmem:[%s725 + $0x48] sm:$0xe] %v627
      %745 = vst [vmem:[%s725 + $0x4c] sm:$0xf] %v630
      %746 = vst [vmem:[%s725 + $0x50] sm:$0x1] %v631
      %747 = vst [vmem:[%s725 + $0x54] sm:$0xe] %v632
      %748 = vst [vmem:[%s725 + $0x58] sm:$0xf] %v635
      %749 = vst [vmem:[%s725 + $0x5c] sm:$0x1] %v636
      %750 = vst [vmem:[%s725 + $0x60] sm:$0xe] %v637
      %751 = vst [vmem:[%s725 + $0x64] sm:$0xf] %v640
      %752 = vst [vmem:[%s725 + $0x68] sm:$0x1] %v641
      %753 = vst [vmem:[%s725 + $0x6c] sm:$0xe] %v642
      %754 = vst [vmem:[%s725 + $0x70] sm:$0xf] %v645
      %755 = vst [vmem:[%s725 + $0x74] sm:$0x1] %v646
      %756 = vst [vmem:[%s725 + $0x78] sm:$0xe] %v647
      %757 = vst [vmem:[%s725 + $0x7c] sm:$0xf] %v650
      %758 = vst [vmem:[%s725 + $0x80] sm:$0x1] %v651
      %759 = vst [vmem:[%s725 + $0x84] sm:$0xe] %v652
      %760 = vst [vmem:[%s725 + $0x88] sm:$0xf] %v655
      %761 = vst [vmem:[%s725 + $0x8c] sm:$0x1] %v656
      %762 = vst [vmem:[%s725 + $0x90] sm:$0xe] %v657
      %763 = vst [vmem:[%s725 + $0x94] sm:$0xf] %v660
      %764 = vst [vmem:[%s725 + $0x98] sm:$0x1] %v661
      %765 = vst [vmem:[%s725 + $0x9c] sm:$0xe] %v662
      %766 = vst [vmem:[%s725 + $0xa0] sm:$0xf] %v665
      %767 = vst [vmem:[%s725 + $0xa4] sm:$0x1] %v666
      %768 = vst [vmem:[%s725 + $0xa8] sm:$0xe] %v667
      %769 = vst [vmem:[%s725 + $0xac] sm:$0xf] %v670
      %770 = vst [vmem:[%s725 + $0xb0] sm:$0x1] %v671
      %771 = vst [vmem:[%s725 + $0xb4] sm:$0xe] %v672
      %772 = vst [vmem:[%s725 + $0xb8] sm:$0xf] %v675
      %773 = vst [vmem:[%s725 + $0xbc] sm:$0x1] %v676
      %v774 = vld [vmem:[#allocation2] sm:$0xf]
      %v775 = vld [vmem:[#allocation2 + $0x4] sm:$0xf]
      %v776 = vld [vmem:[#allocation2 + $0x8] sm:$0x1]
      %v777 = vld [vmem:[#allocation2 + $0xc] sm:$0xf]
      %v778 = vld [vmem:[#allocation2 + $0x10] sm:$0xf]
      %v779 = vld [vmem:[#allocation2 + $0x14] sm:$0x1]
      %v780 = vld [vmem:[#allocation2 + $0x18] sm:$0xf]
      %v781 = vld [vmem:[#allocation2 + $0x1c] sm:$0xf]
      %v782 = vld [vmem:[#allocation2 + $0x20] sm:$0x1]
      %v783 = vld [vmem:[#allocation2 + $0x24] sm:$0xf]
      %v784 = vld [vmem:[#allocation2 + $0x28] sm:$0xf]
      %v785 = vld [vmem:[#allocation2 + $0x2c] sm:$0x1]
      %v786 = vld [vmem:[#allocation2 + $0x30] sm:$0xf]
      %v787 = vld [vmem:[#allocation2 + $0x34] sm:$0xf]
      %v788 = vld [vmem:[#allocation2 + $0x38] sm:$0x1]
      %v789 = vld [vmem:[#allocation2 + $0x3c] sm:$0xf]
      %v790 = vld [vmem:[#allocation2 + $0x40] sm:$0xf]
      %v791 = vld [vmem:[#allocation2 + $0x44] sm:$0x1]
      %v792 = vld [vmem:[#allocation2 + $0x48] sm:$0xf]
      %v793 = vld [vmem:[#allocation2 + $0x4c] sm:$0xf]
      %v794 = vld [vmem:[#allocation2 + $0x50] sm:$0x1]
      %v795 = vld [vmem:[#allocation2 + $0x54] sm:$0xf]
      %v796 = vld [vmem:[#allocation2 + $0x58] sm:$0xf]
      %v797 = vld [vmem:[#allocation2 + $0x5c] sm:$0x1]
      %v798 = vld [vmem:[#allocation2 + $0x60] sm:$0xf]
      %v799 = vld [vmem:[#allocation2 + $0x64] sm:$0xf]
      %v800 = vld [vmem:[#allocation2 + $0x68] sm:$0x1]
      %v801 = vld [vmem:[#allocation2 + $0x6c] sm:$0xf]
      %v802 = vld [vmem:[#allocation2 + $0x70] sm:$0xf]
      %v803 = vld [vmem:[#allocation2 + $0x74] sm:$0x1]
      %v804 = vld [vmem:[#allocation2 + $0x78] sm:$0xf]
      %v805 = vld [vmem:[#allocation2 + $0x7c] sm:$0xf]
      %v806 = vld [vmem:[#allocation2 + $0x80] sm:$0x1]
      %v807 = vld [vmem:[#allocation2 + $0x84] sm:$0xf]
      %v808 = vld [vmem:[#allocation2 + $0x88] sm:$0xf]
      %v809 = vld [vmem:[#allocation2 + $0x8c] sm:$0x1]
      %v810 = vld [vmem:[#allocation2 + $0x90] sm:$0xf]
      %v811 = vld [vmem:[#allocation2 + $0x94] sm:$0xf]
      %v812 = vld [vmem:[#allocation2 + $0x98] sm:$0x1]
      %v813 = vld [vmem:[#allocation2 + $0x9c] sm:$0xf]
      %v814 = vld [vmem:[#allocation2 + $0xa0] sm:$0xf]
      %v815 = vld [vmem:[#allocation2 + $0xa4] sm:$0x1]
      %v816 = vld [vmem:[#allocation2 + $0xa8] sm:$0xf]
      %v817 = vld [vmem:[#allocation2 + $0xac] sm:$0xf]
      %v818 = vld [vmem:[#allocation2 + $0xb0] sm:$0x1]
      %v819 = vld [vmem:[#allocation2 + $0xb4] sm:$0xf]
      %v820 = vld [vmem:[#allocation2 + $0xb8] sm:$0xf]
      %v821 = vld [vmem:[#allocation2 + $0xbc] sm:$0x1]
      %vm822 = vsmask.f32 3328
      %vm823 = vsmask.f32 7440
      %vm824 = vmor %vm822, %vm823
      %v826 = vshrl.u32 %v774, 16
      %v828 = vrot.slane %v826, 4
      %v829 = vshll.u32 %v774, 16
      %v831 = vrot.slane %v829, 5
      %v832 = vor.u32 %v828, %v831
      %v833 = vrot.slane %v832, 4
      %v835 = vshll.u32 %v775, 16
      %v837 = vrot.slane %v835, 5
      %v838 = vsel %vm824, %v833, %v837
      %v839 = vshrl.u32 %v775, 16
      %v841 = vrot.slane %v839, 4
      %v842 = vor.u32 %v841, %v837
      %v843 = vrot.slane %v842, 4
      %v845 = vshll.u32 %v776, 16
      %v847 = vrot.slane %v845, 5
      %v848 = vsel %vm824, %v843, %v847
      %v850 = vshrl.u32 %v777, 16
      %v852 = vrot.slane %v850, 4
      %v853 = vshll.u32 %v777, 16
      %v855 = vrot.slane %v853, 5
      %v856 = vor.u32 %v852, %v855
      %v857 = vrot.slane %v856, 4
      %v859 = vshll.u32 %v778, 16
      %v861 = vrot.slane %v859, 5
      %v862 = vsel %vm824, %v857, %v861
      %v863 = vshrl.u32 %v778, 16
      %v865 = vrot.slane %v863, 4
      %v866 = vor.u32 %v865, %v861
      %v867 = vrot.slane %v866, 4
      %v869 = vshll.u32 %v779, 16
      %v871 = vrot.slane %v869, 5
      %v872 = vsel %vm824, %v867, %v871
      %v874 = vshrl.u32 %v780, 16
      %v876 = vrot.slane %v874, 4
      %v877 = vshll.u32 %v780, 16
      %v879 = vrot.slane %v877, 5
      %v880 = vor.u32 %v876, %v879
      %v881 = vrot.slane %v880, 4
      %v883 = vshll.u32 %v781, 16
      %v885 = vrot.slane %v883, 5
      %v886 = vsel %vm824, %v881, %v885
      %v887 = vshrl.u32 %v781, 16
      %v889 = vrot.slane %v887, 4
      %v890 = vor.u32 %v889, %v885
      %v891 = vrot.slane %v890, 4
      %v893 = vshll.u32 %v782, 16
      %v895 = vrot.slane %v893, 5
      %v896 = vsel %vm824, %v891, %v895
      %v898 = vshrl.u32 %v783, 16
      %v900 = vrot.slane %v898, 4
      %v901 = vshll.u32 %v783, 16
      %v903 = vrot.slane %v901, 5
      %v904 = vor.u32 %v900, %v903
      %v905 = vrot.slane %v904, 4
      %v907 = vshll.u32 %v784, 16
      %v909 = vrot.slane %v907, 5
      %v910 = vsel %vm824, %v905, %v909
      %v911 = vshrl.u32 %v784, 16
      %v913 = vrot.slane %v911, 4
      %v914 = vor.u32 %v913, %v909
      %v915 = vrot.slane %v914, 4
      %v917 = vshll.u32 %v785, 16
      %v919 = vrot.slane %v917, 5
      %v920 = vsel %vm824, %v915, %v919
      %v922 = vshrl.u32 %v786, 16
      %v924 = vrot.slane %v922, 4
      %v925 = vshll.u32 %v786, 16
      %v927 = vrot.slane %v925, 5
      %v928 = vor.u32 %v924, %v927
      %v929 = vrot.slane %v928, 4
      %v931 = vshll.u32 %v787, 16
      %v933 = vrot.slane %v931, 5
      %v934 = vsel %vm824, %v929, %v933
      %v935 = vshrl.u32 %v787, 16
      %v937 = vrot.slane %v935, 4
      %v938 = vor.u32 %v937, %v933
      %v939 = vrot.slane %v938, 4
      %v941 = vshll.u32 %v788, 16
      %v943 = vrot.slane %v941, 5
      %v944 = vsel %vm824, %v939, %v943
      %v946 = vshrl.u32 %v789, 16
      %v948 = vrot.slane %v946, 4
      %v949 = vshll.u32 %v789, 16
      %v951 = vrot.slane %v949, 5
      %v952 = vor.u32 %v948, %v951
      %v953 = vrot.slane %v952, 4
      %v955 = vshll.u32 %v790, 16
      %v957 = vrot.slane %v955, 5
      %v958 = vsel %vm824, %v953, %v957
      %v959 = vshrl.u32 %v790, 16
      %v961 = vrot.slane %v959, 4
      %v962 = vor.u32 %v961, %v957
      %v963 = vrot.slane %v962, 4
      %v965 = vshll.u32 %v791, 16
      %v967 = vrot.slane %v965, 5
      %v968 = vsel %vm824, %v963, %v967
      %v970 = vshrl.u32 %v792, 16
      %v972 = vrot.slane %v970, 4
      %v973 = vshll.u32 %v792, 16
      %v975 = vrot.slane %v973, 5
      %v976 = vor.u32 %v972, %v975
      %v977 = vrot.slane %v976, 4
      %v979 = vshll.u32 %v793, 16
      %v981 = vrot.slane %v979, 5
      %v982 = vsel %vm824, %v977, %v981
      %v983 = vshrl.u32 %v793, 16
      %v985 = vrot.slane %v983, 4
      %v986 = vor.u32 %v985, %v981
      %v987 = vrot.slane %v986, 4
      %v989 = vshll.u32 %v794, 16
      %v991 = vrot.slane %v989, 5
      %v992 = vsel %vm824, %v987, %v991
      %v994 = vshrl.u32 %v795, 16
      %v996 = vrot.slane %v994, 4
      %v997 = vshll.u32 %v795, 16
      %v999 = vrot.slane %v997, 5
      %v1000 = vor.u32 %v996, %v999
      %v1001 = vrot.slane %v1000, 4
      %v1003 = vshll.u32 %v796, 16
      %v1005 = vrot.slane %v1003, 5
      %v1006 = vsel %vm824, %v1001, %v1005
      %v1007 = vshrl.u32 %v796, 16
      %v1009 = vrot.slane %v1007, 4
      %v1010 = vor.u32 %v1009, %v1005
      %v1011 = vrot.slane %v1010, 4
      %v1013 = vshll.u32 %v797, 16
      %v1015 = vrot.slane %v1013, 5
      %v1016 = vsel %vm824, %v1011, %v1015
      %v1018 = vshrl.u32 %v798, 16
      %v1020 = vrot.slane %v1018, 4
      %v1021 = vshll.u32 %v798, 16
      %v1023 = vrot.slane %v1021, 5
      %v1024 = vor.u32 %v1020, %v1023
      %v1025 = vrot.slane %v1024, 4
      %v1027 = vshll.u32 %v799, 16
      %v1029 = vrot.slane %v1027, 5
      %v1030 = vsel %vm824, %v1025, %v1029
      %v1031 = vshrl.u32 %v799, 16
      %v1033 = vrot.slane %v1031, 4
      %v1034 = vor.u32 %v1033, %v1029
      %v1035 = vrot.slane %v1034, 4
      %v1037 = vshll.u32 %v800, 16
      %v1039 = vrot.slane %v1037, 5
      %v1040 = vsel %vm824, %v1035, %v1039
      %v1042 = vshrl.u32 %v801, 16
      %v1044 = vrot.slane %v1042, 4
      %v1045 = vshll.u32 %v801, 16
      %v1047 = vrot.slane %v1045, 5
      %v1048 = vor.u32 %v1044, %v1047
      %v1049 = vrot.slane %v1048, 4
      %v1051 = vshll.u32 %v802, 16
      %v1053 = vrot.slane %v1051, 5
      %v1054 = vsel %vm824, %v1049, %v1053
      %v1055 = vshrl.u32 %v802, 16
      %v1057 = vrot.slane %v1055, 4
      %v1058 = vor.u32 %v1057, %v1053
      %v1059 = vrot.slane %v1058, 4
      %v1061 = vshll.u32 %v803, 16
      %v1063 = vrot.slane %v1061, 5
      %v1064 = vsel %vm824, %v1059, %v1063
      %v1066 = vshrl.u32 %v804, 16
      %v1068 = vrot.slane %v1066, 4
      %v1069 = vshll.u32 %v804, 16
      %v1071 = vrot.slane %v1069, 5
      %v1072 = vor.u32 %v1068, %v1071
      %v1073 = vrot.slane %v1072, 4
      %v1075 = vshll.u32 %v805, 16
      %v1077 = vrot.slane %v1075, 5
      %v1078 = vsel %vm824, %v1073, %v1077
      %v1079 = vshrl.u32 %v805, 16
      %v1081 = vrot.slane %v1079, 4
      %v1082 = vor.u32 %v1081, %v1077
      %v1083 = vrot.slane %v1082, 4
      %v1085 = vshll.u32 %v806, 16
      %v1087 = vrot.slane %v1085, 5
      %v1088 = vsel %vm824, %v1083, %v1087
      %v1090 = vshrl.u32 %v807, 16
      %v1092 = vrot.slane %v1090, 4
      %v1093 = vshll.u32 %v807, 16
      %v1095 = vrot.slane %v1093, 5
      %v1096 = vor.u32 %v1092, %v1095
      %v1097 = vrot.slane %v1096, 4
      %v1099 = vshll.u32 %v808, 16
      %v1101 = vrot.slane %v1099, 5
      %v1102 = vsel %vm824, %v1097, %v1101
      %v1103 = vshrl.u32 %v808, 16
      %v1105 = vrot.slane %v1103, 4
      %v1106 = vor.u32 %v1105, %v1101
      %v1107 = vrot.slane %v1106, 4
      %v1109 = vshll.u32 %v809, 16
      %v1111 = vrot.slane %v1109, 5
      %v1112 = vsel %vm824, %v1107, %v1111
      %v1114 = vshrl.u32 %v810, 16
      %v1116 = vrot.slane %v1114, 4
      %v1117 = vshll.u32 %v810, 16
      %v1119 = vrot.slane %v1117, 5
      %v1120 = vor.u32 %v1116, %v1119
      %v1121 = vrot.slane %v1120, 4
      %v1123 = vshll.u32 %v811, 16
      %v1125 = vrot.slane %v1123, 5
      %v1126 = vsel %vm824, %v1121, %v1125
      %v1127 = vshrl.u32 %v811, 16
      %v1129 = vrot.slane %v1127, 4
      %v1130 = vor.u32 %v1129, %v1125
      %v1131 = vrot.slane %v1130, 4
      %v1133 = vshll.u32 %v812, 16
      %v1135 = vrot.slane %v1133, 5
      %v1136 = vsel %vm824, %v1131, %v1135
      %v1138 = vshrl.u32 %v813, 16
      %v1140 = vrot.slane %v1138, 4
      %v1141 = vshll.u32 %v813, 16
      %v1143 = vrot.slane %v1141, 5
      %v1144 = vor.u32 %v1140, %v1143
      %v1145 = vrot.slane %v1144, 4
      %v1147 = vshll.u32 %v814, 16
      %v1149 = vrot.slane %v1147, 5
      %v1150 = vsel %vm824, %v1145, %v1149
      %v1151 = vshrl.u32 %v814, 16
      %v1153 = vrot.slane %v1151, 4
      %v1154 = vor.u32 %v1153, %v1149
      %v1155 = vrot.slane %v1154, 4
      %v1157 = vshll.u32 %v815, 16
      %v1159 = vrot.slane %v1157, 5
      %v1160 = vsel %vm824, %v1155, %v1159
      %v1162 = vshrl.u32 %v816, 16
      %v1164 = vrot.slane %v1162, 4
      %v1165 = vshll.u32 %v816, 16
      %v1167 = vrot.slane %v1165, 5
      %v1168 = vor.u32 %v1164, %v1167
      %v1169 = vrot.slane %v1168, 4
      %v1171 = vshll.u32 %v817, 16
      %v1173 = vrot.slane %v1171, 5
      %v1174 = vsel %vm824, %v1169, %v1173
      %v1175 = vshrl.u32 %v817, 16
      %v1177 = vrot.slane %v1175, 4
      %v1178 = vor.u32 %v1177, %v1173
      %v1179 = vrot.slane %v1178, 4
      %v1181 = vshll.u32 %v818, 16
      %v1183 = vrot.slane %v1181, 5
      %v1184 = vsel %vm824, %v1179, %v1183
      %v1186 = vshrl.u32 %v819, 16
      %v1188 = vrot.slane %v1186, 4
      %v1189 = vshll.u32 %v819, 16
      %v1191 = vrot.slane %v1189, 5
      %v1192 = vor.u32 %v1188, %v1191
      %v1193 = vrot.slane %v1192, 4
      %v1195 = vshll.u32 %v820, 16
      %v1197 = vrot.slane %v1195, 5
      %v1198 = vsel %vm824, %v1193, %v1197
      %v1199 = vshrl.u32 %v820, 16
      %v1201 = vrot.slane %v1199, 4
      %v1202 = vor.u32 %v1201, %v1197
      %v1203 = vrot.slane %v1202, 4
      %v1205 = vshll.u32 %v821, 16
      %v1207 = vrot.slane %v1205, 5
      %v1208 = vsel %vm824, %v1203, %v1207
      %v1209 = vld [vmem:[%s3] sm:$0xf]
      %v1210 = vld [vmem:[%s3 + $0x4] sm:$0xf]
      %v1211 = vld [vmem:[%s3 + $0x8] sm:$0xf]
      %v1212 = vld [vmem:[%s3 + $0xc] sm:$0xf]
      %v1213 = vld [vmem:[%s3 + $0x10] sm:$0xf]
      %v1214 = vld [vmem:[%s3 + $0x14] sm:$0xf]
      %v1215 = vld [vmem:[%s3 + $0x18] sm:$0xf]
      %v1216 = vld [vmem:[%s3 + $0x1c] sm:$0xf]
      %v1217 = vld [vmem:[%s3 + $0x20] sm:$0xf]
      %v1218 = vld [vmem:[%s3 + $0x24] sm:$0xf]
      %v1219 = vld [vmem:[%s3 + $0x28] sm:$0xf]
      %v1220 = vld [vmem:[%s3 + $0x2c] sm:$0xf]
      %v1221 = vld [vmem:[%s3 + $0x30] sm:$0xf]
      %v1222 = vld [vmem:[%s3 + $0x34] sm:$0xf]
      %v1223 = vld [vmem:[%s3 + $0x38] sm:$0xf]
      %v1224 = vld [vmem:[%s3 + $0x3c] sm:$0xf]
      %v1225 = vld [vmem:[#allocation2] sm:$0xe]
      %v1226 = vld [vmem:[#allocation2 + $0xc] sm:$0xe]
      %v1227 = vld [vmem:[#allocation2 + $0x18] sm:$0xe]
      %v1228 = vld [vmem:[#allocation2 + $0x24] sm:$0xe]
      %v1229 = vld [vmem:[#allocation2 + $0x30] sm:$0xe]
      %v1230 = vld [vmem:[#allocation2 + $0x3c] sm:$0xe]
      %v1231 = vld [vmem:[#allocation2 + $0x48] sm:$0xe]
      %v1232 = vld [vmem:[#allocation2 + $0x54] sm:$0xe]
      %v1233 = vld [vmem:[#allocation2 + $0x60] sm:$0xe]
      %v1234 = vld [vmem:[#allocation2 + $0x6c] sm:$0xe]
      %v1235 = vld [vmem:[#allocation2 + $0x78] sm:$0xe]
      %v1236 = vld [vmem:[#allocation2 + $0x84] sm:$0xe]
      %v1237 = vld [vmem:[#allocation2 + $0x90] sm:$0xe]
      %v1238 = vld [vmem:[#allocation2 + $0x9c] sm:$0xe]
      %v1239 = vld [vmem:[#allocation2 + $0xa8] sm:$0xe]
      %v1240 = vld [vmem:[#allocation2 + $0xb4] sm:$0xe]
      %vm1289 = vcmask 1042432
      %vm1290 = vcmask 1046532
      %vm1291 = vmor %vm1289, %vm1290
      %v1292 = vrot.slane %v1225, 5
      %v1293 = vrot.slane %v1292, 4
      %v1294 = vrot.slane %v775, 5
      %v1295 = vsel %vm1291, %v1293, %v1294
      %v1296 = vrot.slane %v1294, 4
      %v1297 = vrot.slane %v776, 5
      %v1298 = vsel %vm1291, %v1296, %v1297
      %v1299 = vrot.slane %v1226, 5
      %v1300 = vrot.slane %v1299, 4
      %v1301 = vrot.slane %v778, 5
      %v1302 = vsel %vm1291, %v1300, %v1301
      %v1303 = vrot.slane %v1301, 4
      %v1304 = vrot.slane %v779, 5
      %v1305 = vsel %vm1291, %v1303, %v1304
      %v1306 = vrot.slane %v1227, 5
      %v1307 = vrot.slane %v1306, 4
      %v1308 = vrot.slane %v781, 5
      %v1309 = vsel %vm1291, %v1307, %v1308
      %v1310 = vrot.slane %v1308, 4
      %v1311 = vrot.slane %v782, 5
      %v1312 = vsel %vm1291, %v1310, %v1311
      %v1313 = vrot.slane %v1228, 5
      %v1314 = vrot.slane %v1313, 4
      %v1315 = vrot.slane %v784, 5
      %v1316 = vsel %vm1291, %v1314, %v1315
      %v1317 = vrot.slane %v1315, 4
      %v1318 = vrot.slane %v785, 5
      %v1319 = vsel %vm1291, %v1317, %v1318
      %v1320 = vrot.slane %v1229, 5
      %v1321 = vrot.slane %v1320, 4
      %v1322 = vrot.slane %v787, 5
      %v1323 = vsel %vm1291, %v1321, %v1322
      %v1324 = vrot.slane %v1322, 4
      %v1325 = vrot.slane %v788, 5
      %v1326 = vsel %vm1291, %v1324, %v1325
      %v1327 = vrot.slane %v1230, 5
      %v1328 = vrot.slane %v1327, 4
      %v1329 = vrot.slane %v790, 5
      %v1330 = vsel %vm1291, %v1328, %v1329
      %v1331 = vrot.slane %v1329, 4
      %v1332 = vrot.slane %v791, 5
      %v1333 = vsel %vm1291, %v1331, %v1332
      %v1334 = vrot.slane %v1231, 5
      %v1335 = vrot.slane %v1334, 4
      %v1336 = vrot.slane %v793, 5
      %v1337 = vsel %vm1291, %v1335, %v1336
      %v1338 = vrot.slane %v1336, 4
      %v1339 = vrot.slane %v794, 5
      %v1340 = vsel %vm1291, %v1338, %v1339
      %v1341 = vrot.slane %v1232, 5
      %v1342 = vrot.slane %v1341, 4
      %v1343 = vrot.slane %v796, 5
      %v1344 = vsel %vm1291, %v1342, %v1343
      %v1345 = vrot.slane %v1343, 4
      %v1346 = vrot.slane %v797, 5
      %v1347 = vsel %vm1291, %v1345, %v1346
      %v1348 = vrot.slane %v1233, 5
      %v1349 = vrot.slane %v1348, 4
      %v1350 = vrot.slane %v799, 5
      %v1351 = vsel %vm1291, %v1349, %v1350
      %v1352 = vrot.slane %v1350, 4
      %v1353 = vrot.slane %v800, 5
      %v1354 = vsel %vm1291, %v1352, %v1353
      %v1355 = vrot.slane %v1234, 5
      %v1356 = vrot.slane %v1355, 4
      %v1357 = vrot.slane %v802, 5
      %v1358 = vsel %vm1291, %v1356, %v1357
      %v1359 = vrot.slane %v1357, 4
      %v1360 = vrot.slane %v803, 5
      %v1361 = vsel %vm1291, %v1359, %v1360
      %v1362 = vrot.slane %v1235, 5
      %v1363 = vrot.slane %v1362, 4
      %v1364 = vrot.slane %v805, 5
      %v1365 = vsel %vm1291, %v1363, %v1364
      %v1366 = vrot.slane %v1364, 4
      %v1367 = vrot.slane %v806, 5
      %v1368 = vsel %vm1291, %v1366, %v1367
      %v1369 = vrot.slane %v1236, 5
      %v1370 = vrot.slane %v1369, 4
      %v1371 = vrot.slane %v808, 5
      %v1372 = vsel %vm1291, %v1370, %v1371
      %v1373 = vrot.slane %v1371, 4
      %v1374 = vrot.slane %v809, 5
      %v1375 = vsel %vm1291, %v1373, %v1374
      %v1376 = vrot.slane %v1237, 5
      %v1377 = vrot.slane %v1376, 4
      %v1378 = vrot.slane %v811, 5
      %v1379 = vsel %vm1291, %v1377, %v1378
      %v1380 = vrot.slane %v1378, 4
      %v1381 = vrot.slane %v812, 5
      %v1382 = vsel %vm1291, %v1380, %v1381
      %v1383 = vrot.slane %v1238, 5
      %v1384 = vrot.slane %v1383, 4
      %v1385 = vrot.slane %v814, 5
      %v1386 = vsel %vm1291, %v1384, %v1385
      %v1387 = vrot.slane %v1385, 4
      %v1388 = vrot.slane %v815, 5
      %v1389 = vsel %vm1291, %v1387, %v1388
      %v1390 = vrot.slane %v1239, 5
      %v1391 = vrot.slane %v1390, 4
      %v1392 = vrot.slane %v817, 5
      %v1393 = vsel %vm1291, %v1391, %v1392
      %v1394 = vrot.slane %v1392, 4
      %v1395 = vrot.slane %v818, 5
      %v1396 = vsel %vm1291, %v1394, %v1395
      %v1397 = vrot.slane %v1240, 5
      %v1398 = vrot.slane %v1397, 4
      %v1399 = vrot.slane %v820, 5
      %v1400 = vsel %vm1291, %v1398, %v1399
      %v1401 = vrot.slane %v1399, 4
      %v1402 = vrot.slane %v821, 5
      %v1403 = vsel %vm1291, %v1401, %v1402
      %s1404 = scalar_lea.vmem %s3, 64
      %v1405 = vld [vmem:[%s1404] sm:$0xf]
      %v1406 = vld [vmem:[%s1404 + $0x4] sm:$0xf]
      %v1407 = vld [vmem:[%s1404 + $0x8] sm:$0xf]
      %v1408 = vld [vmem:[%s1404 + $0xc] sm:$0xf]
      %v1409 = vld [vmem:[%s1404 + $0x10] sm:$0xf]
      %v1410 = vld [vmem:[%s1404 + $0x14] sm:$0xf]
      %v1411 = vld [vmem:[%s1404 + $0x18] sm:$0xf]
      %v1412 = vld [vmem:[%s1404 + $0x1c] sm:$0xf]
      %v1413 = vld [vmem:[%s1404 + $0x20] sm:$0xf]
      %v1414 = vld [vmem:[%s1404 + $0x24] sm:$0xf]
      %v1415 = vld [vmem:[%s1404 + $0x28] sm:$0xf]
      %v1416 = vld [vmem:[%s1404 + $0x2c] sm:$0xf]
      %v1417 = vld [vmem:[%s1404 + $0x30] sm:$0xf]
      %v1418 = vld [vmem:[%s1404 + $0x34] sm:$0xf]
      %v1419 = vld [vmem:[%s1404 + $0x38] sm:$0xf]
      %v1420 = vld [vmem:[%s1404 + $0x3c] sm:$0xf]
      %v1421 = vunpack.c.l.b16 %v1295
      %v1422 = vunpack.c.l.b16 %v1298
      %v1423 = vunpack.c.l.b16 %v1302
      %v1424 = vunpack.c.l.b16 %v1305
      %v1425 = vunpack.c.l.b16 %v1309
      %v1426 = vunpack.c.l.b16 %v1312
      %v1427 = vunpack.c.l.b16 %v1316
      %v1428 = vunpack.c.l.b16 %v1319
      %v1429 = vunpack.c.l.b16 %v1323
      %v1430 = vunpack.c.l.b16 %v1326
      %v1431 = vunpack.c.l.b16 %v1330
      %v1432 = vunpack.c.l.b16 %v1333
      %v1433 = vunpack.c.l.b16 %v1337
      %v1434 = vunpack.c.l.b16 %v1340
      %v1435 = vunpack.c.l.b16 %v1344
      %v1436 = vunpack.c.l.b16 %v1347
      %v1437 = vunpack.c.l.b16 %v1351
      %v1438 = vunpack.c.l.b16 %v1354
      %v1439 = vunpack.c.l.b16 %v1358
      %v1440 = vunpack.c.l.b16 %v1361
      %v1441 = vunpack.c.l.b16 %v1365
      %v1442 = vunpack.c.l.b16 %v1368
      %v1443 = vunpack.c.l.b16 %v1372
      %v1444 = vunpack.c.l.b16 %v1375
      %v1445 = vunpack.c.l.b16 %v1379
      %v1446 = vunpack.c.l.b16 %v1382
      %v1447 = vunpack.c.l.b16 %v1386
      %v1448 = vunpack.c.l.b16 %v1389
      %v1449 = vunpack.c.l.b16 %v1393
      %v1450 = vunpack.c.l.b16 %v1396
      %v1451 = vunpack.c.l.b16 %v1400
      %v1452 = vunpack.c.l.b16 %v1403
      %v1453 = vpack.c.b16 %v1422, %v1421
      %v1454 = vpack.c.b16 %v1424, %v1423
      %v1455 = vpack.c.b16 %v1426, %v1425
      %v1456 = vpack.c.b16 %v1428, %v1427
      %v1457 = vpack.c.b16 %v1430, %v1429
      %v1458 = vpack.c.b16 %v1432, %v1431
      %v1459 = vpack.c.b16 %v1434, %v1433
      %v1460 = vpack.c.b16 %v1436, %v1435
      %v1461 = vpack.c.b16 %v1438, %v1437
      %v1462 = vpack.c.b16 %v1440, %v1439
      %v1463 = vpack.c.b16 %v1442, %v1441
      %v1464 = vpack.c.b16 %v1444, %v1443
      %v1465 = vpack.c.b16 %v1446, %v1445
      %v1466 = vpack.c.b16 %v1448, %v1447
      %v1467 = vpack.c.b16 %v1450, %v1449
      %v1468 = vpack.c.b16 %v1452, %v1451
      %v1501 = vunpack.c.l.b16 %v1405
      %v1502 = vunpack.c.l.b16 %v1406
      %v1503 = vunpack.c.l.b16 %v1407
      %v1504 = vunpack.c.l.b16 %v1408
      %v1505 = vunpack.c.l.b16 %v1409
      %v1506 = vunpack.c.l.b16 %v1410
      %v1507 = vunpack.c.l.b16 %v1411
      %v1508 = vunpack.c.l.b16 %v1412
      %v1509 = vunpack.c.l.b16 %v1413
      %v1510 = vunpack.c.l.b16 %v1414
      %v1511 = vunpack.c.l.b16 %v1415
      %v1512 = vunpack.c.l.b16 %v1416
      %v1513 = vunpack.c.l.b16 %v1417
      %v1514 = vunpack.c.l.b16 %v1418
      %v1515 = vunpack.c.l.b16 %v1419
      %v1516 = vunpack.c.l.b16 %v1420
      %v1517 = vpack.c.b16 %v1502, %v1501
      %v1518 = vpack.c.b16 %v1504, %v1503
      %v1519 = vpack.c.b16 %v1506, %v1505
      %v1520 = vpack.c.b16 %v1508, %v1507
      %v1521 = vpack.c.b16 %v1510, %v1509
      %v1522 = vpack.c.b16 %v1512, %v1511
      %v1523 = vpack.c.b16 %v1514, %v1513
      %v1524 = vpack.c.b16 %v1516, %v1515
      %1533 = vmatprep.subr.bf16.mxu0 0
      %1534 = vmatpush1.bf16.msra.mxu0 %v1524
      %1535 = vmatprep.subr.bf16.mxu0 0
      %1536 = vmatpush1.bf16.msra.mxu0 %v1523
      %1537 = vmatprep.subr.bf16.mxu0 0
      %1538 = vmatpush1.bf16.msra.mxu0 %v1522
      %1539 = vmatprep.subr.bf16.mxu0 0
      %1540 = vmatpush1.bf16.msra.mxu0 %v1521
      %1541 = vmatprep.subr.bf16.mxu0 0
      %1542 = vmatpush1.bf16.msra.mxu0 %v1520
      %1543 = vmatprep.subr.bf16.mxu0 0
      %1544 = vmatpush1.bf16.msra.mxu0 %v1519
      %1545 = vmatprep.subr.bf16.mxu0 0
      %1546 = vmatpush1.bf16.msra.mxu0 %v1518
      %1547 = vmatprep.subr.bf16.mxu0 0
      %1548 = vmatpush1.bf16.msra.mxu0 %v1517
      %1549 = vmatprep.subr.bf16.mxu0 0
      %1550 = vmatpush2.bf16.msra.mxu0 0
      %1551 = vmatprep.subr.bf16.mxu0 0
      %1552 = vmatpush2.bf16.msra.mxu0 0
      %1553 = vmatprep.subr.bf16.mxu0 0
      %1554 = vmatpush2.bf16.msra.mxu0 0
      %1555 = vmatprep.subr.bf16.mxu0 0
      %1556 = vmatpush2.bf16.msra.mxu0 0
      %1557 = vmatprep.subr.bf16.mxu0 0
      %1558 = vmatpush2.bf16.msra.mxu0 0
      %1559 = vmatprep.subr.bf16.mxu0 0
      %1560 = vmatpush2.bf16.msra.mxu0 0
      %1561 = vmatprep.subr.bf16.mxu0 0
      %1562 = vmatpush2.bf16.msra.mxu0 0
      %1563 = vmatprep.subr.bf16.mxu0 0
      %1564 = vmatpush2.bf16.msra.mxu0 0
      %1565 = vmatprep.mubr.bf16.mxu0 0
      %1566 = vmatmul.mubr.bf16.gmra.mxu0 %v1453
      %v1567 = vpop.f32.mrf.mxu0
      %v1568 = vadd.f32 0.0, %v1567
      %v1569 = vpop.f32.mrf.mxu0
      %v1570 = vpop.f32.mrf.mxu0
      %v1571 = vadd.f32 0.0, %v1570
      %v1572 = vpop.f32.mrf.mxu0
      %1573 = vmatprep.mubr.bf16.mxu0 0
      %1574 = vmatmul.mubr.bf16.gmra.mxu0 %v1454
      %v1575 = vpop.f32.mrf.mxu0
      %v1576 = vadd.f32 0.0, %v1575
      %v1577 = vpop.f32.mrf.mxu0
      %v1578 = vpop.f32.mrf.mxu0
      %v1579 = vadd.f32 0.0, %v1578
      %v1580 = vpop.f32.mrf.mxu0
      %1581 = vmatprep.mubr.bf16.mxu0 0
      %1582 = vmatmul.mubr.bf16.gmra.mxu0 %v1455
      %v1583 = vpop.f32.mrf.mxu0
      %v1584 = vadd.f32 0.0, %v1583
      %v1585 = vpop.f32.mrf.mxu0
      %v1586 = vpop.f32.mrf.mxu0
      %v1587 = vadd.f32 0.0, %v1586
      %v1588 = vpop.f32.mrf.mxu0
      %1589 = vmatprep.mubr.bf16.mxu0 0
      %1590 = vmatmul.mubr.bf16.gmra.mxu0 %v1456
      %v1591 = vpop.f32.mrf.mxu0
      %v1592 = vadd.f32 0.0, %v1591
      %v1593 = vpop.f32.mrf.mxu0
      %v1594 = vpop.f32.mrf.mxu0
      %v1595 = vadd.f32 0.0, %v1594
      %v1596 = vpop.f32.mrf.mxu0
      %1597 = vmatprep.mubr.bf16.mxu0 0
      %1598 = vmatmul.mubr.bf16.gmra.mxu0 %v1457
      %v1599 = vpop.f32.mrf.mxu0
      %v1600 = vadd.f32 0.0, %v1599
      %v1601 = vpop.f32.mrf.mxu0
      %v1602 = vpop.f32.mrf.mxu0
      %v1603 = vadd.f32 0.0, %v1602
      %v1604 = vpop.f32.mrf.mxu0
      %1605 = vmatprep.mubr.bf16.mxu0 0
      %1606 = vmatmul.mubr.bf16.gmra.mxu0 %v1458
      %v1607 = vpop.f32.mrf.mxu0
      %v1608 = vadd.f32 0.0, %v1607
      %v1609 = vpop.f32.mrf.mxu0
      %v1610 = vpop.f32.mrf.mxu0
      %v1611 = vadd.f32 0.0, %v1610
      %v1612 = vpop.f32.mrf.mxu0
      %1613 = vmatprep.mubr.bf16.mxu0 0
      %1614 = vmatmul.mubr.bf16.gmra.mxu0 %v1459
      %v1615 = vpop.f32.mrf.mxu0
      %v1616 = vadd.f32 0.0, %v1615
      %v1617 = vpop.f32.mrf.mxu0
      %v1618 = vpop.f32.mrf.mxu0
      %v1619 = vadd.f32 0.0, %v1618
      %v1620 = vpop.f32.mrf.mxu0
      %1621 = vmatprep.mubr.bf16.mxu0 0
      %1622 = vmatmul.mubr.bf16.gmra.mxu0 %v1460
      %v1623 = vpop.f32.mrf.mxu0
      %v1624 = vadd.f32 0.0, %v1623
      %v1625 = vpop.f32.mrf.mxu0
      %v1626 = vpop.f32.mrf.mxu0
      %v1627 = vadd.f32 0.0, %v1626
      %v1628 = vpop.f32.mrf.mxu0
      %1629 = vmatprep.mubr.bf16.mxu0 0
      %1630 = vmatmul.mubr.bf16.gmra.mxu0 %v1461
      %v1631 = vpop.f32.mrf.mxu0
      %v1632 = vadd.f32 0.0, %v1631
      %v1633 = vpop.f32.mrf.mxu0
      %v1634 = vpop.f32.mrf.mxu0
      %v1635 = vadd.f32 0.0, %v1634
      %v1636 = vpop.f32.mrf.mxu0
      %1637 = vmatprep.mubr.bf16.mxu0 0
      %1638 = vmatmul.mubr.bf16.gmra.mxu0 %v1462
      %v1639 = vpop.f32.mrf.mxu0
      %v1640 = vadd.f32 0.0, %v1639
      %v1641 = vpop.f32.mrf.mxu0
      %v1642 = vpop.f32.mrf.mxu0
      %v1643 = vadd.f32 0.0, %v1642
      %v1644 = vpop.f32.mrf.mxu0
      %1645 = vmatprep.mubr.bf16.mxu0 0
      %1646 = vmatmul.mubr.bf16.gmra.mxu0 %v1463
      %v1647 = vpop.f32.mrf.mxu0
      %v1648 = vadd.f32 0.0, %v1647
      %v1649 = vpop.f32.mrf.mxu0
      %v1650 = vpop.f32.mrf.mxu0
      %v1651 = vadd.f32 0.0, %v1650
      %v1652 = vpop.f32.mrf.mxu0
      %1653 = vmatprep.mubr.bf16.mxu0 0
      %1654 = vmatmul.mubr.bf16.gmra.mxu0 %v1464
      %v1655 = vpop.f32.mrf.mxu0
      %v1656 = vadd.f32 0.0, %v1655
      %v1657 = vpop.f32.mrf.mxu0
      %v1658 = vpop.f32.mrf.mxu0
      %v1659 = vadd.f32 0.0, %v1658
      %v1660 = vpop.f32.mrf.mxu0
      %1661 = vmatprep.mubr.bf16.mxu0 0
      %1662 = vmatmul.mubr.bf16.gmra.mxu0 %v1465
      %v1663 = vpop.f32.mrf.mxu0
      %v1664 = vadd.f32 0.0, %v1663
      %v1665 = vpop.f32.mrf.mxu0
      %v1666 = vpop.f32.mrf.mxu0
      %v1667 = vadd.f32 0.0, %v1666
      %v1668 = vpop.f32.mrf.mxu0
      %1669 = vmatprep.mubr.bf16.mxu0 0
      %1670 = vmatmul.mubr.bf16.gmra.mxu0 %v1466
      %v1671 = vpop.f32.mrf.mxu0
      %v1672 = vadd.f32 0.0, %v1671
      %v1673 = vpop.f32.mrf.mxu0
      %v1674 = vpop.f32.mrf.mxu0
      %v1675 = vadd.f32 0.0, %v1674
      %v1676 = vpop.f32.mrf.mxu0
      %1677 = vmatprep.mubr.bf16.mxu0 0
      %1678 = vmatmul.mubr.bf16.gmra.mxu0 %v1467
      %v1679 = vpop.f32.mrf.mxu0
      %v1680 = vadd.f32 0.0, %v1679
      %v1681 = vpop.f32.mrf.mxu0
      %v1682 = vpop.f32.mrf.mxu0
      %v1683 = vadd.f32 0.0, %v1682
      %v1684 = vpop.f32.mrf.mxu0
      %1685 = vmatprep.mubr.bf16.mxu0 0
      %1686 = vmatmul.mubr.bf16.gmra.mxu0 %v1468
      %v1687 = vpop.f32.mrf.mxu0
      %v1688 = vadd.f32 0.0, %v1687
      %v1689 = vpop.f32.mrf.mxu0
      %v1690 = vpop.f32.mrf.mxu0
      %v1691 = vadd.f32 0.0, %v1690
      %v1692 = vpop.f32.mrf.mxu0
      %1693 = vdwg.mxu0
      %v1694 = vunpack.c.l.b16 %v838
      %v1695 = vunpack.c.l.b16 %v848
      %v1696 = vunpack.c.l.b16 %v862
      %v1697 = vunpack.c.l.b16 %v872
      %v1698 = vunpack.c.l.b16 %v886
      %v1699 = vunpack.c.l.b16 %v896
      %v1700 = vunpack.c.l.b16 %v910
      %v1701 = vunpack.c.l.b16 %v920
      %v1702 = vunpack.c.l.b16 %v934
      %v1703 = vunpack.c.l.b16 %v944
      %v1704 = vunpack.c.l.b16 %v958
      %v1705 = vunpack.c.l.b16 %v968
      %v1706 = vunpack.c.l.b16 %v982
      %v1707 = vunpack.c.l.b16 %v992
      %v1708 = vunpack.c.l.b16 %v1006
      %v1709 = vunpack.c.l.b16 %v1016
      %v1710 = vunpack.c.l.b16 %v1030
      %v1711 = vunpack.c.l.b16 %v1040
      %v1712 = vunpack.c.l.b16 %v1054
      %v1713 = vunpack.c.l.b16 %v1064
      %v1714 = vunpack.c.l.b16 %v1078
      %v1715 = vunpack.c.l.b16 %v1088
      %v1716 = vunpack.c.l.b16 %v1102
      %v1717 = vunpack.c.l.b16 %v1112
      %v1718 = vunpack.c.l.b16 %v1126
      %v1719 = vunpack.c.l.b16 %v1136
      %v1720 = vunpack.c.l.b16 %v1150
      %v1721 = vunpack.c.l.b16 %v1160
      %v1722 = vunpack.c.l.b16 %v1174
      %v1723 = vunpack.c.l.b16 %v1184
      %v1724 = vunpack.c.l.b16 %v1198
      %v1725 = vunpack.c.l.b16 %v1208
      %v1726 = vpack.c.b16 %v1695, %v1694
      %v1727 = vpack.c.b16 %v1697, %v1696
      %v1728 = vpack.c.b16 %v1699, %v1698
      %v1729 = vpack.c.b16 %v1701, %v1700
      %v1730 = vpack.c.b16 %v1703, %v1702
      %v1731 = vpack.c.b16 %v1705, %v1704
      %v1732 = vpack.c.b16 %v1707, %v1706
      %v1733 = vpack.c.b16 %v1709, %v1708
      %v1734 = vpack.c.b16 %v1711, %v1710
      %v1735 = vpack.c.b16 %v1713, %v1712
      %v1736 = vpack.c.b16 %v1715, %v1714
      %v1737 = vpack.c.b16 %v1717, %v1716
      %v1738 = vpack.c.b16 %v1719, %v1718
      %v1739 = vpack.c.b16 %v1721, %v1720
      %v1740 = vpack.c.b16 %v1723, %v1722
      %v1741 = vpack.c.b16 %v1725, %v1724
      %v1774 = vunpack.c.l.b16 %v1209
      %v1775 = vunpack.c.l.b16 %v1210
      %v1776 = vunpack.c.l.b16 %v1211
      %v1777 = vunpack.c.l.b16 %v1212
      %v1778 = vunpack.c.l.b16 %v1213
      %v1779 = vunpack.c.l.b16 %v1214
      %v1780 = vunpack.c.l.b16 %v1215
      %v1781 = vunpack.c.l.b16 %v1216
      %v1782 = vunpack.c.l.b16 %v1217
      %v1783 = vunpack.c.l.b16 %v1218
      %v1784 = vunpack.c.l.b16 %v1219
      %v1785 = vunpack.c.l.b16 %v1220
      %v1786 = vunpack.c.l.b16 %v1221
      %v1787 = vunpack.c.l.b16 %v1222
      %v1788 = vunpack.c.l.b16 %v1223
      %v1789 = vunpack.c.l.b16 %v1224
      %v1790 = vpack.c.b16 %v1775, %v1774
      %v1791 = vpack.c.b16 %v1777, %v1776
      %v1792 = vpack.c.b16 %v1779, %v1778
      %v1793 = vpack.c.b16 %v1781, %v1780
      %v1794 = vpack.c.b16 %v1783, %v1782
      %v1795 = vpack.c.b16 %v1785, %v1784
      %v1796 = vpack.c.b16 %v1787, %v1786
      %v1797 = vpack.c.b16 %v1789, %v1788
      %1806 = vmatprep.subr.bf16.mxu0 0
      %1807 = vmatpush1.bf16.msra.mxu0 %v1797
      %1808 = vmatprep.subr.bf16.mxu0 0
      %1809 = vmatpush1.bf16.msra.mxu0 %v1796
      %1810 = vmatprep.subr.bf16.mxu0 0
      %1811 = vmatpush1.bf16.msra.mxu0 %v1795
      %1812 = vmatprep.subr.bf16.mxu0 0
      %1813 = vmatpush1.bf16.msra.mxu0 %v1794
      %1814 = vmatprep.subr.bf16.mxu0 0
      %1815 = vmatpush1.bf16.msra.mxu0 %v1793
      %1816 = vmatprep.subr.bf16.mxu0 0
      %1817 = vmatpush1.bf16.msra.mxu0 %v1792
      %1818 = vmatprep.subr.bf16.mxu0 0
      %1819 = vmatpush1.bf16.msra.mxu0 %v1791
      %1820 = vmatprep.subr.bf16.mxu0 0
      %1821 = vmatpush1.bf16.msra.mxu0 %v1790
      %1822 = vmatprep.subr.bf16.mxu0 0
      %1823 = vmatpush2.bf16.msra.mxu0 0
      %1824 = vmatprep.subr.bf16.mxu0 0
      %1825 = vmatpush2.bf16.msra.mxu0 0
      %1826 = vmatprep.subr.bf16.mxu0 0
      %1827 = vmatpush2.bf16.msra.mxu0 0
      %1828 = vmatprep.subr.bf16.mxu0 0
      %1829 = vmatpush2.bf16.msra.mxu0 0
      %1830 = vmatprep.subr.bf16.mxu0 0
      %1831 = vmatpush2.bf16.msra.mxu0 0
      %1832 = vmatprep.subr.bf16.mxu0 0
      %1833 = vmatpush2.bf16.msra.mxu0 0
      %1834 = vmatprep.subr.bf16.mxu0 0
      %1835 = vmatpush2.bf16.msra.mxu0 0
      %1836 = vmatprep.subr.bf16.mxu0 0
      %1837 = vmatpush2.bf16.msra.mxu0 0
      %1838 = vmatprep.mubr.bf16.mxu0 0
      %1839 = vmatmul.mubr.bf16.gmra.mxu0 %v1726
      %v1840 = vpop.f32.mrf.mxu0
      %v1841 = vadd.f32 %v1568, %v1840
      %v1842 = vpop.f32.mrf.mxu0
      %v1843 = vpop.f32.mrf.mxu0
      %v1844 = vadd.f32 %v1571, %v1843
      %v1845 = vpop.f32.mrf.mxu0
      %1846 = vmatprep.mubr.bf16.mxu0 0
      %1847 = vmatmul.mubr.bf16.gmra.mxu0 %v1727
      %v1848 = vpop.f32.mrf.mxu0
      %v1849 = vadd.f32 %v1576, %v1848
      %v1850 = vpop.f32.mrf.mxu0
      %v1851 = vpop.f32.mrf.mxu0
      %v1852 = vadd.f32 %v1579, %v1851
      %v1853 = vpop.f32.mrf.mxu0
      %1854 = vmatprep.mubr.bf16.mxu0 0
      %1855 = vmatmul.mubr.bf16.gmra.mxu0 %v1728
      %v1856 = vpop.f32.mrf.mxu0
      %v1857 = vadd.f32 %v1584, %v1856
      %v1858 = vpop.f32.mrf.mxu0
      %v1859 = vpop.f32.mrf.mxu0
      %v1860 = vadd.f32 %v1587, %v1859
      %v1861 = vpop.f32.mrf.mxu0
      %1862 = vmatprep.mubr.bf16.mxu0 0
      %1863 = vmatmul.mubr.bf16.gmra.mxu0 %v1729
      %v1864 = vpop.f32.mrf.mxu0
      %v1865 = vadd.f32 %v1592, %v1864
      %v1866 = vpop.f32.mrf.mxu0
      %v1867 = vpop.f32.mrf.mxu0
      %v1868 = vadd.f32 %v1595, %v1867
      %v1869 = vpop.f32.mrf.mxu0
      %1870 = vmatprep.mubr.bf16.mxu0 0
      %1871 = vmatmul.mubr.bf16.gmra.mxu0 %v1730
      %v1872 = vpop.f32.mrf.mxu0
      %v1873 = vadd.f32 %v1600, %v1872
      %v1874 = vpop.f32.mrf.mxu0
      %v1875 = vpop.f32.mrf.mxu0
      %v1876 = vadd.f32 %v1603, %v1875
      %v1877 = vpop.f32.mrf.mxu0
      %1878 = vmatprep.mubr.bf16.mxu0 0
      %1879 = vmatmul.mubr.bf16.gmra.mxu0 %v1731
      %v1880 = vpop.f32.mrf.mxu0
      %v1881 = vadd.f32 %v1608, %v1880
      %v1882 = vpop.f32.mrf.mxu0
      %v1883 = vpop.f32.mrf.mxu0
      %v1884 = vadd.f32 %v1611, %v1883
      %v1885 = vpop.f32.mrf.mxu0
      %1886 = vmatprep.mubr.bf16.mxu0 0
      %1887 = vmatmul.mubr.bf16.gmra.mxu0 %v1732
      %v1888 = vpop.f32.mrf.mxu0
      %v1889 = vadd.f32 %v1616, %v1888
      %v1890 = vpop.f32.mrf.mxu0
      %v1891 = vpop.f32.mrf.mxu0
      %v1892 = vadd.f32 %v1619, %v1891
      %v1893 = vpop.f32.mrf.mxu0
      %1894 = vmatprep.mubr.bf16.mxu0 0
      %1895 = vmatmul.mubr.bf16.gmra.mxu0 %v1733
      %v1896 = vpop.f32.mrf.mxu0
      %v1897 = vadd.f32 %v1624, %v1896
      %v1898 = vpop.f32.mrf.mxu0
      %v1899 = vpop.f32.mrf.mxu0
      %v1900 = vadd.f32 %v1627, %v1899
      %v1901 = vpop.f32.mrf.mxu0
      %1902 = vmatprep.mubr.bf16.mxu0 0
      %1903 = vmatmul.mubr.bf16.gmra.mxu0 %v1734
      %v1904 = vpop.f32.mrf.mxu0
      %v1905 = vadd.f32 %v1632, %v1904
      %v1906 = vpop.f32.mrf.mxu0
      %v1907 = vpop.f32.mrf.mxu0
      %v1908 = vadd.f32 %v1635, %v1907
      %v1909 = vpop.f32.mrf.mxu0
      %1910 = vmatprep.mubr.bf16.mxu0 0
      %1911 = vmatmul.mubr.bf16.gmra.mxu0 %v1735
      %v1912 = vpop.f32.mrf.mxu0
      %v1913 = vadd.f32 %v1640, %v1912
      %v1914 = vpop.f32.mrf.mxu0
      %v1915 = vpop.f32.mrf.mxu0
      %v1916 = vadd.f32 %v1643, %v1915
      %v1917 = vpop.f32.mrf.mxu0
      %1918 = vmatprep.mubr.bf16.mxu0 0
      %1919 = vmatmul.mubr.bf16.gmra.mxu0 %v1736
      %v1920 = vpop.f32.mrf.mxu0
      %v1921 = vadd.f32 %v1648, %v1920
      %v1922 = vpop.f32.mrf.mxu0
      %v1923 = vpop.f32.mrf.mxu0
      %v1924 = vadd.f32 %v1651, %v1923
      %v1925 = vpop.f32.mrf.mxu0
      %1926 = vmatprep.mubr.bf16.mxu0 0
      %1927 = vmatmul.mubr.bf16.gmra.mxu0 %v1737
      %v1928 = vpop.f32.mrf.mxu0
      %v1929 = vadd.f32 %v1656, %v1928
      %v1930 = vpop.f32.mrf.mxu0
      %v1931 = vpop.f32.mrf.mxu0
      %v1932 = vadd.f32 %v1659, %v1931
      %v1933 = vpop.f32.mrf.mxu0
      %1934 = vmatprep.mubr.bf16.mxu0 0
      %1935 = vmatmul.mubr.bf16.gmra.mxu0 %v1738
      %v1936 = vpop.f32.mrf.mxu0
      %v1937 = vadd.f32 %v1664, %v1936
      %v1938 = vpop.f32.mrf.mxu0
      %v1939 = vpop.f32.mrf.mxu0
      %v1940 = vadd.f32 %v1667, %v1939
      %v1941 = vpop.f32.mrf.mxu0
      %1942 = vmatprep.mubr.bf16.mxu0 0
      %1943 = vmatmul.mubr.bf16.gmra.mxu0 %v1739
      %v1944 = vpop.f32.mrf.mxu0
      %v1945 = vadd.f32 %v1672, %v1944
      %v1946 = vpop.f32.mrf.mxu0
      %v1947 = vpop.f32.mrf.mxu0
      %v1948 = vadd.f32 %v1675, %v1947
      %v1949 = vpop.f32.mrf.mxu0
      %1950 = vmatprep.mubr.bf16.mxu0 0
      %1951 = vmatmul.mubr.bf16.gmra.mxu0 %v1740
      %v1952 = vpop.f32.mrf.mxu0
      %v1953 = vadd.f32 %v1680, %v1952
      %v1954 = vpop.f32.mrf.mxu0
      %v1955 = vpop.f32.mrf.mxu0
      %v1956 = vadd.f32 %v1683, %v1955
      %v1957 = vpop.f32.mrf.mxu0
      %1958 = vmatprep.mubr.bf16.mxu0 0
      %1959 = vmatmul.mubr.bf16.gmra.mxu0 %v1741
      %v1960 = vpop.f32.mrf.mxu0
      %v1961 = vadd.f32 %v1688, %v1960
      %v1962 = vpop.f32.mrf.mxu0
      %v1963 = vpop.f32.mrf.mxu0
      %v1964 = vadd.f32 %v1691, %v1963
      %v1965 = vpop.f32.mrf.mxu0
      %1966 = vdwg.mxu0
      %v1967 = vld [vmem:[#allocation2 + $0x8] sm:$0x3]
      %v1968 = vld [vmem:[#allocation2 + $0x14] sm:$0x3]
      %v1969 = vld [vmem:[#allocation2 + $0x20] sm:$0x3]
      %v1970 = vld [vmem:[#allocation2 + $0x2c] sm:$0x3]
      %v1971 = vld [vmem:[#allocation2 + $0x38] sm:$0x3]
      %v1972 = vld [vmem:[#allocation2 + $0x44] sm:$0x3]
      %v1973 = vld [vmem:[#allocation2 + $0x50] sm:$0x3]
      %v1974 = vld [vmem:[#allocation2 + $0x5c] sm:$0x3]
      %v1975 = vld [vmem:[#allocation2 + $0x68] sm:$0x3]
      %v1976 = vld [vmem:[#allocation2 + $0x74] sm:$0x3]
      %v1977 = vld [vmem:[#allocation2 + $0x80] sm:$0x3]
      %v1978 = vld [vmem:[#allocation2 + $0x8c] sm:$0x3]
      %v1979 = vld [vmem:[#allocation2 + $0x98] sm:$0x3]
      %v1980 = vld [vmem:[#allocation2 + $0xa4] sm:$0x3]
      %v1981 = vld [vmem:[#allocation2 + $0xb0] sm:$0x3]
      %v1982 = vld [vmem:[#allocation2 + $0xbc] sm:$0x3]
      %vm1983 = vsmask.f32 2304
      %vm1984 = vsmask.f32 6416
      %vm1985 = vmor %vm1983, %vm1984
      %v1987 = vshrl.u32 %v1225, 16
      %v1989 = vrot.slane %v1987, 5
      %v1990 = vshll.u32 %v1225, 16
      %v1992 = vrot.slane %v1990, 6
      %v1993 = vor.u32 %v1989, %v1992
      %v1994 = vrot.slane %v1993, 4
      %v1995 = vrot.slane %v839, 5
      %v1996 = vrot.slane %v835, 6
      %v1997 = vor.u32 %v1995, %v1996
      %v1998 = vsel %vm1985, %v1994, %v1997
      %v1999 = vrot.slane %v1997, 4
      %v2001 = vshrl.u32 %v1967, 16
      %v2003 = vrot.slane %v2001, 5
      %v2004 = vshll.u32 %v1967, 16
      %v2006 = vrot.slane %v2004, 6
      %v2007 = vor.u32 %v2003, %v2006
      %v2008 = vsel %vm1985, %v1999, %v2007
      %v2010 = vshrl.u32 %v1226, 16
      %v2012 = vrot.slane %v2010, 5
      %v2013 = vshll.u32 %v1226, 16
      %v2015 = vrot.slane %v2013, 6
      %v2016 = vor.u32 %v2012, %v2015
      %v2017 = vrot.slane %v2016, 4
      %v2018 = vrot.slane %v863, 5
      %v2019 = vrot.slane %v859, 6
      %v2020 = vor.u32 %v2018, %v2019
      %v2021 = vsel %vm1985, %v2017, %v2020
      %v2022 = vrot.slane %v2020, 4
      %v2024 = vshrl.u32 %v1968, 16
      %v2026 = vrot.slane %v2024, 5
      %v2027 = vshll.u32 %v1968, 16
      %v2029 = vrot.slane %v2027, 6
      %v2030 = vor.u32 %v2026, %v2029
      %v2031 = vsel %vm1985, %v2022, %v2030
      %v2033 = vshrl.u32 %v1227, 16
      %v2035 = vrot.slane %v2033, 5
      %v2036 = vshll.u32 %v1227, 16
      %v2038 = vrot.slane %v2036, 6
      %v2039 = vor.u32 %v2035, %v2038
      %v2040 = vrot.slane %v2039, 4
      %v2041 = vrot.slane %v887, 5
      %v2042 = vrot.slane %v883, 6
      %v2043 = vor.u32 %v2041, %v2042
      %v2044 = vsel %vm1985, %v2040, %v2043
      %v2045 = vrot.slane %v2043, 4
      %v2047 = vshrl.u32 %v1969, 16
      %v2049 = vrot.slane %v2047, 5
      %v2050 = vshll.u32 %v1969, 16
      %v2052 = vrot.slane %v2050, 6
      %v2053 = vor.u32 %v2049, %v2052
      %v2054 = vsel %vm1985, %v2045, %v2053
      %v2056 = vshrl.u32 %v1228, 16
      %v2058 = vrot.slane %v2056, 5
      %v2059 = vshll.u32 %v1228, 16
      %v2061 = vrot.slane %v2059, 6
      %v2062 = vor.u32 %v2058, %v2061
      %v2063 = vrot.slane %v2062, 4
      %v2064 = vrot.slane %v911, 5
      %v2065 = vrot.slane %v907, 6
      %v2066 = vor.u32 %v2064, %v2065
      %v2067 = vsel %vm1985, %v2063, %v2066
      %v2068 = vrot.slane %v2066, 4
      %v2070 = vshrl.u32 %v1970, 16
      %v2072 = vrot.slane %v2070, 5
      %v2073 = vshll.u32 %v1970, 16
      %v2075 = vrot.slane %v2073, 6
      %v2076 = vor.u32 %v2072, %v2075
      %v2077 = vsel %vm1985, %v2068, %v2076
      %v2079 = vshrl.u32 %v1229, 16
      %v2081 = vrot.slane %v2079, 5
      %v2082 = vshll.u32 %v1229, 16
      %v2084 = vrot.slane %v2082, 6
      %v2085 = vor.u32 %v2081, %v2084
      %v2086 = vrot.slane %v2085, 4
      %v2087 = vrot.slane %v935, 5
      %v2088 = vrot.slane %v931, 6
      %v2089 = vor.u32 %v2087, %v2088
      %v2090 = vsel %vm1985, %v2086, %v2089
      %v2091 = vrot.slane %v2089, 4
      %v2093 = vshrl.u32 %v1971, 16
      %v2095 = vrot.slane %v2093, 5
      %v2096 = vshll.u32 %v1971, 16
      %v2098 = vrot.slane %v2096, 6
      %v2099 = vor.u32 %v2095, %v2098
      %v2100 = vsel %vm1985, %v2091, %v2099
      %v2102 = vshrl.u32 %v1230, 16
      %v2104 = vrot.slane %v2102, 5
      %v2105 = vshll.u32 %v1230, 16
      %v2107 = vrot.slane %v2105, 6
      %v2108 = vor.u32 %v2104, %v2107
      %v2109 = vrot.slane %v2108, 4
      %v2110 = vrot.slane %v959, 5
      %v2111 = vrot.slane %v955, 6
      %v2112 = vor.u32 %v2110, %v2111
      %v2113 = vsel %vm1985, %v2109, %v2112
      %v2114 = vrot.slane %v2112, 4
      %v2116 = vshrl.u32 %v1972, 16
      %v2118 = vrot.slane %v2116, 5
      %v2119 = vshll.u32 %v1972, 16
      %v2121 = vrot.slane %v2119, 6
      %v2122 = vor.u32 %v2118, %v2121
      %v2123 = vsel %vm1985, %v2114, %v2122
      %v2125 = vshrl.u32 %v1231, 16
      %v2127 = vrot.slane %v2125, 5
      %v2128 = vshll.u32 %v1231, 16
      %v2130 = vrot.slane %v2128, 6
      %v2131 = vor.u32 %v2127, %v2130
      %v2132 = vrot.slane %v2131, 4
      %v2133 = vrot.slane %v983, 5
      %v2134 = vrot.slane %v979, 6
      %v2135 = vor.u32 %v2133, %v2134
      %v2136 = vsel %vm1985, %v2132, %v2135
      %v2137 = vrot.slane %v2135, 4
      %v2139 = vshrl.u32 %v1973, 16
      %v2141 = vrot.slane %v2139, 5
      %v2142 = vshll.u32 %v1973, 16
      %v2144 = vrot.slane %v2142, 6
      %v2145 = vor.u32 %v2141, %v2144
      %v2146 = vsel %vm1985, %v2137, %v2145
      %v2148 = vshrl.u32 %v1232, 16
      %v2150 = vrot.slane %v2148, 5
      %v2151 = vshll.u32 %v1232, 16
      %v2153 = vrot.slane %v2151, 6
      %v2154 = vor.u32 %v2150, %v2153
      %v2155 = vrot.slane %v2154, 4
      %v2156 = vrot.slane %v1007, 5
      %v2157 = vrot.slane %v1003, 6
      %v2158 = vor.u32 %v2156, %v2157
      %v2159 = vsel %vm1985, %v2155, %v2158
      %v2160 = vrot.slane %v2158, 4
      %v2162 = vshrl.u32 %v1974, 16
      %v2164 = vrot.slane %v2162, 5
      %v2165 = vshll.u32 %v1974, 16
      %v2167 = vrot.slane %v2165, 6
      %v2168 = vor.u32 %v2164, %v2167
      %v2169 = vsel %vm1985, %v2160, %v2168
      %v2171 = vshrl.u32 %v1233, 16
      %v2173 = vrot.slane %v2171, 5
      %v2174 = vshll.u32 %v1233, 16
      %v2176 = vrot.slane %v2174, 6
      %v2177 = vor.u32 %v2173, %v2176
      %v2178 = vrot.slane %v2177, 4
      %v2179 = vrot.slane %v1031, 5
      %v2180 = vrot.slane %v1027, 6
      %v2181 = vor.u32 %v2179, %v2180
      %v2182 = vsel %vm1985, %v2178, %v2181
      %v2183 = vrot.slane %v2181, 4
      %v2185 = vshrl.u32 %v1975, 16
      %v2187 = vrot.slane %v2185, 5
      %v2188 = vshll.u32 %v1975, 16
      %v2190 = vrot.slane %v2188, 6
      %v2191 = vor.u32 %v2187, %v2190
      %v2192 = vsel %vm1985, %v2183, %v2191
      %v2194 = vshrl.u32 %v1234, 16
      %v2196 = vrot.slane %v2194, 5
      %v2197 = vshll.u32 %v1234, 16
      %v2199 = vrot.slane %v2197, 6
      %v2200 = vor.u32 %v2196, %v2199
      %v2201 = vrot.slane %v2200, 4
      %v2202 = vrot.slane %v1055, 5
      %v2203 = vrot.slane %v1051, 6
      %v2204 = vor.u32 %v2202, %v2203
      %v2205 = vsel %vm1985, %v2201, %v2204
      %v2206 = vrot.slane %v2204, 4
      %v2208 = vshrl.u32 %v1976, 16
      %v2210 = vrot.slane %v2208, 5
      %v2211 = vshll.u32 %v1976, 16
      %v2213 = vrot.slane %v2211, 6
      %v2214 = vor.u32 %v2210, %v2213
      %v2215 = vsel %vm1985, %v2206, %v2214
      %v2217 = vshrl.u32 %v1235, 16
      %v2219 = vrot.slane %v2217, 5
      %v2220 = vshll.u32 %v1235, 16
      %v2222 = vrot.slane %v2220, 6
      %v2223 = vor.u32 %v2219, %v2222
      %v2224 = vrot.slane %v2223, 4
      %v2225 = vrot.slane %v1079, 5
      %v2226 = vrot.slane %v1075, 6
      %v2227 = vor.u32 %v2225, %v2226
      %v2228 = vsel %vm1985, %v2224, %v2227
      %v2229 = vrot.slane %v2227, 4
      %v2231 = vshrl.u32 %v1977, 16
      %v2233 = vrot.slane %v2231, 5
      %v2234 = vshll.u32 %v1977, 16
      %v2236 = vrot.slane %v2234, 6
      %v2237 = vor.u32 %v2233, %v2236
      %v2238 = vsel %vm1985, %v2229, %v2237
      %v2240 = vshrl.u32 %v1236, 16
      %v2242 = vrot.slane %v2240, 5
      %v2243 = vshll.u32 %v1236, 16
      %v2245 = vrot.slane %v2243, 6
      %v2246 = vor.u32 %v2242, %v2245
      %v2247 = vrot.slane %v2246, 4
      %v2248 = vrot.slane %v1103, 5
      %v2249 = vrot.slane %v1099, 6
      %v2250 = vor.u32 %v2248, %v2249
      %v2251 = vsel %vm1985, %v2247, %v2250
      %v2252 = vrot.slane %v2250, 4
      %v2254 = vshrl.u32 %v1978, 16
      %v2256 = vrot.slane %v2254, 5
      %v2257 = vshll.u32 %v1978, 16
      %v2259 = vrot.slane %v2257, 6
      %v2260 = vor.u32 %v2256, %v2259
      %v2261 = vsel %vm1985, %v2252, %v2260
      %v2263 = vshrl.u32 %v1237, 16
      %v2265 = vrot.slane %v2263, 5
      %v2266 = vshll.u32 %v1237, 16
      %v2268 = vrot.slane %v2266, 6
      %v2269 = vor.u32 %v2265, %v2268
      %v2270 = vrot.slane %v2269, 4
      %v2271 = vrot.slane %v1127, 5
      %v2272 = vrot.slane %v1123, 6
      %v2273 = vor.u32 %v2271, %v2272
      %v2274 = vsel %vm1985, %v2270, %v2273
      %v2275 = vrot.slane %v2273, 4
      %v2277 = vshrl.u32 %v1979, 16
      %v2279 = vrot.slane %v2277, 5
      %v2280 = vshll.u32 %v1979, 16
      %v2282 = vrot.slane %v2280, 6
      %v2283 = vor.u32 %v2279, %v2282
      %v2284 = vsel %vm1985, %v2275, %v2283
      %v2286 = vshrl.u32 %v1238, 16
      %v2288 = vrot.slane %v2286, 5
      %v2289 = vshll.u32 %v1238, 16
      %v2291 = vrot.slane %v2289, 6
      %v2292 = vor.u32 %v2288, %v2291
      %v2293 = vrot.slane %v2292, 4
      %v2294 = vrot.slane %v1151, 5
      %v2295 = vrot.slane %v1147, 6
      %v2296 = vor.u32 %v2294, %v2295
      %v2297 = vsel %vm1985, %v2293, %v2296
      %v2298 = vrot.slane %v2296, 4
      %v2300 = vshrl.u32 %v1980, 16
      %v2302 = vrot.slane %v2300, 5
      %v2303 = vshll.u32 %v1980, 16
      %v2305 = vrot.slane %v2303, 6
      %v2306 = vor.u32 %v2302, %v2305
      %v2307 = vsel %vm1985, %v2298, %v2306
      %v2309 = vshrl.u32 %v1239, 16
      %v2311 = vrot.slane %v2309, 5
      %v2312 = vshll.u32 %v1239, 16
      %v2314 = vrot.slane %v2312, 6
      %v2315 = vor.u32 %v2311, %v2314
      %v2316 = vrot.slane %v2315, 4
      %v2317 = vrot.slane %v1175, 5
      %v2318 = vrot.slane %v1171, 6
      %v2319 = vor.u32 %v2317, %v2318
      %v2320 = vsel %vm1985, %v2316, %v2319
      %v2321 = vrot.slane %v2319, 4
      %v2323 = vshrl.u32 %v1981, 16
      %v2325 = vrot.slane %v2323, 5
      %v2326 = vshll.u32 %v1981, 16
      %v2328 = vrot.slane %v2326, 6
      %v2329 = vor.u32 %v2325, %v2328
      %v2330 = vsel %vm1985, %v2321, %v2329
      %v2332 = vshrl.u32 %v1240, 16
      %v2334 = vrot.slane %v2332, 5
      %v2335 = vshll.u32 %v1240, 16
      %v2337 = vrot.slane %v2335, 6
      %v2338 = vor.u32 %v2334, %v2337
      %v2339 = vrot.slane %v2338, 4
      %v2340 = vrot.slane %v1199, 5
      %v2341 = vrot.slane %v1195, 6
      %v2342 = vor.u32 %v2340, %v2341
      %v2343 = vsel %vm1985, %v2339, %v2342
      %v2344 = vrot.slane %v2342, 4
      %v2346 = vshrl.u32 %v1982, 16
      %v2348 = vrot.slane %v2346, 5
      %v2349 = vshll.u32 %v1982, 16
      %v2351 = vrot.slane %v2349, 6
      %v2352 = vor.u32 %v2348, %v2351
      %v2353 = vsel %vm1985, %v2344, %v2352
      %s2354 = scalar_lea.vmem %s3, 128
      %v2355 = vld [vmem:[%s2354] sm:$0xf]
      %v2356 = vld [vmem:[%s2354 + $0x4] sm:$0xf]
      %v2357 = vld [vmem:[%s2354 + $0x8] sm:$0xf]
      %v2358 = vld [vmem:[%s2354 + $0xc] sm:$0xf]
      %v2359 = vld [vmem:[%s2354 + $0x10] sm:$0xf]
      %v2360 = vld [vmem:[%s2354 + $0x14] sm:$0xf]
      %v2361 = vld [vmem:[%s2354 + $0x18] sm:$0xf]
      %v2362 = vld [vmem:[%s2354 + $0x1c] sm:$0xf]
      %v2363 = vld [vmem:[%s2354 + $0x20] sm:$0xf]
      %v2364 = vld [vmem:[%s2354 + $0x24] sm:$0xf]
      %v2365 = vld [vmem:[%s2354 + $0x28] sm:$0xf]
      %v2366 = vld [vmem:[%s2354 + $0x2c] sm:$0xf]
      %v2367 = vld [vmem:[%s2354 + $0x30] sm:$0xf]
      %v2368 = vld [vmem:[%s2354 + $0x34] sm:$0xf]
      %v2369 = vld [vmem:[%s2354 + $0x38] sm:$0xf]
      %v2370 = vld [vmem:[%s2354 + $0x3c] sm:$0xf]
      %v2371 = vunpack.c.l.b16 %v1998
      %v2372 = vunpack.c.l.b16 %v2008
      %v2373 = vunpack.c.l.b16 %v2021
      %v2374 = vunpack.c.l.b16 %v2031
      %v2375 = vunpack.c.l.b16 %v2044
      %v2376 = vunpack.c.l.b16 %v2054
      %v2377 = vunpack.c.l.b16 %v2067
      %v2378 = vunpack.c.l.b16 %v2077
      %v2379 = vunpack.c.l.b16 %v2090
      %v2380 = vunpack.c.l.b16 %v2100
      %v2381 = vunpack.c.l.b16 %v2113
      %v2382 = vunpack.c.l.b16 %v2123
      %v2383 = vunpack.c.l.b16 %v2136
      %v2384 = vunpack.c.l.b16 %v2146
      %v2385 = vunpack.c.l.b16 %v2159
      %v2386 = vunpack.c.l.b16 %v2169
      %v2387 = vunpack.c.l.b16 %v2182
      %v2388 = vunpack.c.l.b16 %v2192
      %v2389 = vunpack.c.l.b16 %v2205
      %v2390 = vunpack.c.l.b16 %v2215
      %v2391 = vunpack.c.l.b16 %v2228
      %v2392 = vunpack.c.l.b16 %v2238
      %v2393 = vunpack.c.l.b16 %v2251
      %v2394 = vunpack.c.l.b16 %v2261
      %v2395 = vunpack.c.l.b16 %v2274
      %v2396 = vunpack.c.l.b16 %v2284
      %v2397 = vunpack.c.l.b16 %v2297
      %v2398 = vunpack.c.l.b16 %v2307
      %v2399 = vunpack.c.l.b16 %v2320
      %v2400 = vunpack.c.l.b16 %v2330
      %v2401 = vunpack.c.l.b16 %v2343
      %v2402 = vunpack.c.l.b16 %v2353
      %v2403 = vpack.c.b16 %v2372, %v2371
      %v2404 = vpack.c.b16 %v2374, %v2373
      %v2405 = vpack.c.b16 %v2376, %v2375
      %v2406 = vpack.c.b16 %v2378, %v2377
      %v2407 = vpack.c.b16 %v2380, %v2379
      %v2408 = vpack.c.b16 %v2382, %v2381
      %v2409 = vpack.c.b16 %v2384, %v2383
      %v2410 = vpack.c.b16 %v2386, %v2385
      %v2411 = vpack.c.b16 %v2388, %v2387
      %v2412 = vpack.c.b16 %v2390, %v2389
      %v2413 = vpack.c.b16 %v2392, %v2391
      %v2414 = vpack.c.b16 %v2394, %v2393
      %v2415 = vpack.c.b16 %v2396, %v2395
      %v2416 = vpack.c.b16 %v2398, %v2397
      %v2417 = vpack.c.b16 %v2400, %v2399
      %v2418 = vpack.c.b16 %v2402, %v2401
      %v2451 = vunpack.c.l.b16 %v2355
      %v2452 = vunpack.c.l.b16 %v2356
      %v2453 = vunpack.c.l.b16 %v2357
      %v2454 = vunpack.c.l.b16 %v2358
      %v2455 = vunpack.c.l.b16 %v2359
      %v2456 = vunpack.c.l.b16 %v2360
      %v2457 = vunpack.c.l.b16 %v2361
      %v2458 = vunpack.c.l.b16 %v2362
      %v2459 = vunpack.c.l.b16 %v2363
      %v2460 = vunpack.c.l.b16 %v2364
      %v2461 = vunpack.c.l.b16 %v2365
      %v2462 = vunpack.c.l.b16 %v2366
      %v2463 = vunpack.c.l.b16 %v2367
      %v2464 = vunpack.c.l.b16 %v2368
      %v2465 = vunpack.c.l.b16 %v2369
      %v2466 = vunpack.c.l.b16 %v2370
      %v2467 = vpack.c.b16 %v2452, %v2451
      %v2468 = vpack.c.b16 %v2454, %v2453
      %v2469 = vpack.c.b16 %v2456, %v2455
      %v2470 = vpack.c.b16 %v2458, %v2457
      %v2471 = vpack.c.b16 %v2460, %v2459
      %v2472 = vpack.c.b16 %v2462, %v2461
      %v2473 = vpack.c.b16 %v2464, %v2463
      %v2474 = vpack.c.b16 %v2466, %v2465
      %2483 = vmatprep.subr.bf16.mxu0 0
      %2484 = vmatpush1.bf16.msra.mxu0 %v2474
      %2485 = vmatprep.subr.bf16.mxu0 0
      %2486 = vmatpush1.bf16.msra.mxu0 %v2473
      %2487 = vmatprep.subr.bf16.mxu0 0
      %2488 = vmatpush1.bf16.msra.mxu0 %v2472
      %2489 = vmatprep.subr.bf16.mxu0 0
      %2490 = vmatpush1.bf16.msra.mxu0 %v2471
      %2491 = vmatprep.subr.bf16.mxu0 0
      %2492 = vmatpush1.bf16.msra.mxu0 %v2470
      %2493 = vmatprep.subr.bf16.mxu0 0
      %2494 = vmatpush1.bf16.msra.mxu0 %v2469
      %2495 = vmatprep.subr.bf16.mxu0 0
      %2496 = vmatpush1.bf16.msra.mxu0 %v2468
      %2497 = vmatprep.subr.bf16.mxu0 0
      %2498 = vmatpush1.bf16.msra.mxu0 %v2467
      %2499 = vmatprep.subr.bf16.mxu0 0
      %2500 = vmatpush2.bf16.msra.mxu0 0
      %2501 = vmatprep.subr.bf16.mxu0 0
      %2502 = vmatpush2.bf16.msra.mxu0 0
      %2503 = vmatprep.subr.bf16.mxu0 0
      %2504 = vmatpush2.bf16.msra.mxu0 0
      %2505 = vmatprep.subr.bf16.mxu0 0
      %2506 = vmatpush2.bf16.msra.mxu0 0
      %2507 = vmatprep.subr.bf16.mxu0 0
      %2508 = vmatpush2.bf16.msra.mxu0 0
      %2509 = vmatprep.subr.bf16.mxu0 0
      %2510 = vmatpush2.bf16.msra.mxu0 0
      %2511 = vmatprep.subr.bf16.mxu0 0
      %2512 = vmatpush2.bf16.msra.mxu0 0
      %2513 = vmatprep.subr.bf16.mxu0 0
      %2514 = vmatpush2.bf16.msra.mxu0 0
      %2515 = vmatprep.mubr.bf16.mxu0 0
      %2516 = vmatmul.mubr.bf16.gmra.mxu0 %v2403
      %v2517 = vpop.f32.mrf.mxu0
      %v2518 = vadd.f32 0.0, %v2517
      %v2519 = vpop.f32.mrf.mxu0
      %v2520 = vpop.f32.mrf.mxu0
      %v2521 = vadd.f32 0.0, %v2520
      %v2522 = vpop.f32.mrf.mxu0
      %2523 = vmatprep.mubr.bf16.mxu0 0
      %2524 = vmatmul.mubr.bf16.gmra.mxu0 %v2404
      %v2525 = vpop.f32.mrf.mxu0
      %v2526 = vadd.f32 0.0, %v2525
      %v2527 = vpop.f32.mrf.mxu0
      %v2528 = vpop.f32.mrf.mxu0
      %v2529 = vadd.f32 0.0, %v2528
      %v2530 = vpop.f32.mrf.mxu0
      %2531 = vmatprep.mubr.bf16.mxu0 0
      %2532 = vmatmul.mubr.bf16.gmra.mxu0 %v2405
      %v2533 = vpop.f32.mrf.mxu0
      %v2534 = vadd.f32 0.0, %v2533
      %v2535 = vpop.f32.mrf.mxu0
      %v2536 = vpop.f32.mrf.mxu0
      %v2537 = vadd.f32 0.0, %v2536
      %v2538 = vpop.f32.mrf.mxu0
      %2539 = vmatprep.mubr.bf16.mxu0 0
      %2540 = vmatmul.mubr.bf16.gmra.mxu0 %v2406
      %v2541 = vpop.f32.mrf.mxu0
      %v2542 = vadd.f32 0.0, %v2541
      %v2543 = vpop.f32.mrf.mxu0
      %v2544 = vpop.f32.mrf.mxu0
      %v2545 = vadd.f32 0.0, %v2544
      %v2546 = vpop.f32.mrf.mxu0
      %2547 = vmatprep.mubr.bf16.mxu0 0
      %2548 = vmatmul.mubr.bf16.gmra.mxu0 %v2407
      %v2549 = vpop.f32.mrf.mxu0
      %v2550 = vadd.f32 0.0, %v2549
      %v2551 = vpop.f32.mrf.mxu0
      %v2552 = vpop.f32.mrf.mxu0
      %v2553 = vadd.f32 0.0, %v2552
      %v2554 = vpop.f32.mrf.mxu0
      %2555 = vmatprep.mubr.bf16.mxu0 0
      %2556 = vmatmul.mubr.bf16.gmra.mxu0 %v2408
      %v2557 = vpop.f32.mrf.mxu0
      %v2558 = vadd.f32 0.0, %v2557
      %v2559 = vpop.f32.mrf.mxu0
      %v2560 = vpop.f32.mrf.mxu0
      %v2561 = vadd.f32 0.0, %v2560
      %v2562 = vpop.f32.mrf.mxu0
      %2563 = vmatprep.mubr.bf16.mxu0 0
      %2564 = vmatmul.mubr.bf16.gmra.mxu0 %v2409
      %v2565 = vpop.f32.mrf.mxu0
      %v2566 = vadd.f32 0.0, %v2565
      %v2567 = vpop.f32.mrf.mxu0
      %v2568 = vpop.f32.mrf.mxu0
      %v2569 = vadd.f32 0.0, %v2568
      %v2570 = vpop.f32.mrf.mxu0
      %2571 = vmatprep.mubr.bf16.mxu0 0
      %2572 = vmatmul.mubr.bf16.gmra.mxu0 %v2410
      %v2573 = vpop.f32.mrf.mxu0
      %v2574 = vadd.f32 0.0, %v2573
      %v2575 = vpop.f32.mrf.mxu0
      %v2576 = vpop.f32.mrf.mxu0
      %v2577 = vadd.f32 0.0, %v2576
      %v2578 = vpop.f32.mrf.mxu0
      %2579 = vmatprep.mubr.bf16.mxu0 0
      %2580 = vmatmul.mubr.bf16.gmra.mxu0 %v2411
      %v2581 = vpop.f32.mrf.mxu0
      %v2582 = vadd.f32 0.0, %v2581
      %v2583 = vpop.f32.mrf.mxu0
      %v2584 = vpop.f32.mrf.mxu0
      %v2585 = vadd.f32 0.0, %v2584
      %v2586 = vpop.f32.mrf.mxu0
      %2587 = vmatprep.mubr.bf16.mxu0 0
      %2588 = vmatmul.mubr.bf16.gmra.mxu0 %v2412
      %v2589 = vpop.f32.mrf.mxu0
      %v2590 = vadd.f32 0.0, %v2589
      %v2591 = vpop.f32.mrf.mxu0
      %v2592 = vpop.f32.mrf.mxu0
      %v2593 = vadd.f32 0.0, %v2592
      %v2594 = vpop.f32.mrf.mxu0
      %2595 = vmatprep.mubr.bf16.mxu0 0
      %2596 = vmatmul.mubr.bf16.gmra.mxu0 %v2413
      %v2597 = vpop.f32.mrf.mxu0
      %v2598 = vadd.f32 0.0, %v2597
      %v2599 = vpop.f32.mrf.mxu0
      %v2600 = vpop.f32.mrf.mxu0
      %v2601 = vadd.f32 0.0, %v2600
      %v2602 = vpop.f32.mrf.mxu0
      %2603 = vmatprep.mubr.bf16.mxu0 0
      %2604 = vmatmul.mubr.bf16.gmra.mxu0 %v2414
      %v2605 = vpop.f32.mrf.mxu0
      %v2606 = vadd.f32 0.0, %v2605
      %v2607 = vpop.f32.mrf.mxu0
      %v2608 = vpop.f32.mrf.mxu0
      %v2609 = vadd.f32 0.0, %v2608
      %v2610 = vpop.f32.mrf.mxu0
      %2611 = vmatprep.mubr.bf16.mxu0 0
      %2612 = vmatmul.mubr.bf16.gmra.mxu0 %v2415
      %v2613 = vpop.f32.mrf.mxu0
      %v2614 = vadd.f32 0.0, %v2613
      %v2615 = vpop.f32.mrf.mxu0
      %v2616 = vpop.f32.mrf.mxu0
      %v2617 = vadd.f32 0.0, %v2616
      %v2618 = vpop.f32.mrf.mxu0
      %2619 = vmatprep.mubr.bf16.mxu0 0
      %2620 = vmatmul.mubr.bf16.gmra.mxu0 %v2416
      %v2621 = vpop.f32.mrf.mxu0
      %v2622 = vadd.f32 0.0, %v2621
      %v2623 = vpop.f32.mrf.mxu0
      %v2624 = vpop.f32.mrf.mxu0
      %v2625 = vadd.f32 0.0, %v2624
      %v2626 = vpop.f32.mrf.mxu0
      %2627 = vmatprep.mubr.bf16.mxu0 0
      %2628 = vmatmul.mubr.bf16.gmra.mxu0 %v2417
      %v2629 = vpop.f32.mrf.mxu0
      %v2630 = vadd.f32 0.0, %v2629
      %v2631 = vpop.f32.mrf.mxu0
      %v2632 = vpop.f32.mrf.mxu0
      %v2633 = vadd.f32 0.0, %v2632
      %v2634 = vpop.f32.mrf.mxu0
      %2635 = vmatprep.mubr.bf16.mxu0 0
      %2636 = vmatmul.mubr.bf16.gmra.mxu0 %v2418
      %v2637 = vpop.f32.mrf.mxu0
      %v2638 = vadd.f32 0.0, %v2637
      %v2639 = vpop.f32.mrf.mxu0
      %v2640 = vpop.f32.mrf.mxu0
      %v2641 = vadd.f32 0.0, %v2640
      %v2642 = vpop.f32.mrf.mxu0
      %2643 = vdwg.mxu0
      %v2644 = vadd.f32 %v1841, %v2518
      %v2645 = vadd.f32 %v1844, %v2521
      %v2646 = vadd.f32 %v1849, %v2526
      %v2647 = vadd.f32 %v1852, %v2529
      %v2648 = vadd.f32 %v1857, %v2534
      %v2649 = vadd.f32 %v1860, %v2537
      %v2650 = vadd.f32 %v1865, %v2542
      %v2651 = vadd.f32 %v1868, %v2545
      %v2652 = vadd.f32 %v1873, %v2550
      %v2653 = vadd.f32 %v1876, %v2553
      %v2654 = vadd.f32 %v1881, %v2558
      %v2655 = vadd.f32 %v1884, %v2561
      %v2656 = vadd.f32 %v1889, %v2566
      %v2657 = vadd.f32 %v1892, %v2569
      %v2658 = vadd.f32 %v1897, %v2574
      %v2659 = vadd.f32 %v1900, %v2577
      %v2660 = vadd.f32 %v1905, %v2582
      %v2661 = vadd.f32 %v1908, %v2585
      %v2662 = vadd.f32 %v1913, %v2590
      %v2663 = vadd.f32 %v1916, %v2593
      %v2664 = vadd.f32 %v1921, %v2598
      %v2665 = vadd.f32 %v1924, %v2601
      %v2666 = vadd.f32 %v1929, %v2606
      %v2667 = vadd.f32 %v1932, %v2609
      %v2668 = vadd.f32 %v1937, %v2614
      %v2669 = vadd.f32 %v1940, %v2617
      %v2670 = vadd.f32 %v1945, %v2622
      %v2671 = vadd.f32 %v1948, %v2625
      %v2672 = vadd.f32 %v1953, %v2630
      %v2673 = vadd.f32 %v1956, %v2633
      %v2674 = vadd.f32 %v1961, %v2638
      %v2675 = vadd.f32 %v1964, %v2641
      %v2676 = vld [vmem:[%s725] sm:$0xf]
      %v2677 = vld [vmem:[%s725 + $0x4] sm:$0xf]
      %v2678 = vld [vmem:[%s725 + $0x8] sm:$0x1]
      %v2679 = vld [vmem:[%s725 + $0xc] sm:$0xf]
      %v2680 = vld [vmem:[%s725 + $0x10] sm:$0xf]
      %v2681 = vld [vmem:[%s725 + $0x14] sm:$0x1]
      %v2682 = vld [vmem:[%s725 + $0x18] sm:$0xf]
      %v2683 = vld [vmem:[%s725 + $0x1c] sm:$0xf]
      %v2684 = vld [vmem:[%s725 + $0x20] sm:$0x1]
      %v2685 = vld [vmem:[%s725 + $0x24] sm:$0xf]
      %v2686 = vld [vmem:[%s725 + $0x28] sm:$0xf]
      %v2687 = vld [vmem:[%s725 + $0x2c] sm:$0x1]
      %v2688 = vld [vmem:[%s725 + $0x30] sm:$0xf]
      %v2689 = vld [vmem:[%s725 + $0x34] sm:$0xf]
      %v2690 = vld [vmem:[%s725 + $0x38] sm:$0x1]
      %v2691 = vld [vmem:[%s725 + $0x3c] sm:$0xf]
      %v2692 = vld [vmem:[%s725 + $0x40] sm:$0xf]
      %v2693 = vld [vmem:[%s725 + $0x44] sm:$0x1]
      %v2694 = vld [vmem:[%s725 + $0x48] sm:$0xf]
      %v2695 = vld [vmem:[%s725 + $0x4c] sm:$0xf]
      %v2696 = vld [vmem:[%s725 + $0x50] sm:$0x1]
      %v2697 = vld [vmem:[%s725 + $0x54] sm:$0xf]
      %v2698 = vld [vmem:[%s725 + $0x58] sm:$0xf]
      %v2699 = vld [vmem:[%s725 + $0x5c] sm:$0x1]
      %v2700 = vld [vmem:[%s725 + $0x60] sm:$0xf]
      %v2701 = vld [vmem:[%s725 + $0x64] sm:$0xf]
      %v2702 = vld [vmem:[%s725 + $0x68] sm:$0x1]
      %v2703 = vld [vmem:[%s725 + $0x6c] sm:$0xf]
      %v2704 = vld [vmem:[%s725 + $0x70] sm:$0xf]
      %v2705 = vld [vmem:[%s725 + $0x74] sm:$0x1]
      %v2706 = vld [vmem:[%s725 + $0x78] sm:$0xf]
      %v2707 = vld [vmem:[%s725 + $0x7c] sm:$0xf]
      %v2708 = vld [vmem:[%s725 + $0x80] sm:$0x1]
      %v2709 = vld [vmem:[%s725 + $0x84] sm:$0xf]
      %v2710 = vld [vmem:[%s725 + $0x88] sm:$0xf]
      %v2711 = vld [vmem:[%s725 + $0x8c] sm:$0x1]
      %v2712 = vld [vmem:[%s725 + $0x90] sm:$0xf]
      %v2713 = vld [vmem:[%s725 + $0x94] sm:$0xf]
      %v2714 = vld [vmem:[%s725 + $0x98] sm:$0x1]
      %v2715 = vld [vmem:[%s725 + $0x9c] sm:$0xf]
      %v2716 = vld [vmem:[%s725 + $0xa0] sm:$0xf]
      %v2717 = vld [vmem:[%s725 + $0xa4] sm:$0x1]
      %v2718 = vld [vmem:[%s725 + $0xa8] sm:$0xf]
      %v2719 = vld [vmem:[%s725 + $0xac] sm:$0xf]
      %v2720 = vld [vmem:[%s725 + $0xb0] sm:$0x1]
      %v2721 = vld [vmem:[%s725 + $0xb4] sm:$0xf]
      %v2722 = vld [vmem:[%s725 + $0xb8] sm:$0xf]
      %v2723 = vld [vmem:[%s725 + $0xbc] sm:$0x1]
      %v2725 = vshrl.u32 %v2676, 16
      %v2727 = vrot.slane %v2725, 4
      %v2728 = vshll.u32 %v2676, 16
      %v2730 = vrot.slane %v2728, 5
      %v2731 = vor.u32 %v2727, %v2730
      %v2732 = vrot.slane %v2731, 4
      %v2734 = vshll.u32 %v2677, 16
      %v2736 = vrot.slane %v2734, 5
      %v2737 = vsel %vm824, %v2732, %v2736
      %v2738 = vshrl.u32 %v2677, 16
      %v2740 = vrot.slane %v2738, 4
      %v2741 = vor.u32 %v2740, %v2736
      %v2742 = vrot.slane %v2741, 4
      %v2744 = vshll.u32 %v2678, 16
      %v2746 = vrot.slane %v2744, 5
      %v2747 = vsel %vm824, %v2742, %v2746
      %v2749 = vshrl.u32 %v2679, 16
      %v2751 = vrot.slane %v2749, 4
      %v2752 = vshll.u32 %v2679, 16
      %v2754 = vrot.slane %v2752, 5
      %v2755 = vor.u32 %v2751, %v2754
      %v2756 = vrot.slane %v2755, 4
      %v2758 = vshll.u32 %v2680, 16
      %v2760 = vrot.slane %v2758, 5
      %v2761 = vsel %vm824, %v2756, %v2760
      %v2762 = vshrl.u32 %v2680, 16
      %v2764 = vrot.slane %v2762, 4
      %v2765 = vor.u32 %v2764, %v2760
      %v2766 = vrot.slane %v2765, 4
      %v2768 = vshll.u32 %v2681, 16
      %v2770 = vrot.slane %v2768, 5
      %v2771 = vsel %vm824, %v2766, %v2770
      %v2773 = vshrl.u32 %v2682, 16
      %v2775 = vrot.slane %v2773, 4
      %v2776 = vshll.u32 %v2682, 16
      %v2778 = vrot.slane %v2776, 5
      %v2779 = vor.u32 %v2775, %v2778
      %v2780 = vrot.slane %v2779, 4
      %v2782 = vshll.u32 %v2683, 16
      %v2784 = vrot.slane %v2782, 5
      %v2785 = vsel %vm824, %v2780, %v2784
      %v2786 = vshrl.u32 %v2683, 16
      %v2788 = vrot.slane %v2786, 4
      %v2789 = vor.u32 %v2788, %v2784
      %v2790 = vrot.slane %v2789, 4
      %v2792 = vshll.u32 %v2684, 16
      %v2794 = vrot.slane %v2792, 5
      %v2795 = vsel %vm824, %v2790, %v2794
      %v2797 = vshrl.u32 %v2685, 16
      %v2799 = vrot.slane %v2797, 4
      %v2800 = vshll.u32 %v2685, 16
      %v2802 = vrot.slane %v2800, 5
      %v2803 = vor.u32 %v2799, %v2802
      %v2804 = vrot.slane %v2803, 4
      %v2806 = vshll.u32 %v2686, 16
      %v2808 = vrot.slane %v2806, 5
      %v2809 = vsel %vm824, %v2804, %v2808
      %v2810 = vshrl.u32 %v2686, 16
      %v2812 = vrot.slane %v2810, 4
      %v2813 = vor.u32 %v2812, %v2808
      %v2814 = vrot.slane %v2813, 4
      %v2816 = vshll.u32 %v2687, 16
      %v2818 = vrot.slane %v2816, 5
      %v2819 = vsel %vm824, %v2814, %v2818
      %v2821 = vshrl.u32 %v2688, 16
      %v2823 = vrot.slane %v2821, 4
      %v2824 = vshll.u32 %v2688, 16
      %v2826 = vrot.slane %v2824, 5
      %v2827 = vor.u32 %v2823, %v2826
      %v2828 = vrot.slane %v2827, 4
      %v2830 = vshll.u32 %v2689, 16
      %v2832 = vrot.slane %v2830, 5
      %v2833 = vsel %vm824, %v2828, %v2832
      %v2834 = vshrl.u32 %v2689, 16
      %v2836 = vrot.slane %v2834, 4
      %v2837 = vor.u32 %v2836, %v2832
      %v2838 = vrot.slane %v2837, 4
      %v2840 = vshll.u32 %v2690, 16
      %v2842 = vrot.slane %v2840, 5
      %v2843 = vsel %vm824, %v2838, %v2842
      %v2845 = vshrl.u32 %v2691, 16
      %v2847 = vrot.slane %v2845, 4
      %v2848 = vshll.u32 %v2691, 16
      %v2850 = vrot.slane %v2848, 5
      %v2851 = vor.u32 %v2847, %v2850
      %v2852 = vrot.slane %v2851, 4
      %v2854 = vshll.u32 %v2692, 16
      %v2856 = vrot.slane %v2854, 5
      %v2857 = vsel %vm824, %v2852, %v2856
      %v2858 = vshrl.u32 %v2692, 16
      %v2860 = vrot.slane %v2858, 4
      %v2861 = vor.u32 %v2860, %v2856
      %v2862 = vrot.slane %v2861, 4
      %v2864 = vshll.u32 %v2693, 16
      %v2866 = vrot.slane %v2864, 5
      %v2867 = vsel %vm824, %v2862, %v2866
      %v2869 = vshrl.u32 %v2694, 16
      %v2871 = vrot.slane %v2869, 4
      %v2872 = vshll.u32 %v2694, 16
      %v2874 = vrot.slane %v2872, 5
      %v2875 = vor.u32 %v2871, %v2874
      %v2876 = vrot.slane %v2875, 4
      %v2878 = vshll.u32 %v2695, 16
      %v2880 = vrot.slane %v2878, 5
      %v2881 = vsel %vm824, %v2876, %v2880
      %v2882 = vshrl.u32 %v2695, 16
      %v2884 = vrot.slane %v2882, 4
      %v2885 = vor.u32 %v2884, %v2880
      %v2886 = vrot.slane %v2885, 4
      %v2888 = vshll.u32 %v2696, 16
      %v2890 = vrot.slane %v2888, 5
      %v2891 = vsel %vm824, %v2886, %v2890
      %v2893 = vshrl.u32 %v2697, 16
      %v2895 = vrot.slane %v2893, 4
      %v2896 = vshll.u32 %v2697, 16
      %v2898 = vrot.slane %v2896, 5
      %v2899 = vor.u32 %v2895, %v2898
      %v2900 = vrot.slane %v2899, 4
      %v2902 = vshll.u32 %v2698, 16
      %v2904 = vrot.slane %v2902, 5
      %v2905 = vsel %vm824, %v2900, %v2904
      %v2906 = vshrl.u32 %v2698, 16
      %v2908 = vrot.slane %v2906, 4
      %v2909 = vor.u32 %v2908, %v2904
      %v2910 = vrot.slane %v2909, 4
      %v2912 = vshll.u32 %v2699, 16
      %v2914 = vrot.slane %v2912, 5
      %v2915 = vsel %vm824, %v2910, %v2914
      %v2917 = vshrl.u32 %v2700, 16
      %v2919 = vrot.slane %v2917, 4
      %v2920 = vshll.u32 %v2700, 16
      %v2922 = vrot.slane %v2920, 5
      %v2923 = vor.u32 %v2919, %v2922
      %v2924 = vrot.slane %v2923, 4
      %v2926 = vshll.u32 %v2701, 16
      %v2928 = vrot.slane %v2926, 5
      %v2929 = vsel %vm824, %v2924, %v2928
      %v2930 = vshrl.u32 %v2701, 16
      %v2932 = vrot.slane %v2930, 4
      %v2933 = vor.u32 %v2932, %v2928
      %v2934 = vrot.slane %v2933, 4
      %v2936 = vshll.u32 %v2702, 16
      %v2938 = vrot.slane %v2936, 5
      %v2939 = vsel %vm824, %v2934, %v2938
      %v2941 = vshrl.u32 %v2703, 16
      %v2943 = vrot.slane %v2941, 4
      %v2944 = vshll.u32 %v2703, 16
      %v2946 = vrot.slane %v2944, 5
      %v2947 = vor.u32 %v2943, %v2946
      %v2948 = vrot.slane %v2947, 4
      %v2950 = vshll.u32 %v2704, 16
      %v2952 = vrot.slane %v2950, 5
      %v2953 = vsel %vm824, %v2948, %v2952
      %v2954 = vshrl.u32 %v2704, 16
      %v2956 = vrot.slane %v2954, 4
      %v2957 = vor.u32 %v2956, %v2952
      %v2958 = vrot.slane %v2957, 4
      %v2960 = vshll.u32 %v2705, 16
      %v2962 = vrot.slane %v2960, 5
      %v2963 = vsel %vm824, %v2958, %v2962
      %v2965 = vshrl.u32 %v2706, 16
      %v2967 = vrot.slane %v2965, 4
      %v2968 = vshll.u32 %v2706, 16
      %v2970 = vrot.slane %v2968, 5
      %v2971 = vor.u32 %v2967, %v2970
      %v2972 = vrot.slane %v2971, 4
      %v2974 = vshll.u32 %v2707, 16
      %v2976 = vrot.slane %v2974, 5
      %v2977 = vsel %vm824, %v2972, %v2976
      %v2978 = vshrl.u32 %v2707, 16
      %v2980 = vrot.slane %v2978, 4
      %v2981 = vor.u32 %v2980, %v2976
      %v2982 = vrot.slane %v2981, 4
      %v2984 = vshll.u32 %v2708, 16
      %v2986 = vrot.slane %v2984, 5
      %v2987 = vsel %vm824, %v2982, %v2986
      %v2989 = vshrl.u32 %v2709, 16
      %v2991 = vrot.slane %v2989, 4
      %v2992 = vshll.u32 %v2709, 16
      %v2994 = vrot.slane %v2992, 5
      %v2995 = vor.u32 %v2991, %v2994
      %v2996 = vrot.slane %v2995, 4
      %v2998 = vshll.u32 %v2710, 16
      %v3000 = vrot.slane %v2998, 5
      %v3001 = vsel %vm824, %v2996, %v3000
      %v3002 = vshrl.u32 %v2710, 16
      %v3004 = vrot.slane %v3002, 4
      %v3005 = vor.u32 %v3004, %v3000
      %v3006 = vrot.slane %v3005, 4
      %v3008 = vshll.u32 %v2711, 16
      %v3010 = vrot.slane %v3008, 5
      %v3011 = vsel %vm824, %v3006, %v3010
      %v3013 = vshrl.u32 %v2712, 16
      %v3015 = vrot.slane %v3013, 4
      %v3016 = vshll.u32 %v2712, 16
      %v3018 = vrot.slane %v3016, 5
      %v3019 = vor.u32 %v3015, %v3018
      %v3020 = vrot.slane %v3019, 4
      %v3022 = vshll.u32 %v2713, 16
      %v3024 = vrot.slane %v3022, 5
      %v3025 = vsel %vm824, %v3020, %v3024
      %v3026 = vshrl.u32 %v2713, 16
      %v3028 = vrot.slane %v3026, 4
      %v3029 = vor.u32 %v3028, %v3024
      %v3030 = vrot.slane %v3029, 4
      %v3032 = vshll.u32 %v2714, 16
      %v3034 = vrot.slane %v3032, 5
      %v3035 = vsel %vm824, %v3030, %v3034
      %v3037 = vshrl.u32 %v2715, 16
      %v3039 = vrot.slane %v3037, 4
      %v3040 = vshll.u32 %v2715, 16
      %v3042 = vrot.slane %v3040, 5
      %v3043 = vor.u32 %v3039, %v3042
      %v3044 = vrot.slane %v3043, 4
      %v3046 = vshll.u32 %v2716, 16
      %v3048 = vrot.slane %v3046, 5
      %v3049 = vsel %vm824, %v3044, %v3048
      %v3050 = vshrl.u32 %v2716, 16
      %v3052 = vrot.slane %v3050, 4
      %v3053 = vor.u32 %v3052, %v3048
      %v3054 = vrot.slane %v3053, 4
      %v3056 = vshll.u32 %v2717, 16
      %v3058 = vrot.slane %v3056, 5
      %v3059 = vsel %vm824, %v3054, %v3058
      %v3061 = vshrl.u32 %v2718, 16
      %v3063 = vrot.slane %v3061, 4
      %v3064 = vshll.u32 %v2718, 16
      %v3066 = vrot.slane %v3064, 5
      %v3067 = vor.u32 %v3063, %v3066
      %v3068 = vrot.slane %v3067, 4
      %v3070 = vshll.u32 %v2719, 16
      %v3072 = vrot.slane %v3070, 5
      %v3073 = vsel %vm824, %v3068, %v3072
      %v3074 = vshrl.u32 %v2719, 16
      %v3076 = vrot.slane %v3074, 4
      %v3077 = vor.u32 %v3076, %v3072
      %v3078 = vrot.slane %v3077, 4
      %v3080 = vshll.u32 %v2720, 16
      %v3082 = vrot.slane %v3080, 5
      %v3083 = vsel %vm824, %v3078, %v3082
      %v3085 = vshrl.u32 %v2721, 16
      %v3087 = vrot.slane %v3085, 4
      %v3088 = vshll.u32 %v2721, 16
      %v3090 = vrot.slane %v3088, 5
      %v3091 = vor.u32 %v3087, %v3090
      %v3092 = vrot.slane %v3091, 4
      %v3094 = vshll.u32 %v2722, 16
      %v3096 = vrot.slane %v3094, 5
      %v3097 = vsel %vm824, %v3092, %v3096
      %v3098 = vshrl.u32 %v2722, 16
      %v3100 = vrot.slane %v3098, 4
      %v3101 = vor.u32 %v3100, %v3096
      %v3102 = vrot.slane %v3101, 4
      %v3104 = vshll.u32 %v2723, 16
      %v3106 = vrot.slane %v3104, 5
      %v3107 = vsel %vm824, %v3102, %v3106
      %s3108 = scalar_lea.vmem %s3, 192
      %v3109 = vld [vmem:[%s3108] sm:$0xf]
      %v3110 = vld [vmem:[%s3108 + $0x4] sm:$0xf]
      %v3111 = vld [vmem:[%s3108 + $0x8] sm:$0xf]
      %v3112 = vld [vmem:[%s3108 + $0xc] sm:$0xf]
      %v3113 = vld [vmem:[%s3108 + $0x10] sm:$0xf]
      %v3114 = vld [vmem:[%s3108 + $0x14] sm:$0xf]
      %v3115 = vld [vmem:[%s3108 + $0x18] sm:$0xf]
      %v3116 = vld [vmem:[%s3108 + $0x1c] sm:$0xf]
      %v3117 = vld [vmem:[%s3108 + $0x20] sm:$0xf]
      %v3118 = vld [vmem:[%s3108 + $0x24] sm:$0xf]
      %v3119 = vld [vmem:[%s3108 + $0x28] sm:$0xf]
      %v3120 = vld [vmem:[%s3108 + $0x2c] sm:$0xf]
      %v3121 = vld [vmem:[%s3108 + $0x30] sm:$0xf]
      %v3122 = vld [vmem:[%s3108 + $0x34] sm:$0xf]
      %v3123 = vld [vmem:[%s3108 + $0x38] sm:$0xf]
      %v3124 = vld [vmem:[%s3108 + $0x3c] sm:$0xf]
      %v3125 = vunpack.c.l.b16 %v2737
      %v3126 = vunpack.c.l.b16 %v2747
      %v3127 = vunpack.c.l.b16 %v2761
      %v3128 = vunpack.c.l.b16 %v2771
      %v3129 = vunpack.c.l.b16 %v2785
      %v3130 = vunpack.c.l.b16 %v2795
      %v3131 = vunpack.c.l.b16 %v2809
      %v3132 = vunpack.c.l.b16 %v2819
      %v3133 = vunpack.c.l.b16 %v2833
      %v3134 = vunpack.c.l.b16 %v2843
      %v3135 = vunpack.c.l.b16 %v2857
      %v3136 = vunpack.c.l.b16 %v2867
      %v3137 = vunpack.c.l.b16 %v2881
      %v3138 = vunpack.c.l.b16 %v2891
      %v3139 = vunpack.c.l.b16 %v2905
      %v3140 = vunpack.c.l.b16 %v2915
      %v3141 = vunpack.c.l.b16 %v2929
      %v3142 = vunpack.c.l.b16 %v2939
      %v3143 = vunpack.c.l.b16 %v2953
      %v3144 = vunpack.c.l.b16 %v2963
      %v3145 = vunpack.c.l.b16 %v2977
      %v3146 = vunpack.c.l.b16 %v2987
      %v3147 = vunpack.c.l.b16 %v3001
      %v3148 = vunpack.c.l.b16 %v3011
      %v3149 = vunpack.c.l.b16 %v3025
      %v3150 = vunpack.c.l.b16 %v3035
      %v3151 = vunpack.c.l.b16 %v3049
      %v3152 = vunpack.c.l.b16 %v3059
      %v3153 = vunpack.c.l.b16 %v3073
      %v3154 = vunpack.c.l.b16 %v3083
      %v3155 = vunpack.c.l.b16 %v3097
      %v3156 = vunpack.c.l.b16 %v3107
      %v3157 = vpack.c.b16 %v3126, %v3125
      %v3158 = vpack.c.b16 %v3128, %v3127
      %v3159 = vpack.c.b16 %v3130, %v3129
      %v3160 = vpack.c.b16 %v3132, %v3131
      %v3161 = vpack.c.b16 %v3134, %v3133
      %v3162 = vpack.c.b16 %v3136, %v3135
      %v3163 = vpack.c.b16 %v3138, %v3137
      %v3164 = vpack.c.b16 %v3140, %v3139
      %v3165 = vpack.c.b16 %v3142, %v3141
      %v3166 = vpack.c.b16 %v3144, %v3143
      %v3167 = vpack.c.b16 %v3146, %v3145
      %v3168 = vpack.c.b16 %v3148, %v3147
      %v3169 = vpack.c.b16 %v3150, %v3149
      %v3170 = vpack.c.b16 %v3152, %v3151
      %v3171 = vpack.c.b16 %v3154, %v3153
      %v3172 = vpack.c.b16 %v3156, %v3155
      %v3205 = vunpack.c.l.b16 %v3109
      %v3206 = vunpack.c.l.b16 %v3110
      %v3207 = vunpack.c.l.b16 %v3111
      %v3208 = vunpack.c.l.b16 %v3112
      %v3209 = vunpack.c.l.b16 %v3113
      %v3210 = vunpack.c.l.b16 %v3114
      %v3211 = vunpack.c.l.b16 %v3115
      %v3212 = vunpack.c.l.b16 %v3116
      %v3213 = vunpack.c.l.b16 %v3117
      %v3214 = vunpack.c.l.b16 %v3118
      %v3215 = vunpack.c.l.b16 %v3119
      %v3216 = vunpack.c.l.b16 %v3120
      %v3217 = vunpack.c.l.b16 %v3121
      %v3218 = vunpack.c.l.b16 %v3122
      %v3219 = vunpack.c.l.b16 %v3123
      %v3220 = vunpack.c.l.b16 %v3124
      %v3221 = vpack.c.b16 %v3206, %v3205
      %v3222 = vpack.c.b16 %v3208, %v3207
      %v3223 = vpack.c.b16 %v3210, %v3209
      %v3224 = vpack.c.b16 %v3212, %v3211
      %v3225 = vpack.c.b16 %v3214, %v3213
      %v3226 = vpack.c.b16 %v3216, %v3215
      %v3227 = vpack.c.b16 %v3218, %v3217
      %v3228 = vpack.c.b16 %v3220, %v3219
      %3237 = vmatprep.subr.bf16.mxu0 0
      %3238 = vmatpush1.bf16.msra.mxu0 %v3228
      %3239 = vmatprep.subr.bf16.mxu0 0
      %3240 = vmatpush1.bf16.msra.mxu0 %v3227
      %3241 = vmatprep.subr.bf16.mxu0 0
      %3242 = vmatpush1.bf16.msra.mxu0 %v3226
      %3243 = vmatprep.subr.bf16.mxu0 0
      %3244 = vmatpush1.bf16.msra.mxu0 %v3225
      %3245 = vmatprep.subr.bf16.mxu0 0
      %3246 = vmatpush1.bf16.msra.mxu0 %v3224
      %3247 = vmatprep.subr.bf16.mxu0 0
      %3248 = vmatpush1.bf16.msra.mxu0 %v3223
      %3249 = vmatprep.subr.bf16.mxu0 0
      %3250 = vmatpush1.bf16.msra.mxu0 %v3222
      %3251 = vmatprep.subr.bf16.mxu0 0
      %3252 = vmatpush1.bf16.msra.mxu0 %v3221
      %3253 = vmatprep.subr.bf16.mxu0 0
      %3254 = vmatpush2.bf16.msra.mxu0 0
      %3255 = vmatprep.subr.bf16.mxu0 0
      %3256 = vmatpush2.bf16.msra.mxu0 0
      %3257 = vmatprep.subr.bf16.mxu0 0
      %3258 = vmatpush2.bf16.msra.mxu0 0
      %3259 = vmatprep.subr.bf16.mxu0 0
      %3260 = vmatpush2.bf16.msra.mxu0 0
      %3261 = vmatprep.subr.bf16.mxu0 0
      %3262 = vmatpush2.bf16.msra.mxu0 0
      %3263 = vmatprep.subr.bf16.mxu0 0
      %3264 = vmatpush2.bf16.msra.mxu0 0
      %3265 = vmatprep.subr.bf16.mxu0 0
      %3266 = vmatpush2.bf16.msra.mxu0 0
      %3267 = vmatprep.subr.bf16.mxu0 0
      %3268 = vmatpush2.bf16.msra.mxu0 0
      %3269 = vmatprep.mubr.bf16.mxu0 0
      %3270 = vmatmul.mubr.bf16.gmra.mxu0 %v3157
      %v3271 = vpop.f32.mrf.mxu0
      %v3272 = vadd.f32 0.0, %v3271
      %v3273 = vpop.f32.mrf.mxu0
      %v3274 = vpop.f32.mrf.mxu0
      %v3275 = vadd.f32 0.0, %v3274
      %v3276 = vpop.f32.mrf.mxu0
      %3277 = vmatprep.mubr.bf16.mxu0 0
      %3278 = vmatmul.mubr.bf16.gmra.mxu0 %v3158
      %v3279 = vpop.f32.mrf.mxu0
      %v3280 = vadd.f32 0.0, %v3279
      %v3281 = vpop.f32.mrf.mxu0
      %v3282 = vpop.f32.mrf.mxu0
      %v3283 = vadd.f32 0.0, %v3282
      %v3284 = vpop.f32.mrf.mxu0
      %3285 = vmatprep.mubr.bf16.mxu0 0
      %3286 = vmatmul.mubr.bf16.gmra.mxu0 %v3159
      %v3287 = vpop.f32.mrf.mxu0
      %v3288 = vadd.f32 0.0, %v3287
      %v3289 = vpop.f32.mrf.mxu0
      %v3290 = vpop.f32.mrf.mxu0
      %v3291 = vadd.f32 0.0, %v3290
      %v3292 = vpop.f32.mrf.mxu0
      %3293 = vmatprep.mubr.bf16.mxu0 0
      %3294 = vmatmul.mubr.bf16.gmra.mxu0 %v3160
      %v3295 = vpop.f32.mrf.mxu0
      %v3296 = vadd.f32 0.0, %v3295
      %v3297 = vpop.f32.mrf.mxu0
      %v3298 = vpop.f32.mrf.mxu0
      %v3299 = vadd.f32 0.0, %v3298
      %v3300 = vpop.f32.mrf.mxu0
      %3301 = vmatprep.mubr.bf16.mxu0 0
      %3302 = vmatmul.mubr.bf16.gmra.mxu0 %v3161
      %v3303 = vpop.f32.mrf.mxu0
      %v3304 = vadd.f32 0.0, %v3303
      %v3305 = vpop.f32.mrf.mxu0
      %v3306 = vpop.f32.mrf.mxu0
      %v3307 = vadd.f32 0.0, %v3306
      %v3308 = vpop.f32.mrf.mxu0
      %3309 = vmatprep.mubr.bf16.mxu0 0
      %3310 = vmatmul.mubr.bf16.gmra.mxu0 %v3162
      %v3311 = vpop.f32.mrf.mxu0
      %v3312 = vadd.f32 0.0, %v3311
      %v3313 = vpop.f32.mrf.mxu0
      %v3314 = vpop.f32.mrf.mxu0
      %v3315 = vadd.f32 0.0, %v3314
      %v3316 = vpop.f32.mrf.mxu0
      %3317 = vmatprep.mubr.bf16.mxu0 0
      %3318 = vmatmul.mubr.bf16.gmra.mxu0 %v3163
      %v3319 = vpop.f32.mrf.mxu0
      %v3320 = vadd.f32 0.0, %v3319
      %v3321 = vpop.f32.mrf.mxu0
      %v3322 = vpop.f32.mrf.mxu0
      %v3323 = vadd.f32 0.0, %v3322
      %v3324 = vpop.f32.mrf.mxu0
      %3325 = vmatprep.mubr.bf16.mxu0 0
      %3326 = vmatmul.mubr.bf16.gmra.mxu0 %v3164
      %v3327 = vpop.f32.mrf.mxu0
      %v3328 = vadd.f32 0.0, %v3327
      %v3329 = vpop.f32.mrf.mxu0
      %v3330 = vpop.f32.mrf.mxu0
      %v3331 = vadd.f32 0.0, %v3330
      %v3332 = vpop.f32.mrf.mxu0
      %3333 = vmatprep.mubr.bf16.mxu0 0
      %3334 = vmatmul.mubr.bf16.gmra.mxu0 %v3165
      %v3335 = vpop.f32.mrf.mxu0
      %v3336 = vadd.f32 0.0, %v3335
      %v3337 = vpop.f32.mrf.mxu0
      %v3338 = vpop.f32.mrf.mxu0
      %v3339 = vadd.f32 0.0, %v3338
      %v3340 = vpop.f32.mrf.mxu0
      %3341 = vmatprep.mubr.bf16.mxu0 0
      %3342 = vmatmul.mubr.bf16.gmra.mxu0 %v3166
      %v3343 = vpop.f32.mrf.mxu0
      %v3344 = vadd.f32 0.0, %v3343
      %v3345 = vpop.f32.mrf.mxu0
      %v3346 = vpop.f32.mrf.mxu0
      %v3347 = vadd.f32 0.0, %v3346
      %v3348 = vpop.f32.mrf.mxu0
      %3349 = vmatprep.mubr.bf16.mxu0 0
      %3350 = vmatmul.mubr.bf16.gmra.mxu0 %v3167
      %v3351 = vpop.f32.mrf.mxu0
      %v3352 = vadd.f32 0.0, %v3351
      %v3353 = vpop.f32.mrf.mxu0
      %v3354 = vpop.f32.mrf.mxu0
      %v3355 = vadd.f32 0.0, %v3354
      %v3356 = vpop.f32.mrf.mxu0
      %3357 = vmatprep.mubr.bf16.mxu0 0
      %3358 = vmatmul.mubr.bf16.gmra.mxu0 %v3168
      %v3359 = vpop.f32.mrf.mxu0
      %v3360 = vadd.f32 0.0, %v3359
      %v3361 = vpop.f32.mrf.mxu0
      %v3362 = vpop.f32.mrf.mxu0
      %v3363 = vadd.f32 0.0, %v3362
      %v3364 = vpop.f32.mrf.mxu0
      %3365 = vmatprep.mubr.bf16.mxu0 0
      %3366 = vmatmul.mubr.bf16.gmra.mxu0 %v3169
      %v3367 = vpop.f32.mrf.mxu0
      %v3368 = vadd.f32 0.0, %v3367
      %v3369 = vpop.f32.mrf.mxu0
      %v3370 = vpop.f32.mrf.mxu0
      %v3371 = vadd.f32 0.0, %v3370
      %v3372 = vpop.f32.mrf.mxu0
      %3373 = vmatprep.mubr.bf16.mxu0 0
      %3374 = vmatmul.mubr.bf16.gmra.mxu0 %v3170
      %v3375 = vpop.f32.mrf.mxu0
      %v3376 = vadd.f32 0.0, %v3375
      %v3377 = vpop.f32.mrf.mxu0
      %v3378 = vpop.f32.mrf.mxu0
      %v3379 = vadd.f32 0.0, %v3378
      %v3380 = vpop.f32.mrf.mxu0
      %3381 = vmatprep.mubr.bf16.mxu0 0
      %3382 = vmatmul.mubr.bf16.gmra.mxu0 %v3171
      %v3383 = vpop.f32.mrf.mxu0
      %v3384 = vadd.f32 0.0, %v3383
      %v3385 = vpop.f32.mrf.mxu0
      %v3386 = vpop.f32.mrf.mxu0
      %v3387 = vadd.f32 0.0, %v3386
      %v3388 = vpop.f32.mrf.mxu0
      %3389 = vmatprep.mubr.bf16.mxu0 0
      %3390 = vmatmul.mubr.bf16.gmra.mxu0 %v3172
      %v3391 = vpop.f32.mrf.mxu0
      %v3392 = vadd.f32 0.0, %v3391
      %v3393 = vpop.f32.mrf.mxu0
      %v3394 = vpop.f32.mrf.mxu0
      %v3395 = vadd.f32 0.0, %v3394
      %v3396 = vpop.f32.mrf.mxu0
      %3397 = vdwg.mxu0
      %v3398 = vadd.f32 %v2644, %v3272
      %v3399 = vadd.f32 %v2645, %v3275
      %v3400 = vadd.f32 %v2646, %v3280
      %v3401 = vadd.f32 %v2647, %v3283
      %v3402 = vadd.f32 %v2648, %v3288
      %v3403 = vadd.f32 %v2649, %v3291
      %v3404 = vadd.f32 %v2650, %v3296
      %v3405 = vadd.f32 %v2651, %v3299
      %v3406 = vadd.f32 %v2652, %v3304
      %v3407 = vadd.f32 %v2653, %v3307
      %v3408 = vadd.f32 %v2654, %v3312
      %v3409 = vadd.f32 %v2655, %v3315
      %v3410 = vadd.f32 %v2656, %v3320
      %v3411 = vadd.f32 %v2657, %v3323
      %v3412 = vadd.f32 %v2658, %v3328
      %v3413 = vadd.f32 %v2659, %v3331
      %v3414 = vadd.f32 %v2660, %v3336
      %v3415 = vadd.f32 %v2661, %v3339
      %v3416 = vadd.f32 %v2662, %v3344
      %v3417 = vadd.f32 %v2663, %v3347
      %v3418 = vadd.f32 %v2664, %v3352
      %v3419 = vadd.f32 %v2665, %v3355
      %v3420 = vadd.f32 %v2666, %v3360
      %v3421 = vadd.f32 %v2667, %v3363
      %v3422 = vadd.f32 %v2668, %v3368
      %v3423 = vadd.f32 %v2669, %v3371
      %v3424 = vadd.f32 %v2670, %v3376
      %v3425 = vadd.f32 %v2671, %v3379
      %v3426 = vadd.f32 %v2672, %v3384
      %v3427 = vadd.f32 %v2673, %v3387
      %v3428 = vadd.f32 %v2674, %v3392
      %v3429 = vadd.f32 %v2675, %v3395
      %v3430 = vld [vmem:[%s725] sm:$0xe]
      %v3431 = vld [vmem:[%s725 + $0xc] sm:$0xe]
      %v3432 = vld [vmem:[%s725 + $0x18] sm:$0xe]
      %v3433 = vld [vmem:[%s725 + $0x24] sm:$0xe]
      %v3434 = vld [vmem:[%s725 + $0x30] sm:$0xe]
      %v3435 = vld [vmem:[%s725 + $0x3c] sm:$0xe]
      %v3436 = vld [vmem:[%s725 + $0x48] sm:$0xe]
      %v3437 = vld [vmem:[%s725 + $0x54] sm:$0xe]
      %v3438 = vld [vmem:[%s725 + $0x60] sm:$0xe]
      %v3439 = vld [vmem:[%s725 + $0x6c] sm:$0xe]
      %v3440 = vld [vmem:[%s725 + $0x78] sm:$0xe]
      %v3441 = vld [vmem:[%s725 + $0x84] sm:$0xe]
      %v3442 = vld [vmem:[%s725 + $0x90] sm:$0xe]
      %v3443 = vld [vmem:[%s725 + $0x9c] sm:$0xe]
      %v3444 = vld [vmem:[%s725 + $0xa8] sm:$0xe]
      %v3445 = vld [vmem:[%s725 + $0xb4] sm:$0xe]
      %v3494 = vrot.slane %v3430, 5
      %v3495 = vrot.slane %v3494, 4
      %v3496 = vrot.slane %v2677, 5
      %v3497 = vsel %vm1291, %v3495, %v3496
      %v3498 = vrot.slane %v3496, 4
      %v3499 = vrot.slane %v2678, 5
      %v3500 = vsel %vm1291, %v3498, %v3499
      %v3501 = vrot.slane %v3431, 5
      %v3502 = vrot.slane %v3501, 4
      %v3503 = vrot.slane %v2680, 5
      %v3504 = vsel %vm1291, %v3502, %v3503
      %v3505 = vrot.slane %v3503, 4
      %v3506 = vrot.slane %v2681, 5
      %v3507 = vsel %vm1291, %v3505, %v3506
      %v3508 = vrot.slane %v3432, 5
      %v3509 = vrot.slane %v3508, 4
      %v3510 = vrot.slane %v2683, 5
      %v3511 = vsel %vm1291, %v3509, %v3510
      %v3512 = vrot.slane %v3510, 4
      %v3513 = vrot.slane %v2684, 5
      %v3514 = vsel %vm1291, %v3512, %v3513
      %v3515 = vrot.slane %v3433, 5
      %v3516 = vrot.slane %v3515, 4
      %v3517 = vrot.slane %v2686, 5
      %v3518 = vsel %vm1291, %v3516, %v3517
      %v3519 = vrot.slane %v3517, 4
      %v3520 = vrot.slane %v2687, 5
      %v3521 = vsel %vm1291, %v3519, %v3520
      %v3522 = vrot.slane %v3434, 5
      %v3523 = vrot.slane %v3522, 4
      %v3524 = vrot.slane %v2689, 5
      %v3525 = vsel %vm1291, %v3523, %v3524
      %v3526 = vrot.slane %v3524, 4
      %v3527 = vrot.slane %v2690, 5
      %v3528 = vsel %vm1291, %v3526, %v3527
      %v3529 = vrot.slane %v3435, 5
      %v3530 = vrot.slane %v3529, 4
      %v3531 = vrot.slane %v2692, 5
      %v3532 = vsel %vm1291, %v3530, %v3531
      %v3533 = vrot.slane %v3531, 4
      %v3534 = vrot.slane %v2693, 5
      %v3535 = vsel %vm1291, %v3533, %v3534
      %v3536 = vrot.slane %v3436, 5
      %v3537 = vrot.slane %v3536, 4
      %v3538 = vrot.slane %v2695, 5
      %v3539 = vsel %vm1291, %v3537, %v3538
      %v3540 = vrot.slane %v3538, 4
      %v3541 = vrot.slane %v2696, 5
      %v3542 = vsel %vm1291, %v3540, %v3541
      %v3543 = vrot.slane %v3437, 5
      %v3544 = vrot.slane %v3543, 4
      %v3545 = vrot.slane %v2698, 5
      %v3546 = vsel %vm1291, %v3544, %v3545
      %v3547 = vrot.slane %v3545, 4
      %v3548 = vrot.slane %v2699, 5
      %v3549 = vsel %vm1291, %v3547, %v3548
      %v3550 = vrot.slane %v3438, 5
      %v3551 = vrot.slane %v3550, 4
      %v3552 = vrot.slane %v2701, 5
      %v3553 = vsel %vm1291, %v3551, %v3552
      %v3554 = vrot.slane %v3552, 4
      %v3555 = vrot.slane %v2702, 5
      %v3556 = vsel %vm1291, %v3554, %v3555
      %v3557 = vrot.slane %v3439, 5
      %v3558 = vrot.slane %v3557, 4
      %v3559 = vrot.slane %v2704, 5
      %v3560 = vsel %vm1291, %v3558, %v3559
      %v3561 = vrot.slane %v3559, 4
      %v3562 = vrot.slane %v2705, 5
      %v3563 = vsel %vm1291, %v3561, %v3562
      %v3564 = vrot.slane %v3440, 5
      %v3565 = vrot.slane %v3564, 4
      %v3566 = vrot.slane %v2707, 5
      %v3567 = vsel %vm1291, %v3565, %v3566
      %v3568 = vrot.slane %v3566, 4
      %v3569 = vrot.slane %v2708, 5
      %v3570 = vsel %vm1291, %v3568, %v3569
      %v3571 = vrot.slane %v3441, 5
      %v3572 = vrot.slane %v3571, 4
      %v3573 = vrot.slane %v2710, 5
      %v3574 = vsel %vm1291, %v3572, %v3573
      %v3575 = vrot.slane %v3573, 4
      %v3576 = vrot.slane %v2711, 5
      %v3577 = vsel %vm1291, %v3575, %v3576
      %v3578 = vrot.slane %v3442, 5
      %v3579 = vrot.slane %v3578, 4
      %v3580 = vrot.slane %v2713, 5
      %v3581 = vsel %vm1291, %v3579, %v3580
      %v3582 = vrot.slane %v3580, 4
      %v3583 = vrot.slane %v2714, 5
      %v3584 = vsel %vm1291, %v3582, %v3583
      %v3585 = vrot.slane %v3443, 5
      %v3586 = vrot.slane %v3585, 4
      %v3587 = vrot.slane %v2716, 5
      %v3588 = vsel %vm1291, %v3586, %v3587
      %v3589 = vrot.slane %v3587, 4
      %v3590 = vrot.slane %v2717, 5
      %v3591 = vsel %vm1291, %v3589, %v3590
      %v3592 = vrot.slane %v3444, 5
      %v3593 = vrot.slane %v3592, 4
      %v3594 = vrot.slane %v2719, 5
      %v3595 = vsel %vm1291, %v3593, %v3594
      %v3596 = vrot.slane %v3594, 4
      %v3597 = vrot.slane %v2720, 5
      %v3598 = vsel %vm1291, %v3596, %v3597
      %v3599 = vrot.slane %v3445, 5
      %v3600 = vrot.slane %v3599, 4
      %v3601 = vrot.slane %v2722, 5
      %v3602 = vsel %vm1291, %v3600, %v3601
      %v3603 = vrot.slane %v3601, 4
      %v3604 = vrot.slane %v2723, 5
      %v3605 = vsel %vm1291, %v3603, %v3604
      %s3606 = scalar_lea.vmem %s3, 256
      %v3607 = vld [vmem:[%s3606] sm:$0xf]
      %v3608 = vld [vmem:[%s3606 + $0x4] sm:$0xf]
      %v3609 = vld [vmem:[%s3606 + $0x8] sm:$0xf]
      %v3610 = vld [vmem:[%s3606 + $0xc] sm:$0xf]
      %v3611 = vld [vmem:[%s3606 + $0x10] sm:$0xf]
      %v3612 = vld [vmem:[%s3606 + $0x14] sm:$0xf]
      %v3613 = vld [vmem:[%s3606 + $0x18] sm:$0xf]
      %v3614 = vld [vmem:[%s3606 + $0x1c] sm:$0xf]
      %v3615 = vld [vmem:[%s3606 + $0x20] sm:$0xf]
      %v3616 = vld [vmem:[%s3606 + $0x24] sm:$0xf]
      %v3617 = vld [vmem:[%s3606 + $0x28] sm:$0xf]
      %v3618 = vld [vmem:[%s3606 + $0x2c] sm:$0xf]
      %v3619 = vld [vmem:[%s3606 + $0x30] sm:$0xf]
      %v3620 = vld [vmem:[%s3606 + $0x34] sm:$0xf]
      %v3621 = vld [vmem:[%s3606 + $0x38] sm:$0xf]
      %v3622 = vld [vmem:[%s3606 + $0x3c] sm:$0xf]
      %v3623 = vunpack.c.l.b16 %v3497
      %v3624 = vunpack.c.l.b16 %v3500
      %v3625 = vunpack.c.l.b16 %v3504
      %v3626 = vunpack.c.l.b16 %v3507
      %v3627 = vunpack.c.l.b16 %v3511
      %v3628 = vunpack.c.l.b16 %v3514
      %v3629 = vunpack.c.l.b16 %v3518
      %v3630 = vunpack.c.l.b16 %v3521
      %v3631 = vunpack.c.l.b16 %v3525
      %v3632 = vunpack.c.l.b16 %v3528
      %v3633 = vunpack.c.l.b16 %v3532
      %v3634 = vunpack.c.l.b16 %v3535
      %v3635 = vunpack.c.l.b16 %v3539
      %v3636 = vunpack.c.l.b16 %v3542
      %v3637 = vunpack.c.l.b16 %v3546
      %v3638 = vunpack.c.l.b16 %v3549
      %v3639 = vunpack.c.l.b16 %v3553
      %v3640 = vunpack.c.l.b16 %v3556
      %v3641 = vunpack.c.l.b16 %v3560
      %v3642 = vunpack.c.l.b16 %v3563
      %v3643 = vunpack.c.l.b16 %v3567
      %v3644 = vunpack.c.l.b16 %v3570
      %v3645 = vunpack.c.l.b16 %v3574
      %v3646 = vunpack.c.l.b16 %v3577
      %v3647 = vunpack.c.l.b16 %v3581
      %v3648 = vunpack.c.l.b16 %v3584
      %v3649 = vunpack.c.l.b16 %v3588
      %v3650 = vunpack.c.l.b16 %v3591
      %v3651 = vunpack.c.l.b16 %v3595
      %v3652 = vunpack.c.l.b16 %v3598
      %v3653 = vunpack.c.l.b16 %v3602
      %v3654 = vunpack.c.l.b16 %v3605
      %v3655 = vpack.c.b16 %v3624, %v3623
      %v3656 = vpack.c.b16 %v3626, %v3625
      %v3657 = vpack.c.b16 %v3628, %v3627
      %v3658 = vpack.c.b16 %v3630, %v3629
      %v3659 = vpack.c.b16 %v3632, %v3631
      %v3660 = vpack.c.b16 %v3634, %v3633
      %v3661 = vpack.c.b16 %v3636, %v3635
      %v3662 = vpack.c.b16 %v3638, %v3637
      %v3663 = vpack.c.b16 %v3640, %v3639
      %v3664 = vpack.c.b16 %v3642, %v3641
      %v3665 = vpack.c.b16 %v3644, %v3643
      %v3666 = vpack.c.b16 %v3646, %v3645
      %v3667 = vpack.c.b16 %v3648, %v3647
      %v3668 = vpack.c.b16 %v3650, %v3649
      %v3669 = vpack.c.b16 %v3652, %v3651
      %v3670 = vpack.c.b16 %v3654, %v3653
      %v3703 = vunpack.c.l.b16 %v3607
      %v3704 = vunpack.c.l.b16 %v3608
      %v3705 = vunpack.c.l.b16 %v3609
      %v3706 = vunpack.c.l.b16 %v3610
      %v3707 = vunpack.c.l.b16 %v3611
      %v3708 = vunpack.c.l.b16 %v3612
      %v3709 = vunpack.c.l.b16 %v3613
      %v3710 = vunpack.c.l.b16 %v3614
      %v3711 = vunpack.c.l.b16 %v3615
      %v3712 = vunpack.c.l.b16 %v3616
      %v3713 = vunpack.c.l.b16 %v3617
      %v3714 = vunpack.c.l.b16 %v3618
      %v3715 = vunpack.c.l.b16 %v3619
      %v3716 = vunpack.c.l.b16 %v3620
      %v3717 = vunpack.c.l.b16 %v3621
      %v3718 = vunpack.c.l.b16 %v3622
      %v3719 = vpack.c.b16 %v3704, %v3703
      %v3720 = vpack.c.b16 %v3706, %v3705
      %v3721 = vpack.c.b16 %v3708, %v3707
      %v3722 = vpack.c.b16 %v3710, %v3709
      %v3723 = vpack.c.b16 %v3712, %v3711
      %v3724 = vpack.c.b16 %v3714, %v3713
      %v3725 = vpack.c.b16 %v3716, %v3715
      %v3726 = vpack.c.b16 %v3718, %v3717
      %3735 = vmatprep.subr.bf16.mxu0 0
      %3736 = vmatpush1.bf16.msra.mxu0 %v3726
      %3737 = vmatprep.subr.bf16.mxu0 0
      %3738 = vmatpush1.bf16.msra.mxu0 %v3725
      %3739 = vmatprep.subr.bf16.mxu0 0
      %3740 = vmatpush1.bf16.msra.mxu0 %v3724
      %3741 = vmatprep.subr.bf16.mxu0 0
      %3742 = vmatpush1.bf16.msra.mxu0 %v3723
      %3743 = vmatprep.subr.bf16.mxu0 0
      %3744 = vmatpush1.bf16.msra.mxu0 %v3722
      %3745 = vmatprep.subr.bf16.mxu0 0
      %3746 = vmatpush1.bf16.msra.mxu0 %v3721
      %3747 = vmatprep.subr.bf16.mxu0 0
      %3748 = vmatpush1.bf16.msra.mxu0 %v3720
      %3749 = vmatprep.subr.bf16.mxu0 0
      %3750 = vmatpush1.bf16.msra.mxu0 %v3719
      %3751 = vmatprep.subr.bf16.mxu0 0
      %3752 = vmatpush2.bf16.msra.mxu0 0
      %3753 = vmatprep.subr.bf16.mxu0 0
      %3754 = vmatpush2.bf16.msra.mxu0 0
      %3755 = vmatprep.subr.bf16.mxu0 0
      %3756 = vmatpush2.bf16.msra.mxu0 0
      %3757 = vmatprep.subr.bf16.mxu0 0
      %3758 = vmatpush2.bf16.msra.mxu0 0
      %3759 = vmatprep.subr.bf16.mxu0 0
      %3760 = vmatpush2.bf16.msra.mxu0 0
      %3761 = vmatprep.subr.bf16.mxu0 0
      %3762 = vmatpush2.bf16.msra.mxu0 0
      %3763 = vmatprep.subr.bf16.mxu0 0
      %3764 = vmatpush2.bf16.msra.mxu0 0
      %3765 = vmatprep.subr.bf16.mxu0 0
      %3766 = vmatpush2.bf16.msra.mxu0 0
      %3767 = vmatprep.mubr.bf16.mxu0 0
      %3768 = vmatmul.mubr.bf16.gmra.mxu0 %v3655
      %v3769 = vpop.f32.mrf.mxu0
      %v3770 = vadd.f32 0.0, %v3769
      %v3771 = vpop.f32.mrf.mxu0
      %v3772 = vpop.f32.mrf.mxu0
      %v3773 = vadd.f32 0.0, %v3772
      %v3774 = vpop.f32.mrf.mxu0
      %3775 = vmatprep.mubr.bf16.mxu0 0
      %3776 = vmatmul.mubr.bf16.gmra.mxu0 %v3656
      %v3777 = vpop.f32.mrf.mxu0
      %v3778 = vadd.f32 0.0, %v3777
      %v3779 = vpop.f32.mrf.mxu0
      %v3780 = vpop.f32.mrf.mxu0
      %v3781 = vadd.f32 0.0, %v3780
      %v3782 = vpop.f32.mrf.mxu0
      %3783 = vmatprep.mubr.bf16.mxu0 0
      %3784 = vmatmul.mubr.bf16.gmra.mxu0 %v3657
      %v3785 = vpop.f32.mrf.mxu0
      %v3786 = vadd.f32 0.0, %v3785
      %v3787 = vpop.f32.mrf.mxu0
      %v3788 = vpop.f32.mrf.mxu0
      %v3789 = vadd.f32 0.0, %v3788
      %v3790 = vpop.f32.mrf.mxu0
      %3791 = vmatprep.mubr.bf16.mxu0 0
      %3792 = vmatmul.mubr.bf16.gmra.mxu0 %v3658
      %v3793 = vpop.f32.mrf.mxu0
      %v3794 = vadd.f32 0.0, %v3793
      %v3795 = vpop.f32.mrf.mxu0
      %v3796 = vpop.f32.mrf.mxu0
      %v3797 = vadd.f32 0.0, %v3796
      %v3798 = vpop.f32.mrf.mxu0
      %3799 = vmatprep.mubr.bf16.mxu0 0
      %3800 = vmatmul.mubr.bf16.gmra.mxu0 %v3659
      %v3801 = vpop.f32.mrf.mxu0
      %v3802 = vadd.f32 0.0, %v3801
      %v3803 = vpop.f32.mrf.mxu0
      %v3804 = vpop.f32.mrf.mxu0
      %v3805 = vadd.f32 0.0, %v3804
      %v3806 = vpop.f32.mrf.mxu0
      %3807 = vmatprep.mubr.bf16.mxu0 0
      %3808 = vmatmul.mubr.bf16.gmra.mxu0 %v3660
      %v3809 = vpop.f32.mrf.mxu0
      %v3810 = vadd.f32 0.0, %v3809
      %v3811 = vpop.f32.mrf.mxu0
      %v3812 = vpop.f32.mrf.mxu0
      %v3813 = vadd.f32 0.0, %v3812
      %v3814 = vpop.f32.mrf.mxu0
      %3815 = vmatprep.mubr.bf16.mxu0 0
      %3816 = vmatmul.mubr.bf16.gmra.mxu0 %v3661
      %v3817 = vpop.f32.mrf.mxu0
      %v3818 = vadd.f32 0.0, %v3817
      %v3819 = vpop.f32.mrf.mxu0
      %v3820 = vpop.f32.mrf.mxu0
      %v3821 = vadd.f32 0.0, %v3820
      %v3822 = vpop.f32.mrf.mxu0
      %3823 = vmatprep.mubr.bf16.mxu0 0
      %3824 = vmatmul.mubr.bf16.gmra.mxu0 %v3662
      %v3825 = vpop.f32.mrf.mxu0
      %v3826 = vadd.f32 0.0, %v3825
      %v3827 = vpop.f32.mrf.mxu0
      %v3828 = vpop.f32.mrf.mxu0
      %v3829 = vadd.f32 0.0, %v3828
      %v3830 = vpop.f32.mrf.mxu0
      %3831 = vmatprep.mubr.bf16.mxu0 0
      %3832 = vmatmul.mubr.bf16.gmra.mxu0 %v3663
      %v3833 = vpop.f32.mrf.mxu0
      %v3834 = vadd.f32 0.0, %v3833
      %v3835 = vpop.f32.mrf.mxu0
      %v3836 = vpop.f32.mrf.mxu0
      %v3837 = vadd.f32 0.0, %v3836
      %v3838 = vpop.f32.mrf.mxu0
      %3839 = vmatprep.mubr.bf16.mxu0 0
      %3840 = vmatmul.mubr.bf16.gmra.mxu0 %v3664
      %v3841 = vpop.f32.mrf.mxu0
      %v3842 = vadd.f32 0.0, %v3841
      %v3843 = vpop.f32.mrf.mxu0
      %v3844 = vpop.f32.mrf.mxu0
      %v3845 = vadd.f32 0.0, %v3844
      %v3846 = vpop.f32.mrf.mxu0
      %3847 = vmatprep.mubr.bf16.mxu0 0
      %3848 = vmatmul.mubr.bf16.gmra.mxu0 %v3665
      %v3849 = vpop.f32.mrf.mxu0
      %v3850 = vadd.f32 0.0, %v3849
      %v3851 = vpop.f32.mrf.mxu0
      %v3852 = vpop.f32.mrf.mxu0
      %v3853 = vadd.f32 0.0, %v3852
      %v3854 = vpop.f32.mrf.mxu0
      %3855 = vmatprep.mubr.bf16.mxu0 0
      %3856 = vmatmul.mubr.bf16.gmra.mxu0 %v3666
      %v3857 = vpop.f32.mrf.mxu0
      %v3858 = vadd.f32 0.0, %v3857
      %v3859 = vpop.f32.mrf.mxu0
      %v3860 = vpop.f32.mrf.mxu0
      %v3861 = vadd.f32 0.0, %v3860
      %v3862 = vpop.f32.mrf.mxu0
      %3863 = vmatprep.mubr.bf16.mxu0 0
      %3864 = vmatmul.mubr.bf16.gmra.mxu0 %v3667
      %v3865 = vpop.f32.mrf.mxu0
      %v3866 = vadd.f32 0.0, %v3865
      %v3867 = vpop.f32.mrf.mxu0
      %v3868 = vpop.f32.mrf.mxu0
      %v3869 = vadd.f32 0.0, %v3868
      %v3870 = vpop.f32.mrf.mxu0
      %3871 = vmatprep.mubr.bf16.mxu0 0
      %3872 = vmatmul.mubr.bf16.gmra.mxu0 %v3668
      %v3873 = vpop.f32.mrf.mxu0
      %v3874 = vadd.f32 0.0, %v3873
      %v3875 = vpop.f32.mrf.mxu0
      %v3876 = vpop.f32.mrf.mxu0
      %v3877 = vadd.f32 0.0, %v3876
      %v3878 = vpop.f32.mrf.mxu0
      %3879 = vmatprep.mubr.bf16.mxu0 0
      %3880 = vmatmul.mubr.bf16.gmra.mxu0 %v3669
      %v3881 = vpop.f32.mrf.mxu0
      %v3882 = vadd.f32 0.0, %v3881
      %v3883 = vpop.f32.mrf.mxu0
      %v3884 = vpop.f32.mrf.mxu0
      %v3885 = vadd.f32 0.0, %v3884
      %v3886 = vpop.f32.mrf.mxu0
      %3887 = vmatprep.mubr.bf16.mxu0 0
      %3888 = vmatmul.mubr.bf16.gmra.mxu0 %v3670
      %v3889 = vpop.f32.mrf.mxu0
      %v3890 = vadd.f32 0.0, %v3889
      %v3891 = vpop.f32.mrf.mxu0
      %v3892 = vpop.f32.mrf.mxu0
      %v3893 = vadd.f32 0.0, %v3892
      %v3894 = vpop.f32.mrf.mxu0
      %3895 = vdwg.mxu0
      %v3896 = vadd.f32 %v3398, %v3770
      %v3897 = vadd.f32 %v3399, %v3773
      %v3898 = vadd.f32 %v3400, %v3778
      %v3899 = vadd.f32 %v3401, %v3781
      %v3900 = vadd.f32 %v3402, %v3786
      %v3901 = vadd.f32 %v3403, %v3789
      %v3902 = vadd.f32 %v3404, %v3794
      %v3903 = vadd.f32 %v3405, %v3797
      %v3904 = vadd.f32 %v3406, %v3802
      %v3905 = vadd.f32 %v3407, %v3805
      %v3906 = vadd.f32 %v3408, %v3810
      %v3907 = vadd.f32 %v3409, %v3813
      %v3908 = vadd.f32 %v3410, %v3818
      %v3909 = vadd.f32 %v3411, %v3821
      %v3910 = vadd.f32 %v3412, %v3826
      %v3911 = vadd.f32 %v3413, %v3829
      %v3912 = vadd.f32 %v3414, %v3834
      %v3913 = vadd.f32 %v3415, %v3837
      %v3914 = vadd.f32 %v3416, %v3842
      %v3915 = vadd.f32 %v3417, %v3845
      %v3916 = vadd.f32 %v3418, %v3850
      %v3917 = vadd.f32 %v3419, %v3853
      %v3918 = vadd.f32 %v3420, %v3858
      %v3919 = vadd.f32 %v3421, %v3861
      %v3920 = vadd.f32 %v3422, %v3866
      %v3921 = vadd.f32 %v3423, %v3869
      %v3922 = vadd.f32 %v3424, %v3874
      %v3923 = vadd.f32 %v3425, %v3877
      %v3924 = vadd.f32 %v3426, %v3882
      %v3925 = vadd.f32 %v3427, %v3885
      %v3926 = vadd.f32 %v3428, %v3890
      %v3927 = vadd.f32 %v3429, %v3893
      %v3928 = vld [vmem:[%s725 + $0x8] sm:$0x3]
      %v3929 = vld [vmem:[%s725 + $0x14] sm:$0x3]
      %v3930 = vld [vmem:[%s725 + $0x20] sm:$0x3]
      %v3931 = vld [vmem:[%s725 + $0x2c] sm:$0x3]
      %v3932 = vld [vmem:[%s725 + $0x38] sm:$0x3]
      %v3933 = vld [vmem:[%s725 + $0x44] sm:$0x3]
      %v3934 = vld [vmem:[%s725 + $0x50] sm:$0x3]
      %v3935 = vld [vmem:[%s725 + $0x5c] sm:$0x3]
      %v3936 = vld [vmem:[%s725 + $0x68] sm:$0x3]
      %v3937 = vld [vmem:[%s725 + $0x74] sm:$0x3]
      %v3938 = vld [vmem:[%s725 + $0x80] sm:$0x3]
      %v3939 = vld [vmem:[%s725 + $0x8c] sm:$0x3]
      %v3940 = vld [vmem:[%s725 + $0x98] sm:$0x3]
      %v3941 = vld [vmem:[%s725 + $0xa4] sm:$0x3]
      %v3942 = vld [vmem:[%s725 + $0xb0] sm:$0x3]
      %v3943 = vld [vmem:[%s725 + $0xbc] sm:$0x3]
      %v3945 = vshrl.u32 %v3430, 16
      %v3947 = vrot.slane %v3945, 5
      %v3948 = vshll.u32 %v3430, 16
      %v3950 = vrot.slane %v3948, 6
      %v3951 = vor.u32 %v3947, %v3950
      %v3952 = vrot.slane %v3951, 4
      %v3953 = vrot.slane %v2738, 5
      %v3954 = vrot.slane %v2734, 6
      %v3955 = vor.u32 %v3953, %v3954
      %v3956 = vsel %vm1985, %v3952, %v3955
      %v3957 = vrot.slane %v3955, 4
      %v3959 = vshrl.u32 %v3928, 16
      %v3961 = vrot.slane %v3959, 5
      %v3962 = vshll.u32 %v3928, 16
      %v3964 = vrot.slane %v3962, 6
      %v3965 = vor.u32 %v3961, %v3964
      %v3966 = vsel %vm1985, %v3957, %v3965
      %v3968 = vshrl.u32 %v3431, 16
      %v3970 = vrot.slane %v3968, 5
      %v3971 = vshll.u32 %v3431, 16
      %v3973 = vrot.slane %v3971, 6
      %v3974 = vor.u32 %v3970, %v3973
      %v3975 = vrot.slane %v3974, 4
      %v3976 = vrot.slane %v2762, 5
      %v3977 = vrot.slane %v2758, 6
      %v3978 = vor.u32 %v3976, %v3977
      %v3979 = vsel %vm1985, %v3975, %v3978
      %v3980 = vrot.slane %v3978, 4
      %v3982 = vshrl.u32 %v3929, 16
      %v3984 = vrot.slane %v3982, 5
      %v3985 = vshll.u32 %v3929, 16
      %v3987 = vrot.slane %v3985, 6
      %v3988 = vor.u32 %v3984, %v3987
      %v3989 = vsel %vm1985, %v3980, %v3988
      %v3991 = vshrl.u32 %v3432, 16
      %v3993 = vrot.slane %v3991, 5
      %v3994 = vshll.u32 %v3432, 16
      %v3996 = vrot.slane %v3994, 6
      %v3997 = vor.u32 %v3993, %v3996
      %v3998 = vrot.slane %v3997, 4
      %v3999 = vrot.slane %v2786, 5
      %v4000 = vrot.slane %v2782, 6
      %v4001 = vor.u32 %v3999, %v4000
      %v4002 = vsel %vm1985, %v3998, %v4001
      %v4003 = vrot.slane %v4001, 4
      %v4005 = vshrl.u32 %v3930, 16
      %v4007 = vrot.slane %v4005, 5
      %v4008 = vshll.u32 %v3930, 16
      %v4010 = vrot.slane %v4008, 6
      %v4011 = vor.u32 %v4007, %v4010
      %v4012 = vsel %vm1985, %v4003, %v4011
      %v4014 = vshrl.u32 %v3433, 16
      %v4016 = vrot.slane %v4014, 5
      %v4017 = vshll.u32 %v3433, 16
      %v4019 = vrot.slane %v4017, 6
      %v4020 = vor.u32 %v4016, %v4019
      %v4021 = vrot.slane %v4020, 4
      %v4022 = vrot.slane %v2810, 5
      %v4023 = vrot.slane %v2806, 6
      %v4024 = vor.u32 %v4022, %v4023
      %v4025 = vsel %vm1985, %v4021, %v4024
      %v4026 = vrot.slane %v4024, 4
      %v4028 = vshrl.u32 %v3931, 16
      %v4030 = vrot.slane %v4028, 5
      %v4031 = vshll.u32 %v3931, 16
      %v4033 = vrot.slane %v4031, 6
      %v4034 = vor.u32 %v4030, %v4033
      %v4035 = vsel %vm1985, %v4026, %v4034
      %v4037 = vshrl.u32 %v3434, 16
      %v4039 = vrot.slane %v4037, 5
      %v4040 = vshll.u32 %v3434, 16
      %v4042 = vrot.slane %v4040, 6
      %v4043 = vor.u32 %v4039, %v4042
      %v4044 = vrot.slane %v4043, 4
      %v4045 = vrot.slane %v2834, 5
      %v4046 = vrot.slane %v2830, 6
      %v4047 = vor.u32 %v4045, %v4046
      %v4048 = vsel %vm1985, %v4044, %v4047
      %v4049 = vrot.slane %v4047, 4
      %v4051 = vshrl.u32 %v3932, 16
      %v4053 = vrot.slane %v4051, 5
      %v4054 = vshll.u32 %v3932, 16
      %v4056 = vrot.slane %v4054, 6
      %v4057 = vor.u32 %v4053, %v4056
      %v4058 = vsel %vm1985, %v4049, %v4057
      %v4060 = vshrl.u32 %v3435, 16
      %v4062 = vrot.slane %v4060, 5
      %v4063 = vshll.u32 %v3435, 16
      %v4065 = vrot.slane %v4063, 6
      %v4066 = vor.u32 %v4062, %v4065
      %v4067 = vrot.slane %v4066, 4
      %v4068 = vrot.slane %v2858, 5
      %v4069 = vrot.slane %v2854, 6
      %v4070 = vor.u32 %v4068, %v4069
      %v4071 = vsel %vm1985, %v4067, %v4070
      %v4072 = vrot.slane %v4070, 4
      %v4074 = vshrl.u32 %v3933, 16
      %v4076 = vrot.slane %v4074, 5
      %v4077 = vshll.u32 %v3933, 16
      %v4079 = vrot.slane %v4077, 6
      %v4080 = vor.u32 %v4076, %v4079
      %v4081 = vsel %vm1985, %v4072, %v4080
      %v4083 = vshrl.u32 %v3436, 16
      %v4085 = vrot.slane %v4083, 5
      %v4086 = vshll.u32 %v3436, 16
      %v4088 = vrot.slane %v4086, 6
      %v4089 = vor.u32 %v4085, %v4088
      %v4090 = vrot.slane %v4089, 4
      %v4091 = vrot.slane %v2882, 5
      %v4092 = vrot.slane %v2878, 6
      %v4093 = vor.u32 %v4091, %v4092
      %v4094 = vsel %vm1985, %v4090, %v4093
      %v4095 = vrot.slane %v4093, 4
      %v4097 = vshrl.u32 %v3934, 16
      %v4099 = vrot.slane %v4097, 5
      %v4100 = vshll.u32 %v3934, 16
      %v4102 = vrot.slane %v4100, 6
      %v4103 = vor.u32 %v4099, %v4102
      %v4104 = vsel %vm1985, %v4095, %v4103
      %v4106 = vshrl.u32 %v3437, 16
      %v4108 = vrot.slane %v4106, 5
      %v4109 = vshll.u32 %v3437, 16
      %v4111 = vrot.slane %v4109, 6
      %v4112 = vor.u32 %v4108, %v4111
      %v4113 = vrot.slane %v4112, 4
      %v4114 = vrot.slane %v2906, 5
      %v4115 = vrot.slane %v2902, 6
      %v4116 = vor.u32 %v4114, %v4115
      %v4117 = vsel %vm1985, %v4113, %v4116
      %v4118 = vrot.slane %v4116, 4
      %v4120 = vshrl.u32 %v3935, 16
      %v4122 = vrot.slane %v4120, 5
      %v4123 = vshll.u32 %v3935, 16
      %v4125 = vrot.slane %v4123, 6
      %v4126 = vor.u32 %v4122, %v4125
      %v4127 = vsel %vm1985, %v4118, %v4126
      %v4129 = vshrl.u32 %v3438, 16
      %v4131 = vrot.slane %v4129, 5
      %v4132 = vshll.u32 %v3438, 16
      %v4134 = vrot.slane %v4132, 6
      %v4135 = vor.u32 %v4131, %v4134
      %v4136 = vrot.slane %v4135, 4
      %v4137 = vrot.slane %v2930, 5
      %v4138 = vrot.slane %v2926, 6
      %v4139 = vor.u32 %v4137, %v4138
      %v4140 = vsel %vm1985, %v4136, %v4139
      %v4141 = vrot.slane %v4139, 4
      %v4143 = vshrl.u32 %v3936, 16
      %v4145 = vrot.slane %v4143, 5
      %v4146 = vshll.u32 %v3936, 16
      %v4148 = vrot.slane %v4146, 6
      %v4149 = vor.u32 %v4145, %v4148
      %v4150 = vsel %vm1985, %v4141, %v4149
      %v4152 = vshrl.u32 %v3439, 16
      %v4154 = vrot.slane %v4152, 5
      %v4155 = vshll.u32 %v3439, 16
      %v4157 = vrot.slane %v4155, 6
      %v4158 = vor.u32 %v4154, %v4157
      %v4159 = vrot.slane %v4158, 4
      %v4160 = vrot.slane %v2954, 5
      %v4161 = vrot.slane %v2950, 6
      %v4162 = vor.u32 %v4160, %v4161
      %v4163 = vsel %vm1985, %v4159, %v4162
      %v4164 = vrot.slane %v4162, 4
      %v4166 = vshrl.u32 %v3937, 16
      %v4168 = vrot.slane %v4166, 5
      %v4169 = vshll.u32 %v3937, 16
      %v4171 = vrot.slane %v4169, 6
      %v4172 = vor.u32 %v4168, %v4171
      %v4173 = vsel %vm1985, %v4164, %v4172
      %v4175 = vshrl.u32 %v3440, 16
      %v4177 = vrot.slane %v4175, 5
      %v4178 = vshll.u32 %v3440, 16
      %v4180 = vrot.slane %v4178, 6
      %v4181 = vor.u32 %v4177, %v4180
      %v4182 = vrot.slane %v4181, 4
      %v4183 = vrot.slane %v2978, 5
      %v4184 = vrot.slane %v2974, 6
      %v4185 = vor.u32 %v4183, %v4184
      %v4186 = vsel %vm1985, %v4182, %v4185
      %v4187 = vrot.slane %v4185, 4
      %v4189 = vshrl.u32 %v3938, 16
      %v4191 = vrot.slane %v4189, 5
      %v4192 = vshll.u32 %v3938, 16
      %v4194 = vrot.slane %v4192, 6
      %v4195 = vor.u32 %v4191, %v4194
      %v4196 = vsel %vm1985, %v4187, %v4195
      %v4198 = vshrl.u32 %v3441, 16
      %v4200 = vrot.slane %v4198, 5
      %v4201 = vshll.u32 %v3441, 16
      %v4203 = vrot.slane %v4201, 6
      %v4204 = vor.u32 %v4200, %v4203
      %v4205 = vrot.slane %v4204, 4
      %v4206 = vrot.slane %v3002, 5
      %v4207 = vrot.slane %v2998, 6
      %v4208 = vor.u32 %v4206, %v4207
      %v4209 = vsel %vm1985, %v4205, %v4208
      %v4210 = vrot.slane %v4208, 4
      %v4212 = vshrl.u32 %v3939, 16
      %v4214 = vrot.slane %v4212, 5
      %v4215 = vshll.u32 %v3939, 16
      %v4217 = vrot.slane %v4215, 6
      %v4218 = vor.u32 %v4214, %v4217
      %v4219 = vsel %vm1985, %v4210, %v4218
      %v4221 = vshrl.u32 %v3442, 16
      %v4223 = vrot.slane %v4221, 5
      %v4224 = vshll.u32 %v3442, 16
      %v4226 = vrot.slane %v4224, 6
      %v4227 = vor.u32 %v4223, %v4226
      %v4228 = vrot.slane %v4227, 4
      %v4229 = vrot.slane %v3026, 5
      %v4230 = vrot.slane %v3022, 6
      %v4231 = vor.u32 %v4229, %v4230
      %v4232 = vsel %vm1985, %v4228, %v4231
      %v4233 = vrot.slane %v4231, 4
      %v4235 = vshrl.u32 %v3940, 16
      %v4237 = vrot.slane %v4235, 5
      %v4238 = vshll.u32 %v3940, 16
      %v4240 = vrot.slane %v4238, 6
      %v4241 = vor.u32 %v4237, %v4240
      %v4242 = vsel %vm1985, %v4233, %v4241
      %v4244 = vshrl.u32 %v3443, 16
      %v4246 = vrot.slane %v4244, 5
      %v4247 = vshll.u32 %v3443, 16
      %v4249 = vrot.slane %v4247, 6
      %v4250 = vor.u32 %v4246, %v4249
      %v4251 = vrot.slane %v4250, 4
      %v4252 = vrot.slane %v3050, 5
      %v4253 = vrot.slane %v3046, 6
      %v4254 = vor.u32 %v4252, %v4253
      %v4255 = vsel %vm1985, %v4251, %v4254
      %v4256 = vrot.slane %v4254, 4
      %v4258 = vshrl.u32 %v3941, 16
      %v4260 = vrot.slane %v4258, 5
      %v4261 = vshll.u32 %v3941, 16
      %v4263 = vrot.slane %v4261, 6
      %v4264 = vor.u32 %v4260, %v4263
      %v4265 = vsel %vm1985, %v4256, %v4264
      %v4267 = vshrl.u32 %v3444, 16
      %v4269 = vrot.slane %v4267, 5
      %v4270 = vshll.u32 %v3444, 16
      %v4272 = vrot.slane %v4270, 6
      %v4273 = vor.u32 %v4269, %v4272
      %v4274 = vrot.slane %v4273, 4
      %v4275 = vrot.slane %v3074, 5
      %v4276 = vrot.slane %v3070, 6
      %v4277 = vor.u32 %v4275, %v4276
      %v4278 = vsel %vm1985, %v4274, %v4277
      %v4279 = vrot.slane %v4277, 4
      %v4281 = vshrl.u32 %v3942, 16
      %v4283 = vrot.slane %v4281, 5
      %v4284 = vshll.u32 %v3942, 16
      %v4286 = vrot.slane %v4284, 6
      %v4287 = vor.u32 %v4283, %v4286
      %v4288 = vsel %vm1985, %v4279, %v4287
      %v4290 = vshrl.u32 %v3445, 16
      %v4292 = vrot.slane %v4290, 5
      %v4293 = vshll.u32 %v3445, 16
      %v4295 = vrot.slane %v4293, 6
      %v4296 = vor.u32 %v4292, %v4295
      %v4297 = vrot.slane %v4296, 4
      %v4298 = vrot.slane %v3098, 5
      %v4299 = vrot.slane %v3094, 6
      %v4300 = vor.u32 %v4298, %v4299
      %v4301 = vsel %vm1985, %v4297, %v4300
      %v4302 = vrot.slane %v4300, 4
      %v4304 = vshrl.u32 %v3943, 16
      %v4306 = vrot.slane %v4304, 5
      %v4307 = vshll.u32 %v3943, 16
      %v4309 = vrot.slane %v4307, 6
      %v4310 = vor.u32 %v4306, %v4309
      %v4311 = vsel %vm1985, %v4302, %v4310
      %s4312 = scalar_lea.vmem %s3, 320
      %v4313 = vld [vmem:[%s4312] sm:$0xf]
      %v4314 = vld [vmem:[%s4312 + $0x4] sm:$0xf]
      %v4315 = vld [vmem:[%s4312 + $0x8] sm:$0xf]
      %v4316 = vld [vmem:[%s4312 + $0xc] sm:$0xf]
      %v4317 = vld [vmem:[%s4312 + $0x10] sm:$0xf]
      %v4318 = vld [vmem:[%s4312 + $0x14] sm:$0xf]
      %v4319 = vld [vmem:[%s4312 + $0x18] sm:$0xf]
      %v4320 = vld [vmem:[%s4312 + $0x1c] sm:$0xf]
      %v4321 = vld [vmem:[%s4312 + $0x20] sm:$0xf]
      %v4322 = vld [vmem:[%s4312 + $0x24] sm:$0xf]
      %v4323 = vld [vmem:[%s4312 + $0x28] sm:$0xf]
      %v4324 = vld [vmem:[%s4312 + $0x2c] sm:$0xf]
      %v4325 = vld [vmem:[%s4312 + $0x30] sm:$0xf]
      %v4326 = vld [vmem:[%s4312 + $0x34] sm:$0xf]
      %v4327 = vld [vmem:[%s4312 + $0x38] sm:$0xf]
      %v4328 = vld [vmem:[%s4312 + $0x3c] sm:$0xf]
      %v4329 = vunpack.c.l.b16 %v3956
      %v4330 = vunpack.c.l.b16 %v3966
      %v4331 = vunpack.c.l.b16 %v3979
      %v4332 = vunpack.c.l.b16 %v3989
      %v4333 = vunpack.c.l.b16 %v4002
      %v4334 = vunpack.c.l.b16 %v4012
      %v4335 = vunpack.c.l.b16 %v4025
      %v4336 = vunpack.c.l.b16 %v4035
      %v4337 = vunpack.c.l.b16 %v4048
      %v4338 = vunpack.c.l.b16 %v4058
      %v4339 = vunpack.c.l.b16 %v4071
      %v4340 = vunpack.c.l.b16 %v4081
      %v4341 = vunpack.c.l.b16 %v4094
      %v4342 = vunpack.c.l.b16 %v4104
      %v4343 = vunpack.c.l.b16 %v4117
      %v4344 = vunpack.c.l.b16 %v4127
      %v4345 = vunpack.c.l.b16 %v4140
      %v4346 = vunpack.c.l.b16 %v4150
      %v4347 = vunpack.c.l.b16 %v4163
      %v4348 = vunpack.c.l.b16 %v4173
      %v4349 = vunpack.c.l.b16 %v4186
      %v4350 = vunpack.c.l.b16 %v4196
      %v4351 = vunpack.c.l.b16 %v4209
      %v4352 = vunpack.c.l.b16 %v4219
      %v4353 = vunpack.c.l.b16 %v4232
      %v4354 = vunpack.c.l.b16 %v4242
      %v4355 = vunpack.c.l.b16 %v4255
      %v4356 = vunpack.c.l.b16 %v4265
      %v4357 = vunpack.c.l.b16 %v4278
      %v4358 = vunpack.c.l.b16 %v4288
      %v4359 = vunpack.c.l.b16 %v4301
      %v4360 = vunpack.c.l.b16 %v4311
      %v4361 = vpack.c.b16 %v4330, %v4329
      %v4362 = vpack.c.b16 %v4332, %v4331
      %v4363 = vpack.c.b16 %v4334, %v4333
      %v4364 = vpack.c.b16 %v4336, %v4335
      %v4365 = vpack.c.b16 %v4338, %v4337
      %v4366 = vpack.c.b16 %v4340, %v4339
      %v4367 = vpack.c.b16 %v4342, %v4341
      %v4368 = vpack.c.b16 %v4344, %v4343
      %v4369 = vpack.c.b16 %v4346, %v4345
      %v4370 = vpack.c.b16 %v4348, %v4347
      %v4371 = vpack.c.b16 %v4350, %v4349
      %v4372 = vpack.c.b16 %v4352, %v4351
      %v4373 = vpack.c.b16 %v4354, %v4353
      %v4374 = vpack.c.b16 %v4356, %v4355
      %v4375 = vpack.c.b16 %v4358, %v4357
      %v4376 = vpack.c.b16 %v4360, %v4359
      %v4409 = vunpack.c.l.b16 %v4313
      %v4410 = vunpack.c.l.b16 %v4314
      %v4411 = vunpack.c.l.b16 %v4315
      %v4412 = vunpack.c.l.b16 %v4316
      %v4413 = vunpack.c.l.b16 %v4317
      %v4414 = vunpack.c.l.b16 %v4318
      %v4415 = vunpack.c.l.b16 %v4319
      %v4416 = vunpack.c.l.b16 %v4320
      %v4417 = vunpack.c.l.b16 %v4321
      %v4418 = vunpack.c.l.b16 %v4322
      %v4419 = vunpack.c.l.b16 %v4323
      %v4420 = vunpack.c.l.b16 %v4324
      %v4421 = vunpack.c.l.b16 %v4325
      %v4422 = vunpack.c.l.b16 %v4326
      %v4423 = vunpack.c.l.b16 %v4327
      %v4424 = vunpack.c.l.b16 %v4328
      %v4425 = vpack.c.b16 %v4410, %v4409
      %v4426 = vpack.c.b16 %v4412, %v4411
      %v4427 = vpack.c.b16 %v4414, %v4413
      %v4428 = vpack.c.b16 %v4416, %v4415
      %v4429 = vpack.c.b16 %v4418, %v4417
      %v4430 = vpack.c.b16 %v4420, %v4419
      %v4431 = vpack.c.b16 %v4422, %v4421
      %v4432 = vpack.c.b16 %v4424, %v4423
      %4441 = vmatprep.subr.bf16.mxu0 0
      %4442 = vmatpush1.bf16.msra.mxu0 %v4432
      %4443 = vmatprep.subr.bf16.mxu0 0
      %4444 = vmatpush1.bf16.msra.mxu0 %v4431
      %4445 = vmatprep.subr.bf16.mxu0 0
      %4446 = vmatpush1.bf16.msra.mxu0 %v4430
      %4447 = vmatprep.subr.bf16.mxu0 0
      %4448 = vmatpush1.bf16.msra.mxu0 %v4429
      %4449 = vmatprep.subr.bf16.mxu0 0
      %4450 = vmatpush1.bf16.msra.mxu0 %v4428
      %4451 = vmatprep.subr.bf16.mxu0 0
      %4452 = vmatpush1.bf16.msra.mxu0 %v4427
      %4453 = vmatprep.subr.bf16.mxu0 0
      %4454 = vmatpush1.bf16.msra.mxu0 %v4426
      %4455 = vmatprep.subr.bf16.mxu0 0
      %4456 = vmatpush1.bf16.msra.mxu0 %v4425
      %4457 = vmatprep.subr.bf16.mxu0 0
      %4458 = vmatpush2.bf16.msra.mxu0 0
      %4459 = vmatprep.subr.bf16.mxu0 0
      %4460 = vmatpush2.bf16.msra.mxu0 0
      %4461 = vmatprep.subr.bf16.mxu0 0
      %4462 = vmatpush2.bf16.msra.mxu0 0
      %4463 = vmatprep.subr.bf16.mxu0 0
      %4464 = vmatpush2.bf16.msra.mxu0 0
      %4465 = vmatprep.subr.bf16.mxu0 0
      %4466 = vmatpush2.bf16.msra.mxu0 0
      %4467 = vmatprep.subr.bf16.mxu0 0
      %4468 = vmatpush2.bf16.msra.mxu0 0
      %4469 = vmatprep.subr.bf16.mxu0 0
      %4470 = vmatpush2.bf16.msra.mxu0 0
      %4471 = vmatprep.subr.bf16.mxu0 0
      %4472 = vmatpush2.bf16.msra.mxu0 0
      %4473 = vmatprep.mubr.bf16.mxu0 0
      %4474 = vmatmul.mubr.bf16.gmra.mxu0 %v4361
      %v4475 = vpop.f32.mrf.mxu0
      %v4476 = vadd.f32 0.0, %v4475
      %v4477 = vpop.f32.mrf.mxu0
      %v4478 = vpop.f32.mrf.mxu0
      %v4479 = vadd.f32 0.0, %v4478
      %v4480 = vpop.f32.mrf.mxu0
      %4481 = vmatprep.mubr.bf16.mxu0 0
      %4482 = vmatmul.mubr.bf16.gmra.mxu0 %v4362
      %v4483 = vpop.f32.mrf.mxu0
      %v4484 = vadd.f32 0.0, %v4483
      %v4485 = vpop.f32.mrf.mxu0
      %v4486 = vpop.f32.mrf.mxu0
      %v4487 = vadd.f32 0.0, %v4486
      %v4488 = vpop.f32.mrf.mxu0
      %4489 = vmatprep.mubr.bf16.mxu0 0
      %4490 = vmatmul.mubr.bf16.gmra.mxu0 %v4363
      %v4491 = vpop.f32.mrf.mxu0
      %v4492 = vadd.f32 0.0, %v4491
      %v4493 = vpop.f32.mrf.mxu0
      %v4494 = vpop.f32.mrf.mxu0
      %v4495 = vadd.f32 0.0, %v4494
      %v4496 = vpop.f32.mrf.mxu0
      %4497 = vmatprep.mubr.bf16.mxu0 0
      %4498 = vmatmul.mubr.bf16.gmra.mxu0 %v4364
      %v4499 = vpop.f32.mrf.mxu0
      %v4500 = vadd.f32 0.0, %v4499
      %v4501 = vpop.f32.mrf.mxu0
      %v4502 = vpop.f32.mrf.mxu0
      %v4503 = vadd.f32 0.0, %v4502
      %v4504 = vpop.f32.mrf.mxu0
      %4505 = vmatprep.mubr.bf16.mxu0 0
      %4506 = vmatmul.mubr.bf16.gmra.mxu0 %v4365
      %v4507 = vpop.f32.mrf.mxu0
      %v4508 = vadd.f32 0.0, %v4507
      %v4509 = vpop.f32.mrf.mxu0
      %v4510 = vpop.f32.mrf.mxu0
      %v4511 = vadd.f32 0.0, %v4510
      %v4512 = vpop.f32.mrf.mxu0
      %4513 = vmatprep.mubr.bf16.mxu0 0
      %4514 = vmatmul.mubr.bf16.gmra.mxu0 %v4366
      %v4515 = vpop.f32.mrf.mxu0
      %v4516 = vadd.f32 0.0, %v4515
      %v4517 = vpop.f32.mrf.mxu0
      %v4518 = vpop.f32.mrf.mxu0
      %v4519 = vadd.f32 0.0, %v4518
      %v4520 = vpop.f32.mrf.mxu0
      %4521 = vmatprep.mubr.bf16.mxu0 0
      %4522 = vmatmul.mubr.bf16.gmra.mxu0 %v4367
      %v4523 = vpop.f32.mrf.mxu0
      %v4524 = vadd.f32 0.0, %v4523
      %v4525 = vpop.f32.mrf.mxu0
      %v4526 = vpop.f32.mrf.mxu0
      %v4527 = vadd.f32 0.0, %v4526
      %v4528 = vpop.f32.mrf.mxu0
      %4529 = vmatprep.mubr.bf16.mxu0 0
      %4530 = vmatmul.mubr.bf16.gmra.mxu0 %v4368
      %v4531 = vpop.f32.mrf.mxu0
      %v4532 = vadd.f32 0.0, %v4531
      %v4533 = vpop.f32.mrf.mxu0
      %v4534 = vpop.f32.mrf.mxu0
      %v4535 = vadd.f32 0.0, %v4534
      %v4536 = vpop.f32.mrf.mxu0
      %4537 = vmatprep.mubr.bf16.mxu0 0
      %4538 = vmatmul.mubr.bf16.gmra.mxu0 %v4369
      %v4539 = vpop.f32.mrf.mxu0
      %v4540 = vadd.f32 0.0, %v4539
      %v4541 = vpop.f32.mrf.mxu0
      %v4542 = vpop.f32.mrf.mxu0
      %v4543 = vadd.f32 0.0, %v4542
      %v4544 = vpop.f32.mrf.mxu0
      %4545 = vmatprep.mubr.bf16.mxu0 0
      %4546 = vmatmul.mubr.bf16.gmra.mxu0 %v4370
      %v4547 = vpop.f32.mrf.mxu0
      %v4548 = vadd.f32 0.0, %v4547
      %v4549 = vpop.f32.mrf.mxu0
      %v4550 = vpop.f32.mrf.mxu0
      %v4551 = vadd.f32 0.0, %v4550
      %v4552 = vpop.f32.mrf.mxu0
      %4553 = vmatprep.mubr.bf16.mxu0 0
      %4554 = vmatmul.mubr.bf16.gmra.mxu0 %v4371
      %v4555 = vpop.f32.mrf.mxu0
      %v4556 = vadd.f32 0.0, %v4555
      %v4557 = vpop.f32.mrf.mxu0
      %v4558 = vpop.f32.mrf.mxu0
      %v4559 = vadd.f32 0.0, %v4558
      %v4560 = vpop.f32.mrf.mxu0
      %4561 = vmatprep.mubr.bf16.mxu0 0
      %4562 = vmatmul.mubr.bf16.gmra.mxu0 %v4372
      %v4563 = vpop.f32.mrf.mxu0
      %v4564 = vadd.f32 0.0, %v4563
      %v4565 = vpop.f32.mrf.mxu0
      %v4566 = vpop.f32.mrf.mxu0
      %v4567 = vadd.f32 0.0, %v4566
      %v4568 = vpop.f32.mrf.mxu0
      %4569 = vmatprep.mubr.bf16.mxu0 0
      %4570 = vmatmul.mubr.bf16.gmra.mxu0 %v4373
      %v4571 = vpop.f32.mrf.mxu0
      %v4572 = vadd.f32 0.0, %v4571
      %v4573 = vpop.f32.mrf.mxu0
      %v4574 = vpop.f32.mrf.mxu0
      %v4575 = vadd.f32 0.0, %v4574
      %v4576 = vpop.f32.mrf.mxu0
      %4577 = vmatprep.mubr.bf16.mxu0 0
      %4578 = vmatmul.mubr.bf16.gmra.mxu0 %v4374
      %v4579 = vpop.f32.mrf.mxu0
      %v4580 = vadd.f32 0.0, %v4579
      %v4581 = vpop.f32.mrf.mxu0
      %v4582 = vpop.f32.mrf.mxu0
      %v4583 = vadd.f32 0.0, %v4582
      %v4584 = vpop.f32.mrf.mxu0
      %4585 = vmatprep.mubr.bf16.mxu0 0
      %4586 = vmatmul.mubr.bf16.gmra.mxu0 %v4375
      %v4587 = vpop.f32.mrf.mxu0
      %v4588 = vadd.f32 0.0, %v4587
      %v4589 = vpop.f32.mrf.mxu0
      %v4590 = vpop.f32.mrf.mxu0
      %v4591 = vadd.f32 0.0, %v4590
      %v4592 = vpop.f32.mrf.mxu0
      %4593 = vmatprep.mubr.bf16.mxu0 0
      %4594 = vmatmul.mubr.bf16.gmra.mxu0 %v4376
      %v4595 = vpop.f32.mrf.mxu0
      %v4596 = vadd.f32 0.0, %v4595
      %v4597 = vpop.f32.mrf.mxu0
      %v4598 = vpop.f32.mrf.mxu0
      %v4599 = vadd.f32 0.0, %v4598
      %v4600 = vpop.f32.mrf.mxu0
      %4601 = vdwg.mxu0
      %v4602 = vadd.f32 %v3896, %v4476
      %v4603 = vadd.f32 %v3897, %v4479
      %v4604 = vadd.f32 %v3898, %v4484
      %v4605 = vadd.f32 %v3899, %v4487
      %v4606 = vadd.f32 %v3900, %v4492
      %v4607 = vadd.f32 %v3901, %v4495
      %v4608 = vadd.f32 %v3902, %v4500
      %v4609 = vadd.f32 %v3903, %v4503
      %v4610 = vadd.f32 %v3904, %v4508
      %v4611 = vadd.f32 %v3905, %v4511
      %v4612 = vadd.f32 %v3906, %v4516
      %v4613 = vadd.f32 %v3907, %v4519
      %v4614 = vadd.f32 %v3908, %v4524
      %v4615 = vadd.f32 %v3909, %v4527
      %v4616 = vadd.f32 %v3910, %v4532
      %v4617 = vadd.f32 %v3911, %v4535
      %v4618 = vadd.f32 %v3912, %v4540
      %v4619 = vadd.f32 %v3913, %v4543
      %v4620 = vadd.f32 %v3914, %v4548
      %v4621 = vadd.f32 %v3915, %v4551
      %v4622 = vadd.f32 %v3916, %v4556
      %v4623 = vadd.f32 %v3917, %v4559
      %v4624 = vadd.f32 %v3918, %v4564
      %v4625 = vadd.f32 %v3919, %v4567
      %v4626 = vadd.f32 %v3920, %v4572
      %v4627 = vadd.f32 %v3921, %v4575
      %v4628 = vadd.f32 %v3922, %v4580
      %v4629 = vadd.f32 %v3923, %v4583
      %v4630 = vadd.f32 %v3924, %v4588
      %v4631 = vadd.f32 %v3925, %v4591
      %v4632 = vadd.f32 %v3926, %v4596
      %v4633 = vadd.f32 %v3927, %v4599
      %s4634 = scalar_lea.vmem [#allocation2], 24
      %v4635 = vld [vmem:[%s4634] sm:$0xf]
      %v4636 = vld [vmem:[%s4634 + $0x4] sm:$0xf]
      %v4637 = vld [vmem:[%s4634 + $0x8] sm:$0x1]
      %v4638 = vld [vmem:[%s4634 + $0xc] sm:$0xf]
      %v4639 = vld [vmem:[%s4634 + $0x10] sm:$0xf]
      %v4640 = vld [vmem:[%s4634 + $0x14] sm:$0x1]
      %v4641 = vld [vmem:[%s4634 + $0x18] sm:$0xf]
      %v4642 = vld [vmem:[%s4634 + $0x1c] sm:$0xf]
      %v4643 = vld [vmem:[%s4634 + $0x20] sm:$0x1]
      %v4644 = vld [vmem:[%s4634 + $0x24] sm:$0xf]
      %v4645 = vld [vmem:[%s4634 + $0x28] sm:$0xf]
      %v4646 = vld [vmem:[%s4634 + $0x2c] sm:$0x1]
      %v4647 = vld [vmem:[%s4634 + $0x30] sm:$0xf]
      %v4648 = vld [vmem:[%s4634 + $0x34] sm:$0xf]
      %v4649 = vld [vmem:[%s4634 + $0x38] sm:$0x1]
      %v4650 = vld [vmem:[%s4634 + $0x3c] sm:$0xf]
      %v4651 = vld [vmem:[%s4634 + $0x40] sm:$0xf]
      %v4652 = vld [vmem:[%s4634 + $0x44] sm:$0x1]
      %v4653 = vld [vmem:[%s4634 + $0x48] sm:$0xf]
      %v4654 = vld [vmem:[%s4634 + $0x4c] sm:$0xf]
      %v4655 = vld [vmem:[%s4634 + $0x50] sm:$0x1]
      %v4656 = vld [vmem:[%s4634 + $0x54] sm:$0xf]
      %v4657 = vld [vmem:[%s4634 + $0x58] sm:$0xf]
      %v4658 = vld [vmem:[%s4634 + $0x5c] sm:$0x1]
      %v4659 = vld [vmem:[%s4634 + $0x60] sm:$0xf]
      %v4660 = vld [vmem:[%s4634 + $0x64] sm:$0xf]
      %v4661 = vld [vmem:[%s4634 + $0x68] sm:$0x1]
      %v4662 = vld [vmem:[%s4634 + $0x6c] sm:$0xf]
      %v4663 = vld [vmem:[%s4634 + $0x70] sm:$0xf]
      %v4664 = vld [vmem:[%s4634 + $0x74] sm:$0x1]
      %v4665 = vld [vmem:[%s4634 + $0x78] sm:$0xf]
      %v4666 = vld [vmem:[%s4634 + $0x7c] sm:$0xf]
      %v4667 = vld [vmem:[%s4634 + $0x80] sm:$0x1]
      %v4668 = vld [vmem:[%s4634 + $0x84] sm:$0xf]
      %v4669 = vld [vmem:[%s4634 + $0x88] sm:$0xf]
      %v4670 = vld [vmem:[%s4634 + $0x8c] sm:$0x1]
      %v4671 = vld [vmem:[%s4634 + $0x90] sm:$0xf]
      %v4672 = vld [vmem:[%s4634 + $0x94] sm:$0xf]
      %v4673 = vld [vmem:[%s4634 + $0x98] sm:$0x1]
      %v4674 = vld [vmem:[%s4634 + $0x9c] sm:$0xf]
      %v4675 = vld [vmem:[%s4634 + $0xa0] sm:$0xf]
      %v4676 = vld [vmem:[%s4634 + $0xa4] sm:$0x1]
      %v4677 = vld [vmem:[%s4634 + $0xa8] sm:$0xf]
      %v4678 = vld [vmem:[%s4634 + $0xac] sm:$0xf]
      %v4679 = vld [vmem:[%s4634 + $0xb0] sm:$0x1]
      %v4680 = vld [vmem:[%s4634 + $0xb4] sm:$0xf]
      %v4681 = vld [vmem:[%s4634 + $0xb8] sm:$0xf]
      %v4682 = vld [vmem:[%s4634 + $0xbc] sm:$0x1]
      %v4684 = vshrl.u32 %v4635, 16
      %v4686 = vrot.slane %v4684, 4
      %v4687 = vshll.u32 %v4635, 16
      %v4689 = vrot.slane %v4687, 5
      %v4690 = vor.u32 %v4686, %v4689
      %v4691 = vrot.slane %v4690, 4
      %v4693 = vshll.u32 %v4636, 16
      %v4695 = vrot.slane %v4693, 5
      %v4696 = vsel %vm824, %v4691, %v4695
      %v4697 = vshrl.u32 %v4636, 16
      %v4699 = vrot.slane %v4697, 4
      %v4700 = vor.u32 %v4699, %v4695
      %v4701 = vrot.slane %v4700, 4
      %v4703 = vshll.u32 %v4637, 16
      %v4705 = vrot.slane %v4703, 5
      %v4706 = vsel %vm824, %v4701, %v4705
      %v4708 = vshrl.u32 %v4638, 16
      %v4710 = vrot.slane %v4708, 4
      %v4711 = vshll.u32 %v4638, 16
      %v4713 = vrot.slane %v4711, 5
      %v4714 = vor.u32 %v4710, %v4713
      %v4715 = vrot.slane %v4714, 4
      %v4717 = vshll.u32 %v4639, 16
      %v4719 = vrot.slane %v4717, 5
      %v4720 = vsel %vm824, %v4715, %v4719
      %v4721 = vshrl.u32 %v4639, 16
      %v4723 = vrot.slane %v4721, 4
      %v4724 = vor.u32 %v4723, %v4719
      %v4725 = vrot.slane %v4724, 4
      %v4727 = vshll.u32 %v4640, 16
      %v4729 = vrot.slane %v4727, 5
      %v4730 = vsel %vm824, %v4725, %v4729
      %v4732 = vshrl.u32 %v4641, 16
      %v4734 = vrot.slane %v4732, 4
      %v4735 = vshll.u32 %v4641, 16
      %v4737 = vrot.slane %v4735, 5
      %v4738 = vor.u32 %v4734, %v4737
      %v4739 = vrot.slane %v4738, 4
      %v4741 = vshll.u32 %v4642, 16
      %v4743 = vrot.slane %v4741, 5
      %v4744 = vsel %vm824, %v4739, %v4743
      %v4745 = vshrl.u32 %v4642, 16
      %v4747 = vrot.slane %v4745, 4
      %v4748 = vor.u32 %v4747, %v4743
      %v4749 = vrot.slane %v4748, 4
      %v4751 = vshll.u32 %v4643, 16
      %v4753 = vrot.slane %v4751, 5
      %v4754 = vsel %vm824, %v4749, %v4753
      %v4756 = vshrl.u32 %v4644, 16
      %v4758 = vrot.slane %v4756, 4
      %v4759 = vshll.u32 %v4644, 16
      %v4761 = vrot.slane %v4759, 5
      %v4762 = vor.u32 %v4758, %v4761
      %v4763 = vrot.slane %v4762, 4
      %v4765 = vshll.u32 %v4645, 16
      %v4767 = vrot.slane %v4765, 5
      %v4768 = vsel %vm824, %v4763, %v4767
      %v4769 = vshrl.u32 %v4645, 16
      %v4771 = vrot.slane %v4769, 4
      %v4772 = vor.u32 %v4771, %v4767
      %v4773 = vrot.slane %v4772, 4
      %v4775 = vshll.u32 %v4646, 16
      %v4777 = vrot.slane %v4775, 5
      %v4778 = vsel %vm824, %v4773, %v4777
      %v4780 = vshrl.u32 %v4647, 16
      %v4782 = vrot.slane %v4780, 4
      %v4783 = vshll.u32 %v4647, 16
      %v4785 = vrot.slane %v4783, 5
      %v4786 = vor.u32 %v4782, %v4785
      %v4787 = vrot.slane %v4786, 4
      %v4789 = vshll.u32 %v4648, 16
      %v4791 = vrot.slane %v4789, 5
      %v4792 = vsel %vm824, %v4787, %v4791
      %v4793 = vshrl.u32 %v4648, 16
      %v4795 = vrot.slane %v4793, 4
      %v4796 = vor.u32 %v4795, %v4791
      %v4797 = vrot.slane %v4796, 4
      %v4799 = vshll.u32 %v4649, 16
      %v4801 = vrot.slane %v4799, 5
      %v4802 = vsel %vm824, %v4797, %v4801
      %v4804 = vshrl.u32 %v4650, 16
      %v4806 = vrot.slane %v4804, 4
      %v4807 = vshll.u32 %v4650, 16
      %v4809 = vrot.slane %v4807, 5
      %v4810 = vor.u32 %v4806, %v4809
      %v4811 = vrot.slane %v4810, 4
      %v4813 = vshll.u32 %v4651, 16
      %v4815 = vrot.slane %v4813, 5
      %v4816 = vsel %vm824, %v4811, %v4815
      %v4817 = vshrl.u32 %v4651, 16
      %v4819 = vrot.slane %v4817, 4
      %v4820 = vor.u32 %v4819, %v4815
      %v4821 = vrot.slane %v4820, 4
      %v4823 = vshll.u32 %v4652, 16
      %v4825 = vrot.slane %v4823, 5
      %v4826 = vsel %vm824, %v4821, %v4825
      %v4828 = vshrl.u32 %v4653, 16
      %v4830 = vrot.slane %v4828, 4
      %v4831 = vshll.u32 %v4653, 16
      %v4833 = vrot.slane %v4831, 5
      %v4834 = vor.u32 %v4830, %v4833
      %v4835 = vrot.slane %v4834, 4
      %v4837 = vshll.u32 %v4654, 16
      %v4839 = vrot.slane %v4837, 5
      %v4840 = vsel %vm824, %v4835, %v4839
      %v4841 = vshrl.u32 %v4654, 16
      %v4843 = vrot.slane %v4841, 4
      %v4844 = vor.u32 %v4843, %v4839
      %v4845 = vrot.slane %v4844, 4
      %v4847 = vshll.u32 %v4655, 16
      %v4849 = vrot.slane %v4847, 5
      %v4850 = vsel %vm824, %v4845, %v4849
      %v4852 = vshrl.u32 %v4656, 16
      %v4854 = vrot.slane %v4852, 4
      %v4855 = vshll.u32 %v4656, 16
      %v4857 = vrot.slane %v4855, 5
      %v4858 = vor.u32 %v4854, %v4857
      %v4859 = vrot.slane %v4858, 4
      %v4861 = vshll.u32 %v4657, 16
      %v4863 = vrot.slane %v4861, 5
      %v4864 = vsel %vm824, %v4859, %v4863
      %v4865 = vshrl.u32 %v4657, 16
      %v4867 = vrot.slane %v4865, 4
      %v4868 = vor.u32 %v4867, %v4863
      %v4869 = vrot.slane %v4868, 4
      %v4871 = vshll.u32 %v4658, 16
      %v4873 = vrot.slane %v4871, 5
      %v4874 = vsel %vm824, %v4869, %v4873
      %v4876 = vshrl.u32 %v4659, 16
      %v4878 = vrot.slane %v4876, 4
      %v4879 = vshll.u32 %v4659, 16
      %v4881 = vrot.slane %v4879, 5
      %v4882 = vor.u32 %v4878, %v4881
      %v4883 = vrot.slane %v4882, 4
      %v4885 = vshll.u32 %v4660, 16
      %v4887 = vrot.slane %v4885, 5
      %v4888 = vsel %vm824, %v4883, %v4887
      %v4889 = vshrl.u32 %v4660, 16
      %v4891 = vrot.slane %v4889, 4
      %v4892 = vor.u32 %v4891, %v4887
      %v4893 = vrot.slane %v4892, 4
      %v4895 = vshll.u32 %v4661, 16
      %v4897 = vrot.slane %v4895, 5
      %v4898 = vsel %vm824, %v4893, %v4897
      %v4900 = vshrl.u32 %v4662, 16
      %v4902 = vrot.slane %v4900, 4
      %v4903 = vshll.u32 %v4662, 16
      %v4905 = vrot.slane %v4903, 5
      %v4906 = vor.u32 %v4902, %v4905
      %v4907 = vrot.slane %v4906, 4
      %v4909 = vshll.u32 %v4663, 16
      %v4911 = vrot.slane %v4909, 5
      %v4912 = vsel %vm824, %v4907, %v4911
      %v4913 = vshrl.u32 %v4663, 16
      %v4915 = vrot.slane %v4913, 4
      %v4916 = vor.u32 %v4915, %v4911
      %v4917 = vrot.slane %v4916, 4
      %v4919 = vshll.u32 %v4664, 16
      %v4921 = vrot.slane %v4919, 5
      %v4922 = vsel %vm824, %v4917, %v4921
      %v4924 = vshrl.u32 %v4665, 16
      %v4926 = vrot.slane %v4924, 4
      %v4927 = vshll.u32 %v4665, 16
      %v4929 = vrot.slane %v4927, 5
      %v4930 = vor.u32 %v4926, %v4929
      %v4931 = vrot.slane %v4930, 4
      %v4933 = vshll.u32 %v4666, 16
      %v4935 = vrot.slane %v4933, 5
      %v4936 = vsel %vm824, %v4931, %v4935
      %v4937 = vshrl.u32 %v4666, 16
      %v4939 = vrot.slane %v4937, 4
      %v4940 = vor.u32 %v4939, %v4935
      %v4941 = vrot.slane %v4940, 4
      %v4943 = vshll.u32 %v4667, 16
      %v4945 = vrot.slane %v4943, 5
      %v4946 = vsel %vm824, %v4941, %v4945
      %v4948 = vshrl.u32 %v4668, 16
      %v4950 = vrot.slane %v4948, 4
      %v4951 = vshll.u32 %v4668, 16
      %v4953 = vrot.slane %v4951, 5
      %v4954 = vor.u32 %v4950, %v4953
      %v4955 = vrot.slane %v4954, 4
      %v4957 = vshll.u32 %v4669, 16
      %v4959 = vrot.slane %v4957, 5
      %v4960 = vsel %vm824, %v4955, %v4959
      %v4961 = vshrl.u32 %v4669, 16
      %v4963 = vrot.slane %v4961, 4
      %v4964 = vor.u32 %v4963, %v4959
      %v4965 = vrot.slane %v4964, 4
      %v4967 = vshll.u32 %v4670, 16
      %v4969 = vrot.slane %v4967, 5
      %v4970 = vsel %vm824, %v4965, %v4969
      %v4972 = vshrl.u32 %v4671, 16
      %v4974 = vrot.slane %v4972, 4
      %v4975 = vshll.u32 %v4671, 16
      %v4977 = vrot.slane %v4975, 5
      %v4978 = vor.u32 %v4974, %v4977
      %v4979 = vrot.slane %v4978, 4
      %v4981 = vshll.u32 %v4672, 16
      %v4983 = vrot.slane %v4981, 5
      %v4984 = vsel %vm824, %v4979, %v4983
      %v4985 = vshrl.u32 %v4672, 16
      %v4987 = vrot.slane %v4985, 4
      %v4988 = vor.u32 %v4987, %v4983
      %v4989 = vrot.slane %v4988, 4
      %v4991 = vshll.u32 %v4673, 16
      %v4993 = vrot.slane %v4991, 5
      %v4994 = vsel %vm824, %v4989, %v4993
      %v4996 = vshrl.u32 %v4674, 16
      %v4998 = vrot.slane %v4996, 4
      %v4999 = vshll.u32 %v4674, 16
      %v5001 = vrot.slane %v4999, 5
      %v5002 = vor.u32 %v4998, %v5001
      %v5003 = vrot.slane %v5002, 4
      %v5005 = vshll.u32 %v4675, 16
      %v5007 = vrot.slane %v5005, 5
      %v5008 = vsel %vm824, %v5003, %v5007
      %v5009 = vshrl.u32 %v4675, 16
      %v5011 = vrot.slane %v5009, 4
      %v5012 = vor.u32 %v5011, %v5007
      %v5013 = vrot.slane %v5012, 4
      %v5015 = vshll.u32 %v4676, 16
      %v5017 = vrot.slane %v5015, 5
      %v5018 = vsel %vm824, %v5013, %v5017
      %v5020 = vshrl.u32 %v4677, 16
      %v5022 = vrot.slane %v5020, 4
      %v5023 = vshll.u32 %v4677, 16
      %v5025 = vrot.slane %v5023, 5
      %v5026 = vor.u32 %v5022, %v5025
      %v5027 = vrot.slane %v5026, 4
      %v5029 = vshll.u32 %v4678, 16
      %v5031 = vrot.slane %v5029, 5
      %v5032 = vsel %vm824, %v5027, %v5031
      %v5033 = vshrl.u32 %v4678, 16
      %v5035 = vrot.slane %v5033, 4
      %v5036 = vor.u32 %v5035, %v5031
      %v5037 = vrot.slane %v5036, 4
      %v5039 = vshll.u32 %v4679, 16
      %v5041 = vrot.slane %v5039, 5
      %v5042 = vsel %vm824, %v5037, %v5041
      %v5044 = vshrl.u32 %v4680, 16
      %v5046 = vrot.slane %v5044, 4
      %v5047 = vshll.u32 %v4680, 16
      %v5049 = vrot.slane %v5047, 5
      %v5050 = vor.u32 %v5046, %v5049
      %v5051 = vrot.slane %v5050, 4
      %v5053 = vshll.u32 %v4681, 16
      %v5055 = vrot.slane %v5053, 5
      %v5056 = vsel %vm824, %v5051, %v5055
      %v5057 = vshrl.u32 %v4681, 16
      %v5059 = vrot.slane %v5057, 4
      %v5060 = vor.u32 %v5059, %v5055
      %v5061 = vrot.slane %v5060, 4
      %v5063 = vshll.u32 %v4682, 16
      %v5065 = vrot.slane %v5063, 5
      %v5066 = vsel %vm824, %v5061, %v5065
      %s5067 = scalar_lea.vmem %s3, 384
      %v5068 = vld [vmem:[%s5067] sm:$0xf]
      %v5069 = vld [vmem:[%s5067 + $0x4] sm:$0xf]
      %v5070 = vld [vmem:[%s5067 + $0x8] sm:$0xf]
      %v5071 = vld [vmem:[%s5067 + $0xc] sm:$0xf]
      %v5072 = vld [vmem:[%s5067 + $0x10] sm:$0xf]
      %v5073 = vld [vmem:[%s5067 + $0x14] sm:$0xf]
      %v5074 = vld [vmem:[%s5067 + $0x18] sm:$0xf]
      %v5075 = vld [vmem:[%s5067 + $0x1c] sm:$0xf]
      %v5076 = vld [vmem:[%s5067 + $0x20] sm:$0xf]
      %v5077 = vld [vmem:[%s5067 + $0x24] sm:$0xf]
      %v5078 = vld [vmem:[%s5067 + $0x28] sm:$0xf]
      %v5079 = vld [vmem:[%s5067 + $0x2c] sm:$0xf]
      %v5080 = vld [vmem:[%s5067 + $0x30] sm:$0xf]
      %v5081 = vld [vmem:[%s5067 + $0x34] sm:$0xf]
      %v5082 = vld [vmem:[%s5067 + $0x38] sm:$0xf]
      %v5083 = vld [vmem:[%s5067 + $0x3c] sm:$0xf]
      %v5084 = vunpack.c.l.b16 %v4696
      %v5085 = vunpack.c.l.b16 %v4706
      %v5086 = vunpack.c.l.b16 %v4720
      %v5087 = vunpack.c.l.b16 %v4730
      %v5088 = vunpack.c.l.b16 %v4744
      %v5089 = vunpack.c.l.b16 %v4754
      %v5090 = vunpack.c.l.b16 %v4768
      %v5091 = vunpack.c.l.b16 %v4778
      %v5092 = vunpack.c.l.b16 %v4792
      %v5093 = vunpack.c.l.b16 %v4802
      %v5094 = vunpack.c.l.b16 %v4816
      %v5095 = vunpack.c.l.b16 %v4826
      %v5096 = vunpack.c.l.b16 %v4840
      %v5097 = vunpack.c.l.b16 %v4850
      %v5098 = vunpack.c.l.b16 %v4864
      %v5099 = vunpack.c.l.b16 %v4874
      %v5100 = vunpack.c.l.b16 %v4888
      %v5101 = vunpack.c.l.b16 %v4898
      %v5102 = vunpack.c.l.b16 %v4912
      %v5103 = vunpack.c.l.b16 %v4922
      %v5104 = vunpack.c.l.b16 %v4936
      %v5105 = vunpack.c.l.b16 %v4946
      %v5106 = vunpack.c.l.b16 %v4960
      %v5107 = vunpack.c.l.b16 %v4970
      %v5108 = vunpack.c.l.b16 %v4984
      %v5109 = vunpack.c.l.b16 %v4994
      %v5110 = vunpack.c.l.b16 %v5008
      %v5111 = vunpack.c.l.b16 %v5018
      %v5112 = vunpack.c.l.b16 %v5032
      %v5113 = vunpack.c.l.b16 %v5042
      %v5114 = vunpack.c.l.b16 %v5056
      %v5115 = vunpack.c.l.b16 %v5066
      %v5116 = vpack.c.b16 %v5085, %v5084
      %v5117 = vpack.c.b16 %v5087, %v5086
      %v5118 = vpack.c.b16 %v5089, %v5088
      %v5119 = vpack.c.b16 %v5091, %v5090
      %v5120 = vpack.c.b16 %v5093, %v5092
      %v5121 = vpack.c.b16 %v5095, %v5094
      %v5122 = vpack.c.b16 %v5097, %v5096
      %v5123 = vpack.c.b16 %v5099, %v5098
      %v5124 = vpack.c.b16 %v5101, %v5100
      %v5125 = vpack.c.b16 %v5103, %v5102
      %v5126 = vpack.c.b16 %v5105, %v5104
      %v5127 = vpack.c.b16 %v5107, %v5106
      %v5128 = vpack.c.b16 %v5109, %v5108
      %v5129 = vpack.c.b16 %v5111, %v5110
      %v5130 = vpack.c.b16 %v5113, %v5112
      %v5131 = vpack.c.b16 %v5115, %v5114
      %v5164 = vunpack.c.l.b16 %v5068
      %v5165 = vunpack.c.l.b16 %v5069
      %v5166 = vunpack.c.l.b16 %v5070
      %v5167 = vunpack.c.l.b16 %v5071
      %v5168 = vunpack.c.l.b16 %v5072
      %v5169 = vunpack.c.l.b16 %v5073
      %v5170 = vunpack.c.l.b16 %v5074
      %v5171 = vunpack.c.l.b16 %v5075
      %v5172 = vunpack.c.l.b16 %v5076
      %v5173 = vunpack.c.l.b16 %v5077
      %v5174 = vunpack.c.l.b16 %v5078
      %v5175 = vunpack.c.l.b16 %v5079
      %v5176 = vunpack.c.l.b16 %v5080
      %v5177 = vunpack.c.l.b16 %v5081
      %v5178 = vunpack.c.l.b16 %v5082
      %v5179 = vunpack.c.l.b16 %v5083
      %v5180 = vpack.c.b16 %v5165, %v5164
      %v5181 = vpack.c.b16 %v5167, %v5166
      %v5182 = vpack.c.b16 %v5169, %v5168
      %v5183 = vpack.c.b16 %v5171, %v5170
      %v5184 = vpack.c.b16 %v5173, %v5172
      %v5185 = vpack.c.b16 %v5175, %v5174
      %v5186 = vpack.c.b16 %v5177, %v5176
      %v5187 = vpack.c.b16 %v5179, %v5178
      %5196 = vmatprep.subr.bf16.mxu0 0
      %5197 = vmatpush1.bf16.msra.mxu0 %v5187
      %5198 = vmatprep.subr.bf16.mxu0 0
      %5199 = vmatpush1.bf16.msra.mxu0 %v5186
      %5200 = vmatprep.subr.bf16.mxu0 0
      %5201 = vmatpush1.bf16.msra.mxu0 %v5185
      %5202 = vmatprep.subr.bf16.mxu0 0
      %5203 = vmatpush1.bf16.msra.mxu0 %v5184
      %5204 = vmatprep.subr.bf16.mxu0 0
      %5205 = vmatpush1.bf16.msra.mxu0 %v5183
      %5206 = vmatprep.subr.bf16.mxu0 0
      %5207 = vmatpush1.bf16.msra.mxu0 %v5182
      %5208 = vmatprep.subr.bf16.mxu0 0
      %5209 = vmatpush1.bf16.msra.mxu0 %v5181
      %5210 = vmatprep.subr.bf16.mxu0 0
      %5211 = vmatpush1.bf16.msra.mxu0 %v5180
      %5212 = vmatprep.subr.bf16.mxu0 0
      %5213 = vmatpush2.bf16.msra.mxu0 0
      %5214 = vmatprep.subr.bf16.mxu0 0
      %5215 = vmatpush2.bf16.msra.mxu0 0
      %5216 = vmatprep.subr.bf16.mxu0 0
      %5217 = vmatpush2.bf16.msra.mxu0 0
      %5218 = vmatprep.subr.bf16.mxu0 0
      %5219 = vmatpush2.bf16.msra.mxu0 0
      %5220 = vmatprep.subr.bf16.mxu0 0
      %5221 = vmatpush2.bf16.msra.mxu0 0
      %5222 = vmatprep.subr.bf16.mxu0 0
      %5223 = vmatpush2.bf16.msra.mxu0 0
      %5224 = vmatprep.subr.bf16.mxu0 0
      %5225 = vmatpush2.bf16.msra.mxu0 0
      %5226 = vmatprep.subr.bf16.mxu0 0
      %5227 = vmatpush2.bf16.msra.mxu0 0
      %5228 = vmatprep.mubr.bf16.mxu0 0
      %5229 = vmatmul.mubr.bf16.gmra.mxu0 %v5116
      %v5230 = vpop.f32.mrf.mxu0
      %v5231 = vadd.f32 0.0, %v5230
      %v5232 = vpop.f32.mrf.mxu0
      %v5233 = vpop.f32.mrf.mxu0
      %v5234 = vadd.f32 0.0, %v5233
      %v5235 = vpop.f32.mrf.mxu0
      %5236 = vmatprep.mubr.bf16.mxu0 0
      %5237 = vmatmul.mubr.bf16.gmra.mxu0 %v5117
      %v5238 = vpop.f32.mrf.mxu0
      %v5239 = vadd.f32 0.0, %v5238
      %v5240 = vpop.f32.mrf.mxu0
      %v5241 = vpop.f32.mrf.mxu0
      %v5242 = vadd.f32 0.0, %v5241
      %v5243 = vpop.f32.mrf.mxu0
      %5244 = vmatprep.mubr.bf16.mxu0 0
      %5245 = vmatmul.mubr.bf16.gmra.mxu0 %v5118
      %v5246 = vpop.f32.mrf.mxu0
      %v5247 = vadd.f32 0.0, %v5246
      %v5248 = vpop.f32.mrf.mxu0
      %v5249 = vpop.f32.mrf.mxu0
      %v5250 = vadd.f32 0.0, %v5249
      %v5251 = vpop.f32.mrf.mxu0
      %5252 = vmatprep.mubr.bf16.mxu0 0
      %5253 = vmatmul.mubr.bf16.gmra.mxu0 %v5119
      %v5254 = vpop.f32.mrf.mxu0
      %v5255 = vadd.f32 0.0, %v5254
      %v5256 = vpop.f32.mrf.mxu0
      %v5257 = vpop.f32.mrf.mxu0
      %v5258 = vadd.f32 0.0, %v5257
      %v5259 = vpop.f32.mrf.mxu0
      %5260 = vmatprep.mubr.bf16.mxu0 0
      %5261 = vmatmul.mubr.bf16.gmra.mxu0 %v5120
      %v5262 = vpop.f32.mrf.mxu0
      %v5263 = vadd.f32 0.0, %v5262
      %v5264 = vpop.f32.mrf.mxu0
      %v5265 = vpop.f32.mrf.mxu0
      %v5266 = vadd.f32 0.0, %v5265
      %v5267 = vpop.f32.mrf.mxu0
      %5268 = vmatprep.mubr.bf16.mxu0 0
      %5269 = vmatmul.mubr.bf16.gmra.mxu0 %v5121
      %v5270 = vpop.f32.mrf.mxu0
      %v5271 = vadd.f32 0.0, %v5270
      %v5272 = vpop.f32.mrf.mxu0
      %v5273 = vpop.f32.mrf.mxu0
      %v5274 = vadd.f32 0.0, %v5273
      %v5275 = vpop.f32.mrf.mxu0
      %5276 = vmatprep.mubr.bf16.mxu0 0
      %5277 = vmatmul.mubr.bf16.gmra.mxu0 %v5122
      %v5278 = vpop.f32.mrf.mxu0
      %v5279 = vadd.f32 0.0, %v5278
      %v5280 = vpop.f32.mrf.mxu0
      %v5281 = vpop.f32.mrf.mxu0
      %v5282 = vadd.f32 0.0, %v5281
      %v5283 = vpop.f32.mrf.mxu0
      %5284 = vmatprep.mubr.bf16.mxu0 0
      %5285 = vmatmul.mubr.bf16.gmra.mxu0 %v5123
      %v5286 = vpop.f32.mrf.mxu0
      %v5287 = vadd.f32 0.0, %v5286
      %v5288 = vpop.f32.mrf.mxu0
      %v5289 = vpop.f32.mrf.mxu0
      %v5290 = vadd.f32 0.0, %v5289
      %v5291 = vpop.f32.mrf.mxu0
      %5292 = vmatprep.mubr.bf16.mxu0 0
      %5293 = vmatmul.mubr.bf16.gmra.mxu0 %v5124
      %v5294 = vpop.f32.mrf.mxu0
      %v5295 = vadd.f32 0.0, %v5294
      %v5296 = vpop.f32.mrf.mxu0
      %v5297 = vpop.f32.mrf.mxu0
      %v5298 = vadd.f32 0.0, %v5297
      %v5299 = vpop.f32.mrf.mxu0
      %5300 = vmatprep.mubr.bf16.mxu0 0
      %5301 = vmatmul.mubr.bf16.gmra.mxu0 %v5125
      %v5302 = vpop.f32.mrf.mxu0
      %v5303 = vadd.f32 0.0, %v5302
      %v5304 = vpop.f32.mrf.mxu0
      %v5305 = vpop.f32.mrf.mxu0
      %v5306 = vadd.f32 0.0, %v5305
      %v5307 = vpop.f32.mrf.mxu0
      %5308 = vmatprep.mubr.bf16.mxu0 0
      %5309 = vmatmul.mubr.bf16.gmra.mxu0 %v5126
      %v5310 = vpop.f32.mrf.mxu0
      %v5311 = vadd.f32 0.0, %v5310
      %v5312 = vpop.f32.mrf.mxu0
      %v5313 = vpop.f32.mrf.mxu0
      %v5314 = vadd.f32 0.0, %v5313
      %v5315 = vpop.f32.mrf.mxu0
      %5316 = vmatprep.mubr.bf16.mxu0 0
      %5317 = vmatmul.mubr.bf16.gmra.mxu0 %v5127
      %v5318 = vpop.f32.mrf.mxu0
      %v5319 = vadd.f32 0.0, %v5318
      %v5320 = vpop.f32.mrf.mxu0
      %v5321 = vpop.f32.mrf.mxu0
      %v5322 = vadd.f32 0.0, %v5321
      %v5323 = vpop.f32.mrf.mxu0
      %5324 = vmatprep.mubr.bf16.mxu0 0
      %5325 = vmatmul.mubr.bf16.gmra.mxu0 %v5128
      %v5326 = vpop.f32.mrf.mxu0
      %v5327 = vadd.f32 0.0, %v5326
      %v5328 = vpop.f32.mrf.mxu0
      %v5329 = vpop.f32.mrf.mxu0
      %v5330 = vadd.f32 0.0, %v5329
      %v5331 = vpop.f32.mrf.mxu0
      %5332 = vmatprep.mubr.bf16.mxu0 0
      %5333 = vmatmul.mubr.bf16.gmra.mxu0 %v5129
      %v5334 = vpop.f32.mrf.mxu0
      %v5335 = vadd.f32 0.0, %v5334
      %v5336 = vpop.f32.mrf.mxu0
      %v5337 = vpop.f32.mrf.mxu0
      %v5338 = vadd.f32 0.0, %v5337
      %v5339 = vpop.f32.mrf.mxu0
      %5340 = vmatprep.mubr.bf16.mxu0 0
      %5341 = vmatmul.mubr.bf16.gmra.mxu0 %v5130
      %v5342 = vpop.f32.mrf.mxu0
      %v5343 = vadd.f32 0.0, %v5342
      %v5344 = vpop.f32.mrf.mxu0
      %v5345 = vpop.f32.mrf.mxu0
      %v5346 = vadd.f32 0.0, %v5345
      %v5347 = vpop.f32.mrf.mxu0
      %5348 = vmatprep.mubr.bf16.mxu0 0
      %5349 = vmatmul.mubr.bf16.gmra.mxu0 %v5131
      %v5350 = vpop.f32.mrf.mxu0
      %v5351 = vadd.f32 0.0, %v5350
      %v5352 = vpop.f32.mrf.mxu0
      %v5353 = vpop.f32.mrf.mxu0
      %v5354 = vadd.f32 0.0, %v5353
      %v5355 = vpop.f32.mrf.mxu0
      %5356 = vdwg.mxu0
      %v5357 = vadd.f32 %v4602, %v5231
      %v5358 = vadd.f32 %v4603, %v5234
      %v5359 = vadd.f32 %v4604, %v5239
      %v5360 = vadd.f32 %v4605, %v5242
      %v5361 = vadd.f32 %v4606, %v5247
      %v5362 = vadd.f32 %v4607, %v5250
      %v5363 = vadd.f32 %v4608, %v5255
      %v5364 = vadd.f32 %v4609, %v5258
      %v5365 = vadd.f32 %v4610, %v5263
      %v5366 = vadd.f32 %v4611, %v5266
      %v5367 = vadd.f32 %v4612, %v5271
      %v5368 = vadd.f32 %v4613, %v5274
      %v5369 = vadd.f32 %v4614, %v5279
      %v5370 = vadd.f32 %v4615, %v5282
      %v5371 = vadd.f32 %v4616, %v5287
      %v5372 = vadd.f32 %v4617, %v5290
      %v5373 = vadd.f32 %v4618, %v5295
      %v5374 = vadd.f32 %v4619, %v5298
      %v5375 = vadd.f32 %v4620, %v5303
      %v5376 = vadd.f32 %v4621, %v5306
      %v5377 = vadd.f32 %v4622, %v5311
      %v5378 = vadd.f32 %v4623, %v5314
      %v5379 = vadd.f32 %v4624, %v5319
      %v5380 = vadd.f32 %v4625, %v5322
      %v5381 = vadd.f32 %v4626, %v5327
      %v5382 = vadd.f32 %v4627, %v5330
      %v5383 = vadd.f32 %v4628, %v5335
      %v5384 = vadd.f32 %v4629, %v5338
      %v5385 = vadd.f32 %v4630, %v5343
      %v5386 = vadd.f32 %v4631, %v5346
      %v5387 = vadd.f32 %v4632, %v5351
      %v5388 = vadd.f32 %v4633, %v5354
      %v5389 = vld [vmem:[%s4634] sm:$0xe]
      %v5390 = vld [vmem:[%s4634 + $0xc] sm:$0xe]
      %v5391 = vld [vmem:[%s4634 + $0x18] sm:$0xe]
      %v5392 = vld [vmem:[%s4634 + $0x24] sm:$0xe]
      %v5393 = vld [vmem:[%s4634 + $0x30] sm:$0xe]
      %v5394 = vld [vmem:[%s4634 + $0x3c] sm:$0xe]
      %v5395 = vld [vmem:[%s4634 + $0x48] sm:$0xe]
      %v5396 = vld [vmem:[%s4634 + $0x54] sm:$0xe]
      %v5397 = vld [vmem:[%s4634 + $0x60] sm:$0xe]
      %v5398 = vld [vmem:[%s4634 + $0x6c] sm:$0xe]
      %v5399 = vld [vmem:[%s4634 + $0x78] sm:$0xe]
      %v5400 = vld [vmem:[%s4634 + $0x84] sm:$0xe]
      %v5401 = vld [vmem:[%s4634 + $0x90] sm:$0xe]
      %v5402 = vld [vmem:[%s4634 + $0x9c] sm:$0xe]
      %v5403 = vld [vmem:[%s4634 + $0xa8] sm:$0xe]
      %v5404 = vld [vmem:[%s4634 + $0xb4] sm:$0xe]
      %v5453 = vrot.slane %v5389, 5
      %v5454 = vrot.slane %v5453, 4
      %v5455 = vrot.slane %v4636, 5
      %v5456 = vsel %vm1291, %v5454, %v5455
      %v5457 = vrot.slane %v5455, 4
      %v5458 = vrot.slane %v4637, 5
      %v5459 = vsel %vm1291, %v5457, %v5458
      %v5460 = vrot.slane %v5390, 5
      %v5461 = vrot.slane %v5460, 4
      %v5462 = vrot.slane %v4639, 5
      %v5463 = vsel %vm1291, %v5461, %v5462
      %v5464 = vrot.slane %v5462, 4
      %v5465 = vrot.slane %v4640, 5
      %v5466 = vsel %vm1291, %v5464, %v5465
      %v5467 = vrot.slane %v5391, 5
      %v5468 = vrot.slane %v5467, 4
      %v5469 = vrot.slane %v4642, 5
      %v5470 = vsel %vm1291, %v5468, %v5469
      %v5471 = vrot.slane %v5469, 4
      %v5472 = vrot.slane %v4643, 5
      %v5473 = vsel %vm1291, %v5471, %v5472
      %v5474 = vrot.slane %v5392, 5
      %v5475 = vrot.slane %v5474, 4
      %v5476 = vrot.slane %v4645, 5
      %v5477 = vsel %vm1291, %v5475, %v5476
      %v5478 = vrot.slane %v5476, 4
      %v5479 = vrot.slane %v4646, 5
      %v5480 = vsel %vm1291, %v5478, %v5479
      %v5481 = vrot.slane %v5393, 5
      %v5482 = vrot.slane %v5481, 4
      %v5483 = vrot.slane %v4648, 5
      %v5484 = vsel %vm1291, %v5482, %v5483
      %v5485 = vrot.slane %v5483, 4
      %v5486 = vrot.slane %v4649, 5
      %v5487 = vsel %vm1291, %v5485, %v5486
      %v5488 = vrot.slane %v5394, 5
      %v5489 = vrot.slane %v5488, 4
      %v5490 = vrot.slane %v4651, 5
      %v5491 = vsel %vm1291, %v5489, %v5490
      %v5492 = vrot.slane %v5490, 4
      %v5493 = vrot.slane %v4652, 5
      %v5494 = vsel %vm1291, %v5492, %v5493
      %v5495 = vrot.slane %v5395, 5
      %v5496 = vrot.slane %v5495, 4
      %v5497 = vrot.slane %v4654, 5
      %v5498 = vsel %vm1291, %v5496, %v5497
      %v5499 = vrot.slane %v5497, 4
      %v5500 = vrot.slane %v4655, 5
      %v5501 = vsel %vm1291, %v5499, %v5500
      %v5502 = vrot.slane %v5396, 5
      %v5503 = vrot.slane %v5502, 4
      %v5504 = vrot.slane %v4657, 5
      %v5505 = vsel %vm1291, %v5503, %v5504
      %v5506 = vrot.slane %v5504, 4
      %v5507 = vrot.slane %v4658, 5
      %v5508 = vsel %vm1291, %v5506, %v5507
      %v5509 = vrot.slane %v5397, 5
      %v5510 = vrot.slane %v5509, 4
      %v5511 = vrot.slane %v4660, 5
      %v5512 = vsel %vm1291, %v5510, %v5511
      %v5513 = vrot.slane %v5511, 4
      %v5514 = vrot.slane %v4661, 5
      %v5515 = vsel %vm1291, %v5513, %v5514
      %v5516 = vrot.slane %v5398, 5
      %v5517 = vrot.slane %v5516, 4
      %v5518 = vrot.slane %v4663, 5
      %v5519 = vsel %vm1291, %v5517, %v5518
      %v5520 = vrot.slane %v5518, 4
      %v5521 = vrot.slane %v4664, 5
      %v5522 = vsel %vm1291, %v5520, %v5521
      %v5523 = vrot.slane %v5399, 5
      %v5524 = vrot.slane %v5523, 4
      %v5525 = vrot.slane %v4666, 5
      %v5526 = vsel %vm1291, %v5524, %v5525
      %v5527 = vrot.slane %v5525, 4
      %v5528 = vrot.slane %v4667, 5
      %v5529 = vsel %vm1291, %v5527, %v5528
      %v5530 = vrot.slane %v5400, 5
      %v5531 = vrot.slane %v5530, 4
      %v5532 = vrot.slane %v4669, 5
      %v5533 = vsel %vm1291, %v5531, %v5532
      %v5534 = vrot.slane %v5532, 4
      %v5535 = vrot.slane %v4670, 5
      %v5536 = vsel %vm1291, %v5534, %v5535
      %v5537 = vrot.slane %v5401, 5
      %v5538 = vrot.slane %v5537, 4
      %v5539 = vrot.slane %v4672, 5
      %v5540 = vsel %vm1291, %v5538, %v5539
      %v5541 = vrot.slane %v5539, 4
      %v5542 = vrot.slane %v4673, 5
      %v5543 = vsel %vm1291, %v5541, %v5542
      %v5544 = vrot.slane %v5402, 5
      %v5545 = vrot.slane %v5544, 4
      %v5546 = vrot.slane %v4675, 5
      %v5547 = vsel %vm1291, %v5545, %v5546
      %v5548 = vrot.slane %v5546, 4
      %v5549 = vrot.slane %v4676, 5
      %v5550 = vsel %vm1291, %v5548, %v5549
      %v5551 = vrot.slane %v5403, 5
      %v5552 = vrot.slane %v5551, 4
      %v5553 = vrot.slane %v4678, 5
      %v5554 = vsel %vm1291, %v5552, %v5553
      %v5555 = vrot.slane %v5553, 4
      %v5556 = vrot.slane %v4679, 5
      %v5557 = vsel %vm1291, %v5555, %v5556
      %v5558 = vrot.slane %v5404, 5
      %v5559 = vrot.slane %v5558, 4
      %v5560 = vrot.slane %v4681, 5
      %v5561 = vsel %vm1291, %v5559, %v5560
      %v5562 = vrot.slane %v5560, 4
      %v5563 = vrot.slane %v4682, 5
      %v5564 = vsel %vm1291, %v5562, %v5563
      %s5565 = scalar_lea.vmem %s3, 448
      %v5566 = vld [vmem:[%s5565] sm:$0xf]
      %v5567 = vld [vmem:[%s5565 + $0x4] sm:$0xf]
      %v5568 = vld [vmem:[%s5565 + $0x8] sm:$0xf]
      %v5569 = vld [vmem:[%s5565 + $0xc] sm:$0xf]
      %v5570 = vld [vmem:[%s5565 + $0x10] sm:$0xf]
      %v5571 = vld [vmem:[%s5565 + $0x14] sm:$0xf]
      %v5572 = vld [vmem:[%s5565 + $0x18] sm:$0xf]
      %v5573 = vld [vmem:[%s5565 + $0x1c] sm:$0xf]
      %v5574 = vld [vmem:[%s5565 + $0x20] sm:$0xf]
      %v5575 = vld [vmem:[%s5565 + $0x24] sm:$0xf]
      %v5576 = vld [vmem:[%s5565 + $0x28] sm:$0xf]
      %v5577 = vld [vmem:[%s5565 + $0x2c] sm:$0xf]
      %v5578 = vld [vmem:[%s5565 + $0x30] sm:$0xf]
      %v5579 = vld [vmem:[%s5565 + $0x34] sm:$0xf]
      %v5580 = vld [vmem:[%s5565 + $0x38] sm:$0xf]
      %v5581 = vld [vmem:[%s5565 + $0x3c] sm:$0xf]
      %v5582 = vunpack.c.l.b16 %v5456
      %v5583 = vunpack.c.l.b16 %v5459
      %v5584 = vunpack.c.l.b16 %v5463
      %v5585 = vunpack.c.l.b16 %v5466
      %v5586 = vunpack.c.l.b16 %v5470
      %v5587 = vunpack.c.l.b16 %v5473
      %v5588 = vunpack.c.l.b16 %v5477
      %v5589 = vunpack.c.l.b16 %v5480
      %v5590 = vunpack.c.l.b16 %v5484
      %v5591 = vunpack.c.l.b16 %v5487
      %v5592 = vunpack.c.l.b16 %v5491
      %v5593 = vunpack.c.l.b16 %v5494
      %v5594 = vunpack.c.l.b16 %v5498
      %v5595 = vunpack.c.l.b16 %v5501
      %v5596 = vunpack.c.l.b16 %v5505
      %v5597 = vunpack.c.l.b16 %v5508
      %v5598 = vunpack.c.l.b16 %v5512
      %v5599 = vunpack.c.l.b16 %v5515
      %v5600 = vunpack.c.l.b16 %v5519
      %v5601 = vunpack.c.l.b16 %v5522
      %v5602 = vunpack.c.l.b16 %v5526
      %v5603 = vunpack.c.l.b16 %v5529
      %v5604 = vunpack.c.l.b16 %v5533
      %v5605 = vunpack.c.l.b16 %v5536
      %v5606 = vunpack.c.l.b16 %v5540
      %v5607 = vunpack.c.l.b16 %v5543
      %v5608 = vunpack.c.l.b16 %v5547
      %v5609 = vunpack.c.l.b16 %v5550
      %v5610 = vunpack.c.l.b16 %v5554
      %v5611 = vunpack.c.l.b16 %v5557
      %v5612 = vunpack.c.l.b16 %v5561
      %v5613 = vunpack.c.l.b16 %v5564
      %v5614 = vpack.c.b16 %v5583, %v5582
      %v5615 = vpack.c.b16 %v5585, %v5584
      %v5616 = vpack.c.b16 %v5587, %v5586
      %v5617 = vpack.c.b16 %v5589, %v5588
      %v5618 = vpack.c.b16 %v5591, %v5590
      %v5619 = vpack.c.b16 %v5593, %v5592
      %v5620 = vpack.c.b16 %v5595, %v5594
      %v5621 = vpack.c.b16 %v5597, %v5596
      %v5622 = vpack.c.b16 %v5599, %v5598
      %v5623 = vpack.c.b16 %v5601, %v5600
      %v5624 = vpack.c.b16 %v5603, %v5602
      %v5625 = vpack.c.b16 %v5605, %v5604
      %v5626 = vpack.c.b16 %v5607, %v5606
      %v5627 = vpack.c.b16 %v5609, %v5608
      %v5628 = vpack.c.b16 %v5611, %v5610
      %v5629 = vpack.c.b16 %v5613, %v5612
      %v5662 = vunpack.c.l.b16 %v5566
      %v5663 = vunpack.c.l.b16 %v5567
      %v5664 = vunpack.c.l.b16 %v5568
      %v5665 = vunpack.c.l.b16 %v5569
      %v5666 = vunpack.c.l.b16 %v5570
      %v5667 = vunpack.c.l.b16 %v5571
      %v5668 = vunpack.c.l.b16 %v5572
      %v5669 = vunpack.c.l.b16 %v5573
      %v5670 = vunpack.c.l.b16 %v5574
      %v5671 = vunpack.c.l.b16 %v5575
      %v5672 = vunpack.c.l.b16 %v5576
      %v5673 = vunpack.c.l.b16 %v5577
      %v5674 = vunpack.c.l.b16 %v5578
      %v5675 = vunpack.c.l.b16 %v5579
      %v5676 = vunpack.c.l.b16 %v5580
      %v5677 = vunpack.c.l.b16 %v5581
      %v5678 = vpack.c.b16 %v5663, %v5662
      %v5679 = vpack.c.b16 %v5665, %v5664
      %v5680 = vpack.c.b16 %v5667, %v5666
      %v5681 = vpack.c.b16 %v5669, %v5668
      %v5682 = vpack.c.b16 %v5671, %v5670
      %v5683 = vpack.c.b16 %v5673, %v5672
      %v5684 = vpack.c.b16 %v5675, %v5674
      %v5685 = vpack.c.b16 %v5677, %v5676
      %5694 = vmatprep.subr.bf16.mxu0 0
      %5695 = vmatpush1.bf16.msra.mxu0 %v5685
      %5696 = vmatprep.subr.bf16.mxu0 0
      %5697 = vmatpush1.bf16.msra.mxu0 %v5684
      %5698 = vmatprep.subr.bf16.mxu0 0
      %5699 = vmatpush1.bf16.msra.mxu0 %v5683
      %5700 = vmatprep.subr.bf16.mxu0 0
      %5701 = vmatpush1.bf16.msra.mxu0 %v5682
      %5702 = vmatprep.subr.bf16.mxu0 0
      %5703 = vmatpush1.bf16.msra.mxu0 %v5681
      %5704 = vmatprep.subr.bf16.mxu0 0
      %5705 = vmatpush1.bf16.msra.mxu0 %v5680
      %5706 = vmatprep.subr.bf16.mxu0 0
      %5707 = vmatpush1.bf16.msra.mxu0 %v5679
      %5708 = vmatprep.subr.bf16.mxu0 0
      %5709 = vmatpush1.bf16.msra.mxu0 %v5678
      %5710 = vmatprep.subr.bf16.mxu0 0
      %5711 = vmatpush2.bf16.msra.mxu0 0
      %5712 = vmatprep.subr.bf16.mxu0 0
      %5713 = vmatpush2.bf16.msra.mxu0 0
      %5714 = vmatprep.subr.bf16.mxu0 0
      %5715 = vmatpush2.bf16.msra.mxu0 0
      %5716 = vmatprep.subr.bf16.mxu0 0
      %5717 = vmatpush2.bf16.msra.mxu0 0
      %5718 = vmatprep.subr.bf16.mxu0 0
      %5719 = vmatpush2.bf16.msra.mxu0 0
      %5720 = vmatprep.subr.bf16.mxu0 0
      %5721 = vmatpush2.bf16.msra.mxu0 0
      %5722 = vmatprep.subr.bf16.mxu0 0
      %5723 = vmatpush2.bf16.msra.mxu0 0
      %5724 = vmatprep.subr.bf16.mxu0 0
      %5725 = vmatpush2.bf16.msra.mxu0 0
      %5726 = vmatprep.mubr.bf16.mxu0 0
      %5727 = vmatmul.mubr.bf16.gmra.mxu0 %v5614
      %v5728 = vpop.f32.mrf.mxu0
      %v5729 = vadd.f32 0.0, %v5728
      %v5730 = vpop.f32.mrf.mxu0
      %v5731 = vpop.f32.mrf.mxu0
      %v5732 = vadd.f32 0.0, %v5731
      %v5733 = vpop.f32.mrf.mxu0
      %5734 = vmatprep.mubr.bf16.mxu0 0
      %5735 = vmatmul.mubr.bf16.gmra.mxu0 %v5615
      %v5736 = vpop.f32.mrf.mxu0
      %v5737 = vadd.f32 0.0, %v5736
      %v5738 = vpop.f32.mrf.mxu0
      %v5739 = vpop.f32.mrf.mxu0
      %v5740 = vadd.f32 0.0, %v5739
      %v5741 = vpop.f32.mrf.mxu0
      %5742 = vmatprep.mubr.bf16.mxu0 0
      %5743 = vmatmul.mubr.bf16.gmra.mxu0 %v5616
      %v5744 = vpop.f32.mrf.mxu0
      %v5745 = vadd.f32 0.0, %v5744
      %v5746 = vpop.f32.mrf.mxu0
      %v5747 = vpop.f32.mrf.mxu0
      %v5748 = vadd.f32 0.0, %v5747
      %v5749 = vpop.f32.mrf.mxu0
      %5750 = vmatprep.mubr.bf16.mxu0 0
      %5751 = vmatmul.mubr.bf16.gmra.mxu0 %v5617
      %v5752 = vpop.f32.mrf.mxu0
      %v5753 = vadd.f32 0.0, %v5752
      %v5754 = vpop.f32.mrf.mxu0
      %v5755 = vpop.f32.mrf.mxu0
      %v5756 = vadd.f32 0.0, %v5755
      %v5757 = vpop.f32.mrf.mxu0
      %5758 = vmatprep.mubr.bf16.mxu0 0
      %5759 = vmatmul.mubr.bf16.gmra.mxu0 %v5618
      %v5760 = vpop.f32.mrf.mxu0
      %v5761 = vadd.f32 0.0, %v5760
      %v5762 = vpop.f32.mrf.mxu0
      %v5763 = vpop.f32.mrf.mxu0
      %v5764 = vadd.f32 0.0, %v5763
      %v5765 = vpop.f32.mrf.mxu0
      %5766 = vmatprep.mubr.bf16.mxu0 0
      %5767 = vmatmul.mubr.bf16.gmra.mxu0 %v5619
      %v5768 = vpop.f32.mrf.mxu0
      %v5769 = vadd.f32 0.0, %v5768
      %v5770 = vpop.f32.mrf.mxu0
      %v5771 = vpop.f32.mrf.mxu0
      %v5772 = vadd.f32 0.0, %v5771
      %v5773 = vpop.f32.mrf.mxu0
      %5774 = vmatprep.mubr.bf16.mxu0 0
      %5775 = vmatmul.mubr.bf16.gmra.mxu0 %v5620
      %v5776 = vpop.f32.mrf.mxu0
      %v5777 = vadd.f32 0.0, %v5776
      %v5778 = vpop.f32.mrf.mxu0
      %v5779 = vpop.f32.mrf.mxu0
      %v5780 = vadd.f32 0.0, %v5779
      %v5781 = vpop.f32.mrf.mxu0
      %5782 = vmatprep.mubr.bf16.mxu0 0
      %5783 = vmatmul.mubr.bf16.gmra.mxu0 %v5621
      %v5784 = vpop.f32.mrf.mxu0
      %v5785 = vadd.f32 0.0, %v5784
      %v5786 = vpop.f32.mrf.mxu0
      %v5787 = vpop.f32.mrf.mxu0
      %v5788 = vadd.f32 0.0, %v5787
      %v5789 = vpop.f32.mrf.mxu0
      %5790 = vmatprep.mubr.bf16.mxu0 0
      %5791 = vmatmul.mubr.bf16.gmra.mxu0 %v5622
      %v5792 = vpop.f32.mrf.mxu0
      %v5793 = vadd.f32 0.0, %v5792
      %v5794 = vpop.f32.mrf.mxu0
      %v5795 = vpop.f32.mrf.mxu0
      %v5796 = vadd.f32 0.0, %v5795
      %v5797 = vpop.f32.mrf.mxu0
      %5798 = vmatprep.mubr.bf16.mxu0 0
      %5799 = vmatmul.mubr.bf16.gmra.mxu0 %v5623
      %v5800 = vpop.f32.mrf.mxu0
      %v5801 = vadd.f32 0.0, %v5800
      %v5802 = vpop.f32.mrf.mxu0
      %v5803 = vpop.f32.mrf.mxu0
      %v5804 = vadd.f32 0.0, %v5803
      %v5805 = vpop.f32.mrf.mxu0
      %5806 = vmatprep.mubr.bf16.mxu0 0
      %5807 = vmatmul.mubr.bf16.gmra.mxu0 %v5624
      %v5808 = vpop.f32.mrf.mxu0
      %v5809 = vadd.f32 0.0, %v5808
      %v5810 = vpop.f32.mrf.mxu0
      %v5811 = vpop.f32.mrf.mxu0
      %v5812 = vadd.f32 0.0, %v5811
      %v5813 = vpop.f32.mrf.mxu0
      %5814 = vmatprep.mubr.bf16.mxu0 0
      %5815 = vmatmul.mubr.bf16.gmra.mxu0 %v5625
      %v5816 = vpop.f32.mrf.mxu0
      %v5817 = vadd.f32 0.0, %v5816
      %v5818 = vpop.f32.mrf.mxu0
      %v5819 = vpop.f32.mrf.mxu0
      %v5820 = vadd.f32 0.0, %v5819
      %v5821 = vpop.f32.mrf.mxu0
      %5822 = vmatprep.mubr.bf16.mxu0 0
      %5823 = vmatmul.mubr.bf16.gmra.mxu0 %v5626
      %v5824 = vpop.f32.mrf.mxu0
      %v5825 = vadd.f32 0.0, %v5824
      %v5826 = vpop.f32.mrf.mxu0
      %v5827 = vpop.f32.mrf.mxu0
      %v5828 = vadd.f32 0.0, %v5827
      %v5829 = vpop.f32.mrf.mxu0
      %5830 = vmatprep.mubr.bf16.mxu0 0
      %5831 = vmatmul.mubr.bf16.gmra.mxu0 %v5627
      %v5832 = vpop.f32.mrf.mxu0
      %v5833 = vadd.f32 0.0, %v5832
      %v5834 = vpop.f32.mrf.mxu0
      %v5835 = vpop.f32.mrf.mxu0
      %v5836 = vadd.f32 0.0, %v5835
      %v5837 = vpop.f32.mrf.mxu0
      %5838 = vmatprep.mubr.bf16.mxu0 0
      %5839 = vmatmul.mubr.bf16.gmra.mxu0 %v5628
      %v5840 = vpop.f32.mrf.mxu0
      %v5841 = vadd.f32 0.0, %v5840
      %v5842 = vpop.f32.mrf.mxu0
      %v5843 = vpop.f32.mrf.mxu0
      %v5844 = vadd.f32 0.0, %v5843
      %v5845 = vpop.f32.mrf.mxu0
      %5846 = vmatprep.mubr.bf16.mxu0 0
      %5847 = vmatmul.mubr.bf16.gmra.mxu0 %v5629
      %v5848 = vpop.f32.mrf.mxu0
      %v5849 = vadd.f32 0.0, %v5848
      %v5850 = vpop.f32.mrf.mxu0
      %v5851 = vpop.f32.mrf.mxu0
      %v5852 = vadd.f32 0.0, %v5851
      %v5853 = vpop.f32.mrf.mxu0
      %5854 = vdwg.mxu0
      %v5855 = vadd.f32 %v5357, %v5729
      %v5856 = vadd.f32 %v5358, %v5732
      %v5857 = vadd.f32 %v5359, %v5737
      %v5858 = vadd.f32 %v5360, %v5740
      %v5859 = vadd.f32 %v5361, %v5745
      %v5860 = vadd.f32 %v5362, %v5748
      %v5861 = vadd.f32 %v5363, %v5753
      %v5862 = vadd.f32 %v5364, %v5756
      %v5863 = vadd.f32 %v5365, %v5761
      %v5864 = vadd.f32 %v5366, %v5764
      %v5865 = vadd.f32 %v5367, %v5769
      %v5866 = vadd.f32 %v5368, %v5772
      %v5867 = vadd.f32 %v5369, %v5777
      %v5868 = vadd.f32 %v5370, %v5780
      %v5869 = vadd.f32 %v5371, %v5785
      %v5870 = vadd.f32 %v5372, %v5788
      %v5871 = vadd.f32 %v5373, %v5793
      %v5872 = vadd.f32 %v5374, %v5796
      %v5873 = vadd.f32 %v5375, %v5801
      %v5874 = vadd.f32 %v5376, %v5804
      %v5875 = vadd.f32 %v5377, %v5809
      %v5876 = vadd.f32 %v5378, %v5812
      %v5877 = vadd.f32 %v5379, %v5817
      %v5878 = vadd.f32 %v5380, %v5820
      %v5879 = vadd.f32 %v5381, %v5825
      %v5880 = vadd.f32 %v5382, %v5828
      %v5881 = vadd.f32 %v5383, %v5833
      %v5882 = vadd.f32 %v5384, %v5836
      %v5883 = vadd.f32 %v5385, %v5841
      %v5884 = vadd.f32 %v5386, %v5844
      %v5885 = vadd.f32 %v5387, %v5849
      %v5886 = vadd.f32 %v5388, %v5852
      %v5887 = vld [vmem:[%s4634 + $0x8] sm:$0x3]
      %v5888 = vld [vmem:[%s4634 + $0x14] sm:$0x3]
      %v5889 = vld [vmem:[%s4634 + $0x20] sm:$0x3]
      %v5890 = vld [vmem:[%s4634 + $0x2c] sm:$0x3]
      %v5891 = vld [vmem:[%s4634 + $0x38] sm:$0x3]
      %v5892 = vld [vmem:[%s4634 + $0x44] sm:$0x3]
      %v5893 = vld [vmem:[%s4634 + $0x50] sm:$0x3]
      %v5894 = vld [vmem:[%s4634 + $0x5c] sm:$0x3]
      %v5895 = vld [vmem:[%s4634 + $0x68] sm:$0x3]
      %v5896 = vld [vmem:[%s4634 + $0x74] sm:$0x3]
      %v5897 = vld [vmem:[%s4634 + $0x80] sm:$0x3]
      %v5898 = vld [vmem:[%s4634 + $0x8c] sm:$0x3]
      %v5899 = vld [vmem:[%s4634 + $0x98] sm:$0x3]
      %v5900 = vld [vmem:[%s4634 + $0xa4] sm:$0x3]
      %v5901 = vld [vmem:[%s4634 + $0xb0] sm:$0x3]
      %v5902 = vld [vmem:[%s4634 + $0xbc] sm:$0x3]
      %v5904 = vshrl.u32 %v5389, 16
      %v5906 = vrot.slane %v5904, 5
      %v5907 = vshll.u32 %v5389, 16
      %v5909 = vrot.slane %v5907, 6
      %v5910 = vor.u32 %v5906, %v5909
      %v5911 = vrot.slane %v5910, 4
      %v5912 = vrot.slane %v4697, 5
      %v5913 = vrot.slane %v4693, 6
      %v5914 = vor.u32 %v5912, %v5913
      %v5915 = vsel %vm1985, %v5911, %v5914
      %v5916 = vrot.slane %v5914, 4
      %v5918 = vshrl.u32 %v5887, 16
      %v5920 = vrot.slane %v5918, 5
      %v5921 = vshll.u32 %v5887, 16
      %v5923 = vrot.slane %v5921, 6
      %v5924 = vor.u32 %v5920, %v5923
      %v5925 = vsel %vm1985, %v5916, %v5924
      %v5927 = vshrl.u32 %v5390, 16
      %v5929 = vrot.slane %v5927, 5
      %v5930 = vshll.u32 %v5390, 16
      %v5932 = vrot.slane %v5930, 6
      %v5933 = vor.u32 %v5929, %v5932
      %v5934 = vrot.slane %v5933, 4
      %v5935 = vrot.slane %v4721, 5
      %v5936 = vrot.slane %v4717, 6
      %v5937 = vor.u32 %v5935, %v5936
      %v5938 = vsel %vm1985, %v5934, %v5937
      %v5939 = vrot.slane %v5937, 4
      %v5941 = vshrl.u32 %v5888, 16
      %v5943 = vrot.slane %v5941, 5
      %v5944 = vshll.u32 %v5888, 16
      %v5946 = vrot.slane %v5944, 6
      %v5947 = vor.u32 %v5943, %v5946
      %v5948 = vsel %vm1985, %v5939, %v5947
      %v5950 = vshrl.u32 %v5391, 16
      %v5952 = vrot.slane %v5950, 5
      %v5953 = vshll.u32 %v5391, 16
      %v5955 = vrot.slane %v5953, 6
      %v5956 = vor.u32 %v5952, %v5955
      %v5957 = vrot.slane %v5956, 4
      %v5958 = vrot.slane %v4745, 5
      %v5959 = vrot.slane %v4741, 6
      %v5960 = vor.u32 %v5958, %v5959
      %v5961 = vsel %vm1985, %v5957, %v5960
      %v5962 = vrot.slane %v5960, 4
      %v5964 = vshrl.u32 %v5889, 16
      %v5966 = vrot.slane %v5964, 5
      %v5967 = vshll.u32 %v5889, 16
      %v5969 = vrot.slane %v5967, 6
      %v5970 = vor.u32 %v5966, %v5969
      %v5971 = vsel %vm1985, %v5962, %v5970
      %v5973 = vshrl.u32 %v5392, 16
      %v5975 = vrot.slane %v5973, 5
      %v5976 = vshll.u32 %v5392, 16
      %v5978 = vrot.slane %v5976, 6
      %v5979 = vor.u32 %v5975, %v5978
      %v5980 = vrot.slane %v5979, 4
      %v5981 = vrot.slane %v4769, 5
      %v5982 = vrot.slane %v4765, 6
      %v5983 = vor.u32 %v5981, %v5982
      %v5984 = vsel %vm1985, %v5980, %v5983
      %v5985 = vrot.slane %v5983, 4
      %v5987 = vshrl.u32 %v5890, 16
      %v5989 = vrot.slane %v5987, 5
      %v5990 = vshll.u32 %v5890, 16
      %v5992 = vrot.slane %v5990, 6
      %v5993 = vor.u32 %v5989, %v5992
      %v5994 = vsel %vm1985, %v5985, %v5993
      %v5996 = vshrl.u32 %v5393, 16
      %v5998 = vrot.slane %v5996, 5
      %v5999 = vshll.u32 %v5393, 16
      %v6001 = vrot.slane %v5999, 6
      %v6002 = vor.u32 %v5998, %v6001
      %v6003 = vrot.slane %v6002, 4
      %v6004 = vrot.slane %v4793, 5
      %v6005 = vrot.slane %v4789, 6
      %v6006 = vor.u32 %v6004, %v6005
      %v6007 = vsel %vm1985, %v6003, %v6006
      %v6008 = vrot.slane %v6006, 4
      %v6010 = vshrl.u32 %v5891, 16
      %v6012 = vrot.slane %v6010, 5
      %v6013 = vshll.u32 %v5891, 16
      %v6015 = vrot.slane %v6013, 6
      %v6016 = vor.u32 %v6012, %v6015
      %v6017 = vsel %vm1985, %v6008, %v6016
      %v6019 = vshrl.u32 %v5394, 16
      %v6021 = vrot.slane %v6019, 5
      %v6022 = vshll.u32 %v5394, 16
      %v6024 = vrot.slane %v6022, 6
      %v6025 = vor.u32 %v6021, %v6024
      %v6026 = vrot.slane %v6025, 4
      %v6027 = vrot.slane %v4817, 5
      %v6028 = vrot.slane %v4813, 6
      %v6029 = vor.u32 %v6027, %v6028
      %v6030 = vsel %vm1985, %v6026, %v6029
      %v6031 = vrot.slane %v6029, 4
      %v6033 = vshrl.u32 %v5892, 16
      %v6035 = vrot.slane %v6033, 5
      %v6036 = vshll.u32 %v5892, 16
      %v6038 = vrot.slane %v6036, 6
      %v6039 = vor.u32 %v6035, %v6038
      %v6040 = vsel %vm1985, %v6031, %v6039
      %v6042 = vshrl.u32 %v5395, 16
      %v6044 = vrot.slane %v6042, 5
      %v6045 = vshll.u32 %v5395, 16
      %v6047 = vrot.slane %v6045, 6
      %v6048 = vor.u32 %v6044, %v6047
      %v6049 = vrot.slane %v6048, 4
      %v6050 = vrot.slane %v4841, 5
      %v6051 = vrot.slane %v4837, 6
      %v6052 = vor.u32 %v6050, %v6051
      %v6053 = vsel %vm1985, %v6049, %v6052
      %v6054 = vrot.slane %v6052, 4
      %v6056 = vshrl.u32 %v5893, 16
      %v6058 = vrot.slane %v6056, 5
      %v6059 = vshll.u32 %v5893, 16
      %v6061 = vrot.slane %v6059, 6
      %v6062 = vor.u32 %v6058, %v6061
      %v6063 = vsel %vm1985, %v6054, %v6062
      %v6065 = vshrl.u32 %v5396, 16
      %v6067 = vrot.slane %v6065, 5
      %v6068 = vshll.u32 %v5396, 16
      %v6070 = vrot.slane %v6068, 6
      %v6071 = vor.u32 %v6067, %v6070
      %v6072 = vrot.slane %v6071, 4
      %v6073 = vrot.slane %v4865, 5
      %v6074 = vrot.slane %v4861, 6
      %v6075 = vor.u32 %v6073, %v6074
      %v6076 = vsel %vm1985, %v6072, %v6075
      %v6077 = vrot.slane %v6075, 4
      %v6079 = vshrl.u32 %v5894, 16
      %v6081 = vrot.slane %v6079, 5
      %v6082 = vshll.u32 %v5894, 16
      %v6084 = vrot.slane %v6082, 6
      %v6085 = vor.u32 %v6081, %v6084
      %v6086 = vsel %vm1985, %v6077, %v6085
      %v6088 = vshrl.u32 %v5397, 16
      %v6090 = vrot.slane %v6088, 5
      %v6091 = vshll.u32 %v5397, 16
      %v6093 = vrot.slane %v6091, 6
      %v6094 = vor.u32 %v6090, %v6093
      %v6095 = vrot.slane %v6094, 4
      %v6096 = vrot.slane %v4889, 5
      %v6097 = vrot.slane %v4885, 6
      %v6098 = vor.u32 %v6096, %v6097
      %v6099 = vsel %vm1985, %v6095, %v6098
      %v6100 = vrot.slane %v6098, 4
      %v6102 = vshrl.u32 %v5895, 16
      %v6104 = vrot.slane %v6102, 5
      %v6105 = vshll.u32 %v5895, 16
      %v6107 = vrot.slane %v6105, 6
      %v6108 = vor.u32 %v6104, %v6107
      %v6109 = vsel %vm1985, %v6100, %v6108
      %v6111 = vshrl.u32 %v5398, 16
      %v6113 = vrot.slane %v6111, 5
      %v6114 = vshll.u32 %v5398, 16
      %v6116 = vrot.slane %v6114, 6
      %v6117 = vor.u32 %v6113, %v6116
      %v6118 = vrot.slane %v6117, 4
      %v6119 = vrot.slane %v4913, 5
      %v6120 = vrot.slane %v4909, 6
      %v6121 = vor.u32 %v6119, %v6120
      %v6122 = vsel %vm1985, %v6118, %v6121
      %v6123 = vrot.slane %v6121, 4
      %v6125 = vshrl.u32 %v5896, 16
      %v6127 = vrot.slane %v6125, 5
      %v6128 = vshll.u32 %v5896, 16
      %v6130 = vrot.slane %v6128, 6
      %v6131 = vor.u32 %v6127, %v6130
      %v6132 = vsel %vm1985, %v6123, %v6131
      %v6134 = vshrl.u32 %v5399, 16
      %v6136 = vrot.slane %v6134, 5
      %v6137 = vshll.u32 %v5399, 16
      %v6139 = vrot.slane %v6137, 6
      %v6140 = vor.u32 %v6136, %v6139
      %v6141 = vrot.slane %v6140, 4
      %v6142 = vrot.slane %v4937, 5
      %v6143 = vrot.slane %v4933, 6
      %v6144 = vor.u32 %v6142, %v6143
      %v6145 = vsel %vm1985, %v6141, %v6144
      %v6146 = vrot.slane %v6144, 4
      %v6148 = vshrl.u32 %v5897, 16
      %v6150 = vrot.slane %v6148, 5
      %v6151 = vshll.u32 %v5897, 16
      %v6153 = vrot.slane %v6151, 6
      %v6154 = vor.u32 %v6150, %v6153
      %v6155 = vsel %vm1985, %v6146, %v6154
      %v6157 = vshrl.u32 %v5400, 16
      %v6159 = vrot.slane %v6157, 5
      %v6160 = vshll.u32 %v5400, 16
      %v6162 = vrot.slane %v6160, 6
      %v6163 = vor.u32 %v6159, %v6162
      %v6164 = vrot.slane %v6163, 4
      %v6165 = vrot.slane %v4961, 5
      %v6166 = vrot.slane %v4957, 6
      %v6167 = vor.u32 %v6165, %v6166
      %v6168 = vsel %vm1985, %v6164, %v6167
      %v6169 = vrot.slane %v6167, 4
      %v6171 = vshrl.u32 %v5898, 16
      %v6173 = vrot.slane %v6171, 5
      %v6174 = vshll.u32 %v5898, 16
      %v6176 = vrot.slane %v6174, 6
      %v6177 = vor.u32 %v6173, %v6176
      %v6178 = vsel %vm1985, %v6169, %v6177
      %v6180 = vshrl.u32 %v5401, 16
      %v6182 = vrot.slane %v6180, 5
      %v6183 = vshll.u32 %v5401, 16
      %v6185 = vrot.slane %v6183, 6
      %v6186 = vor.u32 %v6182, %v6185
      %v6187 = vrot.slane %v6186, 4
      %v6188 = vrot.slane %v4985, 5
      %v6189 = vrot.slane %v4981, 6
      %v6190 = vor.u32 %v6188, %v6189
      %v6191 = vsel %vm1985, %v6187, %v6190
      %v6192 = vrot.slane %v6190, 4
      %v6194 = vshrl.u32 %v5899, 16
      %v6196 = vrot.slane %v6194, 5
      %v6197 = vshll.u32 %v5899, 16
      %v6199 = vrot.slane %v6197, 6
      %v6200 = vor.u32 %v6196, %v6199
      %v6201 = vsel %vm1985, %v6192, %v6200
      %v6203 = vshrl.u32 %v5402, 16
      %v6205 = vrot.slane %v6203, 5
      %v6206 = vshll.u32 %v5402, 16
      %v6208 = vrot.slane %v6206, 6
      %v6209 = vor.u32 %v6205, %v6208
      %v6210 = vrot.slane %v6209, 4
      %v6211 = vrot.slane %v5009, 5
      %v6212 = vrot.slane %v5005, 6
      %v6213 = vor.u32 %v6211, %v6212
      %v6214 = vsel %vm1985, %v6210, %v6213
      %v6215 = vrot.slane %v6213, 4
      %v6217 = vshrl.u32 %v5900, 16
      %v6219 = vrot.slane %v6217, 5
      %v6220 = vshll.u32 %v5900, 16
      %v6222 = vrot.slane %v6220, 6
      %v6223 = vor.u32 %v6219, %v6222
      %v6224 = vsel %vm1985, %v6215, %v6223
      %v6226 = vshrl.u32 %v5403, 16
      %v6228 = vrot.slane %v6226, 5
      %v6229 = vshll.u32 %v5403, 16
      %v6231 = vrot.slane %v6229, 6
      %v6232 = vor.u32 %v6228, %v6231
      %v6233 = vrot.slane %v6232, 4
      %v6234 = vrot.slane %v5033, 5
      %v6235 = vrot.slane %v5029, 6
      %v6236 = vor.u32 %v6234, %v6235
      %v6237 = vsel %vm1985, %v6233, %v6236
      %v6238 = vrot.slane %v6236, 4
      %v6240 = vshrl.u32 %v5901, 16
      %v6242 = vrot.slane %v6240, 5
      %v6243 = vshll.u32 %v5901, 16
      %v6245 = vrot.slane %v6243, 6
      %v6246 = vor.u32 %v6242, %v6245
      %v6247 = vsel %vm1985, %v6238, %v6246
      %v6249 = vshrl.u32 %v5404, 16
      %v6251 = vrot.slane %v6249, 5
      %v6252 = vshll.u32 %v5404, 16
      %v6254 = vrot.slane %v6252, 6
      %v6255 = vor.u32 %v6251, %v6254
      %v6256 = vrot.slane %v6255, 4
      %v6257 = vrot.slane %v5057, 5
      %v6258 = vrot.slane %v5053, 6
      %v6259 = vor.u32 %v6257, %v6258
      %v6260 = vsel %vm1985, %v6256, %v6259
      %v6261 = vrot.slane %v6259, 4
      %v6263 = vshrl.u32 %v5902, 16
      %v6265 = vrot.slane %v6263, 5
      %v6266 = vshll.u32 %v5902, 16
      %v6268 = vrot.slane %v6266, 6
      %v6269 = vor.u32 %v6265, %v6268
      %v6270 = vsel %vm1985, %v6261, %v6269
      %s6271 = scalar_lea.vmem %s3, 512
      %v6272 = vld [vmem:[%s6271] sm:$0xf]
      %v6273 = vld [vmem:[%s6271 + $0x4] sm:$0xf]
      %v6274 = vld [vmem:[%s6271 + $0x8] sm:$0xf]
      %v6275 = vld [vmem:[%s6271 + $0xc] sm:$0xf]
      %v6276 = vld [vmem:[%s6271 + $0x10] sm:$0xf]
      %v6277 = vld [vmem:[%s6271 + $0x14] sm:$0xf]
      %v6278 = vld [vmem:[%s6271 + $0x18] sm:$0xf]
      %v6279 = vld [vmem:[%s6271 + $0x1c] sm:$0xf]
      %v6280 = vld [vmem:[%s6271 + $0x20] sm:$0xf]
      %v6281 = vld [vmem:[%s6271 + $0x24] sm:$0xf]
      %v6282 = vld [vmem:[%s6271 + $0x28] sm:$0xf]
      %v6283 = vld [vmem:[%s6271 + $0x2c] sm:$0xf]
      %v6284 = vld [vmem:[%s6271 + $0x30] sm:$0xf]
      %v6285 = vld [vmem:[%s6271 + $0x34] sm:$0xf]
      %v6286 = vld [vmem:[%s6271 + $0x38] sm:$0xf]
      %v6287 = vld [vmem:[%s6271 + $0x3c] sm:$0xf]
      %v6288 = vunpack.c.l.b16 %v5915
      %v6289 = vunpack.c.l.b16 %v5925
      %v6290 = vunpack.c.l.b16 %v5938
      %v6291 = vunpack.c.l.b16 %v5948
      %v6292 = vunpack.c.l.b16 %v5961
      %v6293 = vunpack.c.l.b16 %v5971
      %v6294 = vunpack.c.l.b16 %v5984
      %v6295 = vunpack.c.l.b16 %v5994
      %v6296 = vunpack.c.l.b16 %v6007
      %v6297 = vunpack.c.l.b16 %v6017
      %v6298 = vunpack.c.l.b16 %v6030
      %v6299 = vunpack.c.l.b16 %v6040
      %v6300 = vunpack.c.l.b16 %v6053
      %v6301 = vunpack.c.l.b16 %v6063
      %v6302 = vunpack.c.l.b16 %v6076
      %v6303 = vunpack.c.l.b16 %v6086
      %v6304 = vunpack.c.l.b16 %v6099
      %v6305 = vunpack.c.l.b16 %v6109
      %v6306 = vunpack.c.l.b16 %v6122
      %v6307 = vunpack.c.l.b16 %v6132
      %v6308 = vunpack.c.l.b16 %v6145
      %v6309 = vunpack.c.l.b16 %v6155
      %v6310 = vunpack.c.l.b16 %v6168
      %v6311 = vunpack.c.l.b16 %v6178
      %v6312 = vunpack.c.l.b16 %v6191
      %v6313 = vunpack.c.l.b16 %v6201
      %v6314 = vunpack.c.l.b16 %v6214
      %v6315 = vunpack.c.l.b16 %v6224
      %v6316 = vunpack.c.l.b16 %v6237
      %v6317 = vunpack.c.l.b16 %v6247
      %v6318 = vunpack.c.l.b16 %v6260
      %v6319 = vunpack.c.l.b16 %v6270
      %v6320 = vpack.c.b16 %v6289, %v6288
      %v6321 = vpack.c.b16 %v6291, %v6290
      %v6322 = vpack.c.b16 %v6293, %v6292
      %v6323 = vpack.c.b16 %v6295, %v6294
      %v6324 = vpack.c.b16 %v6297, %v6296
      %v6325 = vpack.c.b16 %v6299, %v6298
      %v6326 = vpack.c.b16 %v6301, %v6300
      %v6327 = vpack.c.b16 %v6303, %v6302
      %v6328 = vpack.c.b16 %v6305, %v6304
      %v6329 = vpack.c.b16 %v6307, %v6306
      %v6330 = vpack.c.b16 %v6309, %v6308
      %v6331 = vpack.c.b16 %v6311, %v6310
      %v6332 = vpack.c.b16 %v6313, %v6312
      %v6333 = vpack.c.b16 %v6315, %v6314
      %v6334 = vpack.c.b16 %v6317, %v6316
      %v6335 = vpack.c.b16 %v6319, %v6318
      %v6368 = vunpack.c.l.b16 %v6272
      %v6369 = vunpack.c.l.b16 %v6273
      %v6370 = vunpack.c.l.b16 %v6274
      %v6371 = vunpack.c.l.b16 %v6275
      %v6372 = vunpack.c.l.b16 %v6276
      %v6373 = vunpack.c.l.b16 %v6277
      %v6374 = vunpack.c.l.b16 %v6278
      %v6375 = vunpack.c.l.b16 %v6279
      %v6376 = vunpack.c.l.b16 %v6280
      %v6377 = vunpack.c.l.b16 %v6281
      %v6378 = vunpack.c.l.b16 %v6282
      %v6379 = vunpack.c.l.b16 %v6283
      %v6380 = vunpack.c.l.b16 %v6284
      %v6381 = vunpack.c.l.b16 %v6285
      %v6382 = vunpack.c.l.b16 %v6286
      %v6383 = vunpack.c.l.b16 %v6287
      %v6384 = vpack.c.b16 %v6369, %v6368
      %v6385 = vpack.c.b16 %v6371, %v6370
      %v6386 = vpack.c.b16 %v6373, %v6372
      %v6387 = vpack.c.b16 %v6375, %v6374
      %v6388 = vpack.c.b16 %v6377, %v6376
      %v6389 = vpack.c.b16 %v6379, %v6378
      %v6390 = vpack.c.b16 %v6381, %v6380
      %v6391 = vpack.c.b16 %v6383, %v6382
      %6400 = vmatprep.subr.bf16.mxu0 0
      %6401 = vmatpush1.bf16.msra.mxu0 %v6391
      %6402 = vmatprep.subr.bf16.mxu0 0
      %6403 = vmatpush1.bf16.msra.mxu0 %v6390
      %6404 = vmatprep.subr.bf16.mxu0 0
      %6405 = vmatpush1.bf16.msra.mxu0 %v6389
      %6406 = vmatprep.subr.bf16.mxu0 0
      %6407 = vmatpush1.bf16.msra.mxu0 %v6388
      %6408 = vmatprep.subr.bf16.mxu0 0
      %6409 = vmatpush1.bf16.msra.mxu0 %v6387
      %6410 = vmatprep.subr.bf16.mxu0 0
      %6411 = vmatpush1.bf16.msra.mxu0 %v6386
      %6412 = vmatprep.subr.bf16.mxu0 0
      %6413 = vmatpush1.bf16.msra.mxu0 %v6385
      %6414 = vmatprep.subr.bf16.mxu0 0
      %6415 = vmatpush1.bf16.msra.mxu0 %v6384
      %6416 = vmatprep.subr.bf16.mxu0 0
      %6417 = vmatpush2.bf16.msra.mxu0 0
      %6418 = vmatprep.subr.bf16.mxu0 0
      %6419 = vmatpush2.bf16.msra.mxu0 0
      %6420 = vmatprep.subr.bf16.mxu0 0
      %6421 = vmatpush2.bf16.msra.mxu0 0
      %6422 = vmatprep.subr.bf16.mxu0 0
      %6423 = vmatpush2.bf16.msra.mxu0 0
      %6424 = vmatprep.subr.bf16.mxu0 0
      %6425 = vmatpush2.bf16.msra.mxu0 0
      %6426 = vmatprep.subr.bf16.mxu0 0
      %6427 = vmatpush2.bf16.msra.mxu0 0
      %6428 = vmatprep.subr.bf16.mxu0 0
      %6429 = vmatpush2.bf16.msra.mxu0 0
      %6430 = vmatprep.subr.bf16.mxu0 0
      %6431 = vmatpush2.bf16.msra.mxu0 0
      %6432 = vmatprep.mubr.bf16.mxu0 0
      %6433 = vmatmul.mubr.bf16.gmra.mxu0 %v6320
      %v6434 = vpop.f32.mrf.mxu0
      %v6435 = vadd.f32 0.0, %v6434
      %v6436 = vpop.f32.mrf.mxu0
      %v6437 = vpop.f32.mrf.mxu0
      %v6438 = vadd.f32 0.0, %v6437
      %v6439 = vpop.f32.mrf.mxu0
      %6440 = vmatprep.mubr.bf16.mxu0 0
      %6441 = vmatmul.mubr.bf16.gmra.mxu0 %v6321
      %v6442 = vpop.f32.mrf.mxu0
      %v6443 = vadd.f32 0.0, %v6442
      %v6444 = vpop.f32.mrf.mxu0
      %v6445 = vpop.f32.mrf.mxu0
      %v6446 = vadd.f32 0.0, %v6445
      %v6447 = vpop.f32.mrf.mxu0
      %6448 = vmatprep.mubr.bf16.mxu0 0
      %6449 = vmatmul.mubr.bf16.gmra.mxu0 %v6322
      %v6450 = vpop.f32.mrf.mxu0
      %v6451 = vadd.f32 0.0, %v6450
      %v6452 = vpop.f32.mrf.mxu0
      %v6453 = vpop.f32.mrf.mxu0
      %v6454 = vadd.f32 0.0, %v6453
      %v6455 = vpop.f32.mrf.mxu0
      %6456 = vmatprep.mubr.bf16.mxu0 0
      %6457 = vmatmul.mubr.bf16.gmra.mxu0 %v6323
      %v6458 = vpop.f32.mrf.mxu0
      %v6459 = vadd.f32 0.0, %v6458
      %v6460 = vpop.f32.mrf.mxu0
      %v6461 = vpop.f32.mrf.mxu0
      %v6462 = vadd.f32 0.0, %v6461
      %v6463 = vpop.f32.mrf.mxu0
      %6464 = vmatprep.mubr.bf16.mxu0 0
      %6465 = vmatmul.mubr.bf16.gmra.mxu0 %v6324
      %v6466 = vpop.f32.mrf.mxu0
      %v6467 = vadd.f32 0.0, %v6466
      %v6468 = vpop.f32.mrf.mxu0
      %v6469 = vpop.f32.mrf.mxu0
      %v6470 = vadd.f32 0.0, %v6469
      %v6471 = vpop.f32.mrf.mxu0
      %6472 = vmatprep.mubr.bf16.mxu0 0
      %6473 = vmatmul.mubr.bf16.gmra.mxu0 %v6325
      %v6474 = vpop.f32.mrf.mxu0
      %v6475 = vadd.f32 0.0, %v6474
      %v6476 = vpop.f32.mrf.mxu0
      %v6477 = vpop.f32.mrf.mxu0
      %v6478 = vadd.f32 0.0, %v6477
      %v6479 = vpop.f32.mrf.mxu0
      %6480 = vmatprep.mubr.bf16.mxu0 0
      %6481 = vmatmul.mubr.bf16.gmra.mxu0 %v6326
      %v6482 = vpop.f32.mrf.mxu0
      %v6483 = vadd.f32 0.0, %v6482
      %v6484 = vpop.f32.mrf.mxu0
      %v6485 = vpop.f32.mrf.mxu0
      %v6486 = vadd.f32 0.0, %v6485
      %v6487 = vpop.f32.mrf.mxu0
      %6488 = vmatprep.mubr.bf16.mxu0 0
      %6489 = vmatmul.mubr.bf16.gmra.mxu0 %v6327
      %v6490 = vpop.f32.mrf.mxu0
      %v6491 = vadd.f32 0.0, %v6490
      %v6492 = vpop.f32.mrf.mxu0
      %v6493 = vpop.f32.mrf.mxu0
      %v6494 = vadd.f32 0.0, %v6493
      %v6495 = vpop.f32.mrf.mxu0
      %6496 = vmatprep.mubr.bf16.mxu0 0
      %6497 = vmatmul.mubr.bf16.gmra.mxu0 %v6328
      %v6498 = vpop.f32.mrf.mxu0
      %v6499 = vadd.f32 0.0, %v6498
      %v6500 = vpop.f32.mrf.mxu0
      %v6501 = vpop.f32.mrf.mxu0
      %v6502 = vadd.f32 0.0, %v6501
      %v6503 = vpop.f32.mrf.mxu0
      %6504 = vmatprep.mubr.bf16.mxu0 0
      %6505 = vmatmul.mubr.bf16.gmra.mxu0 %v6329
      %v6506 = vpop.f32.mrf.mxu0
      %v6507 = vadd.f32 0.0, %v6506
      %v6508 = vpop.f32.mrf.mxu0
      %v6509 = vpop.f32.mrf.mxu0
      %v6510 = vadd.f32 0.0, %v6509
      %v6511 = vpop.f32.mrf.mxu0
      %6512 = vmatprep.mubr.bf16.mxu0 0
      %6513 = vmatmul.mubr.bf16.gmra.mxu0 %v6330
      %v6514 = vpop.f32.mrf.mxu0
      %v6515 = vadd.f32 0.0, %v6514
      %v6516 = vpop.f32.mrf.mxu0
      %v6517 = vpop.f32.mrf.mxu0
      %v6518 = vadd.f32 0.0, %v6517
      %v6519 = vpop.f32.mrf.mxu0
      %6520 = vmatprep.mubr.bf16.mxu0 0
      %6521 = vmatmul.mubr.bf16.gmra.mxu0 %v6331
      %v6522 = vpop.f32.mrf.mxu0
      %v6523 = vadd.f32 0.0, %v6522
      %v6524 = vpop.f32.mrf.mxu0
      %v6525 = vpop.f32.mrf.mxu0
      %v6526 = vadd.f32 0.0, %v6525
      %v6527 = vpop.f32.mrf.mxu0
      %6528 = vmatprep.mubr.bf16.mxu0 0
      %6529 = vmatmul.mubr.bf16.gmra.mxu0 %v6332
      %v6530 = vpop.f32.mrf.mxu0
      %v6531 = vadd.f32 0.0, %v6530
      %v6532 = vpop.f32.mrf.mxu0
      %v6533 = vpop.f32.mrf.mxu0
      %v6534 = vadd.f32 0.0, %v6533
      %v6535 = vpop.f32.mrf.mxu0
      %6536 = vmatprep.mubr.bf16.mxu0 0
      %6537 = vmatmul.mubr.bf16.gmra.mxu0 %v6333
      %v6538 = vpop.f32.mrf.mxu0
      %v6539 = vadd.f32 0.0, %v6538
      %v6540 = vpop.f32.mrf.mxu0
      %v6541 = vpop.f32.mrf.mxu0
      %v6542 = vadd.f32 0.0, %v6541
      %v6543 = vpop.f32.mrf.mxu0
      %6544 = vmatprep.mubr.bf16.mxu0 0
      %6545 = vmatmul.mubr.bf16.gmra.mxu0 %v6334
      %v6546 = vpop.f32.mrf.mxu0
      %v6547 = vadd.f32 0.0, %v6546
      %v6548 = vpop.f32.mrf.mxu0
      %v6549 = vpop.f32.mrf.mxu0
      %v6550 = vadd.f32 0.0, %v6549
      %v6551 = vpop.f32.mrf.mxu0
      %6552 = vmatprep.mubr.bf16.mxu0 0
      %6553 = vmatmul.mubr.bf16.gmra.mxu0 %v6335
      %v6554 = vpop.f32.mrf.mxu0
      %v6555 = vadd.f32 0.0, %v6554
      %v6556 = vpop.f32.mrf.mxu0
      %v6557 = vpop.f32.mrf.mxu0
      %v6558 = vadd.f32 0.0, %v6557
      %v6559 = vpop.f32.mrf.mxu0
      %6560 = vdwg.mxu0
      %v6561 = vadd.f32 %v5855, %v6435
      %v6562 = vadd.f32 %v5856, %v6438
      %v6563 = vadd.f32 %v5857, %v6443
      %v6564 = vadd.f32 %v5858, %v6446
      %v6565 = vadd.f32 %v5859, %v6451
      %v6566 = vadd.f32 %v5860, %v6454
      %v6567 = vadd.f32 %v5861, %v6459
      %v6568 = vadd.f32 %v5862, %v6462
      %v6569 = vadd.f32 %v5863, %v6467
      %v6570 = vadd.f32 %v5864, %v6470
      %v6571 = vadd.f32 %v5865, %v6475
      %v6572 = vadd.f32 %v5866, %v6478
      %v6573 = vadd.f32 %v5867, %v6483
      %v6574 = vadd.f32 %v5868, %v6486
      %v6575 = vadd.f32 %v5869, %v6491
      %v6576 = vadd.f32 %v5870, %v6494
      %v6577 = vadd.f32 %v5871, %v6499
      %v6578 = vadd.f32 %v5872, %v6502
      %v6579 = vadd.f32 %v5873, %v6507
      %v6580 = vadd.f32 %v5874, %v6510
      %v6581 = vadd.f32 %v5875, %v6515
      %v6582 = vadd.f32 %v5876, %v6518
      %v6583 = vadd.f32 %v5877, %v6523
      %v6584 = vadd.f32 %v5878, %v6526
      %v6585 = vadd.f32 %v5879, %v6531
      %v6586 = vadd.f32 %v5880, %v6534
      %v6587 = vadd.f32 %v5881, %v6539
      %v6588 = vadd.f32 %v5882, %v6542
      %v6589 = vadd.f32 %v5883, %v6547
      %v6590 = vadd.f32 %v5884, %v6550
      %v6591 = vadd.f32 %v5885, %v6555
      %v6592 = vadd.f32 %v5886, %v6558
      %v6593 = vpack.c.bf16 %v6562, %v6561
      %v6594 = vpack.c.bf16 %v6564, %v6563
      %v6595 = vpack.c.bf16 %v6566, %v6565
      %v6596 = vpack.c.bf16 %v6568, %v6567
      %v6597 = vpack.c.bf16 %v6570, %v6569
      %v6598 = vpack.c.bf16 %v6572, %v6571
      %v6599 = vpack.c.bf16 %v6574, %v6573
      %v6600 = vpack.c.bf16 %v6576, %v6575
      %v6601 = vpack.c.bf16 %v6578, %v6577
      %v6602 = vpack.c.bf16 %v6580, %v6579
      %v6603 = vpack.c.bf16 %v6582, %v6581
      %v6604 = vpack.c.bf16 %v6584, %v6583
      %v6605 = vpack.c.bf16 %v6586, %v6585
      %v6606 = vpack.c.bf16 %v6588, %v6587
      %v6607 = vpack.c.bf16 %v6590, %v6589
      %v6608 = vpack.c.bf16 %v6592, %v6591
      %v6625 = vunpack.c.l.b16 %v6593
      %v6626 = vunpack.c.h.b16 %v6593
      %v6627 = vunpack.c.l.b16 %v6594
      %v6628 = vunpack.c.h.b16 %v6594
      %v6629 = vunpack.c.l.b16 %v6595
      %v6630 = vunpack.c.h.b16 %v6595
      %v6631 = vunpack.c.l.b16 %v6596
      %v6632 = vunpack.c.h.b16 %v6596
      %v6633 = vunpack.c.l.b16 %v6597
      %v6634 = vunpack.c.h.b16 %v6597
      %v6635 = vunpack.c.l.b16 %v6598
      %v6636 = vunpack.c.h.b16 %v6598
      %v6637 = vunpack.c.l.b16 %v6599
      %v6638 = vunpack.c.h.b16 %v6599
      %v6639 = vunpack.c.l.b16 %v6600
      %v6640 = vunpack.c.h.b16 %v6600
      %v6641 = vunpack.c.l.b16 %v6601
      %v6642 = vunpack.c.h.b16 %v6601
      %v6643 = vunpack.c.l.b16 %v6602
      %v6644 = vunpack.c.h.b16 %v6602
      %v6645 = vunpack.c.l.b16 %v6603
      %v6646 = vunpack.c.h.b16 %v6603
      %v6647 = vunpack.c.l.b16 %v6604
      %v6648 = vunpack.c.h.b16 %v6604
      %v6649 = vunpack.c.l.b16 %v6605
      %v6650 = vunpack.c.h.b16 %v6605
      %v6651 = vunpack.c.l.b16 %v6606
      %v6652 = vunpack.c.h.b16 %v6606
      %v6653 = vunpack.c.l.b16 %v6607
      %v6654 = vunpack.c.h.b16 %v6607
      %v6655 = vunpack.c.l.b16 %v6608
      %v6656 = vunpack.c.h.b16 %v6608
      %v6657 = vpack.c.b16 %v6625, %v6625
      %v6658 = vpack.c.b16 %v6626, %v6626
      %v6659 = vpack.c.b16 %v6627, %v6627
      %v6660 = vpack.c.b16 %v6628, %v6628
      %v6661 = vpack.c.b16 %v6629, %v6629
      %v6662 = vpack.c.b16 %v6630, %v6630
      %v6663 = vpack.c.b16 %v6631, %v6631
      %v6664 = vpack.c.b16 %v6632, %v6632
      %v6665 = vpack.c.b16 %v6633, %v6633
      %v6666 = vpack.c.b16 %v6634, %v6634
      %v6667 = vpack.c.b16 %v6635, %v6635
      %v6668 = vpack.c.b16 %v6636, %v6636
      %v6669 = vpack.c.b16 %v6637, %v6637
      %v6670 = vpack.c.b16 %v6638, %v6638
      %v6671 = vpack.c.b16 %v6639, %v6639
      %v6672 = vpack.c.b16 %v6640, %v6640
      %v6673 = vpack.c.b16 %v6641, %v6641
      %v6674 = vpack.c.b16 %v6642, %v6642
      %v6675 = vpack.c.b16 %v6643, %v6643
      %v6676 = vpack.c.b16 %v6644, %v6644
      %v6677 = vpack.c.b16 %v6645, %v6645
      %v6678 = vpack.c.b16 %v6646, %v6646
      %v6679 = vpack.c.b16 %v6647, %v6647
      %v6680 = vpack.c.b16 %v6648, %v6648
      %v6681 = vpack.c.b16 %v6649, %v6649
      %v6682 = vpack.c.b16 %v6650, %v6650
      %v6683 = vpack.c.b16 %v6651, %v6651
      %v6684 = vpack.c.b16 %v6652, %v6652
      %v6685 = vpack.c.b16 %v6653, %v6653
      %v6686 = vpack.c.b16 %v6654, %v6654
      %v6687 = vpack.c.b16 %v6655, %v6655
      %v6688 = vpack.c.b16 %v6656, %v6656
      %6721 = vst [vmem:[%s262] sm:$0xf] %v6657
      %6722 = vst [vmem:[%s262 + $0x4] sm:$0xf] %v6658
      %6723 = vst [vmem:[%s262 + $0x8] sm:$0xf] %v6659
      %6724 = vst [vmem:[%s262 + $0xc] sm:$0xf] %v6660
      %6725 = vst [vmem:[%s262 + $0x10] sm:$0xf] %v6661
      %6726 = vst [vmem:[%s262 + $0x14] sm:$0xf] %v6662
      %6727 = vst [vmem:[%s262 + $0x18] sm:$0xf] %v6663
      %6728 = vst [vmem:[%s262 + $0x1c] sm:$0xf] %v6664
      %6729 = vst [vmem:[%s262 + $0x20] sm:$0xf] %v6665
      %6730 = vst [vmem:[%s262 + $0x24] sm:$0xf] %v6666
      %6731 = vst [vmem:[%s262 + $0x28] sm:$0xf] %v6667
      %6732 = vst [vmem:[%s262 + $0x2c] sm:$0xf] %v6668
      %6733 = vst [vmem:[%s262 + $0x30] sm:$0xf] %v6669
      %6734 = vst [vmem:[%s262 + $0x34] sm:$0xf] %v6670
      %6735 = vst [vmem:[%s262 + $0x38] sm:$0xf] %v6671
      %6736 = vst [vmem:[%s262 + $0x3c] sm:$0xf] %v6672
      %6737 = vst [vmem:[%s262 + $0x40] sm:$0xf] %v6673
      %6738 = vst [vmem:[%s262 + $0x44] sm:$0xf] %v6674
      %6739 = vst [vmem:[%s262 + $0x48] sm:$0xf] %v6675
      %6740 = vst [vmem:[%s262 + $0x4c] sm:$0xf] %v6676
      %6741 = vst [vmem:[%s262 + $0x50] sm:$0xf] %v6677
      %6742 = vst [vmem:[%s262 + $0x54] sm:$0xf] %v6678
      %6743 = vst [vmem:[%s262 + $0x58] sm:$0xf] %v6679
      %6744 = vst [vmem:[%s262 + $0x5c] sm:$0xf] %v6680
      %6745 = vst [vmem:[%s262 + $0x60] sm:$0xf] %v6681
      %6746 = vst [vmem:[%s262 + $0x64] sm:$0xf] %v6682
      %6747 = vst [vmem:[%s262 + $0x68] sm:$0xf] %v6683
      %6748 = vst [vmem:[%s262 + $0x6c] sm:$0xf] %v6684
      %6749 = vst [vmem:[%s262 + $0x70] sm:$0xf] %v6685
      %6750 = vst [vmem:[%s262 + $0x74] sm:$0xf] %v6686
      %6751 = vst [vmem:[%s262 + $0x78] sm:$0xf] %v6687
      %6752 = vst [vmem:[%s262 + $0x7c] sm:$0xf] %v6688
      %v6753 = vadd.f32 %v6561, %v6562
      %v6754 = vadd.f32 %v6753, %v6563
      %v6755 = vadd.f32 %v6754, %v6564
      %v6756 = vadd.f32 %v6755, %v6565
      %v6757 = vadd.f32 %v6756, %v6566
      %v6758 = vadd.f32 %v6757, %v6567
      %v6759 = vadd.f32 %v6758, %v6568
      %v6760 = vadd.f32 %v6759, %v6569
      %v6761 = vadd.f32 %v6760, %v6570
      %v6762 = vadd.f32 %v6761, %v6571
      %v6763 = vadd.f32 %v6762, %v6572
      %v6764 = vadd.f32 %v6763, %v6573
      %v6765 = vadd.f32 %v6764, %v6574
      %v6766 = vadd.f32 %v6765, %v6575
      %v6767 = vadd.f32 %v6766, %v6576
      %v6768 = vadd.f32 %v6767, %v6577
      %v6769 = vadd.f32 %v6768, %v6578
      %v6770 = vadd.f32 %v6769, %v6579
      %v6771 = vadd.f32 %v6770, %v6580
      %v6772 = vadd.f32 %v6771, %v6581
      %v6773 = vadd.f32 %v6772, %v6582
      %v6774 = vadd.f32 %v6773, %v6583
      %v6775 = vadd.f32 %v6774, %v6584
      %v6776 = vadd.f32 %v6775, %v6585
      %v6777 = vadd.f32 %v6776, %v6586
      %v6778 = vadd.f32 %v6777, %v6587
      %v6779 = vadd.f32 %v6778, %v6588
      %v6780 = vadd.f32 %v6779, %v6589
      %v6781 = vadd.f32 %v6780, %v6590
      %v6782 = vadd.f32 %v6781, %v6591
      %v6783 = vadd.f32 %v6782, %v6592
      %v6784 = vrot.slane %v6783, 4
      %v6785 = vadd.f32 %v6783, %v6784
      %v6786 = vrot.slane %v6785, 2
      %v6787 = vadd.f32 %v6785, %v6786
      %v6788 = vrot.slane %v6787, 1
      %v6789 = vadd.f32 %v6787, %v6788
      %6790 = vst [vmem:[%s265] sm:$0x1] %v6789
      %v6791 = vmul.f32 %v6561, %v6561
      %v6792 = vmul.f32 %v6562, %v6562
      %v6793 = vmul.f32 %v6563, %v6563
      %v6794 = vmul.f32 %v6564, %v6564
      %v6795 = vmul.f32 %v6565, %v6565
      %v6796 = vmul.f32 %v6566, %v6566
      %v6797 = vmul.f32 %v6567, %v6567
      %v6798 = vmul.f32 %v6568, %v6568
      %v6799 = vmul.f32 %v6569, %v6569
      %v6800 = vmul.f32 %v6570, %v6570
      %v6801 = vmul.f32 %v6571, %v6571
      %v6802 = vmul.f32 %v6572, %v6572
      %v6803 = vmul.f32 %v6573, %v6573
      %v6804 = vmul.f32 %v6574, %v6574
      %v6805 = vmul.f32 %v6575, %v6575
      %v6806 = vmul.f32 %v6576, %v6576
      %v6807 = vmul.f32 %v6577, %v6577
      %v6808 = vmul.f32 %v6578, %v6578
      %v6809 = vmul.f32 %v6579, %v6579
      %v6810 = vmul.f32 %v6580, %v6580
      %v6811 = vmul.f32 %v6581, %v6581
      %v6812 = vmul.f32 %v6582, %v6582
      %v6813 = vmul.f32 %v6583, %v6583
      %v6814 = vmul.f32 %v6584, %v6584
      %v6815 = vmul.f32 %v6585, %v6585
      %v6816 = vmul.f32 %v6586, %v6586
      %v6817 = vmul.f32 %v6587, %v6587
      %v6818 = vmul.f32 %v6588, %v6588
      %v6819 = vmul.f32 %v6589, %v6589
      %v6820 = vmul.f32 %v6590, %v6590
      %v6821 = vmul.f32 %v6591, %v6591
      %v6822 = vmul.f32 %v6592, %v6592
      %v6823 = vadd.f32 %v6791, %v6792
      %v6824 = vadd.f32 %v6823, %v6793
      %v6825 = vadd.f32 %v6824, %v6794
      %v6826 = vadd.f32 %v6825, %v6795
      %v6827 = vadd.f32 %v6826, %v6796
      %v6828 = vadd.f32 %v6827, %v6797
      %v6829 = vadd.f32 %v6828, %v6798
      %v6830 = vadd.f32 %v6829, %v6799
      %v6831 = vadd.f32 %v6830, %v6800
      %v6832 = vadd.f32 %v6831, %v6801
      %v6833 = vadd.f32 %v6832, %v6802
      %v6834 = vadd.f32 %v6833, %v6803
      %v6835 = vadd.f32 %v6834, %v6804
      %v6836 = vadd.f32 %v6835, %v6805
      %v6837 = vadd.f32 %v6836, %v6806
      %v6838 = vadd.f32 %v6837, %v6807
      %v6839 = vadd.f32 %v6838, %v6808
      %v6840 = vadd.f32 %v6839, %v6809
      %v6841 = vadd.f32 %v6840, %v6810
      %v6842 = vadd.f32 %v6841, %v6811
      %v6843 = vadd.f32 %v6842, %v6812
      %v6844 = vadd.f32 %v6843, %v6813
      %v6845 = vadd.f32 %v6844, %v6814
      %v6846 = vadd.f32 %v6845, %v6815
      %v6847 = vadd.f32 %v6846, %v6816
      %v6848 = vadd.f32 %v6847, %v6817
      %v6849 = vadd.f32 %v6848, %v6818
      %v6850 = vadd.f32 %v6849, %v6819
      %v6851 = vadd.f32 %v6850, %v6820
      %v6852 = vadd.f32 %v6851, %v6821
      %v6853 = vadd.f32 %v6852, %v6822
      %v6854 = vrot.slane %v6853, 4
      %v6855 = vadd.f32 %v6853, %v6854
      %v6856 = vrot.slane %v6855, 2
      %v6857 = vadd.f32 %v6855, %v6856
      %v6858 = vrot.slane %v6857, 1
      %v6859 = vadd.f32 %v6857, %v6858
      %6860 = vst [vmem:[%s268] sm:$0x1] %v6859
      %p6861 = scmp.lt.s32.totalorder %s18, 1
      %s6862 = scalar_select %p6861, %s18, 1
      %s6863 = smul.addr %s6862, 32
      %s6864 = smul.addr %s6863, 4
      %s6865 = scalar_lea.vmem %s4, %s6864
      %p6866 = scmp.lt.s32.totalorder %s18, 1
      %s6867 = scalar_select %p6866, %s18, 1
      %s6868 = scalar_lea.vmem %s5, %s6867
      %p6869 = scmp.lt.s32.totalorder %s18, 1
      %s6870 = scalar_select %p6869, %s18, 1
      %s6871 = scalar_lea.vmem %s6, %s6870
      // Predicated region
      $region37: #{bottleneck_forward.5} parent=35 // pred_check
        %p6872 = pneg %p125
      $region38: #{bottleneck_forward.5} parent=35 // pred_check_branch
        %6874 = sbr.rel (%p6872) target = $region40
      $region39: #{bottleneck_forward.5} parent=35 // pred_region
        _
      $region40: #{bottleneck_forward.5} parent=35 // pred_fallthru
        _
      // Predicated region
      $region41: #{bottleneck_forward.5} parent=35 // pred_check
        %p6875 = pneg %p151
      $region42: #{bottleneck_forward.5} parent=35 // pred_check_branch
        %6877 = sbr.rel (%p6875) target = $region44
      $region43: #{bottleneck_forward.5} parent=35 // pred_region
        _
      $region44: #{bottleneck_forward.5} parent=35 // pred_fallthru
        _
      // Predicated region
      $region45: #{bottleneck_forward.5} parent=35 // pred_check
        %p6878 = pneg %p177
      $region46: #{bottleneck_forward.5} parent=35 // pred_check_branch
        %6880 = sbr.rel (%p6878) target = $region48
      $region47: #{bottleneck_forward.5} parent=35 // pred_region
        _
      $region48: #{bottleneck_forward.5} parent=35 // pred_fallthru
        _
    $region36: #{bottleneck_forward.5} parent=5 // pred_fallthru
      _
    %p6881 = scmp.le.s32.totalorder 2, %s13
    // Predicated region
    $region49: #{bottleneck_forward.5} parent=5 // pred_check
      %p6882 = pneg %p6881
    $region50: #{bottleneck_forward.5} parent=5 // pred_check_branch
      %6884 = sbr.rel (%p6882) target = $region52
    $region51: #{bottleneck_forward.5} parent=5 // pred_region
      %s6885 = ssub.s32 %s13, 2
      // Predicated region
      $region53: #{bottleneck_forward.5} parent=51 // pred_check
        %p6886 = pneg %p131
      $region54: #{bottleneck_forward.5} parent=51 // pred_check_branch
        %6888 = sbr.rel (%p6886) target = $region56
      $region55: #{bottleneck_forward.5} parent=51 // pred_region
        %p6889 = scmp.lt.s32.totalorder %s19, 1
        %s6890 = scalar_select %p6889, %s19, 1
        %s6891 = smul.addr %s6890, 32
        %s6892 = smul.addr %s6891, 4
        %s6893 = scalar_lea.vmem %s4, %s6892
      $region56: #{bottleneck_forward.5} parent=51 // pred_fallthru
        _
      // Predicated region
      $region57: #{bottleneck_forward.5} parent=51 // pred_check
        %p6894 = pneg %p157
      $region58: #{bottleneck_forward.5} parent=51 // pred_check_branch
        %6896 = sbr.rel (%p6894) target = $region60
      $region59: #{bottleneck_forward.5} parent=51 // pred_region
        %p6897 = scmp.lt.s32.totalorder %s19, 1
        %s6898 = scalar_select %p6897, %s19, 1
        %s6899 = scalar_lea.vmem %s5, %s6898
      $region60: #{bottleneck_forward.5} parent=51 // pred_fallthru
        _
      // Predicated region
      $region61: #{bottleneck_forward.5} parent=51 // pred_check
        %p6900 = pneg %p183
      $region62: #{bottleneck_forward.5} parent=51 // pred_check_branch
        %6902 = sbr.rel (%p6900) target = $region64
      $region63: #{bottleneck_forward.5} parent=51 // pred_region
        %p6903 = scmp.lt.s32.totalorder %s19, 1
        %s6904 = scalar_select %p6903, %s19, 1
        %s6905 = scalar_lea.vmem %s6, %s6904
      $region64: #{bottleneck_forward.5} parent=51 // pred_fallthru
        _
    $region52: #{bottleneck_forward.5} parent=5 // pred_fallthru
      _
  $region6: #{bottleneck_forward.5} parent=0 // loop_footer
    %s17 = sadd.s32 1, %s13
  $region7: #{bottleneck_forward.5} parent=0 // loop_footer_branch
    %12 = sbr.rel target = $region3
  $region8: #{bottleneck_forward.5} parent=0 // loop_exit
    _

</llo_original>
